<compile_context>
chip_gen: v5e
topology: v5e:2x2
jax: 0.10.0
libtpu: 0.0.40
codegen_flags: <defaults>
</compile_context>

<pallas_src>
import functools

import jax
import jax.numpy as jnp
from jax.experimental import pallas as pl
from jax.experimental.pallas import tpu as pltpu


# ----------------------------- Pallas kernels -----------------------------

def _conv_mm_kernel(p_ref, w_ref, b_ref, o_ref):
    # im2col-conv as fused matmul + bias + ReLU (MXU + VPU epilogue)
    y = jnp.dot(p_ref[...], w_ref[...], preferred_element_type=jnp.float32)
    y = jnp.maximum(y + b_ref[...], 0.0)
    o_ref[...] = y.astype(o_ref.dtype)


def _fc_fused_kernel(x_ref, w1_ref, b1_ref, w2_ref, b2_ref, wh_ref, bh_ref,
                     o_ref, acc_ref):
    """Whole FC stack in one kernel.

    Grid axis j tiles fc1's output (1024) in n_block columns.  Per step:
        h1_blk = relu(x @ w1[:, blk] + b1[blk])          # (M, n_block)
        acc   += h1_blk @ w2[blk, :]                     # partial fc2 contraction
    Last step epilogue:
        h2  = relu(acc + b2)
        out = h2 @ [mean_w | lv_w] + [mean_b | lv_b]
    """
    j = pl.program_id(0)

    @pl.when(j == 0)
    def _():
        acc_ref[...] = jnp.zeros_like(acc_ref)

    h1 = jnp.dot(x_ref[...], w1_ref[...], preferred_element_type=jnp.float32)
    h1 = jnp.maximum(h1 + b1_ref[...], 0.0)
    acc_ref[...] += jnp.dot(h1, w2_ref[...], preferred_element_type=jnp.float32)

    @pl.when(j == pl.num_programs(0) - 1)
    def _():
        h2 = jnp.maximum(acc_ref[...] + b2_ref[...], 0.0)
        out = jnp.dot(h2, wh_ref[...], preferred_element_type=jnp.float32)
        out = out + bh_ref[...]
        o_ref[...] = out.astype(o_ref.dtype)


# ------------------------------ wrappers -----------------------------------

def conv2d_relu(x_nhwc, w_mat, b_row, *, k=5, pad=1):
    """Conv2d(stride=1, padding=pad) + ReLU.

    w_mat is the conv weight already reshaped to (k*k*Cin, Cout) with rows in
    (kh, kw, cin) order, b_row is (1, Cout).
    """
    B, H, W, C = x_nhwc.shape
    Cout = w_mat.shape[1]
    patches, Ho, Wo = _im2col_nhwc(x_nhwc, k, pad)      # (B*Ho*Wo, k*k*C)
    M, K = patches.shape
    y = pl.pallas_call(
        _conv_mm_kernel,
        out_shape=jax.ShapeDtypeStruct((M, Cout), x_nhwc.dtype),
        grid=(1,),
        in_specs=[
            pl.BlockSpec((M, K), lambda i: (0, 0)),
            pl.BlockSpec((K, Cout), lambda i: (0, 0)),
            pl.BlockSpec((1, Cout), lambda i: (0, 0)),
        ],
        out_specs=pl.BlockSpec((M, Cout), lambda i: (0, 0)),
        compiler_params=pltpu.CompilerParams(
            dimension_semantics=("arbitrary",)),
    )(patches, w_mat, b_row)
    return y.reshape(B, Ho, Wo, Cout)


def _im2col_nhwc(x, k, pad):
    """k x k patches, stride 1. Column order = (kh, kw, cin) (no transpose --
    the conv weight is pre-permuted to match)."""
    B, H, W, C = x.shape
    xp = jnp.pad(x, ((0, 0), (pad, pad), (pad, pad), (0, 0)))
    Ho = H + 2 * pad - k + 1
    Wo = W + 2 * pad - k + 1
    cols = [xp[:, i:i + Ho, j:j + Wo, :] for i in range(k) for j in range(k)]
    p = jnp.stack(cols, axis=3)                 # (B, Ho, Wo, k*k, C)
    return p.reshape(B * Ho * Wo, k * k * C), Ho, Wo


def maxpool_2x2_pad1(x_nhwc):
    """MaxPool2d(kernel=2, stride=2, padding=1); PyTorch pads with -inf.
    Plain elementwise max -> XLA fuses it (no dedicated kernel needed)."""
    xp = jnp.pad(x_nhwc, ((0, 0), (1, 1), (1, 1), (0, 0)),
                 constant_values=-jnp.inf)
    a = xp[:, 0::2, 0::2, :]
    b = xp[:, 0::2, 1::2, :]
    c = xp[:, 1::2, 0::2, :]
    d = xp[:, 1::2, 1::2, :]
    return jnp.maximum(jnp.maximum(a, b), jnp.maximum(c, d))


def fused_fc_stack(x, kp, *, n_block=256):
    """relu(relu(x@W1+b1)@W2+b2) @ [Wmean|Wlv] + [bmean|blv] in one pallas_call."""
    M, K = x.shape
    H1 = kp["fc1_w"].shape[1]       # 1024
    H2 = kp["fc2_w"].shape[1]       # layer_sizes
    NH = kp["head_w"].shape[1]      # 2 * latent_size
    if H1 % n_block != 0:
        n_block = H1
    grid = (H1 // n_block,)
    return pl.pallas_call(
        _fc_fused_kernel,
        out_shape=jax.ShapeDtypeStruct((M, NH), x.dtype),
        grid=grid,
        in_specs=[
            pl.BlockSpec((M, K), lambda j: (0, 0)),            # x (resident)
            pl.BlockSpec((K, n_block), lambda j: (0, j)),      # fc1_w column block
            pl.BlockSpec((1, n_block), lambda j: (0, j)),      # fc1_b block
            pl.BlockSpec((n_block, H2), lambda j: (j, 0)),     # fc2_w row block
            pl.BlockSpec((1, H2), lambda j: (0, 0)),           # fc2_b
            pl.BlockSpec((H2, NH), lambda j: (0, 0)),          # [mean_w | lv_w]
            pl.BlockSpec((1, NH), lambda j: (0, 0)),           # [mean_b | lv_b]
        ],
        out_specs=pl.BlockSpec((M, NH), lambda j: (0, 0)),
        scratch_shapes=[pltpu.VMEM((M, H2), jnp.float32)],
        compiler_params=pltpu.CompilerParams(
            dimension_semantics=("arbitrary",)),
    )(x, kp["fc1_w"], kp["fc1_b"], kp["fc2_w"], kp["fc2_b"],
      kp["head_w"], kp["head_b"])


# --------------------------- parameters / model ----------------------------

def init_encoder_params(key, layer_sizes, latent_size, conditional, num_labels):
    """PyTorch-layout parameters (conv: (Cout,Cin,kH,kW); linear: (in,out))."""
    fc1_in = 64 * 7 * 7 + (num_labels if conditional else 0)
    keys = jax.random.split(key, 12)

    def dense(kw, kb, fan_in, shape_w, shape_b):
        s = 1.0 / float(fan_in) ** 0.5
        return (jax.random.uniform(kw, shape_w, jnp.float32, -s, s),
                jax.random.uniform(kb, shape_b, jnp.float32, -s, s))

    p = {}
    p["conv1_w"], p["conv1_b"] = dense(keys[0], keys[1], 1 * 5 * 5, (32, 1, 5, 5), (32,))
    p["conv2_w"], p["conv2_b"] = dense(keys[2], keys[3], 32 * 5 * 5, (64, 32, 5, 5), (64,))
    p["fc1_w"], p["fc1_b"] = dense(keys[4], keys[5], fc1_in, (fc1_in, 1024), (1024,))
    p["fc2_w"], p["fc2_b"] = dense(keys[6], keys[7], 1024, (1024, layer_sizes), (layer_sizes,))
    p["mean_w"], p["mean_b"] = dense(keys[8], keys[9], layer_sizes,
                                     (layer_sizes, latent_size), (latent_size,))
    p["lv_w"], p["lv_b"] = dense(keys[10], keys[11], layer_sizes,
                                 (layer_sizes, latent_size), (latent_size,))
    return p


def prepare_params(pt, *, conditional, num_labels):
    """One-time layout conversion (outside the per-step forward):
       * conv weights -> (kh, kw, cin, cout) matrix form (matches im2col order),
       * fc1 weight rows permuted from PyTorch (c, h, w) flatten order to the
         NHWC (h, w, c) flatten order (so no activation transpose at runtime),
       * means / log_var heads concatenated into one matmul."""
    kp = {}
    kp["conv1_w"] = pt["conv1_w"].transpose(2, 3, 1, 0).reshape(5 * 5 * 1, 32)
    kp["conv1_b"] = pt["conv1_b"].reshape(1, -1)
    kp["conv2_w"] = pt["conv2_w"].transpose(2, 3, 1, 0).reshape(5 * 5 * 32, 64)
    kp["conv2_b"] = pt["conv2_b"].reshape(1, -1)

    perm = jnp.arange(64 * 7 * 7).reshape(64, 7, 7).transpose(1, 2, 0).reshape(-1)
    if conditional:
        perm = jnp.concatenate([perm, 64 * 7 * 7 + jnp.arange(num_labels)])
    kp["fc1_w"] = pt["fc1_w"][perm]
    kp["fc1_b"] = pt["fc1_b"].reshape(1, -1)
    kp["fc2_w"] = pt["fc2_w"]
    kp["fc2_b"] = pt["fc2_b"].reshape(1, -1)
    kp["head_w"] = jnp.concatenate([pt["mean_w"], pt["lv_w"]], axis=1)
    kp["head_b"] = jnp.concatenate([pt["mean_b"], pt["lv_b"]]).reshape(1, -1)
    return kp


def encoder_forward(kparams, x, c=None, *, conditional=False, num_labels=10):
    x = x.reshape(-1, 1, 28, 28)          # PyTorch: x.view(-1, 1, 28, 28)
    B = x.shape[0]
    x = x.reshape(B, 28, 28, 1)           # NCHW -> NHWC (free: Cin == 1)

    h = conv2d_relu(x, kparams["conv1_w"], kparams["conv1_b"])    # (B, 26, 26, 32)
    h = maxpool_2x2_pad1(h)                                       # (B, 14, 14, 32)
    h = conv2d_relu(h, kparams["conv2_w"], kparams["conv2_b"])    # (B, 12, 12, 64)
    h = maxpool_2x2_pad1(h)                                       # (B, 7, 7, 64)

    # NHWC flatten; fc1_w rows were pre-permuted to this order in prepare_params,
    # so this is numerically identical to PyTorch's NCHW flatten + fc1.
    h = h.reshape(B, 7 * 7 * 64)

    if conditional:
        onehot = jax.nn.one_hot(c, num_labels, dtype=h.dtype)     # idx2onehot(c, n=10)
        h = jnp.concatenate([h, onehot], axis=1)

    out = fused_fc_stack(h, kparams)                              # (B, 2*latent)
    latent = out.shape[1] // 2
    return out[:, :latent], out[:, latent:]


if __name__ == "__main__":
    layer_sizes, latent_size, conditional, num_labels = 32, 16, False, 10

    key = jax.random.PRNGKey(0)
    k_param, k_x = jax.random.split(key)
    pt_params = init_encoder_params(k_param, layer_sizes, latent_size,
                                    conditional, num_labels)
    kparams = jax.tree_util.tree_map(
        jnp.asarray, prepare_params(pt_params, conditional=conditional,
                                    num_labels=num_labels))
    x = jax.random.normal(k_x, (2, 1, 28, 28), jnp.float32)

    fwd = jax.jit(functools.partial(encoder_forward,
                                    conditional=conditional,
                                    num_labels=num_labels))
    means, log_vars = fwd(kparams, x)
    jax.block_until_ready((means, log_vars))

    assert means.shape == (2, latent_size), means.shape
    assert log_vars.shape == (2, latent_size), log_vars.shape
    assert means.dtype == jnp.float32 and log_vars.dtype == jnp.float32
    assert bool(jnp.isfinite(means).all()) and bool(jnp.isfinite(log_vars).all())
    print("KERNEL_OK")
</pallas_src>

<mosaic_0001>
module attributes {stable_mosaic.version = 11 : i64} {
  func.func @_conv_mm_kernel(%arg0: i32, %arg1: memref<1352x25xf32, #tpu.memory_space<vmem>>, %arg2: memref<25x32xf32, #tpu.memory_space<vmem>>, %arg3: memref<1x32xf32, #tpu.memory_space<vmem>>, %arg4: memref<1352x32xf32, #tpu.memory_space<vmem>>) attributes {dimension_semantics = [#tpu.dimension_semantics<arbitrary>], iteration_bounds = array<i64: 1>, scalar_prefetch = 0 : i64, scratch_operands = 0 : i64, tpu.core_type = #tpu.core_type<tc>, window_params = [{pipeline_mode = #tpu.pipeline_mode<synchronous>, transform_indices = @transform_0, window_bounds = array<i64: 1352, 25>}, {pipeline_mode = #tpu.pipeline_mode<synchronous>, transform_indices = @transform_1, window_bounds = array<i64: 25, 32>}, {pipeline_mode = #tpu.pipeline_mode<synchronous>, transform_indices = @transform_2, window_bounds = array<i64: 1, 32>}, {pipeline_mode = #tpu.pipeline_mode<synchronous>, transform_indices = @transform_3, window_bounds = array<i64: 1352, 32>}]} {
    %c0 = arith.constant 0 : index
    %c0_0 = arith.constant 0 : index
    %0 = vector.load %arg1[%c0, %c0_0] : memref<1352x25xf32, #tpu.memory_space<vmem>>, vector<1352x25xf32>
    %c0_1 = arith.constant 0 : index
    %c0_2 = arith.constant 0 : index
    %1 = vector.load %arg2[%c0_1, %c0_2] : memref<25x32xf32, #tpu.memory_space<vmem>>, vector<25x32xf32>
    %cst = arith.constant dense<0.000000e+00> : vector<1352x32xf32>
    %2 = tpu.matmul %0, %1, %cst {dimension_numbers = #tpu.dot_dimension_numbers<[1], [0], [0], [1], [0, 0, 1, 1], [], []>} : vector<1352x25xf32>, vector<25x32xf32>, vector<1352x32xf32> -> vector<1352x32xf32>
    %c0_3 = arith.constant 0 : index
    %c0_4 = arith.constant 0 : index
    %3 = vector.load %arg3[%c0_3, %c0_4] : memref<1x32xf32, #tpu.memory_space<vmem>>, vector<1x32xf32>
    %4 = vector.broadcast %3 : vector<1x32xf32> to vector<1352x32xf32>
    %5 = arith.addf %2, %4 : vector<1352x32xf32>
    %cst_5 = arith.constant 0.000000e+00 : f32
    %6 = vector.broadcast %cst_5 : f32 to vector<1352x32xf32>
    %7 = arith.maximumf %5, %6 : vector<1352x32xf32>
    %c0_6 = arith.constant 0 : index
    %c0_7 = arith.constant 0 : index
    %8 = vector.load %arg4[%c0_6, %c0_7] : memref<1352x32xf32, #tpu.memory_space<vmem>>, vector<1352x32xf32>
    tpu.vector_store %arg4[%c0_6, %c0_7], %7 {strides = array<i32>} : memref<1352x32xf32, #tpu.memory_space<vmem>>, vector<1352x32xf32>,
    return
  }
  func.func @transform_0(%arg0: i32) -> (i32, i32) {
    %c0_i32 = arith.constant 0 : i32
    %c0_i32_0 = arith.constant 0 : i32
    %c0_i32_1 = arith.constant 0 : i32
    return %c0_i32, %c0_i32_0 : i32, i32
  }
  func.func @transform_1(%arg0: i32) -> (i32, i32) {
    %c0_i32 = arith.constant 0 : i32
    %c0_i32_0 = arith.constant 0 : i32
    %c0_i32_1 = arith.constant 0 : i32
    return %c0_i32, %c0_i32_0 : i32, i32
  }
  func.func @transform_2(%arg0: i32) -> (i32, i32) {
    %c0_i32 = arith.constant 0 : i32
    %c0_i32_0 = arith.constant 0 : i32
    %c0_i32_1 = arith.constant 0 : i32
    return %c0_i32, %c0_i32_0 : i32, i32
  }
  func.func @transform_3(%arg0: i32) -> (i32, i32) {
    %c0_i32 = arith.constant 0 : i32
    %c0_i32_0 = arith.constant 0 : i32
    %c0_i32_1 = arith.constant 0 : i32
    return %c0_i32, %c0_i32_0 : i32, i32
  }
}

module attributes {stable_mosaic.version = 11 : i64} {
  func.func @_conv_mm_kernel(%arg0: i32, %arg1: memref<288x800xf32, #tpu.memory_space<vmem>>, %arg2: memref<800x64xf32, #tpu.memory_space<vmem>>, %arg3: memref<1x64xf32, #tpu.memory_space<vmem>>, %arg4: memref<288x64xf32, #tpu.memory_space<vmem>>) attributes {dimension_semantics = [#tpu.dimension_semantics<arbitrary>], iteration_bounds = array<i64: 1>, scalar_prefetch = 0 : i64, scratch_operands = 0 : i64, tpu.core_type = #tpu.core_type<tc>, window_params = [{pipeline_mode = #tpu.pipeline_mode<synchronous>, transform_indices = @transform_0, window_bounds = array<i64: 288, 800>}, {pipeline_mode = #tpu.pipeline_mode<synchronous>, transform_indices = @transform_1, window_bounds = array<i64: 800, 64>}, {pipeline_mode = #tpu.pipeline_mode<synchronous>, transform_indices = @transform_2, window_bounds = array<i64: 1, 64>}, {pipeline_mode = #tpu.pipeline_mode<synchronous>, transform_indices = @transform_3, window_bounds = array<i64: 288, 64>}]} {
    %c0 = arith.constant 0 : index
    %c0_0 = arith.constant 0 : index
    %0 = vector.load %arg1[%c0, %c0_0] : memref<288x800xf32, #tpu.memory_space<vmem>>, vector<288x800xf32>
    %c0_1 = arith.constant 0 : index
    %c0_2 = arith.constant 0 : index
    %1 = vector.load %arg2[%c0_1, %c0_2] : memref<800x64xf32, #tpu.memory_space<vmem>>, vector<800x64xf32>
    %cst = arith.constant dense<0.000000e+00> : vector<288x64xf32>
    %2 = tpu.matmul %0, %1, %cst {dimension_numbers = #tpu.dot_dimension_numbers<[1], [0], [0], [1], [0, 0, 1, 1], [], []>} : vector<288x800xf32>, vector<800x64xf32>, vector<288x64xf32> -> vector<288x64xf32>
    %c0_3 = arith.constant 0 : index
    %c0_4 = arith.constant 0 : index
    %3 = vector.load %arg3[%c0_3, %c0_4] : memref<1x64xf32, #tpu.memory_space<vmem>>, vector<1x64xf32>
    %4 = vector.broadcast %3 : vector<1x64xf32> to vector<288x64xf32>
    %5 = arith.addf %2, %4 : vector<288x64xf32>
    %cst_5 = arith.constant 0.000000e+00 : f32
    %6 = vector.broadcast %cst_5 : f32 to vector<288x64xf32>
    %7 = arith.maximumf %5, %6 : vector<288x64xf32>
    %c0_6 = arith.constant 0 : index
    %c0_7 = arith.constant 0 : index
    %8 = vector.load %arg4[%c0_6, %c0_7] : memref<288x64xf32, #tpu.memory_space<vmem>>, vector<288x64xf32>
    tpu.vector_store %arg4[%c0_6, %c0_7], %7 {strides = array<i32>} : memref<288x64xf32, #tpu.memory_space<vmem>>, vector<288x64xf32>,
    return
  }
  func.func @transform_0(%arg0: i32) -> (i32, i32) {
    %c0_i32 = arith.constant 0 : i32
    %c0_i32_0 = arith.constant 0 : i32
    %c0_i32_1 = arith.constant 0 : i32
    return %c0_i32, %c0_i32_0 : i32, i32
  }
  func.func @transform_1(%arg0: i32) -> (i32, i32) {
    %c0_i32 = arith.constant 0 : i32
    %c0_i32_0 = arith.constant 0 : i32
    %c0_i32_1 = arith.constant 0 : i32
    return %c0_i32, %c0_i32_0 : i32, i32
  }
  func.func @transform_2(%arg0: i32) -> (i32, i32) {
    %c0_i32 = arith.constant 0 : i32
    %c0_i32_0 = arith.constant 0 : i32
    %c0_i32_1 = arith.constant 0 : i32
    return %c0_i32, %c0_i32_0 : i32, i32
  }
  func.func @transform_3(%arg0: i32) -> (i32, i32) {
    %c0_i32 = arith.constant 0 : i32
    %c0_i32_0 = arith.constant 0 : i32
    %c0_i32_1 = arith.constant 0 : i32
    return %c0_i32, %c0_i32_0 : i32, i32
  }
}

module attributes {stable_mosaic.version = 11 : i64} {
  func.func @_fc_fused_kernel(%arg0: i32, %arg1: memref<2x3136xf32, #tpu.memory_space<vmem>>, %arg2: memref<3136x256xf32, #tpu.memory_space<vmem>>, %arg3: memref<1x256xf32, #tpu.memory_space<vmem>>, %arg4: memref<256x32xf32, #tpu.memory_space<vmem>>, %arg5: memref<1x32xf32, #tpu.memory_space<vmem>>, %arg6: memref<32x32xf32, #tpu.memory_space<vmem>>, %arg7: memref<1x32xf32, #tpu.memory_space<vmem>>, %arg8: memref<2x32xf32, #tpu.memory_space<vmem>>, %arg9: memref<2x32xf32, #tpu.memory_space<vmem>>) attributes {dimension_semantics = [#tpu.dimension_semantics<arbitrary>], iteration_bounds = array<i64: 4>, scalar_prefetch = 0 : i64, scratch_operands = 1 : i64, tpu.core_type = #tpu.core_type<tc>, window_params = [{pipeline_mode = #tpu.pipeline_mode<synchronous>, transform_indices = @transform_0, window_bounds = array<i64: 2, 3136>}, {transform_indices = @transform_1, window_bounds = array<i64: 3136, 256>}, {transform_indices = @transform_2, window_bounds = array<i64: 1, 256>}, {transform_indices = @transform_3, window_bounds = array<i64: 256, 32>}, {pipeline_mode = #tpu.pipeline_mode<synchronous>, transform_indices = @transform_4, window_bounds = array<i64: 1, 32>}, {pipeline_mode = #tpu.pipeline_mode<synchronous>, transform_indices = @transform_5, window_bounds = array<i64: 32, 32>}, {pipeline_mode = #tpu.pipeline_mode<synchronous>, transform_indices = @transform_6, window_bounds = array<i64: 1, 32>}, {pipeline_mode = #tpu.pipeline_mode<synchronous>, transform_indices = @transform_7, window_bounds = array<i64: 2, 32>}]} {
    %c0_i32 = arith.constant 0 : i32
    %0 = arith.cmpi eq, %arg0, %c0_i32 : i32
    %1 = arith.extui %0 : i1 to i32
    %c0_i32_0 = arith.constant 0 : i32
    %2 = arith.cmpi ne, %1, %c0_i32_0 : i32
    scf.if %2 {
      %cst_15 = arith.constant 0.000000e+00 : f32
      %19 = vector.broadcast %cst_15 : f32 to vector<2x32xf32>
      %c0_16 = arith.constant 0 : index
      %c0_17 = arith.constant 0 : index
      %20 = vector.load %arg9[%c0_16, %c0_17] : memref<2x32xf32, #tpu.memory_space<vmem>>, vector<2x32xf32>
      tpu.vector_store %arg9[%c0_16, %c0_17], %19 {strides = array<i32>} : memref<2x32xf32, #tpu.memory_space<vmem>>, vector<2x32xf32>,
    } else {
    }
    %c0 = arith.constant 0 : index
    %c0_1 = arith.constant 0 : index
    %3 = vector.load %arg1[%c0, %c0_1] : memref<2x3136xf32, #tpu.memory_space<vmem>>, vector<2x3136xf32>
    %c0_2 = arith.constant 0 : index
    %c0_3 = arith.constant 0 : index
    %4 = vector.load %arg2[%c0_2, %c0_3] : memref<3136x256xf32, #tpu.memory_space<vmem>>, vector<3136x256xf32>
    %cst = arith.constant dense<0.000000e+00> : vector<2x256xf32>
    %5 = tpu.matmul %3, %4, %cst {dimension_numbers = #tpu.dot_dimension_numbers<[1], [0], [0], [1], [0, 0, 1, 1], [], []>} : vector<2x3136xf32>, vector<3136x256xf32>, vector<2x256xf32> -> vector<2x256xf32>
    %c0_4 = arith.constant 0 : index
    %c0_5 = arith.constant 0 : index
    %6 = vector.load %arg3[%c0_4, %c0_5] : memref<1x256xf32, #tpu.memory_space<vmem>>, vector<1x256xf32>
    %7 = vector.broadcast %6 : vector<1x256xf32> to vector<2x256xf32>
    %8 = arith.addf %5, %7 : vector<2x256xf32>
    %cst_6 = arith.constant 0.000000e+00 : f32
    %9 = vector.broadcast %cst_6 : f32 to vector<2x256xf32>
    %10 = arith.maximumf %8, %9 : vector<2x256xf32>
    %c0_7 = arith.constant 0 : index
    %c0_8 = arith.constant 0 : index
    %11 = vector.load %arg9[%c0_7, %c0_8] : memref<2x32xf32, #tpu.memory_space<vmem>>, vector<2x32xf32>
    %c0_9 = arith.constant 0 : index
    %c0_10 = arith.constant 0 : index
    %12 = vector.load %arg4[%c0_9, %c0_10] : memref<256x32xf32, #tpu.memory_space<vmem>>, vector<256x32xf32>
    %cst_11 = arith.constant dense<0.000000e+00> : vector<2x32xf32>
    %13 = tpu.matmul %10, %12, %cst_11 {dimension_numbers = #tpu.dot_dimension_numbers<[1], [0], [0], [1], [0, 0, 1, 1], [], []>} : vector<2x256xf32>, vector<256x32xf32>, vector<2x32xf32> -> vector<2x32xf32>
    %14 = arith.addf %11, %13 : vector<2x32xf32>
    %c0_12 = arith.constant 0 : index
    %c0_13 = arith.constant 0 : index
    %15 = vector.load %arg9[%c0_12, %c0_13] : memref<2x32xf32, #tpu.memory_space<vmem>>, vector<2x32xf32>
    tpu.vector_store %arg9[%c0_12, %c0_13], %14 {strides = array<i32>} : memref<2x32xf32, #tpu.memory_space<vmem>>, vector<2x32xf32>,
    %c3_i32 = arith.constant 3 : i32
    %16 = arith.cmpi eq, %arg0, %c3_i32 : i32
    %17 = arith.extui %16 : i1 to i32
    %c0_i32_14 = arith.constant 0 : i32
    %18 = arith.cmpi ne, %17, %c0_i32_14 : i32
    scf.if %18 {
      %c0_15 = arith.constant 0 : index
      %c0_16 = arith.constant 0 : index
      %19 = vector.load %arg9[%c0_15, %c0_16] : memref<2x32xf32, #tpu.memory_space<vmem>>, vector<2x32xf32>
      %c0_17 = arith.constant 0 : index
      %c0_18 = arith.constant 0 : index
      %20 = vector.load %arg5[%c0_17, %c0_18] : memref<1x32xf32, #tpu.memory_space<vmem>>, vector<1x32xf32>
      %21 = vector.broadcast %20 : vector<1x32xf32> to vector<2x32xf32>
      %22 = arith.addf %19, %21 : vector<2x32xf32>
      %cst_19 = arith.constant 0.000000e+00 : f32
      %23 = vector.broadcast %cst_19 : f32 to vector<2x32xf32>
      %24 = arith.maximumf %22, %23 : vector<2x32xf32>
      %c0_20 = arith.constant 0 : index
      %c0_21 = arith.constant 0 : index
      %25 = vector.load %arg6[%c0_20, %c0_21] : memref<32x32xf32, #tpu.memory_space<vmem>>, vector<32x32xf32>
      %cst_22 = arith.constant dense<0.000000e+00> : vector<2x32xf32>
      %26 = tpu.matmul %24, %25, %cst_22 {dimension_numbers = #tpu.dot_dimension_numbers<[1], [0], [0], [1], [0, 0, 1, 1], [], []>} : vector<2x32xf32>, vector<32x32xf32>, vector<2x32xf32> -> vector<2x32xf32>
      %c0_23 = arith.constant 0 : index
      %c0_24 = arith.constant 0 : index
      %27 = vector.load %arg7[%c0_23, %c0_24] : memref<1x32xf32, #tpu.memory_space<vmem>>, vector<1x32xf32>
      %28 = vector.broadcast %27 : vector<1x32xf32> to vector<2x32xf32>
      %29 = arith.addf %26, %28 : vector<2x32xf32>
      %c0_25 = arith.constant 0 : index
      %c0_26 = arith.constant 0 : index
      %30 = vector.load %arg8[%c0_25, %c0_26] : memref<2x32xf32, #tpu.memory_space<vmem>>, vector<2x32xf32>
      tpu.vector_store %arg8[%c0_25, %c0_26], %29 {strides = array<i32>} : memref<2x32xf32, #tpu.memory_space<vmem>>, vector<2x32xf32>,
    } else {
    }
    return
  }
  func.func @transform_0(%arg0: i32) -> (i32, i32) {
    %c0_i32 = arith.constant 0 : i32
    %c0_i32_0 = arith.constant 0 : i32
    %c0_i32_1 = arith.constant 0 : i32
    return %c0_i32, %c0_i32_0 : i32, i32
  }
  func.func @transform_1(%arg0: i32) -> (i32, i32) {
    %c0_i32 = arith.constant 0 : i32
    %c0_i32_0 = arith.constant 0 : i32
    return %c0_i32, %arg0 : i32, i32
  }
  func.func @transform_2(%arg0: i32) -> (i32, i32) {
    %c0_i32 = arith.constant 0 : i32
    %c0_i32_0 = arith.constant 0 : i32
    return %c0_i32, %arg0 : i32, i32
  }
  func.func @transform_3(%arg0: i32) -> (i32, i32) {
    %c0_i32 = arith.constant 0 : i32
    %c0_i32_0 = arith.constant 0 : i32
    return %arg0, %c0_i32 : i32, i32
  }
  func.func @transform_4(%arg0: i32) -> (i32, i32) {
    %c0_i32 = arith.constant 0 : i32
    %c0_i32_0 = arith.constant 0 : i32
    %c0_i32_1 = arith.constant 0 : i32
    return %c0_i32, %c0_i32_0 : i32, i32
  }
  func.func @transform_5(%arg0: i32) -> (i32, i32) {
    %c0_i32 = arith.constant 0 : i32
    %c0_i32_0 = arith.constant 0 : i32
    %c0_i32_1 = arith.constant 0 : i32
    return %c0_i32, %c0_i32_0 : i32, i32
  }
  func.func @transform_6(%arg0: i32) -> (i32, i32) {
    %c0_i32 = arith.constant 0 : i32
    %c0_i32_0 = arith.constant 0 : i32
    %c0_i32_1 = arith.constant 0 : i32
    return %c0_i32, %c0_i32_0 : i32, i32
  }
  func.func @transform_7(%arg0: i32) -> (i32, i32) {
    %c0_i32 = arith.constant 0 : i32
    %c0_i32_0 = arith.constant 0 : i32
    %c0_i32_1 = arith.constant 0 : i32
    return %c0_i32, %c0_i32_0 : i32, i32
  }
}

</mosaic_0001>

<llo_original>
// kernel: encoder_forward.3
$region0: #{encoder_forward.3}
  #allocation0 [shape = 'u32[]', space=smem, size = 0x4, offset = 0x4, fixed_abs, tag = 'smem constant byte address 0x4 - core index']
  #allocation1 [shape = 'u32[72,128]{1,0:T(1,128)}', space=vmem, size = 0x9000, scoped, tag = 'internal scratch']
  %s0 = inlined_call_operand.vmem [shape: f32[1352,25], index: 0, kind: input, shape index: {}]
  %s1 = inlined_call_operand.hbm [shape: f32[25,32], index: 1, kind: input, shape index: {}]
  %s2 = inlined_call_operand.hbm [shape: f32[1,32], index: 2, kind: input, shape index: {}]
  %s3 = inlined_call_operand.vmem [shape: f32[1352,32], index: 3, kind: output, shape index: {}]
  %s4 = sld [smem:[#allocation0]]
  $region30: #{encoder_forward.3} parent=0
    _
  %s6 = ssub.s32 1, %s4
  %s7 = scalar_select 0, %s6, %s4
  $region1: #{encoder_forward.3} parent=0
    #allocation2 [shape = 'u8[16384]{0}', space=vmem, size = 0x4000, scoped, tag = 'input window, operand 1, single buffered']
    #allocation3 [shape = 's32[1]{0}', space=sflag, size = 0x4, scoped, tag = 'scoped memory for encoder_forward.3']
    #allocation4 [shape = 'u8[512]{0}', space=vmem, size = 0x400, scoped, tag = 'input window, operand 2, single buffered']
    #allocation5 [shape = 's32[1]{0}', space=sflag, size = 0x4, scoped, tag = 'scoped memory for encoder_forward.3']
    %8 = vsyncpa [#allocation3], 0
    %9 = vsyncpa [#allocation5], 0
    // Predicated region
    $region2: #{encoder_forward.3} parent=1 // pred_check
      _
    $region3: #{encoder_forward.3} parent=1 // pred_check_branch
      %11 = sbr.rel (0) target = $region5
    $region4: #{encoder_forward.3} parent=1 // pred_region
      _
    $region5: #{encoder_forward.3} parent=1 // pred_fallthru
      _
    // Predicated region
    $region6: #{encoder_forward.3} parent=1 // pred_check
      _
    $region7: #{encoder_forward.3} parent=1 // pred_check_branch
      %13 = sbr.rel (0) target = $region9
    $region8: #{encoder_forward.3} parent=1 // pred_region
      %15 = vsyncadd [#allocation3], 0
      %s16 = sshll.u32 %s1, 4
      %s17 = int_to_ptr.hbm [resolvable:$true] %s16
      %s18 = sshll.u32 [#allocation2], 4
      %s19 = int_to_ptr.vmem [resolvable:$true] %s18
      %24 = dma.hbm_to_vmem [thread:$0]  %s17, 512, %s19, [#allocation3], 128, 128, 8
    $region9: #{encoder_forward.3} parent=1 // pred_fallthru
      _
    // Predicated region
    $region10: #{encoder_forward.3} parent=1 // pred_check
      _
    $region11: #{encoder_forward.3} parent=1 // pred_check_branch
      %26 = sbr.rel (0) target = $region13
    $region12: #{encoder_forward.3} parent=1 // pred_region
      %28 = vsyncadd [#allocation5], 0
      %s30 = sshll.u32 %s2, 4
      %s31 = int_to_ptr.hbm [resolvable:$true] %s30
      %s32 = sshll.u32 [#allocation4], 4
      %s33 = int_to_ptr.vmem [resolvable:$true] %s32
      %35 = dma.hbm_to_vmem [thread:$0]  %s31, 16, %s33, [#allocation5]
    $region13: #{encoder_forward.3} parent=1 // pred_fallthru
      _
    // Predicated region
    $region14: #{encoder_forward.3} parent=1 // pred_check
      _
    $region15: #{encoder_forward.3} parent=1 // pred_check_branch
      %37 = sbr.rel (0) target = $region17
    $region16: #{encoder_forward.3} parent=1 // pred_region
      %39 = dma.done [#allocation3], 512
    $region17: #{encoder_forward.3} parent=1 // pred_fallthru
      _
    // Predicated region
    $region18: #{encoder_forward.3} parent=1 // pred_check
      _
    $region19: #{encoder_forward.3} parent=1 // pred_check_branch
      %41 = sbr.rel (0) target = $region21
    $region20: #{encoder_forward.3} parent=1 // pred_region
      %43 = dma.done [#allocation5], 16
    $region21: #{encoder_forward.3} parent=1 // pred_fallthru
      _
    %v44 = vld [vmem:[%s0] sm:$0xff]
    %v45 = vld [vmem:[%s0 + $0x8] sm:$0xff]
    %v46 = vld [vmem:[%s0 + $0x10] sm:$0xff]
    %v47 = vld [vmem:[%s0 + $0x18] sm:$0xff]
    %v48 = vld [vmem:[%s0 + $0x20] sm:$0xff]
    %v49 = vld [vmem:[%s0 + $0x28] sm:$0xff]
    %v50 = vld [vmem:[%s0 + $0x30] sm:$0xff]
    %v51 = vld [vmem:[%s0 + $0x38] sm:$0xff]
    %v52 = vld [vmem:[%s0 + $0x40] sm:$0xff]
    %v53 = vld [vmem:[%s0 + $0x48] sm:$0xff]
    %v54 = vld [vmem:[%s0 + $0x50] sm:$0xff]
    %v55 = vld [vmem:[%s0 + $0x58] sm:$0xff]
    %v56 = vld [vmem:[%s0 + $0x60] sm:$0xff]
    %v57 = vld [vmem:[%s0 + $0x68] sm:$0xff]
    %v58 = vld [vmem:[%s0 + $0x70] sm:$0xff]
    %v59 = vld [vmem:[%s0 + $0x78] sm:$0xff]
    %v60 = vld [vmem:[%s0 + $0x80] sm:$0xff]
    %v61 = vld [vmem:[%s0 + $0x88] sm:$0xff]
    %v62 = vld [vmem:[%s0 + $0x90] sm:$0xff]
    %v63 = vld [vmem:[%s0 + $0x98] sm:$0xff]
    %v64 = vld [vmem:[%s0 + $0xa0] sm:$0xff]
    %v65 = vld [vmem:[%s0 + $0xa8] sm:$0xff]
    %v66 = vld [vmem:[%s0 + $0xb0] sm:$0xff]
    %v67 = vld [vmem:[%s0 + $0xb8] sm:$0xff]
    %v68 = vld [vmem:[%s0 + $0xc0] sm:$0xff]
    %v69 = vld [vmem:[%s0 + $0xc8] sm:$0xff]
    %v70 = vld [vmem:[%s0 + $0xd0] sm:$0xff]
    %v71 = vld [vmem:[%s0 + $0xd8] sm:$0xff]
    %v72 = vld [vmem:[%s0 + $0xe0] sm:$0xff]
    %v73 = vld [vmem:[%s0 + $0xe8] sm:$0xff]
    %v74 = vld [vmem:[%s0 + $0xf0] sm:$0xff]
    %v75 = vld [vmem:[%s0 + $0xf8] sm:$0xff]
    %v76 = vld [vmem:[%s0 + $0x100] sm:$0xff]
    %v77 = vld [vmem:[%s0 + $0x108] sm:$0xff]
    %v78 = vld [vmem:[%s0 + $0x110] sm:$0xff]
    %v79 = vld [vmem:[%s0 + $0x118] sm:$0xff]
    %v80 = vld [vmem:[%s0 + $0x120] sm:$0xff]
    %v81 = vld [vmem:[%s0 + $0x128] sm:$0xff]
    %v82 = vld [vmem:[%s0 + $0x130] sm:$0xff]
    %v83 = vld [vmem:[%s0 + $0x138] sm:$0xff]
    %v84 = vld [vmem:[%s0 + $0x140] sm:$0xff]
    %v85 = vld [vmem:[%s0 + $0x148] sm:$0xff]
    %v86 = vld [vmem:[%s0 + $0x150] sm:$0xff]
    %v87 = vld [vmem:[%s0 + $0x158] sm:$0xff]
    %v88 = vld [vmem:[%s0 + $0x160] sm:$0xff]
    %v89 = vld [vmem:[%s0 + $0x168] sm:$0xff]
    %v90 = vld [vmem:[%s0 + $0x170] sm:$0xff]
    %v91 = vld [vmem:[%s0 + $0x178] sm:$0xff]
    %v92 = vld [vmem:[%s0 + $0x180] sm:$0xff]
    %v93 = vld [vmem:[%s0 + $0x188] sm:$0xff]
    %v94 = vld [vmem:[%s0 + $0x190] sm:$0xff]
    %v95 = vld [vmem:[%s0 + $0x198] sm:$0xff]
    %v96 = vld [vmem:[%s0 + $0x1a0] sm:$0xff]
    %v97 = vld [vmem:[%s0 + $0x1a8] sm:$0xff]
    %v98 = vld [vmem:[%s0 + $0x1b0] sm:$0xff]
    %v99 = vld [vmem:[%s0 + $0x1b8] sm:$0xff]
    %v100 = vld [vmem:[%s0 + $0x1c0] sm:$0xff]
    %v101 = vld [vmem:[%s0 + $0x1c8] sm:$0xff]
    %v102 = vld [vmem:[%s0 + $0x1d0] sm:$0xff]
    %v103 = vld [vmem:[%s0 + $0x1d8] sm:$0xff]
    %v104 = vld [vmem:[%s0 + $0x1e0] sm:$0xff]
    %v105 = vld [vmem:[%s0 + $0x1e8] sm:$0xff]
    %v106 = vld [vmem:[%s0 + $0x1f0] sm:$0xff]
    %v107 = vld [vmem:[%s0 + $0x1f8] sm:$0xff]
    %v108 = vld [vmem:[%s0 + $0x200] sm:$0xff]
    %v109 = vld [vmem:[%s0 + $0x208] sm:$0xff]
    %v110 = vld [vmem:[%s0 + $0x210] sm:$0xff]
    %v111 = vld [vmem:[%s0 + $0x218] sm:$0xff]
    %v112 = vld [vmem:[%s0 + $0x220] sm:$0xff]
    %v113 = vld [vmem:[%s0 + $0x228] sm:$0xff]
    %v114 = vld [vmem:[%s0 + $0x230] sm:$0xff]
    %v115 = vld [vmem:[%s0 + $0x238] sm:$0xff]
    %v116 = vld [vmem:[%s0 + $0x240] sm:$0xff]
    %v117 = vld [vmem:[%s0 + $0x248] sm:$0xff]
    %v118 = vld [vmem:[%s0 + $0x250] sm:$0xff]
    %v119 = vld [vmem:[%s0 + $0x258] sm:$0xff]
    %v120 = vld [vmem:[%s0 + $0x260] sm:$0xff]
    %v121 = vld [vmem:[%s0 + $0x268] sm:$0xff]
    %v122 = vld [vmem:[%s0 + $0x270] sm:$0xff]
    %v123 = vld [vmem:[%s0 + $0x278] sm:$0xff]
    %v124 = vld [vmem:[%s0 + $0x280] sm:$0xff]
    %v125 = vld [vmem:[%s0 + $0x288] sm:$0xff]
    %v126 = vld [vmem:[%s0 + $0x290] sm:$0xff]
    %v127 = vld [vmem:[%s0 + $0x298] sm:$0xff]
    %v128 = vld [vmem:[%s0 + $0x2a0] sm:$0xff]
    %v129 = vld [vmem:[%s0 + $0x2a8] sm:$0xff]
    %v130 = vld [vmem:[%s0 + $0x2b0] sm:$0xff]
    %v131 = vld [vmem:[%s0 + $0x2b8] sm:$0xff]
    %v132 = vld [vmem:[%s0 + $0x2c0] sm:$0xff]
    %v133 = vld [vmem:[%s0 + $0x2c8] sm:$0xff]
    %v134 = vld [vmem:[%s0 + $0x2d0] sm:$0xff]
    %v135 = vld [vmem:[%s0 + $0x2d8] sm:$0xff]
    %v136 = vld [vmem:[%s0 + $0x2e0] sm:$0xff]
    %v137 = vld [vmem:[%s0 + $0x2e8] sm:$0xff]
    %v138 = vld [vmem:[%s0 + $0x2f0] sm:$0xff]
    %v139 = vld [vmem:[%s0 + $0x2f8] sm:$0xff]
    %v140 = vld [vmem:[%s0 + $0x300] sm:$0xff]
    %v141 = vld [vmem:[%s0 + $0x308] sm:$0xff]
    %v142 = vld [vmem:[%s0 + $0x310] sm:$0xff]
    %v143 = vld [vmem:[%s0 + $0x318] sm:$0xff]
    %v144 = vld [vmem:[%s0 + $0x320] sm:$0xff]
    %v145 = vld [vmem:[%s0 + $0x328] sm:$0xff]
    %v146 = vld [vmem:[%s0 + $0x330] sm:$0xff]
    %v147 = vld [vmem:[%s0 + $0x338] sm:$0xff]
    %v148 = vld [vmem:[%s0 + $0x340] sm:$0xff]
    %v149 = vld [vmem:[%s0 + $0x348] sm:$0xff]
    %v150 = vld [vmem:[%s0 + $0x350] sm:$0xff]
    %v151 = vld [vmem:[%s0 + $0x358] sm:$0xff]
    %v152 = vld [vmem:[%s0 + $0x360] sm:$0xff]
    %v153 = vld [vmem:[%s0 + $0x368] sm:$0xff]
    %v154 = vld [vmem:[%s0 + $0x370] sm:$0xff]
    %v155 = vld [vmem:[%s0 + $0x378] sm:$0xff]
    %v156 = vld [vmem:[%s0 + $0x380] sm:$0xff]
    %v157 = vld [vmem:[%s0 + $0x388] sm:$0xff]
    %v158 = vld [vmem:[%s0 + $0x390] sm:$0xff]
    %v159 = vld [vmem:[%s0 + $0x398] sm:$0xff]
    %v160 = vld [vmem:[%s0 + $0x3a0] sm:$0xff]
    %v161 = vld [vmem:[%s0 + $0x3a8] sm:$0xff]
    %v162 = vld [vmem:[%s0 + $0x3b0] sm:$0xff]
    %v163 = vld [vmem:[%s0 + $0x3b8] sm:$0xff]
    %v164 = vld [vmem:[%s0 + $0x3c0] sm:$0xff]
    %v165 = vld [vmem:[%s0 + $0x3c8] sm:$0xff]
    %v166 = vld [vmem:[%s0 + $0x3d0] sm:$0xff]
    %v167 = vld [vmem:[%s0 + $0x3d8] sm:$0xff]
    %v168 = vld [vmem:[%s0 + $0x3e0] sm:$0xff]
    %v169 = vld [vmem:[%s0 + $0x3e8] sm:$0xff]
    %v170 = vld [vmem:[%s0 + $0x3f0] sm:$0xff]
    %v171 = vld [vmem:[%s0 + $0x3f8] sm:$0xff]
    %v172 = vld [vmem:[%s0 + $0x400] sm:$0xff]
    %v173 = vld [vmem:[%s0 + $0x408] sm:$0xff]
    %v174 = vld [vmem:[%s0 + $0x410] sm:$0xff]
    %v175 = vld [vmem:[%s0 + $0x418] sm:$0xff]
    %v176 = vld [vmem:[%s0 + $0x420] sm:$0xff]
    %v177 = vld [vmem:[%s0 + $0x428] sm:$0xff]
    %v178 = vld [vmem:[%s0 + $0x430] sm:$0xff]
    %v179 = vld [vmem:[%s0 + $0x438] sm:$0xff]
    %v180 = vld [vmem:[%s0 + $0x440] sm:$0xff]
    %v181 = vld [vmem:[%s0 + $0x448] sm:$0xff]
    %v182 = vld [vmem:[%s0 + $0x450] sm:$0xff]
    %v183 = vld [vmem:[%s0 + $0x458] sm:$0xff]
    %v184 = vld [vmem:[%s0 + $0x460] sm:$0xff]
    %v185 = vld [vmem:[%s0 + $0x468] sm:$0xff]
    %v186 = vld [vmem:[%s0 + $0x470] sm:$0xff]
    %v187 = vld [vmem:[%s0 + $0x478] sm:$0xff]
    %v188 = vld [vmem:[%s0 + $0x480] sm:$0xff]
    %v189 = vld [vmem:[%s0 + $0x488] sm:$0xff]
    %v190 = vld [vmem:[%s0 + $0x490] sm:$0xff]
    %v191 = vld [vmem:[%s0 + $0x498] sm:$0xff]
    %v192 = vld [vmem:[%s0 + $0x4a0] sm:$0xff]
    %v193 = vld [vmem:[%s0 + $0x4a8] sm:$0xff]
    %v194 = vld [vmem:[%s0 + $0x4b0] sm:$0xff]
    %v195 = vld [vmem:[%s0 + $0x4b8] sm:$0xff]
    %v196 = vld [vmem:[%s0 + $0x4c0] sm:$0xff]
    %v197 = vld [vmem:[%s0 + $0x4c8] sm:$0xff]
    %v198 = vld [vmem:[%s0 + $0x4d0] sm:$0xff]
    %v199 = vld [vmem:[%s0 + $0x4d8] sm:$0xff]
    %v200 = vld [vmem:[%s0 + $0x4e0] sm:$0xff]
    %v201 = vld [vmem:[%s0 + $0x4e8] sm:$0xff]
    %v202 = vld [vmem:[%s0 + $0x4f0] sm:$0xff]
    %v203 = vld [vmem:[%s0 + $0x4f8] sm:$0xff]
    %v204 = vld [vmem:[%s0 + $0x500] sm:$0xff]
    %v205 = vld [vmem:[%s0 + $0x508] sm:$0xff]
    %v206 = vld [vmem:[%s0 + $0x510] sm:$0xff]
    %v207 = vld [vmem:[%s0 + $0x518] sm:$0xff]
    %v208 = vld [vmem:[%s0 + $0x520] sm:$0xff]
    %v209 = vld [vmem:[%s0 + $0x528] sm:$0xff]
    %v210 = vld [vmem:[%s0 + $0x530] sm:$0xff]
    %v211 = vld [vmem:[%s0 + $0x538] sm:$0xff]
    %v212 = vld [vmem:[%s0 + $0x540] sm:$0xff]
    %v213 = vld [vmem:[#allocation2] sm:$0xff]
    %v214 = vld [vmem:[#allocation2 + $0x8] sm:$0xff]
    %v215 = vld [vmem:[#allocation2 + $0x10] sm:$0xff]
    %v216 = vld [vmem:[#allocation2 + $0x18] sm:$0x1]
    %v217 = vld [vmem:[#allocation4] sm:$0x1]
    %v219 = vperm.slane %v217, 0
    %vm221 = vcmask 203776
    %v223 = vsel %vm221, %v44, 0
    %v226 = vsel %vm221, %v45, 0
    %v229 = vsel %vm221, %v46, 0
    %v232 = vsel %vm221, %v47, 0
    %v235 = vsel %vm221, %v48, 0
    %v238 = vsel %vm221, %v49, 0
    %v241 = vsel %vm221, %v50, 0
    %v244 = vsel %vm221, %v51, 0
    %v247 = vsel %vm221, %v52, 0
    %v250 = vsel %vm221, %v53, 0
    %v253 = vsel %vm221, %v54, 0
    %v256 = vsel %vm221, %v55, 0
    %v259 = vsel %vm221, %v56, 0
    %v262 = vsel %vm221, %v57, 0
    %v265 = vsel %vm221, %v58, 0
    %v268 = vsel %vm221, %v59, 0
    %v271 = vsel %vm221, %v60, 0
    %v274 = vsel %vm221, %v61, 0
    %v277 = vsel %vm221, %v62, 0
    %v280 = vsel %vm221, %v63, 0
    %v283 = vsel %vm221, %v64, 0
    %v286 = vsel %vm221, %v65, 0
    %v289 = vsel %vm221, %v66, 0
    %v292 = vsel %vm221, %v67, 0
    %v295 = vsel %vm221, %v68, 0
    %v298 = vsel %vm221, %v69, 0
    %v301 = vsel %vm221, %v70, 0
    %v304 = vsel %vm221, %v71, 0
    %v307 = vsel %vm221, %v72, 0
    %v310 = vsel %vm221, %v73, 0
    %v313 = vsel %vm221, %v74, 0
    %v316 = vsel %vm221, %v75, 0
    %v319 = vsel %vm221, %v76, 0
    %v322 = vsel %vm221, %v77, 0
    %v325 = vsel %vm221, %v78, 0
    %v328 = vsel %vm221, %v79, 0
    %v331 = vsel %vm221, %v80, 0
    %v334 = vsel %vm221, %v81, 0
    %v337 = vsel %vm221, %v82, 0
    %v340 = vsel %vm221, %v83, 0
    %v343 = vsel %vm221, %v84, 0
    %v346 = vsel %vm221, %v85, 0
    %v349 = vsel %vm221, %v86, 0
    %v352 = vsel %vm221, %v87, 0
    %v355 = vsel %vm221, %v88, 0
    %v358 = vsel %vm221, %v89, 0
    %v361 = vsel %vm221, %v90, 0
    %v364 = vsel %vm221, %v91, 0
    %v367 = vsel %vm221, %v92, 0
    %v370 = vsel %vm221, %v93, 0
    %v373 = vsel %vm221, %v94, 0
    %v376 = vsel %vm221, %v95, 0
    %v379 = vsel %vm221, %v96, 0
    %v382 = vsel %vm221, %v97, 0
    %v385 = vsel %vm221, %v98, 0
    %v388 = vsel %vm221, %v99, 0
    %v391 = vsel %vm221, %v100, 0
    %v394 = vsel %vm221, %v101, 0
    %v397 = vsel %vm221, %v102, 0
    %v400 = vsel %vm221, %v103, 0
    %v403 = vsel %vm221, %v104, 0
    %v406 = vsel %vm221, %v105, 0
    %v409 = vsel %vm221, %v106, 0
    %v412 = vsel %vm221, %v107, 0
    %v415 = vsel %vm221, %v108, 0
    %v418 = vsel %vm221, %v109, 0
    %v421 = vsel %vm221, %v110, 0
    %v424 = vsel %vm221, %v111, 0
    %v427 = vsel %vm221, %v112, 0
    %v430 = vsel %vm221, %v113, 0
    %v433 = vsel %vm221, %v114, 0
    %v436 = vsel %vm221, %v115, 0
    %v439 = vsel %vm221, %v116, 0
    %v442 = vsel %vm221, %v117, 0
    %v445 = vsel %vm221, %v118, 0
    %v448 = vsel %vm221, %v119, 0
    %v451 = vsel %vm221, %v120, 0
    %v454 = vsel %vm221, %v121, 0
    %v457 = vsel %vm221, %v122, 0
    %v460 = vsel %vm221, %v123, 0
    %v463 = vsel %vm221, %v124, 0
    %v466 = vsel %vm221, %v125, 0
    %v469 = vsel %vm221, %v126, 0
    %v472 = vsel %vm221, %v127, 0
    %v475 = vsel %vm221, %v128, 0
    %v478 = vsel %vm221, %v129, 0
    %v481 = vsel %vm221, %v130, 0
    %v484 = vsel %vm221, %v131, 0
    %v487 = vsel %vm221, %v132, 0
    %v490 = vsel %vm221, %v133, 0
    %v493 = vsel %vm221, %v134, 0
    %v496 = vsel %vm221, %v135, 0
    %v499 = vsel %vm221, %v136, 0
    %v502 = vsel %vm221, %v137, 0
    %v505 = vsel %vm221, %v138, 0
    %v508 = vsel %vm221, %v139, 0
    %v511 = vsel %vm221, %v140, 0
    %v514 = vsel %vm221, %v141, 0
    %v517 = vsel %vm221, %v142, 0
    %v520 = vsel %vm221, %v143, 0
    %v523 = vsel %vm221, %v144, 0
    %v526 = vsel %vm221, %v145, 0
    %v529 = vsel %vm221, %v146, 0
    %v532 = vsel %vm221, %v147, 0
    %v535 = vsel %vm221, %v148, 0
    %v538 = vsel %vm221, %v149, 0
    %v541 = vsel %vm221, %v150, 0
    %v544 = vsel %vm221, %v151, 0
    %v547 = vsel %vm221, %v152, 0
    %v550 = vsel %vm221, %v153, 0
    %v553 = vsel %vm221, %v154, 0
    %v556 = vsel %vm221, %v155, 0
    %v559 = vsel %vm221, %v156, 0
    %v562 = vsel %vm221, %v157, 0
    %v565 = vsel %vm221, %v158, 0
    %v568 = vsel %vm221, %v159, 0
    %v571 = vsel %vm221, %v160, 0
    %v574 = vsel %vm221, %v161, 0
    %v577 = vsel %vm221, %v162, 0
    %v580 = vsel %vm221, %v163, 0
    %v583 = vsel %vm221, %v164, 0
    %v586 = vsel %vm221, %v165, 0
    %v589 = vsel %vm221, %v166, 0
    %v592 = vsel %vm221, %v167, 0
    %v595 = vsel %vm221, %v168, 0
    %v598 = vsel %vm221, %v169, 0
    %v601 = vsel %vm221, %v170, 0
    %v604 = vsel %vm221, %v171, 0
    %v607 = vsel %vm221, %v172, 0
    %v610 = vsel %vm221, %v173, 0
    %v613 = vsel %vm221, %v174, 0
    %v616 = vsel %vm221, %v175, 0
    %v619 = vsel %vm221, %v176, 0
    %v622 = vsel %vm221, %v177, 0
    %v625 = vsel %vm221, %v178, 0
    %v628 = vsel %vm221, %v179, 0
    %v631 = vsel %vm221, %v180, 0
    %v634 = vsel %vm221, %v181, 0
    %v637 = vsel %vm221, %v182, 0
    %v640 = vsel %vm221, %v183, 0
    %v643 = vsel %vm221, %v184, 0
    %v646 = vsel %vm221, %v185, 0
    %v649 = vsel %vm221, %v186, 0
    %v652 = vsel %vm221, %v187, 0
    %v655 = vsel %vm221, %v188, 0
    %v658 = vsel %vm221, %v189, 0
    %v661 = vsel %vm221, %v190, 0
    %v664 = vsel %vm221, %v191, 0
    %v667 = vsel %vm221, %v192, 0
    %v670 = vsel %vm221, %v193, 0
    %v673 = vsel %vm221, %v194, 0
    %v676 = vsel %vm221, %v195, 0
    %v679 = vsel %vm221, %v196, 0
    %v682 = vsel %vm221, %v197, 0
    %v685 = vsel %vm221, %v198, 0
    %v688 = vsel %vm221, %v199, 0
    %v691 = vsel %vm221, %v200, 0
    %v694 = vsel %vm221, %v201, 0
    %v697 = vsel %vm221, %v202, 0
    %v700 = vsel %vm221, %v203, 0
    %v703 = vsel %vm221, %v204, 0
    %v706 = vsel %vm221, %v205, 0
    %v709 = vsel %vm221, %v206, 0
    %v712 = vsel %vm221, %v207, 0
    %v715 = vsel %vm221, %v208, 0
    %v718 = vsel %vm221, %v209, 0
    %v721 = vsel %vm221, %v210, 0
    %v724 = vsel %vm221, %v211, 0
    %v727 = vsel %vm221, %v212, 0
    %vm729 = vcmask 1040384
    %v731 = vsel %vm729, %v216, 0
    %733 = vmatpush.msra.mxu0 0.0
    %734 = vmatpush.msra.mxu0 0.0
    %735 = vmatpush.msra.mxu0 0.0
    %736 = vmatpush.msra.mxu0 0.0
    %737 = vmatpush.msra.mxu0 0.0
    %738 = vmatpush.msra.mxu0 0.0
    %739 = vmatpush.msra.mxu0 0.0
    %740 = vmatpush.msra.mxu0 0.0
    %741 = vmatpush.msra.mxu0 0.0
    %742 = vmatpush.msra.mxu0 0.0
    %743 = vmatpush.msra.mxu0 0.0
    %744 = vmatpush.msra.mxu0 0.0
    %745 = vmatpush.msra.mxu0 %v731
    %746 = vmatpush.msra.mxu0 %v215
    %747 = vmatpush.msra.mxu0 %v214
    %748 = vmatpush.msra.mxu0 %v213
    %749 = vmatmul.f32.gmra.mxu0 %v223
    %v750 = vpop.f32.mrf.mxu0
    %v751 = vadd.f32 %v219, %v750
    %752 = vmatmul.f32.gmra.mxu0 %v226
    %v753 = vpop.f32.mrf.mxu0
    %v754 = vadd.f32 %v219, %v753
    %755 = vmatmul.f32.gmra.mxu0 %v229
    %v756 = vpop.f32.mrf.mxu0
    %v757 = vadd.f32 %v219, %v756
    %758 = vmatmul.f32.gmra.mxu0 %v232
    %v759 = vpop.f32.mrf.mxu0
    %v760 = vadd.f32 %v219, %v759
    %761 = vmatmul.f32.gmra.mxu0 %v235
    %v762 = vpop.f32.mrf.mxu0
    %v763 = vadd.f32 %v219, %v762
    %764 = vmatmul.f32.gmra.mxu0 %v238
    %v765 = vpop.f32.mrf.mxu0
    %v766 = vadd.f32 %v219, %v765
    %767 = vmatmul.f32.gmra.mxu0 %v241
    %v768 = vpop.f32.mrf.mxu0
    %v769 = vadd.f32 %v219, %v768
    %770 = vmatmul.f32.gmra.mxu0 %v244
    %v771 = vpop.f32.mrf.mxu0
    %v772 = vadd.f32 %v219, %v771
    %773 = vmatmul.f32.gmra.mxu0 %v247
    %v774 = vpop.f32.mrf.mxu0
    %v775 = vadd.f32 %v219, %v774
    %776 = vmatmul.f32.gmra.mxu0 %v250
    %v777 = vpop.f32.mrf.mxu0
    %v778 = vadd.f32 %v219, %v777
    %779 = vmatmul.f32.gmra.mxu0 %v253
    %v780 = vpop.f32.mrf.mxu0
    %v781 = vadd.f32 %v219, %v780
    %782 = vmatmul.f32.gmra.mxu0 %v256
    %v783 = vpop.f32.mrf.mxu0
    %v784 = vadd.f32 %v219, %v783
    %785 = vmatmul.f32.gmra.mxu0 %v259
    %v786 = vpop.f32.mrf.mxu0
    %v787 = vadd.f32 %v219, %v786
    %788 = vmatmul.f32.gmra.mxu0 %v262
    %v789 = vpop.f32.mrf.mxu0
    %v790 = vadd.f32 %v219, %v789
    %791 = vmatmul.f32.gmra.mxu0 %v265
    %v792 = vpop.f32.mrf.mxu0
    %v793 = vadd.f32 %v219, %v792
    %794 = vmatmul.f32.gmra.mxu0 %v268
    %v795 = vpop.f32.mrf.mxu0
    %v796 = vadd.f32 %v219, %v795
    %797 = vmatmul.f32.gmra.mxu0 %v271
    %v798 = vpop.f32.mrf.mxu0
    %v799 = vadd.f32 %v219, %v798
    %800 = vmatmul.f32.gmra.mxu0 %v274
    %v801 = vpop.f32.mrf.mxu0
    %v802 = vadd.f32 %v219, %v801
    %803 = vmatmul.f32.gmra.mxu0 %v277
    %v804 = vpop.f32.mrf.mxu0
    %v805 = vadd.f32 %v219, %v804
    %806 = vmatmul.f32.gmra.mxu0 %v280
    %v807 = vpop.f32.mrf.mxu0
    %v808 = vadd.f32 %v219, %v807
    %809 = vmatmul.f32.gmra.mxu0 %v283
    %v810 = vpop.f32.mrf.mxu0
    %v811 = vadd.f32 %v219, %v810
    %812 = vmatmul.f32.gmra.mxu0 %v286
    %v813 = vpop.f32.mrf.mxu0
    %v814 = vadd.f32 %v219, %v813
    %815 = vmatmul.f32.gmra.mxu0 %v289
    %v816 = vpop.f32.mrf.mxu0
    %v817 = vadd.f32 %v219, %v816
    %818 = vmatmul.f32.gmra.mxu0 %v292
    %v819 = vpop.f32.mrf.mxu0
    %v820 = vadd.f32 %v219, %v819
    %821 = vmatmul.f32.gmra.mxu0 %v295
    %v822 = vpop.f32.mrf.mxu0
    %v823 = vadd.f32 %v219, %v822
    %824 = vmatmul.f32.gmra.mxu0 %v298
    %v825 = vpop.f32.mrf.mxu0
    %v826 = vadd.f32 %v219, %v825
    %827 = vmatmul.f32.gmra.mxu0 %v301
    %v828 = vpop.f32.mrf.mxu0
    %v829 = vadd.f32 %v219, %v828
    %830 = vmatmul.f32.gmra.mxu0 %v304
    %v831 = vpop.f32.mrf.mxu0
    %v832 = vadd.f32 %v219, %v831
    %833 = vmatmul.f32.gmra.mxu0 %v307
    %v834 = vpop.f32.mrf.mxu0
    %v835 = vadd.f32 %v219, %v834
    %836 = vmatmul.f32.gmra.mxu0 %v310
    %v837 = vpop.f32.mrf.mxu0
    %v838 = vadd.f32 %v219, %v837
    %839 = vmatmul.f32.gmra.mxu0 %v313
    %v840 = vpop.f32.mrf.mxu0
    %v841 = vadd.f32 %v219, %v840
    %842 = vmatmul.f32.gmra.mxu0 %v316
    %v843 = vpop.f32.mrf.mxu0
    %v844 = vadd.f32 %v219, %v843
    %845 = vmatmul.f32.gmra.mxu0 %v319
    %v846 = vpop.f32.mrf.mxu0
    %v847 = vadd.f32 %v219, %v846
    %848 = vmatmul.f32.gmra.mxu0 %v322
    %v849 = vpop.f32.mrf.mxu0
    %v850 = vadd.f32 %v219, %v849
    %851 = vmatmul.f32.gmra.mxu0 %v325
    %v852 = vpop.f32.mrf.mxu0
    %v853 = vadd.f32 %v219, %v852
    %854 = vmatmul.f32.gmra.mxu0 %v328
    %v855 = vpop.f32.mrf.mxu0
    %v856 = vadd.f32 %v219, %v855
    %857 = vmatmul.f32.gmra.mxu0 %v331
    %v858 = vpop.f32.mrf.mxu0
    %v859 = vadd.f32 %v219, %v858
    %860 = vmatmul.f32.gmra.mxu0 %v334
    %v861 = vpop.f32.mrf.mxu0
    %v862 = vadd.f32 %v219, %v861
    %863 = vmatmul.f32.gmra.mxu0 %v337
    %v864 = vpop.f32.mrf.mxu0
    %v865 = vadd.f32 %v219, %v864
    %866 = vmatmul.f32.gmra.mxu0 %v340
    %v867 = vpop.f32.mrf.mxu0
    %v868 = vadd.f32 %v219, %v867
    %869 = vmatmul.f32.gmra.mxu0 %v343
    %v870 = vpop.f32.mrf.mxu0
    %v871 = vadd.f32 %v219, %v870
    %872 = vmatmul.f32.gmra.mxu0 %v346
    %v873 = vpop.f32.mrf.mxu0
    %v874 = vadd.f32 %v219, %v873
    %875 = vmatmul.f32.gmra.mxu0 %v349
    %v876 = vpop.f32.mrf.mxu0
    %v877 = vadd.f32 %v219, %v876
    %878 = vmatmul.f32.gmra.mxu0 %v352
    %v879 = vpop.f32.mrf.mxu0
    %v880 = vadd.f32 %v219, %v879
    %881 = vmatmul.f32.gmra.mxu0 %v355
    %v882 = vpop.f32.mrf.mxu0
    %v883 = vadd.f32 %v219, %v882
    %884 = vmatmul.f32.gmra.mxu0 %v358
    %v885 = vpop.f32.mrf.mxu0
    %v886 = vadd.f32 %v219, %v885
    %887 = vmatmul.f32.gmra.mxu0 %v361
    %v888 = vpop.f32.mrf.mxu0
    %v889 = vadd.f32 %v219, %v888
    %890 = vmatmul.f32.gmra.mxu0 %v364
    %v891 = vpop.f32.mrf.mxu0
    %v892 = vadd.f32 %v219, %v891
    %893 = vmatmul.f32.gmra.mxu0 %v367
    %v894 = vpop.f32.mrf.mxu0
    %v895 = vadd.f32 %v219, %v894
    %896 = vmatmul.f32.gmra.mxu0 %v370
    %v897 = vpop.f32.mrf.mxu0
    %v898 = vadd.f32 %v219, %v897
    %899 = vmatmul.f32.gmra.mxu0 %v373
    %v900 = vpop.f32.mrf.mxu0
    %v901 = vadd.f32 %v219, %v900
    %902 = vmatmul.f32.gmra.mxu0 %v376
    %v903 = vpop.f32.mrf.mxu0
    %v904 = vadd.f32 %v219, %v903
    %905 = vmatmul.f32.gmra.mxu0 %v379
    %v906 = vpop.f32.mrf.mxu0
    %v907 = vadd.f32 %v219, %v906
    %908 = vmatmul.f32.gmra.mxu0 %v382
    %v909 = vpop.f32.mrf.mxu0
    %v910 = vadd.f32 %v219, %v909
    %911 = vmatmul.f32.gmra.mxu0 %v385
    %v912 = vpop.f32.mrf.mxu0
    %v913 = vadd.f32 %v219, %v912
    %914 = vmatmul.f32.gmra.mxu0 %v388
    %v915 = vpop.f32.mrf.mxu0
    %v916 = vadd.f32 %v219, %v915
    %917 = vmatmul.f32.gmra.mxu0 %v391
    %v918 = vpop.f32.mrf.mxu0
    %v919 = vadd.f32 %v219, %v918
    %920 = vmatmul.f32.gmra.mxu0 %v394
    %v921 = vpop.f32.mrf.mxu0
    %v922 = vadd.f32 %v219, %v921
    %923 = vmatmul.f32.gmra.mxu0 %v397
    %v924 = vpop.f32.mrf.mxu0
    %v925 = vadd.f32 %v219, %v924
    %926 = vmatmul.f32.gmra.mxu0 %v400
    %v927 = vpop.f32.mrf.mxu0
    %v928 = vadd.f32 %v219, %v927
    %929 = vmatmul.f32.gmra.mxu0 %v403
    %v930 = vpop.f32.mrf.mxu0
    %v931 = vadd.f32 %v219, %v930
    %932 = vmatmul.f32.gmra.mxu0 %v406
    %v933 = vpop.f32.mrf.mxu0
    %v934 = vadd.f32 %v219, %v933
    %935 = vmatmul.f32.gmra.mxu0 %v409
    %v936 = vpop.f32.mrf.mxu0
    %v937 = vadd.f32 %v219, %v936
    %938 = vmatmul.f32.gmra.mxu0 %v412
    %v939 = vpop.f32.mrf.mxu0
    %v940 = vadd.f32 %v219, %v939
    %941 = vmatmul.f32.gmra.mxu0 %v415
    %v942 = vpop.f32.mrf.mxu0
    %v943 = vadd.f32 %v219, %v942
    %944 = vmatmul.f32.gmra.mxu0 %v418
    %v945 = vpop.f32.mrf.mxu0
    %v946 = vadd.f32 %v219, %v945
    %947 = vmatmul.f32.gmra.mxu0 %v421
    %v948 = vpop.f32.mrf.mxu0
    %v949 = vadd.f32 %v219, %v948
    %950 = vmatmul.f32.gmra.mxu0 %v424
    %v951 = vpop.f32.mrf.mxu0
    %v952 = vadd.f32 %v219, %v951
    %953 = vmatmul.f32.gmra.mxu0 %v427
    %v954 = vpop.f32.mrf.mxu0
    %v955 = vadd.f32 %v219, %v954
    %956 = vmatmul.f32.gmra.mxu0 %v430
    %v957 = vpop.f32.mrf.mxu0
    %v958 = vadd.f32 %v219, %v957
    %959 = vmatmul.f32.gmra.mxu0 %v433
    %v960 = vpop.f32.mrf.mxu0
    %v961 = vadd.f32 %v219, %v960
    %962 = vmatmul.f32.gmra.mxu0 %v436
    %v963 = vpop.f32.mrf.mxu0
    %v964 = vadd.f32 %v219, %v963
    %965 = vmatmul.f32.gmra.mxu0 %v439
    %v966 = vpop.f32.mrf.mxu0
    %v967 = vadd.f32 %v219, %v966
    %968 = vmatmul.f32.gmra.mxu0 %v442
    %v969 = vpop.f32.mrf.mxu0
    %v970 = vadd.f32 %v219, %v969
    %971 = vmatmul.f32.gmra.mxu0 %v445
    %v972 = vpop.f32.mrf.mxu0
    %v973 = vadd.f32 %v219, %v972
    %974 = vmatmul.f32.gmra.mxu0 %v448
    %v975 = vpop.f32.mrf.mxu0
    %v976 = vadd.f32 %v219, %v975
    %977 = vmatmul.f32.gmra.mxu0 %v451
    %v978 = vpop.f32.mrf.mxu0
    %v979 = vadd.f32 %v219, %v978
    %980 = vmatmul.f32.gmra.mxu0 %v454
    %v981 = vpop.f32.mrf.mxu0
    %v982 = vadd.f32 %v219, %v981
    %983 = vmatmul.f32.gmra.mxu0 %v457
    %v984 = vpop.f32.mrf.mxu0
    %v985 = vadd.f32 %v219, %v984
    %986 = vmatmul.f32.gmra.mxu0 %v460
    %v987 = vpop.f32.mrf.mxu0
    %v988 = vadd.f32 %v219, %v987
    %989 = vmatmul.f32.gmra.mxu0 %v463
    %v990 = vpop.f32.mrf.mxu0
    %v991 = vadd.f32 %v219, %v990
    %992 = vmatmul.f32.gmra.mxu0 %v466
    %v993 = vpop.f32.mrf.mxu0
    %v994 = vadd.f32 %v219, %v993
    %995 = vmatmul.f32.gmra.mxu0 %v469
    %v996 = vpop.f32.mrf.mxu0
    %v997 = vadd.f32 %v219, %v996
    %998 = vmatmul.f32.gmra.mxu0 %v472
    %v999 = vpop.f32.mrf.mxu0
    %v1000 = vadd.f32 %v219, %v999
    %1001 = vmatmul.f32.gmra.mxu0 %v475
    %v1002 = vpop.f32.mrf.mxu0
    %v1003 = vadd.f32 %v219, %v1002
    %1004 = vmatmul.f32.gmra.mxu0 %v478
    %v1005 = vpop.f32.mrf.mxu0
    %v1006 = vadd.f32 %v219, %v1005
    %1007 = vmatmul.f32.gmra.mxu0 %v481
    %v1008 = vpop.f32.mrf.mxu0
    %v1009 = vadd.f32 %v219, %v1008
    %1010 = vmatmul.f32.gmra.mxu0 %v484
    %v1011 = vpop.f32.mrf.mxu0
    %v1012 = vadd.f32 %v219, %v1011
    %1013 = vmatmul.f32.gmra.mxu0 %v487
    %v1014 = vpop.f32.mrf.mxu0
    %v1015 = vadd.f32 %v219, %v1014
    %1016 = vmatmul.f32.gmra.mxu0 %v490
    %v1017 = vpop.f32.mrf.mxu0
    %v1018 = vadd.f32 %v219, %v1017
    %1019 = vmatmul.f32.gmra.mxu0 %v493
    %v1020 = vpop.f32.mrf.mxu0
    %v1021 = vadd.f32 %v219, %v1020
    %1022 = vmatmul.f32.gmra.mxu0 %v496
    %v1023 = vpop.f32.mrf.mxu0
    %v1024 = vadd.f32 %v219, %v1023
    %1025 = vmatmul.f32.gmra.mxu0 %v499
    %v1026 = vpop.f32.mrf.mxu0
    %v1027 = vadd.f32 %v219, %v1026
    %1028 = vmatmul.f32.gmra.mxu0 %v502
    %v1029 = vpop.f32.mrf.mxu0
    %v1030 = vadd.f32 %v219, %v1029
    %1031 = vmatmul.f32.gmra.mxu0 %v505
    %v1032 = vpop.f32.mrf.mxu0
    %v1033 = vadd.f32 %v219, %v1032
    %1034 = vmatmul.f32.gmra.mxu0 %v508
    %v1035 = vpop.f32.mrf.mxu0
    %v1036 = vadd.f32 %v219, %v1035
    %1037 = vmatmul.f32.gmra.mxu0 %v511
    %v1038 = vpop.f32.mrf.mxu0
    %v1039 = vadd.f32 %v219, %v1038
    %1040 = vmatmul.f32.gmra.mxu0 %v514
    %v1041 = vpop.f32.mrf.mxu0
    %v1042 = vadd.f32 %v219, %v1041
    %1043 = vmatmul.f32.gmra.mxu0 %v517
    %v1044 = vpop.f32.mrf.mxu0
    %v1045 = vadd.f32 %v219, %v1044
    %1046 = vmatmul.f32.gmra.mxu0 %v520
    %v1047 = vpop.f32.mrf.mxu0
    %v1048 = vadd.f32 %v219, %v1047
    %1049 = vmatmul.f32.gmra.mxu0 %v523
    %v1050 = vpop.f32.mrf.mxu0
    %v1051 = vadd.f32 %v219, %v1050
    %1052 = vmatmul.f32.gmra.mxu0 %v526
    %v1053 = vpop.f32.mrf.mxu0
    %v1054 = vadd.f32 %v219, %v1053
    %1055 = vmatmul.f32.gmra.mxu0 %v529
    %v1056 = vpop.f32.mrf.mxu0
    %v1057 = vadd.f32 %v219, %v1056
    %1058 = vmatmul.f32.gmra.mxu0 %v532
    %v1059 = vpop.f32.mrf.mxu0
    %v1060 = vadd.f32 %v219, %v1059
    %1061 = vmatmul.f32.gmra.mxu0 %v535
    %v1062 = vpop.f32.mrf.mxu0
    %v1063 = vadd.f32 %v219, %v1062
    %1064 = vmatmul.f32.gmra.mxu0 %v538
    %v1065 = vpop.f32.mrf.mxu0
    %v1066 = vadd.f32 %v219, %v1065
    %1067 = vmatmul.f32.gmra.mxu0 %v541
    %v1068 = vpop.f32.mrf.mxu0
    %v1069 = vadd.f32 %v219, %v1068
    %1070 = vmatmul.f32.gmra.mxu0 %v544
    %v1071 = vpop.f32.mrf.mxu0
    %v1072 = vadd.f32 %v219, %v1071
    %1073 = vmatmul.f32.gmra.mxu0 %v547
    %v1074 = vpop.f32.mrf.mxu0
    %v1075 = vadd.f32 %v219, %v1074
    %1076 = vmatmul.f32.gmra.mxu0 %v550
    %v1077 = vpop.f32.mrf.mxu0
    %v1078 = vadd.f32 %v219, %v1077
    %1079 = vmatmul.f32.gmra.mxu0 %v553
    %v1080 = vpop.f32.mrf.mxu0
    %v1081 = vadd.f32 %v219, %v1080
    %1082 = vmatmul.f32.gmra.mxu0 %v556
    %v1083 = vpop.f32.mrf.mxu0
    %v1084 = vadd.f32 %v219, %v1083
    %1085 = vmatmul.f32.gmra.mxu0 %v559
    %v1086 = vpop.f32.mrf.mxu0
    %v1087 = vadd.f32 %v219, %v1086
    %1088 = vmatmul.f32.gmra.mxu0 %v562
    %v1089 = vpop.f32.mrf.mxu0
    %v1090 = vadd.f32 %v219, %v1089
    %1091 = vmatmul.f32.gmra.mxu0 %v565
    %v1092 = vpop.f32.mrf.mxu0
    %v1093 = vadd.f32 %v219, %v1092
    %1094 = vmatmul.f32.gmra.mxu0 %v568
    %v1095 = vpop.f32.mrf.mxu0
    %v1096 = vadd.f32 %v219, %v1095
    %1097 = vmatmul.f32.gmra.mxu0 %v571
    %v1098 = vpop.f32.mrf.mxu0
    %v1099 = vadd.f32 %v219, %v1098
    %1100 = vmatmul.f32.gmra.mxu0 %v574
    %v1101 = vpop.f32.mrf.mxu0
    %v1102 = vadd.f32 %v219, %v1101
    %1103 = vmatmul.f32.gmra.mxu0 %v577
    %v1104 = vpop.f32.mrf.mxu0
    %v1105 = vadd.f32 %v219, %v1104
    %1106 = vmatmul.f32.gmra.mxu0 %v580
    %v1107 = vpop.f32.mrf.mxu0
    %v1108 = vadd.f32 %v219, %v1107
    %1109 = vmatmul.f32.gmra.mxu0 %v583
    %v1110 = vpop.f32.mrf.mxu0
    %v1111 = vadd.f32 %v219, %v1110
    %1112 = vmatmul.f32.gmra.mxu0 %v586
    %v1113 = vpop.f32.mrf.mxu0
    %v1114 = vadd.f32 %v219, %v1113
    %1115 = vmatmul.f32.gmra.mxu0 %v589
    %v1116 = vpop.f32.mrf.mxu0
    %v1117 = vadd.f32 %v219, %v1116
    %1118 = vmatmul.f32.gmra.mxu0 %v592
    %v1119 = vpop.f32.mrf.mxu0
    %v1120 = vadd.f32 %v219, %v1119
    %1121 = vmatmul.f32.gmra.mxu0 %v595
    %v1122 = vpop.f32.mrf.mxu0
    %v1123 = vadd.f32 %v219, %v1122
    %1124 = vmatmul.f32.gmra.mxu0 %v598
    %v1125 = vpop.f32.mrf.mxu0
    %v1126 = vadd.f32 %v219, %v1125
    %1127 = vmatmul.f32.gmra.mxu0 %v601
    %v1128 = vpop.f32.mrf.mxu0
    %v1129 = vadd.f32 %v219, %v1128
    %1130 = vmatmul.f32.gmra.mxu0 %v604
    %v1131 = vpop.f32.mrf.mxu0
    %v1132 = vadd.f32 %v219, %v1131
    %1133 = vmatmul.f32.gmra.mxu0 %v607
    %v1134 = vpop.f32.mrf.mxu0
    %v1135 = vadd.f32 %v219, %v1134
    %1136 = vmatmul.f32.gmra.mxu0 %v610
    %v1137 = vpop.f32.mrf.mxu0
    %v1138 = vadd.f32 %v219, %v1137
    %1139 = vmatmul.f32.gmra.mxu0 %v613
    %v1140 = vpop.f32.mrf.mxu0
    %v1141 = vadd.f32 %v219, %v1140
    %1142 = vmatmul.f32.gmra.mxu0 %v616
    %v1143 = vpop.f32.mrf.mxu0
    %v1144 = vadd.f32 %v219, %v1143
    %1145 = vmatmul.f32.gmra.mxu0 %v619
    %v1146 = vpop.f32.mrf.mxu0
    %v1147 = vadd.f32 %v219, %v1146
    %1148 = vmatmul.f32.gmra.mxu0 %v622
    %v1149 = vpop.f32.mrf.mxu0
    %v1150 = vadd.f32 %v219, %v1149
    %1151 = vmatmul.f32.gmra.mxu0 %v625
    %v1152 = vpop.f32.mrf.mxu0
    %v1153 = vadd.f32 %v219, %v1152
    %1154 = vmatmul.f32.gmra.mxu0 %v628
    %v1155 = vpop.f32.mrf.mxu0
    %v1156 = vadd.f32 %v219, %v1155
    %1157 = vmatmul.f32.gmra.mxu0 %v631
    %v1158 = vpop.f32.mrf.mxu0
    %v1159 = vadd.f32 %v219, %v1158
    %1160 = vmatmul.f32.gmra.mxu0 %v634
    %v1161 = vpop.f32.mrf.mxu0
    %v1162 = vadd.f32 %v219, %v1161
    %1163 = vmatmul.f32.gmra.mxu0 %v637
    %v1164 = vpop.f32.mrf.mxu0
    %v1165 = vadd.f32 %v219, %v1164
    %1166 = vmatmul.f32.gmra.mxu0 %v640
    %v1167 = vpop.f32.mrf.mxu0
    %v1168 = vadd.f32 %v219, %v1167
    %1169 = vmatmul.f32.gmra.mxu0 %v643
    %v1170 = vpop.f32.mrf.mxu0
    %v1171 = vadd.f32 %v219, %v1170
    %1172 = vmatmul.f32.gmra.mxu0 %v646
    %v1173 = vpop.f32.mrf.mxu0
    %v1174 = vadd.f32 %v219, %v1173
    %1175 = vmatmul.f32.gmra.mxu0 %v649
    %v1176 = vpop.f32.mrf.mxu0
    %v1177 = vadd.f32 %v219, %v1176
    %1178 = vmatmul.f32.gmra.mxu0 %v652
    %v1179 = vpop.f32.mrf.mxu0
    %v1180 = vadd.f32 %v219, %v1179
    %1181 = vmatmul.f32.gmra.mxu0 %v655
    %v1182 = vpop.f32.mrf.mxu0
    %v1183 = vadd.f32 %v219, %v1182
    %1184 = vmatmul.f32.gmra.mxu0 %v658
    %v1185 = vpop.f32.mrf.mxu0
    %v1186 = vadd.f32 %v219, %v1185
    %1187 = vmatmul.f32.gmra.mxu0 %v661
    %v1188 = vpop.f32.mrf.mxu0
    %v1189 = vadd.f32 %v219, %v1188
    %1190 = vmatmul.f32.gmra.mxu0 %v664
    %v1191 = vpop.f32.mrf.mxu0
    %v1192 = vadd.f32 %v219, %v1191
    %1193 = vmatmul.f32.gmra.mxu0 %v667
    %v1194 = vpop.f32.mrf.mxu0
    %v1195 = vadd.f32 %v219, %v1194
    %1196 = vmatmul.f32.gmra.mxu0 %v670
    %v1197 = vpop.f32.mrf.mxu0
    %v1198 = vadd.f32 %v219, %v1197
    %1199 = vmatmul.f32.gmra.mxu0 %v673
    %v1200 = vpop.f32.mrf.mxu0
    %v1201 = vadd.f32 %v219, %v1200
    %1202 = vmatmul.f32.gmra.mxu0 %v676
    %v1203 = vpop.f32.mrf.mxu0
    %v1204 = vadd.f32 %v219, %v1203
    %1205 = vmatmul.f32.gmra.mxu0 %v679
    %v1206 = vpop.f32.mrf.mxu0
    %v1207 = vadd.f32 %v219, %v1206
    %1208 = vmatmul.f32.gmra.mxu0 %v682
    %v1209 = vpop.f32.mrf.mxu0
    %v1210 = vadd.f32 %v219, %v1209
    %1211 = vmatmul.f32.gmra.mxu0 %v685
    %v1212 = vpop.f32.mrf.mxu0
    %v1213 = vadd.f32 %v219, %v1212
    %1214 = vmatmul.f32.gmra.mxu0 %v688
    %v1215 = vpop.f32.mrf.mxu0
    %v1216 = vadd.f32 %v219, %v1215
    %1217 = vmatmul.f32.gmra.mxu0 %v691
    %v1218 = vpop.f32.mrf.mxu0
    %v1219 = vadd.f32 %v219, %v1218
    %1220 = vmatmul.f32.gmra.mxu0 %v694
    %v1221 = vpop.f32.mrf.mxu0
    %v1222 = vadd.f32 %v219, %v1221
    %1223 = vmatmul.f32.gmra.mxu0 %v697
    %v1224 = vpop.f32.mrf.mxu0
    %v1225 = vadd.f32 %v219, %v1224
    %1226 = vmatmul.f32.gmra.mxu0 %v700
    %v1227 = vpop.f32.mrf.mxu0
    %v1228 = vadd.f32 %v219, %v1227
    %1229 = vmatmul.f32.gmra.mxu0 %v703
    %v1230 = vpop.f32.mrf.mxu0
    %v1231 = vadd.f32 %v219, %v1230
    %1232 = vmatmul.f32.gmra.mxu0 %v706
    %v1233 = vpop.f32.mrf.mxu0
    %v1234 = vadd.f32 %v219, %v1233
    %1235 = vmatmul.f32.gmra.mxu0 %v709
    %v1236 = vpop.f32.mrf.mxu0
    %v1237 = vadd.f32 %v219, %v1236
    %1238 = vmatmul.f32.gmra.mxu0 %v712
    %v1239 = vpop.f32.mrf.mxu0
    %v1240 = vadd.f32 %v219, %v1239
    %1241 = vmatmul.f32.gmra.mxu0 %v715
    %v1242 = vpop.f32.mrf.mxu0
    %v1243 = vadd.f32 %v219, %v1242
    %1244 = vmatmul.f32.gmra.mxu0 %v718
    %v1245 = vpop.f32.mrf.mxu0
    %v1246 = vadd.f32 %v219, %v1245
    %1247 = vmatmul.f32.gmra.mxu0 %v721
    %v1248 = vpop.f32.mrf.mxu0
    %v1249 = vadd.f32 %v219, %v1248
    %1250 = vmatmul.f32.gmra.mxu0 %v724
    %v1251 = vpop.f32.mrf.mxu0
    %v1252 = vadd.f32 %v219, %v1251
    %1253 = vmatmul.f32.gmra.mxu0 %v727
    %v1254 = vpop.f32.mrf.mxu0
    %v1255 = vadd.f32 %v219, %v1254
    %1256 = vdwg.mxu0
    %v1257 = vmax.f32 %v751, 0.0
    %v1258 = vmax.f32 %v754, 0.0
    %v1259 = vmax.f32 %v757, 0.0
    %v1260 = vmax.f32 %v760, 0.0
    %v1261 = vmax.f32 %v763, 0.0
    %v1262 = vmax.f32 %v766, 0.0
    %v1263 = vmax.f32 %v769, 0.0
    %v1264 = vmax.f32 %v772, 0.0
    %v1265 = vmax.f32 %v775, 0.0
    %v1266 = vmax.f32 %v778, 0.0
    %v1267 = vmax.f32 %v781, 0.0
    %v1268 = vmax.f32 %v784, 0.0
    %v1269 = vmax.f32 %v787, 0.0
    %v1270 = vmax.f32 %v790, 0.0
    %v1271 = vmax.f32 %v793, 0.0
    %v1272 = vmax.f32 %v796, 0.0
    %v1273 = vmax.f32 %v799, 0.0
    %v1274 = vmax.f32 %v802, 0.0
    %v1275 = vmax.f32 %v805, 0.0
    %v1276 = vmax.f32 %v808, 0.0
    %v1277 = vmax.f32 %v811, 0.0
    %v1278 = vmax.f32 %v814, 0.0
    %v1279 = vmax.f32 %v817, 0.0
    %v1280 = vmax.f32 %v820, 0.0
    %v1281 = vmax.f32 %v823, 0.0
    %v1282 = vmax.f32 %v826, 0.0
    %v1283 = vmax.f32 %v829, 0.0
    %v1284 = vmax.f32 %v832, 0.0
    %v1285 = vmax.f32 %v835, 0.0
    %v1286 = vmax.f32 %v838, 0.0
    %v1287 = vmax.f32 %v841, 0.0
    %v1288 = vmax.f32 %v844, 0.0
    %v1289 = vmax.f32 %v847, 0.0
    %v1290 = vmax.f32 %v850, 0.0
    %v1291 = vmax.f32 %v853, 0.0
    %v1292 = vmax.f32 %v856, 0.0
    %v1293 = vmax.f32 %v859, 0.0
    %v1294 = vmax.f32 %v862, 0.0
    %v1295 = vmax.f32 %v865, 0.0
    %v1296 = vmax.f32 %v868, 0.0
    %v1297 = vmax.f32 %v871, 0.0
    %v1298 = vmax.f32 %v874, 0.0
    %v1299 = vmax.f32 %v877, 0.0
    %v1300 = vmax.f32 %v880, 0.0
    %v1301 = vmax.f32 %v883, 0.0
    %v1302 = vmax.f32 %v886, 0.0
    %v1303 = vmax.f32 %v889, 0.0
    %v1304 = vmax.f32 %v892, 0.0
    %v1305 = vmax.f32 %v895, 0.0
    %v1306 = vmax.f32 %v898, 0.0
    %v1307 = vmax.f32 %v901, 0.0
    %v1308 = vmax.f32 %v904, 0.0
    %v1309 = vmax.f32 %v907, 0.0
    %v1310 = vmax.f32 %v910, 0.0
    %v1311 = vmax.f32 %v913, 0.0
    %v1312 = vmax.f32 %v916, 0.0
    %v1313 = vmax.f32 %v919, 0.0
    %v1314 = vmax.f32 %v922, 0.0
    %v1315 = vmax.f32 %v925, 0.0
    %v1316 = vmax.f32 %v928, 0.0
    %v1317 = vmax.f32 %v931, 0.0
    %v1318 = vmax.f32 %v934, 0.0
    %v1319 = vmax.f32 %v937, 0.0
    %v1320 = vmax.f32 %v940, 0.0
    %v1321 = vmax.f32 %v943, 0.0
    %v1322 = vmax.f32 %v946, 0.0
    %v1323 = vmax.f32 %v949, 0.0
    %v1324 = vmax.f32 %v952, 0.0
    %v1325 = vmax.f32 %v955, 0.0
    %v1326 = vmax.f32 %v958, 0.0
    %v1327 = vmax.f32 %v961, 0.0
    %v1328 = vmax.f32 %v964, 0.0
    %v1329 = vmax.f32 %v967, 0.0
    %v1330 = vmax.f32 %v970, 0.0
    %v1331 = vmax.f32 %v973, 0.0
    %v1332 = vmax.f32 %v976, 0.0
    %v1333 = vmax.f32 %v979, 0.0
    %v1334 = vmax.f32 %v982, 0.0
    %v1335 = vmax.f32 %v985, 0.0
    %v1336 = vmax.f32 %v988, 0.0
    %v1337 = vmax.f32 %v991, 0.0
    %v1338 = vmax.f32 %v994, 0.0
    %v1339 = vmax.f32 %v997, 0.0
    %v1340 = vmax.f32 %v1000, 0.0
    %v1341 = vmax.f32 %v1003, 0.0
    %v1342 = vmax.f32 %v1006, 0.0
    %v1343 = vmax.f32 %v1009, 0.0
    %v1344 = vmax.f32 %v1012, 0.0
    %v1345 = vmax.f32 %v1015, 0.0
    %v1346 = vmax.f32 %v1018, 0.0
    %v1347 = vmax.f32 %v1021, 0.0
    %v1348 = vmax.f32 %v1024, 0.0
    %v1349 = vmax.f32 %v1027, 0.0
    %v1350 = vmax.f32 %v1030, 0.0
    %v1351 = vmax.f32 %v1033, 0.0
    %v1352 = vmax.f32 %v1036, 0.0
    %v1353 = vmax.f32 %v1039, 0.0
    %v1354 = vmax.f32 %v1042, 0.0
    %v1355 = vmax.f32 %v1045, 0.0
    %v1356 = vmax.f32 %v1048, 0.0
    %v1357 = vmax.f32 %v1051, 0.0
    %v1358 = vmax.f32 %v1054, 0.0
    %v1359 = vmax.f32 %v1057, 0.0
    %v1360 = vmax.f32 %v1060, 0.0
    %v1361 = vmax.f32 %v1063, 0.0
    %v1362 = vmax.f32 %v1066, 0.0
    %v1363 = vmax.f32 %v1069, 0.0
    %v1364 = vmax.f32 %v1072, 0.0
    %v1365 = vmax.f32 %v1075, 0.0
    %v1366 = vmax.f32 %v1078, 0.0
    %v1367 = vmax.f32 %v1081, 0.0
    %v1368 = vmax.f32 %v1084, 0.0
    %v1369 = vmax.f32 %v1087, 0.0
    %v1370 = vmax.f32 %v1090, 0.0
    %v1371 = vmax.f32 %v1093, 0.0
    %v1372 = vmax.f32 %v1096, 0.0
    %v1373 = vmax.f32 %v1099, 0.0
    %v1374 = vmax.f32 %v1102, 0.0
    %v1375 = vmax.f32 %v1105, 0.0
    %v1376 = vmax.f32 %v1108, 0.0
    %v1377 = vmax.f32 %v1111, 0.0
    %v1378 = vmax.f32 %v1114, 0.0
    %v1379 = vmax.f32 %v1117, 0.0
    %v1380 = vmax.f32 %v1120, 0.0
    %v1381 = vmax.f32 %v1123, 0.0
    %v1382 = vmax.f32 %v1126, 0.0
    %v1383 = vmax.f32 %v1129, 0.0
    %v1384 = vmax.f32 %v1132, 0.0
    %v1385 = vmax.f32 %v1135, 0.0
    %v1386 = vmax.f32 %v1138, 0.0
    %v1387 = vmax.f32 %v1141, 0.0
    %v1388 = vmax.f32 %v1144, 0.0
    %v1389 = vmax.f32 %v1147, 0.0
    %v1390 = vmax.f32 %v1150, 0.0
    %v1391 = vmax.f32 %v1153, 0.0
    %v1392 = vmax.f32 %v1156, 0.0
    %v1393 = vmax.f32 %v1159, 0.0
    %v1394 = vmax.f32 %v1162, 0.0
    %v1395 = vmax.f32 %v1165, 0.0
    %v1396 = vmax.f32 %v1168, 0.0
    %v1397 = vmax.f32 %v1171, 0.0
    %v1398 = vmax.f32 %v1174, 0.0
    %v1399 = vmax.f32 %v1177, 0.0
    %v1400 = vmax.f32 %v1180, 0.0
    %v1401 = vmax.f32 %v1183, 0.0
    %v1402 = vmax.f32 %v1186, 0.0
    %v1403 = vmax.f32 %v1189, 0.0
    %v1404 = vmax.f32 %v1192, 0.0
    %v1405 = vmax.f32 %v1195, 0.0
    %v1406 = vmax.f32 %v1198, 0.0
    %v1407 = vmax.f32 %v1201, 0.0
    %v1408 = vmax.f32 %v1204, 0.0
    %v1409 = vmax.f32 %v1207, 0.0
    %v1410 = vmax.f32 %v1210, 0.0
    %v1411 = vmax.f32 %v1213, 0.0
    %v1412 = vmax.f32 %v1216, 0.0
    %v1413 = vmax.f32 %v1219, 0.0
    %v1414 = vmax.f32 %v1222, 0.0
    %v1415 = vmax.f32 %v1225, 0.0
    %v1416 = vmax.f32 %v1228, 0.0
    %v1417 = vmax.f32 %v1231, 0.0
    %v1418 = vmax.f32 %v1234, 0.0
    %v1419 = vmax.f32 %v1237, 0.0
    %v1420 = vmax.f32 %v1240, 0.0
    %v1421 = vmax.f32 %v1243, 0.0
    %v1422 = vmax.f32 %v1246, 0.0
    %v1423 = vmax.f32 %v1249, 0.0
    %v1424 = vmax.f32 %v1252, 0.0
    %v1425 = vmax.f32 %v1255, 0.0
    %vm1426 = vcmask 261120
    %1427 = vst.msk [vmem:[%s3] sm:$0xff] %vm1426, %v1257
    %1428 = vst.msk [vmem:[%s3 + $0x8] sm:$0xff] %vm1426, %v1258
    %1429 = vst.msk [vmem:[%s3 + $0x10] sm:$0xff] %vm1426, %v1259
    %1430 = vst.msk [vmem:[%s3 + $0x18] sm:$0xff] %vm1426, %v1260
    %1431 = vst.msk [vmem:[%s3 + $0x20] sm:$0xff] %vm1426, %v1261
    %1432 = vst.msk [vmem:[%s3 + $0x28] sm:$0xff] %vm1426, %v1262
    %1433 = vst.msk [vmem:[%s3 + $0x30] sm:$0xff] %vm1426, %v1263
    %1434 = vst.msk [vmem:[%s3 + $0x38] sm:$0xff] %vm1426, %v1264
    %1435 = vst.msk [vmem:[%s3 + $0x40] sm:$0xff] %vm1426, %v1265
    %1436 = vst.msk [vmem:[%s3 + $0x48] sm:$0xff] %vm1426, %v1266
    %1437 = vst.msk [vmem:[%s3 + $0x50] sm:$0xff] %vm1426, %v1267
    %1438 = vst.msk [vmem:[%s3 + $0x58] sm:$0xff] %vm1426, %v1268
    %1439 = vst.msk [vmem:[%s3 + $0x60] sm:$0xff] %vm1426, %v1269
    %1440 = vst.msk [vmem:[%s3 + $0x68] sm:$0xff] %vm1426, %v1270
    %1441 = vst.msk [vmem:[%s3 + $0x70] sm:$0xff] %vm1426, %v1271
    %1442 = vst.msk [vmem:[%s3 + $0x78] sm:$0xff] %vm1426, %v1272
    %1443 = vst.msk [vmem:[%s3 + $0x80] sm:$0xff] %vm1426, %v1273
    %1444 = vst.msk [vmem:[%s3 + $0x88] sm:$0xff] %vm1426, %v1274
    %1445 = vst.msk [vmem:[%s3 + $0x90] sm:$0xff] %vm1426, %v1275
    %1446 = vst.msk [vmem:[%s3 + $0x98] sm:$0xff] %vm1426, %v1276
    %1447 = vst.msk [vmem:[%s3 + $0xa0] sm:$0xff] %vm1426, %v1277
    %1448 = vst.msk [vmem:[%s3 + $0xa8] sm:$0xff] %vm1426, %v1278
    %1449 = vst.msk [vmem:[%s3 + $0xb0] sm:$0xff] %vm1426, %v1279
    %1450 = vst.msk [vmem:[%s3 + $0xb8] sm:$0xff] %vm1426, %v1280
    %1451 = vst.msk [vmem:[%s3 + $0xc0] sm:$0xff] %vm1426, %v1281
    %1452 = vst.msk [vmem:[%s3 + $0xc8] sm:$0xff] %vm1426, %v1282
    %1453 = vst.msk [vmem:[%s3 + $0xd0] sm:$0xff] %vm1426, %v1283
    %1454 = vst.msk [vmem:[%s3 + $0xd8] sm:$0xff] %vm1426, %v1284
    %1455 = vst.msk [vmem:[%s3 + $0xe0] sm:$0xff] %vm1426, %v1285
    %1456 = vst.msk [vmem:[%s3 + $0xe8] sm:$0xff] %vm1426, %v1286
    %1457 = vst.msk [vmem:[%s3 + $0xf0] sm:$0xff] %vm1426, %v1287
    %1458 = vst.msk [vmem:[%s3 + $0xf8] sm:$0xff] %vm1426, %v1288
    %1459 = vst.msk [vmem:[%s3 + $0x100] sm:$0xff] %vm1426, %v1289
    %1460 = vst.msk [vmem:[%s3 + $0x108] sm:$0xff] %vm1426, %v1290
    %1461 = vst.msk [vmem:[%s3 + $0x110] sm:$0xff] %vm1426, %v1291
    %1462 = vst.msk [vmem:[%s3 + $0x118] sm:$0xff] %vm1426, %v1292
    %1463 = vst.msk [vmem:[%s3 + $0x120] sm:$0xff] %vm1426, %v1293
    %1464 = vst.msk [vmem:[%s3 + $0x128] sm:$0xff] %vm1426, %v1294
    %1465 = vst.msk [vmem:[%s3 + $0x130] sm:$0xff] %vm1426, %v1295
    %1466 = vst.msk [vmem:[%s3 + $0x138] sm:$0xff] %vm1426, %v1296
    %1467 = vst.msk [vmem:[%s3 + $0x140] sm:$0xff] %vm1426, %v1297
    %1468 = vst.msk [vmem:[%s3 + $0x148] sm:$0xff] %vm1426, %v1298
    %1469 = vst.msk [vmem:[%s3 + $0x150] sm:$0xff] %vm1426, %v1299
    %1470 = vst.msk [vmem:[%s3 + $0x158] sm:$0xff] %vm1426, %v1300
    %1471 = vst.msk [vmem:[%s3 + $0x160] sm:$0xff] %vm1426, %v1301
    %1472 = vst.msk [vmem:[%s3 + $0x168] sm:$0xff] %vm1426, %v1302
    %1473 = vst.msk [vmem:[%s3 + $0x170] sm:$0xff] %vm1426, %v1303
    %1474 = vst.msk [vmem:[%s3 + $0x178] sm:$0xff] %vm1426, %v1304
    %1475 = vst.msk [vmem:[%s3 + $0x180] sm:$0xff] %vm1426, %v1305
    %1476 = vst.msk [vmem:[%s3 + $0x188] sm:$0xff] %vm1426, %v1306
    %1477 = vst.msk [vmem:[%s3 + $0x190] sm:$0xff] %vm1426, %v1307
    %1478 = vst.msk [vmem:[%s3 + $0x198] sm:$0xff] %vm1426, %v1308
    %1479 = vst.msk [vmem:[%s3 + $0x1a0] sm:$0xff] %vm1426, %v1309
    %1480 = vst.msk [vmem:[%s3 + $0x1a8] sm:$0xff] %vm1426, %v1310
    %1481 = vst.msk [vmem:[%s3 + $0x1b0] sm:$0xff] %vm1426, %v1311
    %1482 = vst.msk [vmem:[%s3 + $0x1b8] sm:$0xff] %vm1426, %v1312
    %1483 = vst.msk [vmem:[%s3 + $0x1c0] sm:$0xff] %vm1426, %v1313
    %1484 = vst.msk [vmem:[%s3 + $0x1c8] sm:$0xff] %vm1426, %v1314
    %1485 = vst.msk [vmem:[%s3 + $0x1d0] sm:$0xff] %vm1426, %v1315
    %1486 = vst.msk [vmem:[%s3 + $0x1d8] sm:$0xff] %vm1426, %v1316
    %1487 = vst.msk [vmem:[%s3 + $0x1e0] sm:$0xff] %vm1426, %v1317
    %1488 = vst.msk [vmem:[%s3 + $0x1e8] sm:$0xff] %vm1426, %v1318
    %1489 = vst.msk [vmem:[%s3 + $0x1f0] sm:$0xff] %vm1426, %v1319
    %1490 = vst.msk [vmem:[%s3 + $0x1f8] sm:$0xff] %vm1426, %v1320
    %1491 = vst.msk [vmem:[%s3 + $0x200] sm:$0xff] %vm1426, %v1321
    %1492 = vst.msk [vmem:[%s3 + $0x208] sm:$0xff] %vm1426, %v1322
    %1493 = vst.msk [vmem:[%s3 + $0x210] sm:$0xff] %vm1426, %v1323
    %1494 = vst.msk [vmem:[%s3 + $0x218] sm:$0xff] %vm1426, %v1324
    %1495 = vst.msk [vmem:[%s3 + $0x220] sm:$0xff] %vm1426, %v1325
    %1496 = vst.msk [vmem:[%s3 + $0x228] sm:$0xff] %vm1426, %v1326
    %1497 = vst.msk [vmem:[%s3 + $0x230] sm:$0xff] %vm1426, %v1327
    %1498 = vst.msk [vmem:[%s3 + $0x238] sm:$0xff] %vm1426, %v1328
    %1499 = vst.msk [vmem:[%s3 + $0x240] sm:$0xff] %vm1426, %v1329
    %1500 = vst.msk [vmem:[%s3 + $0x248] sm:$0xff] %vm1426, %v1330
    %1501 = vst.msk [vmem:[%s3 + $0x250] sm:$0xff] %vm1426, %v1331
    %1502 = vst.msk [vmem:[%s3 + $0x258] sm:$0xff] %vm1426, %v1332
    %1503 = vst.msk [vmem:[%s3 + $0x260] sm:$0xff] %vm1426, %v1333
    %1504 = vst.msk [vmem:[%s3 + $0x268] sm:$0xff] %vm1426, %v1334
    %1505 = vst.msk [vmem:[%s3 + $0x270] sm:$0xff] %vm1426, %v1335
    %1506 = vst.msk [vmem:[%s3 + $0x278] sm:$0xff] %vm1426, %v1336
    %1507 = vst.msk [vmem:[%s3 + $0x280] sm:$0xff] %vm1426, %v1337
    %1508 = vst.msk [vmem:[%s3 + $0x288] sm:$0xff] %vm1426, %v1338
    %1509 = vst.msk [vmem:[%s3 + $0x290] sm:$0xff] %vm1426, %v1339
    %1510 = vst.msk [vmem:[%s3 + $0x298] sm:$0xff] %vm1426, %v1340
    %1511 = vst.msk [vmem:[%s3 + $0x2a0] sm:$0xff] %vm1426, %v1341
    %1512 = vst.msk [vmem:[%s3 + $0x2a8] sm:$0xff] %vm1426, %v1342
    %1513 = vst.msk [vmem:[%s3 + $0x2b0] sm:$0xff] %vm1426, %v1343
    %1514 = vst.msk [vmem:[%s3 + $0x2b8] sm:$0xff] %vm1426, %v1344
    %1515 = vst.msk [vmem:[%s3 + $0x2c0] sm:$0xff] %vm1426, %v1345
    %1516 = vst.msk [vmem:[%s3 + $0x2c8] sm:$0xff] %vm1426, %v1346
    %1517 = vst.msk [vmem:[%s3 + $0x2d0] sm:$0xff] %vm1426, %v1347
    %1518 = vst.msk [vmem:[%s3 + $0x2d8] sm:$0xff] %vm1426, %v1348
    %1519 = vst.msk [vmem:[%s3 + $0x2e0] sm:$0xff] %vm1426, %v1349
    %1520 = vst.msk [vmem:[%s3 + $0x2e8] sm:$0xff] %vm1426, %v1350
    %1521 = vst.msk [vmem:[%s3 + $0x2f0] sm:$0xff] %vm1426, %v1351
    %1522 = vst.msk [vmem:[%s3 + $0x2f8] sm:$0xff] %vm1426, %v1352
    %1523 = vst.msk [vmem:[%s3 + $0x300] sm:$0xff] %vm1426, %v1353
    %1524 = vst.msk [vmem:[%s3 + $0x308] sm:$0xff] %vm1426, %v1354
    %1525 = vst.msk [vmem:[%s3 + $0x310] sm:$0xff] %vm1426, %v1355
    %1526 = vst.msk [vmem:[%s3 + $0x318] sm:$0xff] %vm1426, %v1356
    %1527 = vst.msk [vmem:[%s3 + $0x320] sm:$0xff] %vm1426, %v1357
    %1528 = vst.msk [vmem:[%s3 + $0x328] sm:$0xff] %vm1426, %v1358
    %1529 = vst.msk [vmem:[%s3 + $0x330] sm:$0xff] %vm1426, %v1359
    %1530 = vst.msk [vmem:[%s3 + $0x338] sm:$0xff] %vm1426, %v1360
    %1531 = vst.msk [vmem:[%s3 + $0x340] sm:$0xff] %vm1426, %v1361
    %1532 = vst.msk [vmem:[%s3 + $0x348] sm:$0xff] %vm1426, %v1362
    %1533 = vst.msk [vmem:[%s3 + $0x350] sm:$0xff] %vm1426, %v1363
    %1534 = vst.msk [vmem:[%s3 + $0x358] sm:$0xff] %vm1426, %v1364
    %1535 = vst.msk [vmem:[%s3 + $0x360] sm:$0xff] %vm1426, %v1365
    %1536 = vst.msk [vmem:[%s3 + $0x368] sm:$0xff] %vm1426, %v1366
    %1537 = vst.msk [vmem:[%s3 + $0x370] sm:$0xff] %vm1426, %v1367
    %1538 = vst.msk [vmem:[%s3 + $0x378] sm:$0xff] %vm1426, %v1368
    %1539 = vst.msk [vmem:[%s3 + $0x380] sm:$0xff] %vm1426, %v1369
    %1540 = vst.msk [vmem:[%s3 + $0x388] sm:$0xff] %vm1426, %v1370
    %1541 = vst.msk [vmem:[%s3 + $0x390] sm:$0xff] %vm1426, %v1371
    %1542 = vst.msk [vmem:[%s3 + $0x398] sm:$0xff] %vm1426, %v1372
    %1543 = vst.msk [vmem:[%s3 + $0x3a0] sm:$0xff] %vm1426, %v1373
    %1544 = vst.msk [vmem:[%s3 + $0x3a8] sm:$0xff] %vm1426, %v1374
    %1545 = vst.msk [vmem:[%s3 + $0x3b0] sm:$0xff] %vm1426, %v1375
    %1546 = vst.msk [vmem:[%s3 + $0x3b8] sm:$0xff] %vm1426, %v1376
    %1547 = vst.msk [vmem:[%s3 + $0x3c0] sm:$0xff] %vm1426, %v1377
    %1548 = vst.msk [vmem:[%s3 + $0x3c8] sm:$0xff] %vm1426, %v1378
    %1549 = vst.msk [vmem:[%s3 + $0x3d0] sm:$0xff] %vm1426, %v1379
    %1550 = vst.msk [vmem:[%s3 + $0x3d8] sm:$0xff] %vm1426, %v1380
    %1551 = vst.msk [vmem:[%s3 + $0x3e0] sm:$0xff] %vm1426, %v1381
    %1552 = vst.msk [vmem:[%s3 + $0x3e8] sm:$0xff] %vm1426, %v1382
    %1553 = vst.msk [vmem:[%s3 + $0x3f0] sm:$0xff] %vm1426, %v1383
    %1554 = vst.msk [vmem:[%s3 + $0x3f8] sm:$0xff] %vm1426, %v1384
    %1555 = vst.msk [vmem:[%s3 + $0x400] sm:$0xff] %vm1426, %v1385
    %1556 = vst.msk [vmem:[%s3 + $0x408] sm:$0xff] %vm1426, %v1386
    %1557 = vst.msk [vmem:[%s3 + $0x410] sm:$0xff] %vm1426, %v1387
    %1558 = vst.msk [vmem:[%s3 + $0x418] sm:$0xff] %vm1426, %v1388
    %1559 = vst.msk [vmem:[%s3 + $0x420] sm:$0xff] %vm1426, %v1389
    %1560 = vst.msk [vmem:[%s3 + $0x428] sm:$0xff] %vm1426, %v1390
    %1561 = vst.msk [vmem:[%s3 + $0x430] sm:$0xff] %vm1426, %v1391
    %1562 = vst.msk [vmem:[%s3 + $0x438] sm:$0xff] %vm1426, %v1392
    %1563 = vst.msk [vmem:[%s3 + $0x440] sm:$0xff] %vm1426, %v1393
    %1564 = vst.msk [vmem:[%s3 + $0x448] sm:$0xff] %vm1426, %v1394
    %1565 = vst.msk [vmem:[%s3 + $0x450] sm:$0xff] %vm1426, %v1395
    %1566 = vst.msk [vmem:[%s3 + $0x458] sm:$0xff] %vm1426, %v1396
    %1567 = vst.msk [vmem:[%s3 + $0x460] sm:$0xff] %vm1426, %v1397
    %1568 = vst.msk [vmem:[%s3 + $0x468] sm:$0xff] %vm1426, %v1398
    %1569 = vst.msk [vmem:[%s3 + $0x470] sm:$0xff] %vm1426, %v1399
    %1570 = vst.msk [vmem:[%s3 + $0x478] sm:$0xff] %vm1426, %v1400
    %1571 = vst.msk [vmem:[%s3 + $0x480] sm:$0xff] %vm1426, %v1401
    %1572 = vst.msk [vmem:[%s3 + $0x488] sm:$0xff] %vm1426, %v1402
    %1573 = vst.msk [vmem:[%s3 + $0x490] sm:$0xff] %vm1426, %v1403
    %1574 = vst.msk [vmem:[%s3 + $0x498] sm:$0xff] %vm1426, %v1404
    %1575 = vst.msk [vmem:[%s3 + $0x4a0] sm:$0xff] %vm1426, %v1405
    %1576 = vst.msk [vmem:[%s3 + $0x4a8] sm:$0xff] %vm1426, %v1406
    %1577 = vst.msk [vmem:[%s3 + $0x4b0] sm:$0xff] %vm1426, %v1407
    %1578 = vst.msk [vmem:[%s3 + $0x4b8] sm:$0xff] %vm1426, %v1408
    %1579 = vst.msk [vmem:[%s3 + $0x4c0] sm:$0xff] %vm1426, %v1409
    %1580 = vst.msk [vmem:[%s3 + $0x4c8] sm:$0xff] %vm1426, %v1410
    %1581 = vst.msk [vmem:[%s3 + $0x4d0] sm:$0xff] %vm1426, %v1411
    %1582 = vst.msk [vmem:[%s3 + $0x4d8] sm:$0xff] %vm1426, %v1412
    %1583 = vst.msk [vmem:[%s3 + $0x4e0] sm:$0xff] %vm1426, %v1413
    %1584 = vst.msk [vmem:[%s3 + $0x4e8] sm:$0xff] %vm1426, %v1414
    %1585 = vst.msk [vmem:[%s3 + $0x4f0] sm:$0xff] %vm1426, %v1415
    %1586 = vst.msk [vmem:[%s3 + $0x4f8] sm:$0xff] %vm1426, %v1416
    %1587 = vst.msk [vmem:[%s3 + $0x500] sm:$0xff] %vm1426, %v1417
    %1588 = vst.msk [vmem:[%s3 + $0x508] sm:$0xff] %vm1426, %v1418
    %1589 = vst.msk [vmem:[%s3 + $0x510] sm:$0xff] %vm1426, %v1419
    %1590 = vst.msk [vmem:[%s3 + $0x518] sm:$0xff] %vm1426, %v1420
    %1591 = vst.msk [vmem:[%s3 + $0x520] sm:$0xff] %vm1426, %v1421
    %1592 = vst.msk [vmem:[%s3 + $0x528] sm:$0xff] %vm1426, %v1422
    %1593 = vst.msk [vmem:[%s3 + $0x530] sm:$0xff] %vm1426, %v1423
    %1594 = vst.msk [vmem:[%s3 + $0x538] sm:$0xff] %vm1426, %v1424
    %1595 = vst.msk [vmem:[%s3 + $0x540] sm:$0xff] %vm1426, %v1425
    // Predicated region
    $region22: #{encoder_forward.3} parent=1 // pred_check
      _
    $region23: #{encoder_forward.3} parent=1 // pred_check_branch
      %1597 = sbr.rel (0) target = $region25
    $region24: #{encoder_forward.3} parent=1 // pred_region
      _
    $region25: #{encoder_forward.3} parent=1 // pred_fallthru
      _
    // Predicated region
    $region26: #{encoder_forward.3} parent=1 // pred_check
      _
    $region27: #{encoder_forward.3} parent=1 // pred_check_branch
      %1599 = sbr.rel (0) target = $region29
    $region28: #{encoder_forward.3} parent=1 // pred_region
      _
    $region29: #{encoder_forward.3} parent=1 // pred_fallthru
      _
    %1600 = vsyncpa [#allocation3], 1
    %1601 = vsyncpa [#allocation5], 1

// kernel: encoder_forward.4
$region0: #{encoder_forward.4}
  #allocation0 [shape = 'u32[]', space=smem, size = 0x4, offset = 0x4, fixed_abs, tag = 'smem constant byte address 0x4 - core index']
  #allocation1 [shape = 'u32[72,128]{1,0:T(1,128)}', space=vmem, size = 0x9000, scoped, tag = 'internal scratch']
  %s0 = inlined_call_operand.vmem [shape: f32[288,800], index: 0, kind: input, shape index: {}]
  %s1 = inlined_call_operand.vmem [shape: f32[800,64], index: 1, kind: input, shape index: {}]
  %s2 = inlined_call_operand.vmem [shape: f32[1,64], index: 2, kind: input, shape index: {}]
  %s3 = inlined_call_operand.vmem [shape: f32[288,64], index: 3, kind: output, shape index: {}]
  %s4 = sld [smem:[#allocation0]]
  $region22: #{encoder_forward.4} parent=0
    _
  %s6 = ssub.s32 1, %s4
  %s7 = scalar_select 0, %s6, %s4
  // Predicated region
  $region2: #{encoder_forward.4} parent=0 // pred_check
    _
  $region3: #{encoder_forward.4} parent=0 // pred_check_branch
    %9 = sbr.rel (0) target = $region5
  $region4: #{encoder_forward.4} parent=0 // pred_region
    _
  $region5: #{encoder_forward.4} parent=0 // pred_fallthru
    _
  // Predicated region
  $region6: #{encoder_forward.4} parent=0 // pred_check
    _
  $region7: #{encoder_forward.4} parent=0 // pred_check_branch
    %11 = sbr.rel (0) target = $region9
  $region8: #{encoder_forward.4} parent=0 // pred_region
    _
  $region9: #{encoder_forward.4} parent=0 // pred_fallthru
    _
  // Predicated region
  $region10: #{encoder_forward.4} parent=0 // pred_check
    _
  $region11: #{encoder_forward.4} parent=0 // pred_check_branch
    %13 = sbr.rel (0) target = $region13
  $region12: #{encoder_forward.4} parent=0 // pred_region
    _
  $region13: #{encoder_forward.4} parent=0 // pred_fallthru
    _
  %v14 = vld [vmem:[%s0] sm:$0xff]
  %v15 = vld [vmem:[%s0 + $0x8] sm:$0xff]
  %v16 = vld [vmem:[%s0 + $0x10] sm:$0xff]
  %v17 = vld [vmem:[%s0 + $0x18] sm:$0xff]
  %v18 = vld [vmem:[%s0 + $0x20] sm:$0xff]
  %v19 = vld [vmem:[%s0 + $0x28] sm:$0xff]
  %v20 = vld [vmem:[%s0 + $0x30] sm:$0xff]
  %v21 = vld [vmem:[%s0 + $0x38] sm:$0xff]
  %v22 = vld [vmem:[%s0 + $0x40] sm:$0xff]
  %v23 = vld [vmem:[%s0 + $0x48] sm:$0xff]
  %v24 = vld [vmem:[%s0 + $0x50] sm:$0xff]
  %v25 = vld [vmem:[%s0 + $0x58] sm:$0xff]
  %v26 = vld [vmem:[%s0 + $0x60] sm:$0xff]
  %v27 = vld [vmem:[%s0 + $0x68] sm:$0xff]
  %v28 = vld [vmem:[%s0 + $0x70] sm:$0xff]
  %v29 = vld [vmem:[%s0 + $0x78] sm:$0xff]
  %v30 = vld [vmem:[%s0 + $0x80] sm:$0xff]
  %v31 = vld [vmem:[%s0 + $0x88] sm:$0xff]
  %v32 = vld [vmem:[%s0 + $0x90] sm:$0xff]
  %v33 = vld [vmem:[%s0 + $0x98] sm:$0xff]
  %v34 = vld [vmem:[%s0 + $0xa0] sm:$0xff]
  %v35 = vld [vmem:[%s0 + $0xa8] sm:$0xff]
  %v36 = vld [vmem:[%s0 + $0xb0] sm:$0xff]
  %v37 = vld [vmem:[%s0 + $0xb8] sm:$0xff]
  %v38 = vld [vmem:[%s0 + $0xc0] sm:$0xff]
  %v39 = vld [vmem:[%s0 + $0xc8] sm:$0xff]
  %v40 = vld [vmem:[%s0 + $0xd0] sm:$0xff]
  %v41 = vld [vmem:[%s0 + $0xd8] sm:$0xff]
  %v42 = vld [vmem:[%s0 + $0xe0] sm:$0xff]
  %v43 = vld [vmem:[%s0 + $0xe8] sm:$0xff]
  %v44 = vld [vmem:[%s0 + $0xf0] sm:$0xff]
  %v45 = vld [vmem:[%s0 + $0xf8] sm:$0xff]
  %v46 = vld [vmem:[%s0 + $0x100] sm:$0xff]
  %v47 = vld [vmem:[%s0 + $0x108] sm:$0xff]
  %v48 = vld [vmem:[%s0 + $0x110] sm:$0xff]
  %v49 = vld [vmem:[%s0 + $0x118] sm:$0xff]
  %v50 = vld [vmem:[%s0 + $0x120] sm:$0xff]
  %v51 = vld [vmem:[%s0 + $0x128] sm:$0xff]
  %v52 = vld [vmem:[%s0 + $0x130] sm:$0xff]
  %v53 = vld [vmem:[%s0 + $0x138] sm:$0xff]
  %v54 = vld [vmem:[%s0 + $0x140] sm:$0xff]
  %v55 = vld [vmem:[%s0 + $0x148] sm:$0xff]
  %v56 = vld [vmem:[%s0 + $0x150] sm:$0xff]
  %v57 = vld [vmem:[%s0 + $0x158] sm:$0xff]
  %v58 = vld [vmem:[%s0 + $0x160] sm:$0xff]
  %v59 = vld [vmem:[%s0 + $0x168] sm:$0xff]
  %v60 = vld [vmem:[%s0 + $0x170] sm:$0xff]
  %v61 = vld [vmem:[%s0 + $0x178] sm:$0xff]
  %v62 = vld [vmem:[%s0 + $0x180] sm:$0xff]
  %v63 = vld [vmem:[%s0 + $0x188] sm:$0xff]
  %v64 = vld [vmem:[%s0 + $0x190] sm:$0xff]
  %v65 = vld [vmem:[%s0 + $0x198] sm:$0xff]
  %v66 = vld [vmem:[%s0 + $0x1a0] sm:$0xff]
  %v67 = vld [vmem:[%s0 + $0x1a8] sm:$0xff]
  %v68 = vld [vmem:[%s0 + $0x1b0] sm:$0xff]
  %v69 = vld [vmem:[%s0 + $0x1b8] sm:$0xff]
  %v70 = vld [vmem:[%s0 + $0x1c0] sm:$0xff]
  %v71 = vld [vmem:[%s0 + $0x1c8] sm:$0xff]
  %v72 = vld [vmem:[%s0 + $0x1d0] sm:$0xff]
  %v73 = vld [vmem:[%s0 + $0x1d8] sm:$0xff]
  %v74 = vld [vmem:[%s0 + $0x1e0] sm:$0xff]
  %v75 = vld [vmem:[%s0 + $0x1e8] sm:$0xff]
  %v76 = vld [vmem:[%s0 + $0x1f0] sm:$0xff]
  %v77 = vld [vmem:[%s0 + $0x1f8] sm:$0xff]
  %v78 = vld [vmem:[%s0 + $0x200] sm:$0xff]
  %v79 = vld [vmem:[%s0 + $0x208] sm:$0xff]
  %v80 = vld [vmem:[%s0 + $0x210] sm:$0xff]
  %v81 = vld [vmem:[%s0 + $0x218] sm:$0xff]
  %v82 = vld [vmem:[%s0 + $0x220] sm:$0xff]
  %v83 = vld [vmem:[%s0 + $0x228] sm:$0xff]
  %v84 = vld [vmem:[%s0 + $0x230] sm:$0xff]
  %v85 = vld [vmem:[%s0 + $0x238] sm:$0xff]
  %v86 = vld [vmem:[%s0 + $0x240] sm:$0xff]
  %v87 = vld [vmem:[%s0 + $0x248] sm:$0xff]
  %v88 = vld [vmem:[%s0 + $0x250] sm:$0xff]
  %v89 = vld [vmem:[%s0 + $0x258] sm:$0xff]
  %v90 = vld [vmem:[%s0 + $0x260] sm:$0xff]
  %v91 = vld [vmem:[%s0 + $0x268] sm:$0xff]
  %v92 = vld [vmem:[%s0 + $0x270] sm:$0xff]
  %v93 = vld [vmem:[%s0 + $0x278] sm:$0xff]
  %v94 = vld [vmem:[%s0 + $0x280] sm:$0xff]
  %v95 = vld [vmem:[%s0 + $0x288] sm:$0xff]
  %v96 = vld [vmem:[%s0 + $0x290] sm:$0xff]
  %v97 = vld [vmem:[%s0 + $0x298] sm:$0xff]
  %v98 = vld [vmem:[%s0 + $0x2a0] sm:$0xff]
  %v99 = vld [vmem:[%s0 + $0x2a8] sm:$0xff]
  %v100 = vld [vmem:[%s0 + $0x2b0] sm:$0xff]
  %v101 = vld [vmem:[%s0 + $0x2b8] sm:$0xff]
  %v102 = vld [vmem:[%s0 + $0x2c0] sm:$0xff]
  %v103 = vld [vmem:[%s0 + $0x2c8] sm:$0xff]
  %v104 = vld [vmem:[%s0 + $0x2d0] sm:$0xff]
  %v105 = vld [vmem:[%s0 + $0x2d8] sm:$0xff]
  %v106 = vld [vmem:[%s0 + $0x2e0] sm:$0xff]
  %v107 = vld [vmem:[%s0 + $0x2e8] sm:$0xff]
  %v108 = vld [vmem:[%s0 + $0x2f0] sm:$0xff]
  %v109 = vld [vmem:[%s0 + $0x2f8] sm:$0xff]
  %v110 = vld [vmem:[%s0 + $0x300] sm:$0xff]
  %v111 = vld [vmem:[%s0 + $0x308] sm:$0xff]
  %v112 = vld [vmem:[%s0 + $0x310] sm:$0xff]
  %v113 = vld [vmem:[%s0 + $0x318] sm:$0xff]
  %v114 = vld [vmem:[%s0 + $0x320] sm:$0xff]
  %v115 = vld [vmem:[%s0 + $0x328] sm:$0xff]
  %v116 = vld [vmem:[%s0 + $0x330] sm:$0xff]
  %v117 = vld [vmem:[%s0 + $0x338] sm:$0xff]
  %v118 = vld [vmem:[%s0 + $0x340] sm:$0xff]
  %v119 = vld [vmem:[%s0 + $0x348] sm:$0xff]
  %v120 = vld [vmem:[%s0 + $0x350] sm:$0xff]
  %v121 = vld [vmem:[%s0 + $0x358] sm:$0xff]
  %v122 = vld [vmem:[%s0 + $0x360] sm:$0xff]
  %v123 = vld [vmem:[%s0 + $0x368] sm:$0xff]
  %v124 = vld [vmem:[%s0 + $0x370] sm:$0xff]
  %v125 = vld [vmem:[%s0 + $0x378] sm:$0xff]
  %v126 = vld [vmem:[%s0 + $0x380] sm:$0xff]
  %v127 = vld [vmem:[%s0 + $0x388] sm:$0xff]
  %v128 = vld [vmem:[%s0 + $0x390] sm:$0xff]
  %v129 = vld [vmem:[%s0 + $0x398] sm:$0xff]
  %v130 = vld [vmem:[%s0 + $0x3a0] sm:$0xff]
  %v131 = vld [vmem:[%s0 + $0x3a8] sm:$0xff]
  %v132 = vld [vmem:[%s0 + $0x3b0] sm:$0xff]
  %v133 = vld [vmem:[%s0 + $0x3b8] sm:$0xff]
  %v134 = vld [vmem:[%s0 + $0x3c0] sm:$0xff]
  %v135 = vld [vmem:[%s0 + $0x3c8] sm:$0xff]
  %v136 = vld [vmem:[%s0 + $0x3d0] sm:$0xff]
  %v137 = vld [vmem:[%s0 + $0x3d8] sm:$0xff]
  %v138 = vld [vmem:[%s0 + $0x3e0] sm:$0xff]
  %v139 = vld [vmem:[%s0 + $0x3e8] sm:$0xff]
  %v140 = vld [vmem:[%s0 + $0x3f0] sm:$0xff]
  %v141 = vld [vmem:[%s0 + $0x3f8] sm:$0xff]
  %v142 = vld [vmem:[%s0 + $0x400] sm:$0xff]
  %v143 = vld [vmem:[%s0 + $0x408] sm:$0xff]
  %v144 = vld [vmem:[%s0 + $0x410] sm:$0xff]
  %v145 = vld [vmem:[%s0 + $0x418] sm:$0xff]
  %v146 = vld [vmem:[%s0 + $0x420] sm:$0xff]
  %v147 = vld [vmem:[%s0 + $0x428] sm:$0xff]
  %v148 = vld [vmem:[%s0 + $0x430] sm:$0xff]
  %v149 = vld [vmem:[%s0 + $0x438] sm:$0xff]
  %v150 = vld [vmem:[%s0 + $0x440] sm:$0xff]
  %v151 = vld [vmem:[%s0 + $0x448] sm:$0xff]
  %v152 = vld [vmem:[%s0 + $0x450] sm:$0xff]
  %v153 = vld [vmem:[%s0 + $0x458] sm:$0xff]
  %v154 = vld [vmem:[%s0 + $0x460] sm:$0xff]
  %v155 = vld [vmem:[%s0 + $0x468] sm:$0xff]
  %v156 = vld [vmem:[%s0 + $0x470] sm:$0xff]
  %v157 = vld [vmem:[%s0 + $0x478] sm:$0xff]
  %v158 = vld [vmem:[%s0 + $0x480] sm:$0xff]
  %v159 = vld [vmem:[%s0 + $0x488] sm:$0xff]
  %v160 = vld [vmem:[%s0 + $0x490] sm:$0xff]
  %v161 = vld [vmem:[%s0 + $0x498] sm:$0xff]
  %v162 = vld [vmem:[%s0 + $0x4a0] sm:$0xff]
  %v163 = vld [vmem:[%s0 + $0x4a8] sm:$0xff]
  %v164 = vld [vmem:[%s0 + $0x4b0] sm:$0xff]
  %v165 = vld [vmem:[%s0 + $0x4b8] sm:$0xff]
  %v166 = vld [vmem:[%s0 + $0x4c0] sm:$0xff]
  %v167 = vld [vmem:[%s0 + $0x4c8] sm:$0xff]
  %v168 = vld [vmem:[%s0 + $0x4d0] sm:$0xff]
  %v169 = vld [vmem:[%s0 + $0x4d8] sm:$0xff]
  %v170 = vld [vmem:[%s0 + $0x4e0] sm:$0xff]
  %v171 = vld [vmem:[%s0 + $0x4e8] sm:$0xff]
  %v172 = vld [vmem:[%s0 + $0x4f0] sm:$0xff]
  %v173 = vld [vmem:[%s0 + $0x4f8] sm:$0xff]
  %v174 = vld [vmem:[%s0 + $0x500] sm:$0xff]
  %v175 = vld [vmem:[%s0 + $0x508] sm:$0xff]
  %v176 = vld [vmem:[%s0 + $0x510] sm:$0xff]
  %v177 = vld [vmem:[%s0 + $0x518] sm:$0xff]
  %v178 = vld [vmem:[%s0 + $0x520] sm:$0xff]
  %v179 = vld [vmem:[%s0 + $0x528] sm:$0xff]
  %v180 = vld [vmem:[%s0 + $0x530] sm:$0xff]
  %v181 = vld [vmem:[%s0 + $0x538] sm:$0xff]
  %v182 = vld [vmem:[%s0 + $0x540] sm:$0xff]
  %v183 = vld [vmem:[%s0 + $0x548] sm:$0xff]
  %v184 = vld [vmem:[%s0 + $0x550] sm:$0xff]
  %v185 = vld [vmem:[%s0 + $0x558] sm:$0xff]
  %v186 = vld [vmem:[%s0 + $0x560] sm:$0xff]
  %v187 = vld [vmem:[%s0 + $0x568] sm:$0xff]
  %v188 = vld [vmem:[%s0 + $0x570] sm:$0xff]
  %v189 = vld [vmem:[%s0 + $0x578] sm:$0xff]
  %v190 = vld [vmem:[%s0 + $0x580] sm:$0xff]
  %v191 = vld [vmem:[%s0 + $0x588] sm:$0xff]
  %v192 = vld [vmem:[%s0 + $0x590] sm:$0xff]
  %v193 = vld [vmem:[%s0 + $0x598] sm:$0xff]
  %v194 = vld [vmem:[%s0 + $0x5a0] sm:$0xff]
  %v195 = vld [vmem:[%s0 + $0x5a8] sm:$0xff]
  %v196 = vld [vmem:[%s0 + $0x5b0] sm:$0xff]
  %v197 = vld [vmem:[%s0 + $0x5b8] sm:$0xff]
  %v198 = vld [vmem:[%s0 + $0x5c0] sm:$0xff]
  %v199 = vld [vmem:[%s0 + $0x5c8] sm:$0xff]
  %v200 = vld [vmem:[%s0 + $0x5d0] sm:$0xff]
  %v201 = vld [vmem:[%s0 + $0x5d8] sm:$0xff]
  %v202 = vld [vmem:[%s0 + $0x5e0] sm:$0xff]
  %v203 = vld [vmem:[%s0 + $0x5e8] sm:$0xff]
  %v204 = vld [vmem:[%s0 + $0x5f0] sm:$0xff]
  %v205 = vld [vmem:[%s0 + $0x5f8] sm:$0xff]
  %v206 = vld [vmem:[%s0 + $0x600] sm:$0xff]
  %v207 = vld [vmem:[%s0 + $0x608] sm:$0xff]
  %v208 = vld [vmem:[%s0 + $0x610] sm:$0xff]
  %v209 = vld [vmem:[%s0 + $0x618] sm:$0xff]
  %v210 = vld [vmem:[%s0 + $0x620] sm:$0xff]
  %v211 = vld [vmem:[%s0 + $0x628] sm:$0xff]
  %v212 = vld [vmem:[%s0 + $0x630] sm:$0xff]
  %v213 = vld [vmem:[%s0 + $0x638] sm:$0xff]
  %v214 = vld [vmem:[%s0 + $0x640] sm:$0xff]
  %v215 = vld [vmem:[%s0 + $0x648] sm:$0xff]
  %v216 = vld [vmem:[%s0 + $0x650] sm:$0xff]
  %v217 = vld [vmem:[%s0 + $0x658] sm:$0xff]
  %v218 = vld [vmem:[%s0 + $0x660] sm:$0xff]
  %v219 = vld [vmem:[%s0 + $0x668] sm:$0xff]
  %v220 = vld [vmem:[%s0 + $0x670] sm:$0xff]
  %v221 = vld [vmem:[%s0 + $0x678] sm:$0xff]
  %v222 = vld [vmem:[%s0 + $0x680] sm:$0xff]
  %v223 = vld [vmem:[%s0 + $0x688] sm:$0xff]
  %v224 = vld [vmem:[%s0 + $0x690] sm:$0xff]
  %v225 = vld [vmem:[%s0 + $0x698] sm:$0xff]
  %v226 = vld [vmem:[%s0 + $0x6a0] sm:$0xff]
  %v227 = vld [vmem:[%s0 + $0x6a8] sm:$0xff]
  %v228 = vld [vmem:[%s0 + $0x6b0] sm:$0xff]
  %v229 = vld [vmem:[%s0 + $0x6b8] sm:$0xff]
  %v230 = vld [vmem:[%s0 + $0x6c0] sm:$0xff]
  %v231 = vld [vmem:[%s0 + $0x6c8] sm:$0xff]
  %v232 = vld [vmem:[%s0 + $0x6d0] sm:$0xff]
  %v233 = vld [vmem:[%s0 + $0x6d8] sm:$0xff]
  %v234 = vld [vmem:[%s0 + $0x6e0] sm:$0xff]
  %v235 = vld [vmem:[%s0 + $0x6e8] sm:$0xff]
  %v236 = vld [vmem:[%s0 + $0x6f0] sm:$0xff]
  %v237 = vld [vmem:[%s0 + $0x6f8] sm:$0xff]
  %v238 = vld [vmem:[%s0 + $0x700] sm:$0xff]
  %v239 = vld [vmem:[%s0 + $0x708] sm:$0xff]
  %v240 = vld [vmem:[%s0 + $0x710] sm:$0xff]
  %v241 = vld [vmem:[%s0 + $0x718] sm:$0xff]
  %v242 = vld [vmem:[%s0 + $0x720] sm:$0xff]
  %v243 = vld [vmem:[%s0 + $0x728] sm:$0xff]
  %v244 = vld [vmem:[%s0 + $0x730] sm:$0xff]
  %v245 = vld [vmem:[%s0 + $0x738] sm:$0xff]
  %v246 = vld [vmem:[%s0 + $0x740] sm:$0xff]
  %v247 = vld [vmem:[%s0 + $0x748] sm:$0xff]
  %v248 = vld [vmem:[%s0 + $0x750] sm:$0xff]
  %v249 = vld [vmem:[%s0 + $0x758] sm:$0xff]
  %v250 = vld [vmem:[%s0 + $0x760] sm:$0xff]
  %v251 = vld [vmem:[%s0 + $0x768] sm:$0xff]
  %v252 = vld [vmem:[%s0 + $0x770] sm:$0xff]
  %v253 = vld [vmem:[%s0 + $0x778] sm:$0xff]
  %v254 = vld [vmem:[%s0 + $0x780] sm:$0xff]
  %v255 = vld [vmem:[%s0 + $0x788] sm:$0xff]
  %v256 = vld [vmem:[%s0 + $0x790] sm:$0xff]
  %v257 = vld [vmem:[%s0 + $0x798] sm:$0xff]
  %v258 = vld [vmem:[%s0 + $0x7a0] sm:$0xff]
  %v259 = vld [vmem:[%s0 + $0x7a8] sm:$0xff]
  %v260 = vld [vmem:[%s0 + $0x7b0] sm:$0xff]
  %v261 = vld [vmem:[%s0 + $0x7b8] sm:$0xff]
  %v262 = vld [vmem:[%s0 + $0x7c0] sm:$0xff]
  %v263 = vld [vmem:[%s0 + $0x7c8] sm:$0xff]
  %v264 = vld [vmem:[%s0 + $0x7d0] sm:$0xff]
  %v265 = vld [vmem:[%s0 + $0x7d8] sm:$0xff]
  %v266 = vld [vmem:[%s1] sm:$0xff]
  %v267 = vld [vmem:[%s1 + $0x8] sm:$0xff]
  %v268 = vld [vmem:[%s1 + $0x10] sm:$0xff]
  %v269 = vld [vmem:[%s1 + $0x18] sm:$0xff]
  %v270 = vld [vmem:[%s1 + $0x20] sm:$0xff]
  %v271 = vld [vmem:[%s1 + $0x28] sm:$0xff]
  %v272 = vld [vmem:[%s1 + $0x30] sm:$0xff]
  %v273 = vld [vmem:[%s1 + $0x38] sm:$0xff]
  %v274 = vld [vmem:[%s1 + $0x40] sm:$0xff]
  %v275 = vld [vmem:[%s1 + $0x48] sm:$0xff]
  %v276 = vld [vmem:[%s1 + $0x50] sm:$0xff]
  %v277 = vld [vmem:[%s1 + $0x58] sm:$0xff]
  %v278 = vld [vmem:[%s1 + $0x60] sm:$0xff]
  %v279 = vld [vmem:[%s1 + $0x68] sm:$0xff]
  %v280 = vld [vmem:[%s1 + $0x70] sm:$0xff]
  %v281 = vld [vmem:[%s1 + $0x78] sm:$0xff]
  %v282 = vld [vmem:[%s1 + $0x80] sm:$0xff]
  %v283 = vld [vmem:[%s1 + $0x88] sm:$0xff]
  %v284 = vld [vmem:[%s1 + $0x90] sm:$0xff]
  %v285 = vld [vmem:[%s1 + $0x98] sm:$0xff]
  %v286 = vld [vmem:[%s1 + $0xa0] sm:$0xff]
  %v287 = vld [vmem:[%s1 + $0xa8] sm:$0xff]
  %v288 = vld [vmem:[%s1 + $0xb0] sm:$0xff]
  %v289 = vld [vmem:[%s1 + $0xb8] sm:$0xff]
  %v290 = vld [vmem:[%s1 + $0xc0] sm:$0xff]
  %v291 = vld [vmem:[%s1 + $0xc8] sm:$0xff]
  %v292 = vld [vmem:[%s1 + $0xd0] sm:$0xff]
  %v293 = vld [vmem:[%s1 + $0xd8] sm:$0xff]
  %v294 = vld [vmem:[%s1 + $0xe0] sm:$0xff]
  %v295 = vld [vmem:[%s1 + $0xe8] sm:$0xff]
  %v296 = vld [vmem:[%s1 + $0xf0] sm:$0xff]
  %v297 = vld [vmem:[%s1 + $0xf8] sm:$0xff]
  %v298 = vld [vmem:[%s1 + $0x100] sm:$0xff]
  %v299 = vld [vmem:[%s1 + $0x108] sm:$0xff]
  %v300 = vld [vmem:[%s1 + $0x110] sm:$0xff]
  %v301 = vld [vmem:[%s1 + $0x118] sm:$0xff]
  %v302 = vld [vmem:[%s1 + $0x120] sm:$0xff]
  %v303 = vld [vmem:[%s1 + $0x128] sm:$0xff]
  %v304 = vld [vmem:[%s1 + $0x130] sm:$0xff]
  %v305 = vld [vmem:[%s1 + $0x138] sm:$0xff]
  %v306 = vld [vmem:[%s1 + $0x140] sm:$0xff]
  %v307 = vld [vmem:[%s1 + $0x148] sm:$0xff]
  %v308 = vld [vmem:[%s1 + $0x150] sm:$0xff]
  %v309 = vld [vmem:[%s1 + $0x158] sm:$0xff]
  %v310 = vld [vmem:[%s1 + $0x160] sm:$0xff]
  %v311 = vld [vmem:[%s1 + $0x168] sm:$0xff]
  %v312 = vld [vmem:[%s1 + $0x170] sm:$0xff]
  %v313 = vld [vmem:[%s1 + $0x178] sm:$0xff]
  %v314 = vld [vmem:[%s1 + $0x180] sm:$0xff]
  %v315 = vld [vmem:[%s1 + $0x188] sm:$0xff]
  %v316 = vld [vmem:[%s1 + $0x190] sm:$0xff]
  %v317 = vld [vmem:[%s1 + $0x198] sm:$0xff]
  %v318 = vld [vmem:[%s1 + $0x1a0] sm:$0xff]
  %v319 = vld [vmem:[%s1 + $0x1a8] sm:$0xff]
  %v320 = vld [vmem:[%s1 + $0x1b0] sm:$0xff]
  %v321 = vld [vmem:[%s1 + $0x1b8] sm:$0xff]
  %v322 = vld [vmem:[%s1 + $0x1c0] sm:$0xff]
  %v323 = vld [vmem:[%s1 + $0x1c8] sm:$0xff]
  %v324 = vld [vmem:[%s1 + $0x1d0] sm:$0xff]
  %v325 = vld [vmem:[%s1 + $0x1d8] sm:$0xff]
  %v326 = vld [vmem:[%s1 + $0x1e0] sm:$0xff]
  %v327 = vld [vmem:[%s1 + $0x1e8] sm:$0xff]
  %v328 = vld [vmem:[%s1 + $0x1f0] sm:$0xff]
  %v329 = vld [vmem:[%s1 + $0x1f8] sm:$0xff]
  %v330 = vld [vmem:[%s1 + $0x200] sm:$0xff]
  %v331 = vld [vmem:[%s1 + $0x208] sm:$0xff]
  %v332 = vld [vmem:[%s1 + $0x210] sm:$0xff]
  %v333 = vld [vmem:[%s1 + $0x218] sm:$0xff]
  %v334 = vld [vmem:[%s1 + $0x220] sm:$0xff]
  %v335 = vld [vmem:[%s1 + $0x228] sm:$0xff]
  %v336 = vld [vmem:[%s1 + $0x230] sm:$0xff]
  %v337 = vld [vmem:[%s1 + $0x238] sm:$0xff]
  %v338 = vld [vmem:[%s1 + $0x240] sm:$0xff]
  %v339 = vld [vmem:[%s1 + $0x248] sm:$0xff]
  %v340 = vld [vmem:[%s1 + $0x250] sm:$0xff]
  %v341 = vld [vmem:[%s1 + $0x258] sm:$0xff]
  %v342 = vld [vmem:[%s1 + $0x260] sm:$0xff]
  %v343 = vld [vmem:[%s1 + $0x268] sm:$0xff]
  %v344 = vld [vmem:[%s1 + $0x270] sm:$0xff]
  %v345 = vld [vmem:[%s1 + $0x278] sm:$0xff]
  %v346 = vld [vmem:[%s1 + $0x280] sm:$0xff]
  %v347 = vld [vmem:[%s1 + $0x288] sm:$0xff]
  %v348 = vld [vmem:[%s1 + $0x290] sm:$0xff]
  %v349 = vld [vmem:[%s1 + $0x298] sm:$0xff]
  %v350 = vld [vmem:[%s1 + $0x2a0] sm:$0xff]
  %v351 = vld [vmem:[%s1 + $0x2a8] sm:$0xff]
  %v352 = vld [vmem:[%s1 + $0x2b0] sm:$0xff]
  %v353 = vld [vmem:[%s1 + $0x2b8] sm:$0xff]
  %v354 = vld [vmem:[%s1 + $0x2c0] sm:$0xff]
  %v355 = vld [vmem:[%s1 + $0x2c8] sm:$0xff]
  %v356 = vld [vmem:[%s1 + $0x2d0] sm:$0xff]
  %v357 = vld [vmem:[%s1 + $0x2d8] sm:$0xff]
  %v358 = vld [vmem:[%s1 + $0x2e0] sm:$0xff]
  %v359 = vld [vmem:[%s1 + $0x2e8] sm:$0xff]
  %v360 = vld [vmem:[%s1 + $0x2f0] sm:$0xff]
  %v361 = vld [vmem:[%s1 + $0x2f8] sm:$0xff]
  %v362 = vld [vmem:[%s1 + $0x300] sm:$0xff]
  %v363 = vld [vmem:[%s1 + $0x308] sm:$0xff]
  %v364 = vld [vmem:[%s1 + $0x310] sm:$0xff]
  %v365 = vld [vmem:[%s1 + $0x318] sm:$0xff]
  %v366 = vld [vmem:[%s2] sm:$0x1]
  %v368 = vperm.slane %v366, 0
  %vm370 = vcmask 261120
  %v372 = vsel %vm370, %v20, 0
  %v375 = vsel %vm370, %v27, 0
  %v378 = vsel %vm370, %v34, 0
  %v381 = vsel %vm370, %v41, 0
  %v384 = vsel %vm370, %v48, 0
  %v387 = vsel %vm370, %v55, 0
  %v390 = vsel %vm370, %v62, 0
  %v393 = vsel %vm370, %v69, 0
  %v396 = vsel %vm370, %v76, 0
  %v399 = vsel %vm370, %v83, 0
  %v402 = vsel %vm370, %v90, 0
  %v405 = vsel %vm370, %v97, 0
  %v408 = vsel %vm370, %v104, 0
  %v411 = vsel %vm370, %v111, 0
  %v414 = vsel %vm370, %v118, 0
  %v417 = vsel %vm370, %v125, 0
  %v420 = vsel %vm370, %v132, 0
  %v423 = vsel %vm370, %v139, 0
  %v426 = vsel %vm370, %v146, 0
  %v429 = vsel %vm370, %v153, 0
  %v432 = vsel %vm370, %v160, 0
  %v435 = vsel %vm370, %v167, 0
  %v438 = vsel %vm370, %v174, 0
  %v441 = vsel %vm370, %v181, 0
  %v444 = vsel %vm370, %v188, 0
  %v447 = vsel %vm370, %v195, 0
  %v450 = vsel %vm370, %v202, 0
  %v453 = vsel %vm370, %v209, 0
  %v456 = vsel %vm370, %v216, 0
  %v459 = vsel %vm370, %v223, 0
  %v462 = vsel %vm370, %v230, 0
  %v465 = vsel %vm370, %v237, 0
  %v468 = vsel %vm370, %v244, 0
  %v471 = vsel %vm370, %v251, 0
  %v474 = vsel %vm370, %v258, 0
  %v477 = vsel %vm370, %v265, 0
  %479 = vmatpush.msra.mxu0 %v281
  %480 = vmatpush.msra.mxu0 %v280
  %481 = vmatpush.msra.mxu0 %v279
  %482 = vmatpush.msra.mxu0 %v278
  %483 = vmatpush.msra.mxu0 %v277
  %484 = vmatpush.msra.mxu0 %v276
  %485 = vmatpush.msra.mxu0 %v275
  %486 = vmatpush.msra.mxu0 %v274
  %487 = vmatpush.msra.mxu0 %v273
  %488 = vmatpush.msra.mxu0 %v272
  %489 = vmatpush.msra.mxu0 %v271
  %490 = vmatpush.msra.mxu0 %v270
  %491 = vmatpush.msra.mxu0 %v269
  %492 = vmatpush.msra.mxu0 %v268
  %493 = vmatpush.msra.mxu0 %v267
  %494 = vmatpush.msra.mxu0 %v266
  %495 = vmatmul.f32.gmra.mxu0 %v14
  %v496 = vpop.f32.mrf.mxu0
  %v497 = vadd.f32 %v368, %v496
  %498 = vmatmul.f32.gmra.mxu0 %v21
  %v499 = vpop.f32.mrf.mxu0
  %v500 = vadd.f32 %v368, %v499
  %501 = vmatmul.f32.gmra.mxu0 %v28
  %v502 = vpop.f32.mrf.mxu0
  %v503 = vadd.f32 %v368, %v502
  %504 = vmatmul.f32.gmra.mxu0 %v35
  %v505 = vpop.f32.mrf.mxu0
  %v506 = vadd.f32 %v368, %v505
  %507 = vmatmul.f32.gmra.mxu0 %v42
  %v508 = vpop.f32.mrf.mxu0
  %v509 = vadd.f32 %v368, %v508
  %510 = vmatmul.f32.gmra.mxu0 %v49
  %v511 = vpop.f32.mrf.mxu0
  %v512 = vadd.f32 %v368, %v511
  %513 = vmatmul.f32.gmra.mxu0 %v56
  %v514 = vpop.f32.mrf.mxu0
  %v515 = vadd.f32 %v368, %v514
  %516 = vmatmul.f32.gmra.mxu0 %v63
  %v517 = vpop.f32.mrf.mxu0
  %v518 = vadd.f32 %v368, %v517
  %519 = vmatmul.f32.gmra.mxu0 %v70
  %v520 = vpop.f32.mrf.mxu0
  %v521 = vadd.f32 %v368, %v520
  %522 = vmatmul.f32.gmra.mxu0 %v77
  %v523 = vpop.f32.mrf.mxu0
  %v524 = vadd.f32 %v368, %v523
  %525 = vmatmul.f32.gmra.mxu0 %v84
  %v526 = vpop.f32.mrf.mxu0
  %v527 = vadd.f32 %v368, %v526
  %528 = vmatmul.f32.gmra.mxu0 %v91
  %v529 = vpop.f32.mrf.mxu0
  %v530 = vadd.f32 %v368, %v529
  %531 = vmatmul.f32.gmra.mxu0 %v98
  %v532 = vpop.f32.mrf.mxu0
  %v533 = vadd.f32 %v368, %v532
  %534 = vmatmul.f32.gmra.mxu0 %v105
  %v535 = vpop.f32.mrf.mxu0
  %v536 = vadd.f32 %v368, %v535
  %537 = vmatmul.f32.gmra.mxu0 %v112
  %v538 = vpop.f32.mrf.mxu0
  %v539 = vadd.f32 %v368, %v538
  %540 = vmatmul.f32.gmra.mxu0 %v119
  %v541 = vpop.f32.mrf.mxu0
  %v542 = vadd.f32 %v368, %v541
  %543 = vmatmul.f32.gmra.mxu0 %v126
  %v544 = vpop.f32.mrf.mxu0
  %v545 = vadd.f32 %v368, %v544
  %546 = vmatmul.f32.gmra.mxu0 %v133
  %v547 = vpop.f32.mrf.mxu0
  %v548 = vadd.f32 %v368, %v547
  %549 = vmatmul.f32.gmra.mxu0 %v140
  %v550 = vpop.f32.mrf.mxu0
  %v551 = vadd.f32 %v368, %v550
  %552 = vmatmul.f32.gmra.mxu0 %v147
  %v553 = vpop.f32.mrf.mxu0
  %v554 = vadd.f32 %v368, %v553
  %555 = vmatmul.f32.gmra.mxu0 %v154
  %v556 = vpop.f32.mrf.mxu0
  %v557 = vadd.f32 %v368, %v556
  %558 = vmatmul.f32.gmra.mxu0 %v161
  %v559 = vpop.f32.mrf.mxu0
  %v560 = vadd.f32 %v368, %v559
  %561 = vmatmul.f32.gmra.mxu0 %v168
  %v562 = vpop.f32.mrf.mxu0
  %v563 = vadd.f32 %v368, %v562
  %564 = vmatmul.f32.gmra.mxu0 %v175
  %v565 = vpop.f32.mrf.mxu0
  %v566 = vadd.f32 %v368, %v565
  %567 = vmatmul.f32.gmra.mxu0 %v182
  %v568 = vpop.f32.mrf.mxu0
  %v569 = vadd.f32 %v368, %v568
  %570 = vmatmul.f32.gmra.mxu0 %v189
  %v571 = vpop.f32.mrf.mxu0
  %v572 = vadd.f32 %v368, %v571
  %573 = vmatmul.f32.gmra.mxu0 %v196
  %v574 = vpop.f32.mrf.mxu0
  %v575 = vadd.f32 %v368, %v574
  %576 = vmatmul.f32.gmra.mxu0 %v203
  %v577 = vpop.f32.mrf.mxu0
  %v578 = vadd.f32 %v368, %v577
  %579 = vmatmul.f32.gmra.mxu0 %v210
  %v580 = vpop.f32.mrf.mxu0
  %v581 = vadd.f32 %v368, %v580
  %582 = vmatmul.f32.gmra.mxu0 %v217
  %v583 = vpop.f32.mrf.mxu0
  %v584 = vadd.f32 %v368, %v583
  %585 = vmatmul.f32.gmra.mxu0 %v224
  %v586 = vpop.f32.mrf.mxu0
  %v587 = vadd.f32 %v368, %v586
  %588 = vmatmul.f32.gmra.mxu0 %v231
  %v589 = vpop.f32.mrf.mxu0
  %v590 = vadd.f32 %v368, %v589
  %591 = vmatmul.f32.gmra.mxu0 %v238
  %v592 = vpop.f32.mrf.mxu0
  %v593 = vadd.f32 %v368, %v592
  %594 = vmatmul.f32.gmra.mxu0 %v245
  %v595 = vpop.f32.mrf.mxu0
  %v596 = vadd.f32 %v368, %v595
  %597 = vmatmul.f32.gmra.mxu0 %v252
  %v598 = vpop.f32.mrf.mxu0
  %v599 = vadd.f32 %v368, %v598
  %600 = vmatmul.f32.gmra.mxu0 %v259
  %v601 = vpop.f32.mrf.mxu0
  %v602 = vadd.f32 %v368, %v601
  %603 = vdwg.mxu0
  %604 = vmatpush.msra.mxu0 %v297
  %605 = vmatpush.msra.mxu0 %v296
  %606 = vmatpush.msra.mxu0 %v295
  %607 = vmatpush.msra.mxu0 %v294
  %608 = vmatpush.msra.mxu0 %v293
  %609 = vmatpush.msra.mxu0 %v292
  %610 = vmatpush.msra.mxu0 %v291
  %611 = vmatpush.msra.mxu0 %v290
  %612 = vmatpush.msra.mxu0 %v289
  %613 = vmatpush.msra.mxu0 %v288
  %614 = vmatpush.msra.mxu0 %v287
  %615 = vmatpush.msra.mxu0 %v286
  %616 = vmatpush.msra.mxu0 %v285
  %617 = vmatpush.msra.mxu0 %v284
  %618 = vmatpush.msra.mxu0 %v283
  %619 = vmatpush.msra.mxu0 %v282
  %620 = vmatmul.f32.gmra.mxu0 %v15
  %v621 = vpop.f32.mrf.mxu0
  %v622 = vadd.f32 %v497, %v621
  %623 = vmatmul.f32.gmra.mxu0 %v22
  %v624 = vpop.f32.mrf.mxu0
  %v625 = vadd.f32 %v500, %v624
  %626 = vmatmul.f32.gmra.mxu0 %v29
  %v627 = vpop.f32.mrf.mxu0
  %v628 = vadd.f32 %v503, %v627
  %629 = vmatmul.f32.gmra.mxu0 %v36
  %v630 = vpop.f32.mrf.mxu0
  %v631 = vadd.f32 %v506, %v630
  %632 = vmatmul.f32.gmra.mxu0 %v43
  %v633 = vpop.f32.mrf.mxu0
  %v634 = vadd.f32 %v509, %v633
  %635 = vmatmul.f32.gmra.mxu0 %v50
  %v636 = vpop.f32.mrf.mxu0
  %v637 = vadd.f32 %v512, %v636
  %638 = vmatmul.f32.gmra.mxu0 %v57
  %v639 = vpop.f32.mrf.mxu0
  %v640 = vadd.f32 %v515, %v639
  %641 = vmatmul.f32.gmra.mxu0 %v64
  %v642 = vpop.f32.mrf.mxu0
  %v643 = vadd.f32 %v518, %v642
  %644 = vmatmul.f32.gmra.mxu0 %v71
  %v645 = vpop.f32.mrf.mxu0
  %v646 = vadd.f32 %v521, %v645
  %647 = vmatmul.f32.gmra.mxu0 %v78
  %v648 = vpop.f32.mrf.mxu0
  %v649 = vadd.f32 %v524, %v648
  %650 = vmatmul.f32.gmra.mxu0 %v85
  %v651 = vpop.f32.mrf.mxu0
  %v652 = vadd.f32 %v527, %v651
  %653 = vmatmul.f32.gmra.mxu0 %v92
  %v654 = vpop.f32.mrf.mxu0
  %v655 = vadd.f32 %v530, %v654
  %656 = vmatmul.f32.gmra.mxu0 %v99
  %v657 = vpop.f32.mrf.mxu0
  %v658 = vadd.f32 %v533, %v657
  %659 = vmatmul.f32.gmra.mxu0 %v106
  %v660 = vpop.f32.mrf.mxu0
  %v661 = vadd.f32 %v536, %v660
  %662 = vmatmul.f32.gmra.mxu0 %v113
  %v663 = vpop.f32.mrf.mxu0
  %v664 = vadd.f32 %v539, %v663
  %665 = vmatmul.f32.gmra.mxu0 %v120
  %v666 = vpop.f32.mrf.mxu0
  %v667 = vadd.f32 %v542, %v666
  %668 = vmatmul.f32.gmra.mxu0 %v127
  %v669 = vpop.f32.mrf.mxu0
  %v670 = vadd.f32 %v545, %v669
  %671 = vmatmul.f32.gmra.mxu0 %v134
  %v672 = vpop.f32.mrf.mxu0
  %v673 = vadd.f32 %v548, %v672
  %674 = vmatmul.f32.gmra.mxu0 %v141
  %v675 = vpop.f32.mrf.mxu0
  %v676 = vadd.f32 %v551, %v675
  %677 = vmatmul.f32.gmra.mxu0 %v148
  %v678 = vpop.f32.mrf.mxu0
  %v679 = vadd.f32 %v554, %v678
  %680 = vmatmul.f32.gmra.mxu0 %v155
  %v681 = vpop.f32.mrf.mxu0
  %v682 = vadd.f32 %v557, %v681
  %683 = vmatmul.f32.gmra.mxu0 %v162
  %v684 = vpop.f32.mrf.mxu0
  %v685 = vadd.f32 %v560, %v684
  %686 = vmatmul.f32.gmra.mxu0 %v169
  %v687 = vpop.f32.mrf.mxu0
  %v688 = vadd.f32 %v563, %v687
  %689 = vmatmul.f32.gmra.mxu0 %v176
  %v690 = vpop.f32.mrf.mxu0
  %v691 = vadd.f32 %v566, %v690
  %692 = vmatmul.f32.gmra.mxu0 %v183
  %v693 = vpop.f32.mrf.mxu0
  %v694 = vadd.f32 %v569, %v693
  %695 = vmatmul.f32.gmra.mxu0 %v190
  %v696 = vpop.f32.mrf.mxu0
  %v697 = vadd.f32 %v572, %v696
  %698 = vmatmul.f32.gmra.mxu0 %v197
  %v699 = vpop.f32.mrf.mxu0
  %v700 = vadd.f32 %v575, %v699
  %701 = vmatmul.f32.gmra.mxu0 %v204
  %v702 = vpop.f32.mrf.mxu0
  %v703 = vadd.f32 %v578, %v702
  %704 = vmatmul.f32.gmra.mxu0 %v211
  %v705 = vpop.f32.mrf.mxu0
  %v706 = vadd.f32 %v581, %v705
  %707 = vmatmul.f32.gmra.mxu0 %v218
  %v708 = vpop.f32.mrf.mxu0
  %v709 = vadd.f32 %v584, %v708
  %710 = vmatmul.f32.gmra.mxu0 %v225
  %v711 = vpop.f32.mrf.mxu0
  %v712 = vadd.f32 %v587, %v711
  %713 = vmatmul.f32.gmra.mxu0 %v232
  %v714 = vpop.f32.mrf.mxu0
  %v715 = vadd.f32 %v590, %v714
  %716 = vmatmul.f32.gmra.mxu0 %v239
  %v717 = vpop.f32.mrf.mxu0
  %v718 = vadd.f32 %v593, %v717
  %719 = vmatmul.f32.gmra.mxu0 %v246
  %v720 = vpop.f32.mrf.mxu0
  %v721 = vadd.f32 %v596, %v720
  %722 = vmatmul.f32.gmra.mxu0 %v253
  %v723 = vpop.f32.mrf.mxu0
  %v724 = vadd.f32 %v599, %v723
  %725 = vmatmul.f32.gmra.mxu0 %v260
  %v726 = vpop.f32.mrf.mxu0
  %v727 = vadd.f32 %v602, %v726
  %728 = vdwg.mxu0
  %729 = vmatpush.msra.mxu0 %v313
  %730 = vmatpush.msra.mxu0 %v312
  %731 = vmatpush.msra.mxu0 %v311
  %732 = vmatpush.msra.mxu0 %v310
  %733 = vmatpush.msra.mxu0 %v309
  %734 = vmatpush.msra.mxu0 %v308
  %735 = vmatpush.msra.mxu0 %v307
  %736 = vmatpush.msra.mxu0 %v306
  %737 = vmatpush.msra.mxu0 %v305
  %738 = vmatpush.msra.mxu0 %v304
  %739 = vmatpush.msra.mxu0 %v303
  %740 = vmatpush.msra.mxu0 %v302
  %741 = vmatpush.msra.mxu0 %v301
  %742 = vmatpush.msra.mxu0 %v300
  %743 = vmatpush.msra.mxu0 %v299
  %744 = vmatpush.msra.mxu0 %v298
  %745 = vmatmul.f32.gmra.mxu0 %v16
  %v746 = vpop.f32.mrf.mxu0
  %v747 = vadd.f32 %v622, %v746
  %748 = vmatmul.f32.gmra.mxu0 %v23
  %v749 = vpop.f32.mrf.mxu0
  %v750 = vadd.f32 %v625, %v749
  %751 = vmatmul.f32.gmra.mxu0 %v30
  %v752 = vpop.f32.mrf.mxu0
  %v753 = vadd.f32 %v628, %v752
  %754 = vmatmul.f32.gmra.mxu0 %v37
  %v755 = vpop.f32.mrf.mxu0
  %v756 = vadd.f32 %v631, %v755
  %757 = vmatmul.f32.gmra.mxu0 %v44
  %v758 = vpop.f32.mrf.mxu0
  %v759 = vadd.f32 %v634, %v758
  %760 = vmatmul.f32.gmra.mxu0 %v51
  %v761 = vpop.f32.mrf.mxu0
  %v762 = vadd.f32 %v637, %v761
  %763 = vmatmul.f32.gmra.mxu0 %v58
  %v764 = vpop.f32.mrf.mxu0
  %v765 = vadd.f32 %v640, %v764
  %766 = vmatmul.f32.gmra.mxu0 %v65
  %v767 = vpop.f32.mrf.mxu0
  %v768 = vadd.f32 %v643, %v767
  %769 = vmatmul.f32.gmra.mxu0 %v72
  %v770 = vpop.f32.mrf.mxu0
  %v771 = vadd.f32 %v646, %v770
  %772 = vmatmul.f32.gmra.mxu0 %v79
  %v773 = vpop.f32.mrf.mxu0
  %v774 = vadd.f32 %v649, %v773
  %775 = vmatmul.f32.gmra.mxu0 %v86
  %v776 = vpop.f32.mrf.mxu0
  %v777 = vadd.f32 %v652, %v776
  %778 = vmatmul.f32.gmra.mxu0 %v93
  %v779 = vpop.f32.mrf.mxu0
  %v780 = vadd.f32 %v655, %v779
  %781 = vmatmul.f32.gmra.mxu0 %v100
  %v782 = vpop.f32.mrf.mxu0
  %v783 = vadd.f32 %v658, %v782
  %784 = vmatmul.f32.gmra.mxu0 %v107
  %v785 = vpop.f32.mrf.mxu0
  %v786 = vadd.f32 %v661, %v785
  %787 = vmatmul.f32.gmra.mxu0 %v114
  %v788 = vpop.f32.mrf.mxu0
  %v789 = vadd.f32 %v664, %v788
  %790 = vmatmul.f32.gmra.mxu0 %v121
  %v791 = vpop.f32.mrf.mxu0
  %v792 = vadd.f32 %v667, %v791
  %793 = vmatmul.f32.gmra.mxu0 %v128
  %v794 = vpop.f32.mrf.mxu0
  %v795 = vadd.f32 %v670, %v794
  %796 = vmatmul.f32.gmra.mxu0 %v135
  %v797 = vpop.f32.mrf.mxu0
  %v798 = vadd.f32 %v673, %v797
  %799 = vmatmul.f32.gmra.mxu0 %v142
  %v800 = vpop.f32.mrf.mxu0
  %v801 = vadd.f32 %v676, %v800
  %802 = vmatmul.f32.gmra.mxu0 %v149
  %v803 = vpop.f32.mrf.mxu0
  %v804 = vadd.f32 %v679, %v803
  %805 = vmatmul.f32.gmra.mxu0 %v156
  %v806 = vpop.f32.mrf.mxu0
  %v807 = vadd.f32 %v682, %v806
  %808 = vmatmul.f32.gmra.mxu0 %v163
  %v809 = vpop.f32.mrf.mxu0
  %v810 = vadd.f32 %v685, %v809
  %811 = vmatmul.f32.gmra.mxu0 %v170
  %v812 = vpop.f32.mrf.mxu0
  %v813 = vadd.f32 %v688, %v812
  %814 = vmatmul.f32.gmra.mxu0 %v177
  %v815 = vpop.f32.mrf.mxu0
  %v816 = vadd.f32 %v691, %v815
  %817 = vmatmul.f32.gmra.mxu0 %v184
  %v818 = vpop.f32.mrf.mxu0
  %v819 = vadd.f32 %v694, %v818
  %820 = vmatmul.f32.gmra.mxu0 %v191
  %v821 = vpop.f32.mrf.mxu0
  %v822 = vadd.f32 %v697, %v821
  %823 = vmatmul.f32.gmra.mxu0 %v198
  %v824 = vpop.f32.mrf.mxu0
  %v825 = vadd.f32 %v700, %v824
  %826 = vmatmul.f32.gmra.mxu0 %v205
  %v827 = vpop.f32.mrf.mxu0
  %v828 = vadd.f32 %v703, %v827
  %829 = vmatmul.f32.gmra.mxu0 %v212
  %v830 = vpop.f32.mrf.mxu0
  %v831 = vadd.f32 %v706, %v830
  %832 = vmatmul.f32.gmra.mxu0 %v219
  %v833 = vpop.f32.mrf.mxu0
  %v834 = vadd.f32 %v709, %v833
  %835 = vmatmul.f32.gmra.mxu0 %v226
  %v836 = vpop.f32.mrf.mxu0
  %v837 = vadd.f32 %v712, %v836
  %838 = vmatmul.f32.gmra.mxu0 %v233
  %v839 = vpop.f32.mrf.mxu0
  %v840 = vadd.f32 %v715, %v839
  %841 = vmatmul.f32.gmra.mxu0 %v240
  %v842 = vpop.f32.mrf.mxu0
  %v843 = vadd.f32 %v718, %v842
  %844 = vmatmul.f32.gmra.mxu0 %v247
  %v845 = vpop.f32.mrf.mxu0
  %v846 = vadd.f32 %v721, %v845
  %847 = vmatmul.f32.gmra.mxu0 %v254
  %v848 = vpop.f32.mrf.mxu0
  %v849 = vadd.f32 %v724, %v848
  %850 = vmatmul.f32.gmra.mxu0 %v261
  %v851 = vpop.f32.mrf.mxu0
  %v852 = vadd.f32 %v727, %v851
  %853 = vdwg.mxu0
  %854 = vmatpush.msra.mxu0 %v329
  %855 = vmatpush.msra.mxu0 %v328
  %856 = vmatpush.msra.mxu0 %v327
  %857 = vmatpush.msra.mxu0 %v326
  %858 = vmatpush.msra.mxu0 %v325
  %859 = vmatpush.msra.mxu0 %v324
  %860 = vmatpush.msra.mxu0 %v323
  %861 = vmatpush.msra.mxu0 %v322
  %862 = vmatpush.msra.mxu0 %v321
  %863 = vmatpush.msra.mxu0 %v320
  %864 = vmatpush.msra.mxu0 %v319
  %865 = vmatpush.msra.mxu0 %v318
  %866 = vmatpush.msra.mxu0 %v317
  %867 = vmatpush.msra.mxu0 %v316
  %868 = vmatpush.msra.mxu0 %v315
  %869 = vmatpush.msra.mxu0 %v314
  %870 = vmatmul.f32.gmra.mxu0 %v17
  %v871 = vpop.f32.mrf.mxu0
  %v872 = vadd.f32 %v747, %v871
  %873 = vmatmul.f32.gmra.mxu0 %v24
  %v874 = vpop.f32.mrf.mxu0
  %v875 = vadd.f32 %v750, %v874
  %876 = vmatmul.f32.gmra.mxu0 %v31
  %v877 = vpop.f32.mrf.mxu0
  %v878 = vadd.f32 %v753, %v877
  %879 = vmatmul.f32.gmra.mxu0 %v38
  %v880 = vpop.f32.mrf.mxu0
  %v881 = vadd.f32 %v756, %v880
  %882 = vmatmul.f32.gmra.mxu0 %v45
  %v883 = vpop.f32.mrf.mxu0
  %v884 = vadd.f32 %v759, %v883
  %885 = vmatmul.f32.gmra.mxu0 %v52
  %v886 = vpop.f32.mrf.mxu0
  %v887 = vadd.f32 %v762, %v886
  %888 = vmatmul.f32.gmra.mxu0 %v59
  %v889 = vpop.f32.mrf.mxu0
  %v890 = vadd.f32 %v765, %v889
  %891 = vmatmul.f32.gmra.mxu0 %v66
  %v892 = vpop.f32.mrf.mxu0
  %v893 = vadd.f32 %v768, %v892
  %894 = vmatmul.f32.gmra.mxu0 %v73
  %v895 = vpop.f32.mrf.mxu0
  %v896 = vadd.f32 %v771, %v895
  %897 = vmatmul.f32.gmra.mxu0 %v80
  %v898 = vpop.f32.mrf.mxu0
  %v899 = vadd.f32 %v774, %v898
  %900 = vmatmul.f32.gmra.mxu0 %v87
  %v901 = vpop.f32.mrf.mxu0
  %v902 = vadd.f32 %v777, %v901
  %903 = vmatmul.f32.gmra.mxu0 %v94
  %v904 = vpop.f32.mrf.mxu0
  %v905 = vadd.f32 %v780, %v904
  %906 = vmatmul.f32.gmra.mxu0 %v101
  %v907 = vpop.f32.mrf.mxu0
  %v908 = vadd.f32 %v783, %v907
  %909 = vmatmul.f32.gmra.mxu0 %v108
  %v910 = vpop.f32.mrf.mxu0
  %v911 = vadd.f32 %v786, %v910
  %912 = vmatmul.f32.gmra.mxu0 %v115
  %v913 = vpop.f32.mrf.mxu0
  %v914 = vadd.f32 %v789, %v913
  %915 = vmatmul.f32.gmra.mxu0 %v122
  %v916 = vpop.f32.mrf.mxu0
  %v917 = vadd.f32 %v792, %v916
  %918 = vmatmul.f32.gmra.mxu0 %v129
  %v919 = vpop.f32.mrf.mxu0
  %v920 = vadd.f32 %v795, %v919
  %921 = vmatmul.f32.gmra.mxu0 %v136
  %v922 = vpop.f32.mrf.mxu0
  %v923 = vadd.f32 %v798, %v922
  %924 = vmatmul.f32.gmra.mxu0 %v143
  %v925 = vpop.f32.mrf.mxu0
  %v926 = vadd.f32 %v801, %v925
  %927 = vmatmul.f32.gmra.mxu0 %v150
  %v928 = vpop.f32.mrf.mxu0
  %v929 = vadd.f32 %v804, %v928
  %930 = vmatmul.f32.gmra.mxu0 %v157
  %v931 = vpop.f32.mrf.mxu0
  %v932 = vadd.f32 %v807, %v931
  %933 = vmatmul.f32.gmra.mxu0 %v164
  %v934 = vpop.f32.mrf.mxu0
  %v935 = vadd.f32 %v810, %v934
  %936 = vmatmul.f32.gmra.mxu0 %v171
  %v937 = vpop.f32.mrf.mxu0
  %v938 = vadd.f32 %v813, %v937
  %939 = vmatmul.f32.gmra.mxu0 %v178
  %v940 = vpop.f32.mrf.mxu0
  %v941 = vadd.f32 %v816, %v940
  %942 = vmatmul.f32.gmra.mxu0 %v185
  %v943 = vpop.f32.mrf.mxu0
  %v944 = vadd.f32 %v819, %v943
  %945 = vmatmul.f32.gmra.mxu0 %v192
  %v946 = vpop.f32.mrf.mxu0
  %v947 = vadd.f32 %v822, %v946
  %948 = vmatmul.f32.gmra.mxu0 %v199
  %v949 = vpop.f32.mrf.mxu0
  %v950 = vadd.f32 %v825, %v949
  %951 = vmatmul.f32.gmra.mxu0 %v206
  %v952 = vpop.f32.mrf.mxu0
  %v953 = vadd.f32 %v828, %v952
  %954 = vmatmul.f32.gmra.mxu0 %v213
  %v955 = vpop.f32.mrf.mxu0
  %v956 = vadd.f32 %v831, %v955
  %957 = vmatmul.f32.gmra.mxu0 %v220
  %v958 = vpop.f32.mrf.mxu0
  %v959 = vadd.f32 %v834, %v958
  %960 = vmatmul.f32.gmra.mxu0 %v227
  %v961 = vpop.f32.mrf.mxu0
  %v962 = vadd.f32 %v837, %v961
  %963 = vmatmul.f32.gmra.mxu0 %v234
  %v964 = vpop.f32.mrf.mxu0
  %v965 = vadd.f32 %v840, %v964
  %966 = vmatmul.f32.gmra.mxu0 %v241
  %v967 = vpop.f32.mrf.mxu0
  %v968 = vadd.f32 %v843, %v967
  %969 = vmatmul.f32.gmra.mxu0 %v248
  %v970 = vpop.f32.mrf.mxu0
  %v971 = vadd.f32 %v846, %v970
  %972 = vmatmul.f32.gmra.mxu0 %v255
  %v973 = vpop.f32.mrf.mxu0
  %v974 = vadd.f32 %v849, %v973
  %975 = vmatmul.f32.gmra.mxu0 %v262
  %v976 = vpop.f32.mrf.mxu0
  %v977 = vadd.f32 %v852, %v976
  %978 = vdwg.mxu0
  %979 = vmatpush.msra.mxu0 %v345
  %980 = vmatpush.msra.mxu0 %v344
  %981 = vmatpush.msra.mxu0 %v343
  %982 = vmatpush.msra.mxu0 %v342
  %983 = vmatpush.msra.mxu0 %v341
  %984 = vmatpush.msra.mxu0 %v340
  %985 = vmatpush.msra.mxu0 %v339
  %986 = vmatpush.msra.mxu0 %v338
  %987 = vmatpush.msra.mxu0 %v337
  %988 = vmatpush.msra.mxu0 %v336
  %989 = vmatpush.msra.mxu0 %v335
  %990 = vmatpush.msra.mxu0 %v334
  %991 = vmatpush.msra.mxu0 %v333
  %992 = vmatpush.msra.mxu0 %v332
  %993 = vmatpush.msra.mxu0 %v331
  %994 = vmatpush.msra.mxu0 %v330
  %995 = vmatmul.f32.gmra.mxu0 %v18
  %v996 = vpop.f32.mrf.mxu0
  %v997 = vadd.f32 %v872, %v996
  %998 = vmatmul.f32.gmra.mxu0 %v25
  %v999 = vpop.f32.mrf.mxu0
  %v1000 = vadd.f32 %v875, %v999
  %1001 = vmatmul.f32.gmra.mxu0 %v32
  %v1002 = vpop.f32.mrf.mxu0
  %v1003 = vadd.f32 %v878, %v1002
  %1004 = vmatmul.f32.gmra.mxu0 %v39
  %v1005 = vpop.f32.mrf.mxu0
  %v1006 = vadd.f32 %v881, %v1005
  %1007 = vmatmul.f32.gmra.mxu0 %v46
  %v1008 = vpop.f32.mrf.mxu0
  %v1009 = vadd.f32 %v884, %v1008
  %1010 = vmatmul.f32.gmra.mxu0 %v53
  %v1011 = vpop.f32.mrf.mxu0
  %v1012 = vadd.f32 %v887, %v1011
  %1013 = vmatmul.f32.gmra.mxu0 %v60
  %v1014 = vpop.f32.mrf.mxu0
  %v1015 = vadd.f32 %v890, %v1014
  %1016 = vmatmul.f32.gmra.mxu0 %v67
  %v1017 = vpop.f32.mrf.mxu0
  %v1018 = vadd.f32 %v893, %v1017
  %1019 = vmatmul.f32.gmra.mxu0 %v74
  %v1020 = vpop.f32.mrf.mxu0
  %v1021 = vadd.f32 %v896, %v1020
  %1022 = vmatmul.f32.gmra.mxu0 %v81
  %v1023 = vpop.f32.mrf.mxu0
  %v1024 = vadd.f32 %v899, %v1023
  %1025 = vmatmul.f32.gmra.mxu0 %v88
  %v1026 = vpop.f32.mrf.mxu0
  %v1027 = vadd.f32 %v902, %v1026
  %1028 = vmatmul.f32.gmra.mxu0 %v95
  %v1029 = vpop.f32.mrf.mxu0
  %v1030 = vadd.f32 %v905, %v1029
  %1031 = vmatmul.f32.gmra.mxu0 %v102
  %v1032 = vpop.f32.mrf.mxu0
  %v1033 = vadd.f32 %v908, %v1032
  %1034 = vmatmul.f32.gmra.mxu0 %v109
  %v1035 = vpop.f32.mrf.mxu0
  %v1036 = vadd.f32 %v911, %v1035
  %1037 = vmatmul.f32.gmra.mxu0 %v116
  %v1038 = vpop.f32.mrf.mxu0
  %v1039 = vadd.f32 %v914, %v1038
  %1040 = vmatmul.f32.gmra.mxu0 %v123
  %v1041 = vpop.f32.mrf.mxu0
  %v1042 = vadd.f32 %v917, %v1041
  %1043 = vmatmul.f32.gmra.mxu0 %v130
  %v1044 = vpop.f32.mrf.mxu0
  %v1045 = vadd.f32 %v920, %v1044
  %1046 = vmatmul.f32.gmra.mxu0 %v137
  %v1047 = vpop.f32.mrf.mxu0
  %v1048 = vadd.f32 %v923, %v1047
  %1049 = vmatmul.f32.gmra.mxu0 %v144
  %v1050 = vpop.f32.mrf.mxu0
  %v1051 = vadd.f32 %v926, %v1050
  %1052 = vmatmul.f32.gmra.mxu0 %v151
  %v1053 = vpop.f32.mrf.mxu0
  %v1054 = vadd.f32 %v929, %v1053
  %1055 = vmatmul.f32.gmra.mxu0 %v158
  %v1056 = vpop.f32.mrf.mxu0
  %v1057 = vadd.f32 %v932, %v1056
  %1058 = vmatmul.f32.gmra.mxu0 %v165
  %v1059 = vpop.f32.mrf.mxu0
  %v1060 = vadd.f32 %v935, %v1059
  %1061 = vmatmul.f32.gmra.mxu0 %v172
  %v1062 = vpop.f32.mrf.mxu0
  %v1063 = vadd.f32 %v938, %v1062
  %1064 = vmatmul.f32.gmra.mxu0 %v179
  %v1065 = vpop.f32.mrf.mxu0
  %v1066 = vadd.f32 %v941, %v1065
  %1067 = vmatmul.f32.gmra.mxu0 %v186
  %v1068 = vpop.f32.mrf.mxu0
  %v1069 = vadd.f32 %v944, %v1068
  %1070 = vmatmul.f32.gmra.mxu0 %v193
  %v1071 = vpop.f32.mrf.mxu0
  %v1072 = vadd.f32 %v947, %v1071
  %1073 = vmatmul.f32.gmra.mxu0 %v200
  %v1074 = vpop.f32.mrf.mxu0
  %v1075 = vadd.f32 %v950, %v1074
  %1076 = vmatmul.f32.gmra.mxu0 %v207
  %v1077 = vpop.f32.mrf.mxu0
  %v1078 = vadd.f32 %v953, %v1077
  %1079 = vmatmul.f32.gmra.mxu0 %v214
  %v1080 = vpop.f32.mrf.mxu0
  %v1081 = vadd.f32 %v956, %v1080
  %1082 = vmatmul.f32.gmra.mxu0 %v221
  %v1083 = vpop.f32.mrf.mxu0
  %v1084 = vadd.f32 %v959, %v1083
  %1085 = vmatmul.f32.gmra.mxu0 %v228
  %v1086 = vpop.f32.mrf.mxu0
  %v1087 = vadd.f32 %v962, %v1086
  %1088 = vmatmul.f32.gmra.mxu0 %v235
  %v1089 = vpop.f32.mrf.mxu0
  %v1090 = vadd.f32 %v965, %v1089
  %1091 = vmatmul.f32.gmra.mxu0 %v242
  %v1092 = vpop.f32.mrf.mxu0
  %v1093 = vadd.f32 %v968, %v1092
  %1094 = vmatmul.f32.gmra.mxu0 %v249
  %v1095 = vpop.f32.mrf.mxu0
  %v1096 = vadd.f32 %v971, %v1095
  %1097 = vmatmul.f32.gmra.mxu0 %v256
  %v1098 = vpop.f32.mrf.mxu0
  %v1099 = vadd.f32 %v974, %v1098
  %1100 = vmatmul.f32.gmra.mxu0 %v263
  %v1101 = vpop.f32.mrf.mxu0
  %v1102 = vadd.f32 %v977, %v1101
  %1103 = vdwg.mxu0
  %1104 = vmatpush.msra.mxu0 %v361
  %1105 = vmatpush.msra.mxu0 %v360
  %1106 = vmatpush.msra.mxu0 %v359
  %1107 = vmatpush.msra.mxu0 %v358
  %1108 = vmatpush.msra.mxu0 %v357
  %1109 = vmatpush.msra.mxu0 %v356
  %1110 = vmatpush.msra.mxu0 %v355
  %1111 = vmatpush.msra.mxu0 %v354
  %1112 = vmatpush.msra.mxu0 %v353
  %1113 = vmatpush.msra.mxu0 %v352
  %1114 = vmatpush.msra.mxu0 %v351
  %1115 = vmatpush.msra.mxu0 %v350
  %1116 = vmatpush.msra.mxu0 %v349
  %1117 = vmatpush.msra.mxu0 %v348
  %1118 = vmatpush.msra.mxu0 %v347
  %1119 = vmatpush.msra.mxu0 %v346
  %1120 = vmatmul.f32.gmra.mxu0 %v19
  %v1121 = vpop.f32.mrf.mxu0
  %v1122 = vadd.f32 %v997, %v1121
  %1123 = vmatmul.f32.gmra.mxu0 %v26
  %v1124 = vpop.f32.mrf.mxu0
  %v1125 = vadd.f32 %v1000, %v1124
  %1126 = vmatmul.f32.gmra.mxu0 %v33
  %v1127 = vpop.f32.mrf.mxu0
  %v1128 = vadd.f32 %v1003, %v1127
  %1129 = vmatmul.f32.gmra.mxu0 %v40
  %v1130 = vpop.f32.mrf.mxu0
  %v1131 = vadd.f32 %v1006, %v1130
  %1132 = vmatmul.f32.gmra.mxu0 %v47
  %v1133 = vpop.f32.mrf.mxu0
  %v1134 = vadd.f32 %v1009, %v1133
  %1135 = vmatmul.f32.gmra.mxu0 %v54
  %v1136 = vpop.f32.mrf.mxu0
  %v1137 = vadd.f32 %v1012, %v1136
  %1138 = vmatmul.f32.gmra.mxu0 %v61
  %v1139 = vpop.f32.mrf.mxu0
  %v1140 = vadd.f32 %v1015, %v1139
  %1141 = vmatmul.f32.gmra.mxu0 %v68
  %v1142 = vpop.f32.mrf.mxu0
  %v1143 = vadd.f32 %v1018, %v1142
  %1144 = vmatmul.f32.gmra.mxu0 %v75
  %v1145 = vpop.f32.mrf.mxu0
  %v1146 = vadd.f32 %v1021, %v1145
  %1147 = vmatmul.f32.gmra.mxu0 %v82
  %v1148 = vpop.f32.mrf.mxu0
  %v1149 = vadd.f32 %v1024, %v1148
  %1150 = vmatmul.f32.gmra.mxu0 %v89
  %v1151 = vpop.f32.mrf.mxu0
  %v1152 = vadd.f32 %v1027, %v1151
  %1153 = vmatmul.f32.gmra.mxu0 %v96
  %v1154 = vpop.f32.mrf.mxu0
  %v1155 = vadd.f32 %v1030, %v1154
  %1156 = vmatmul.f32.gmra.mxu0 %v103
  %v1157 = vpop.f32.mrf.mxu0
  %v1158 = vadd.f32 %v1033, %v1157
  %1159 = vmatmul.f32.gmra.mxu0 %v110
  %v1160 = vpop.f32.mrf.mxu0
  %v1161 = vadd.f32 %v1036, %v1160
  %1162 = vmatmul.f32.gmra.mxu0 %v117
  %v1163 = vpop.f32.mrf.mxu0
  %v1164 = vadd.f32 %v1039, %v1163
  %1165 = vmatmul.f32.gmra.mxu0 %v124
  %v1166 = vpop.f32.mrf.mxu0
  %v1167 = vadd.f32 %v1042, %v1166
  %1168 = vmatmul.f32.gmra.mxu0 %v131
  %v1169 = vpop.f32.mrf.mxu0
  %v1170 = vadd.f32 %v1045, %v1169
  %1171 = vmatmul.f32.gmra.mxu0 %v138
  %v1172 = vpop.f32.mrf.mxu0
  %v1173 = vadd.f32 %v1048, %v1172
  %1174 = vmatmul.f32.gmra.mxu0 %v145
  %v1175 = vpop.f32.mrf.mxu0
  %v1176 = vadd.f32 %v1051, %v1175
  %1177 = vmatmul.f32.gmra.mxu0 %v152
  %v1178 = vpop.f32.mrf.mxu0
  %v1179 = vadd.f32 %v1054, %v1178
  %1180 = vmatmul.f32.gmra.mxu0 %v159
  %v1181 = vpop.f32.mrf.mxu0
  %v1182 = vadd.f32 %v1057, %v1181
  %1183 = vmatmul.f32.gmra.mxu0 %v166
  %v1184 = vpop.f32.mrf.mxu0
  %v1185 = vadd.f32 %v1060, %v1184
  %1186 = vmatmul.f32.gmra.mxu0 %v173
  %v1187 = vpop.f32.mrf.mxu0
  %v1188 = vadd.f32 %v1063, %v1187
  %1189 = vmatmul.f32.gmra.mxu0 %v180
  %v1190 = vpop.f32.mrf.mxu0
  %v1191 = vadd.f32 %v1066, %v1190
  %1192 = vmatmul.f32.gmra.mxu0 %v187
  %v1193 = vpop.f32.mrf.mxu0
  %v1194 = vadd.f32 %v1069, %v1193
  %1195 = vmatmul.f32.gmra.mxu0 %v194
  %v1196 = vpop.f32.mrf.mxu0
  %v1197 = vadd.f32 %v1072, %v1196
  %1198 = vmatmul.f32.gmra.mxu0 %v201
  %v1199 = vpop.f32.mrf.mxu0
  %v1200 = vadd.f32 %v1075, %v1199
  %1201 = vmatmul.f32.gmra.mxu0 %v208
  %v1202 = vpop.f32.mrf.mxu0
  %v1203 = vadd.f32 %v1078, %v1202
  %1204 = vmatmul.f32.gmra.mxu0 %v215
  %v1205 = vpop.f32.mrf.mxu0
  %v1206 = vadd.f32 %v1081, %v1205
  %1207 = vmatmul.f32.gmra.mxu0 %v222
  %v1208 = vpop.f32.mrf.mxu0
  %v1209 = vadd.f32 %v1084, %v1208
  %1210 = vmatmul.f32.gmra.mxu0 %v229
  %v1211 = vpop.f32.mrf.mxu0
  %v1212 = vadd.f32 %v1087, %v1211
  %1213 = vmatmul.f32.gmra.mxu0 %v236
  %v1214 = vpop.f32.mrf.mxu0
  %v1215 = vadd.f32 %v1090, %v1214
  %1216 = vmatmul.f32.gmra.mxu0 %v243
  %v1217 = vpop.f32.mrf.mxu0
  %v1218 = vadd.f32 %v1093, %v1217
  %1219 = vmatmul.f32.gmra.mxu0 %v250
  %v1220 = vpop.f32.mrf.mxu0
  %v1221 = vadd.f32 %v1096, %v1220
  %1222 = vmatmul.f32.gmra.mxu0 %v257
  %v1223 = vpop.f32.mrf.mxu0
  %v1224 = vadd.f32 %v1099, %v1223
  %1225 = vmatmul.f32.gmra.mxu0 %v264
  %v1226 = vpop.f32.mrf.mxu0
  %v1227 = vadd.f32 %v1102, %v1226
  %1228 = vdwg.mxu0
  %1229 = vmatpush.msra.mxu0 0.0
  %1230 = vmatpush.msra.mxu0 0.0
  %1231 = vmatpush.msra.mxu0 0.0
  %1232 = vmatpush.msra.mxu0 0.0
  %1233 = vmatpush.msra.mxu0 0.0
  %1234 = vmatpush.msra.mxu0 0.0
  %1235 = vmatpush.msra.mxu0 0.0
  %1236 = vmatpush.msra.mxu0 0.0
  %1237 = vmatpush.msra.mxu0 0.0
  %1238 = vmatpush.msra.mxu0 0.0
  %1239 = vmatpush.msra.mxu0 0.0
  %1240 = vmatpush.msra.mxu0 0.0
  %1241 = vmatpush.msra.mxu0 %v365
  %1242 = vmatpush.msra.mxu0 %v364
  %1243 = vmatpush.msra.mxu0 %v363
  %1244 = vmatpush.msra.mxu0 %v362
  %1245 = vmatmul.f32.gmra.mxu0 %v372
  %v1246 = vpop.f32.mrf.mxu0
  %v1247 = vadd.f32 %v1122, %v1246
  %1248 = vmatmul.f32.gmra.mxu0 %v375
  %v1249 = vpop.f32.mrf.mxu0
  %v1250 = vadd.f32 %v1125, %v1249
  %1251 = vmatmul.f32.gmra.mxu0 %v378
  %v1252 = vpop.f32.mrf.mxu0
  %v1253 = vadd.f32 %v1128, %v1252
  %1254 = vmatmul.f32.gmra.mxu0 %v381
  %v1255 = vpop.f32.mrf.mxu0
  %v1256 = vadd.f32 %v1131, %v1255
  %1257 = vmatmul.f32.gmra.mxu0 %v384
  %v1258 = vpop.f32.mrf.mxu0
  %v1259 = vadd.f32 %v1134, %v1258
  %1260 = vmatmul.f32.gmra.mxu0 %v387
  %v1261 = vpop.f32.mrf.mxu0
  %v1262 = vadd.f32 %v1137, %v1261
  %1263 = vmatmul.f32.gmra.mxu0 %v390
  %v1264 = vpop.f32.mrf.mxu0
  %v1265 = vadd.f32 %v1140, %v1264
  %1266 = vmatmul.f32.gmra.mxu0 %v393
  %v1267 = vpop.f32.mrf.mxu0
  %v1268 = vadd.f32 %v1143, %v1267
  %1269 = vmatmul.f32.gmra.mxu0 %v396
  %v1270 = vpop.f32.mrf.mxu0
  %v1271 = vadd.f32 %v1146, %v1270
  %1272 = vmatmul.f32.gmra.mxu0 %v399
  %v1273 = vpop.f32.mrf.mxu0
  %v1274 = vadd.f32 %v1149, %v1273
  %1275 = vmatmul.f32.gmra.mxu0 %v402
  %v1276 = vpop.f32.mrf.mxu0
  %v1277 = vadd.f32 %v1152, %v1276
  %1278 = vmatmul.f32.gmra.mxu0 %v405
  %v1279 = vpop.f32.mrf.mxu0
  %v1280 = vadd.f32 %v1155, %v1279
  %1281 = vmatmul.f32.gmra.mxu0 %v408
  %v1282 = vpop.f32.mrf.mxu0
  %v1283 = vadd.f32 %v1158, %v1282
  %1284 = vmatmul.f32.gmra.mxu0 %v411
  %v1285 = vpop.f32.mrf.mxu0
  %v1286 = vadd.f32 %v1161, %v1285
  %1287 = vmatmul.f32.gmra.mxu0 %v414
  %v1288 = vpop.f32.mrf.mxu0
  %v1289 = vadd.f32 %v1164, %v1288
  %1290 = vmatmul.f32.gmra.mxu0 %v417
  %v1291 = vpop.f32.mrf.mxu0
  %v1292 = vadd.f32 %v1167, %v1291
  %1293 = vmatmul.f32.gmra.mxu0 %v420
  %v1294 = vpop.f32.mrf.mxu0
  %v1295 = vadd.f32 %v1170, %v1294
  %1296 = vmatmul.f32.gmra.mxu0 %v423
  %v1297 = vpop.f32.mrf.mxu0
  %v1298 = vadd.f32 %v1173, %v1297
  %1299 = vmatmul.f32.gmra.mxu0 %v426
  %v1300 = vpop.f32.mrf.mxu0
  %v1301 = vadd.f32 %v1176, %v1300
  %1302 = vmatmul.f32.gmra.mxu0 %v429
  %v1303 = vpop.f32.mrf.mxu0
  %v1304 = vadd.f32 %v1179, %v1303
  %1305 = vmatmul.f32.gmra.mxu0 %v432
  %v1306 = vpop.f32.mrf.mxu0
  %v1307 = vadd.f32 %v1182, %v1306
  %1308 = vmatmul.f32.gmra.mxu0 %v435
  %v1309 = vpop.f32.mrf.mxu0
  %v1310 = vadd.f32 %v1185, %v1309
  %1311 = vmatmul.f32.gmra.mxu0 %v438
  %v1312 = vpop.f32.mrf.mxu0
  %v1313 = vadd.f32 %v1188, %v1312
  %1314 = vmatmul.f32.gmra.mxu0 %v441
  %v1315 = vpop.f32.mrf.mxu0
  %v1316 = vadd.f32 %v1191, %v1315
  %1317 = vmatmul.f32.gmra.mxu0 %v444
  %v1318 = vpop.f32.mrf.mxu0
  %v1319 = vadd.f32 %v1194, %v1318
  %1320 = vmatmul.f32.gmra.mxu0 %v447
  %v1321 = vpop.f32.mrf.mxu0
  %v1322 = vadd.f32 %v1197, %v1321
  %1323 = vmatmul.f32.gmra.mxu0 %v450
  %v1324 = vpop.f32.mrf.mxu0
  %v1325 = vadd.f32 %v1200, %v1324
  %1326 = vmatmul.f32.gmra.mxu0 %v453
  %v1327 = vpop.f32.mrf.mxu0
  %v1328 = vadd.f32 %v1203, %v1327
  %1329 = vmatmul.f32.gmra.mxu0 %v456
  %v1330 = vpop.f32.mrf.mxu0
  %v1331 = vadd.f32 %v1206, %v1330
  %1332 = vmatmul.f32.gmra.mxu0 %v459
  %v1333 = vpop.f32.mrf.mxu0
  %v1334 = vadd.f32 %v1209, %v1333
  %1335 = vmatmul.f32.gmra.mxu0 %v462
  %v1336 = vpop.f32.mrf.mxu0
  %v1337 = vadd.f32 %v1212, %v1336
  %1338 = vmatmul.f32.gmra.mxu0 %v465
  %v1339 = vpop.f32.mrf.mxu0
  %v1340 = vadd.f32 %v1215, %v1339
  %1341 = vmatmul.f32.gmra.mxu0 %v468
  %v1342 = vpop.f32.mrf.mxu0
  %v1343 = vadd.f32 %v1218, %v1342
  %1344 = vmatmul.f32.gmra.mxu0 %v471
  %v1345 = vpop.f32.mrf.mxu0
  %v1346 = vadd.f32 %v1221, %v1345
  %1347 = vmatmul.f32.gmra.mxu0 %v474
  %v1348 = vpop.f32.mrf.mxu0
  %v1349 = vadd.f32 %v1224, %v1348
  %1350 = vmatmul.f32.gmra.mxu0 %v477
  %v1351 = vpop.f32.mrf.mxu0
  %v1352 = vadd.f32 %v1227, %v1351
  %1353 = vdwg.mxu0
  %v1354 = vmax.f32 %v1247, 0.0
  %v1355 = vmax.f32 %v1250, 0.0
  %v1356 = vmax.f32 %v1253, 0.0
  %v1357 = vmax.f32 %v1256, 0.0
  %v1358 = vmax.f32 %v1259, 0.0
  %v1359 = vmax.f32 %v1262, 0.0
  %v1360 = vmax.f32 %v1265, 0.0
  %v1361 = vmax.f32 %v1268, 0.0
  %v1362 = vmax.f32 %v1271, 0.0
  %v1363 = vmax.f32 %v1274, 0.0
  %v1364 = vmax.f32 %v1277, 0.0
  %v1365 = vmax.f32 %v1280, 0.0
  %v1366 = vmax.f32 %v1283, 0.0
  %v1367 = vmax.f32 %v1286, 0.0
  %v1368 = vmax.f32 %v1289, 0.0
  %v1369 = vmax.f32 %v1292, 0.0
  %v1370 = vmax.f32 %v1295, 0.0
  %v1371 = vmax.f32 %v1298, 0.0
  %v1372 = vmax.f32 %v1301, 0.0
  %v1373 = vmax.f32 %v1304, 0.0
  %v1374 = vmax.f32 %v1307, 0.0
  %v1375 = vmax.f32 %v1310, 0.0
  %v1376 = vmax.f32 %v1313, 0.0
  %v1377 = vmax.f32 %v1316, 0.0
  %v1378 = vmax.f32 %v1319, 0.0
  %v1379 = vmax.f32 %v1322, 0.0
  %v1380 = vmax.f32 %v1325, 0.0
  %v1381 = vmax.f32 %v1328, 0.0
  %v1382 = vmax.f32 %v1331, 0.0
  %v1383 = vmax.f32 %v1334, 0.0
  %v1384 = vmax.f32 %v1337, 0.0
  %v1385 = vmax.f32 %v1340, 0.0
  %v1386 = vmax.f32 %v1343, 0.0
  %v1387 = vmax.f32 %v1346, 0.0
  %v1388 = vmax.f32 %v1349, 0.0
  %v1389 = vmax.f32 %v1352, 0.0
  %vm1390 = vcmask 523264
  %1391 = vst.msk [vmem:[%s3] sm:$0xff] %vm1390, %v1354
  %1392 = vst.msk [vmem:[%s3 + $0x8] sm:$0xff] %vm1390, %v1355
  %1393 = vst.msk [vmem:[%s3 + $0x10] sm:$0xff] %vm1390, %v1356
  %1394 = vst.msk [vmem:[%s3 + $0x18] sm:$0xff] %vm1390, %v1357
  %1395 = vst.msk [vmem:[%s3 + $0x20] sm:$0xff] %vm1390, %v1358
  %1396 = vst.msk [vmem:[%s3 + $0x28] sm:$0xff] %vm1390, %v1359
  %1397 = vst.msk [vmem:[%s3 + $0x30] sm:$0xff] %vm1390, %v1360
  %1398 = vst.msk [vmem:[%s3 + $0x38] sm:$0xff] %vm1390, %v1361
  %1399 = vst.msk [vmem:[%s3 + $0x40] sm:$0xff] %vm1390, %v1362
  %1400 = vst.msk [vmem:[%s3 + $0x48] sm:$0xff] %vm1390, %v1363
  %1401 = vst.msk [vmem:[%s3 + $0x50] sm:$0xff] %vm1390, %v1364
  %1402 = vst.msk [vmem:[%s3 + $0x58] sm:$0xff] %vm1390, %v1365
  %1403 = vst.msk [vmem:[%s3 + $0x60] sm:$0xff] %vm1390, %v1366
  %1404 = vst.msk [vmem:[%s3 + $0x68] sm:$0xff] %vm1390, %v1367
  %1405 = vst.msk [vmem:[%s3 + $0x70] sm:$0xff] %vm1390, %v1368
  %1406 = vst.msk [vmem:[%s3 + $0x78] sm:$0xff] %vm1390, %v1369
  %1407 = vst.msk [vmem:[%s3 + $0x80] sm:$0xff] %vm1390, %v1370
  %1408 = vst.msk [vmem:[%s3 + $0x88] sm:$0xff] %vm1390, %v1371
  %1409 = vst.msk [vmem:[%s3 + $0x90] sm:$0xff] %vm1390, %v1372
  %1410 = vst.msk [vmem:[%s3 + $0x98] sm:$0xff] %vm1390, %v1373
  %1411 = vst.msk [vmem:[%s3 + $0xa0] sm:$0xff] %vm1390, %v1374
  %1412 = vst.msk [vmem:[%s3 + $0xa8] sm:$0xff] %vm1390, %v1375
  %1413 = vst.msk [vmem:[%s3 + $0xb0] sm:$0xff] %vm1390, %v1376
  %1414 = vst.msk [vmem:[%s3 + $0xb8] sm:$0xff] %vm1390, %v1377
  %1415 = vst.msk [vmem:[%s3 + $0xc0] sm:$0xff] %vm1390, %v1378
  %1416 = vst.msk [vmem:[%s3 + $0xc8] sm:$0xff] %vm1390, %v1379
  %1417 = vst.msk [vmem:[%s3 + $0xd0] sm:$0xff] %vm1390, %v1380
  %1418 = vst.msk [vmem:[%s3 + $0xd8] sm:$0xff] %vm1390, %v1381
  %1419 = vst.msk [vmem:[%s3 + $0xe0] sm:$0xff] %vm1390, %v1382
  %1420 = vst.msk [vmem:[%s3 + $0xe8] sm:$0xff] %vm1390, %v1383
  %1421 = vst.msk [vmem:[%s3 + $0xf0] sm:$0xff] %vm1390, %v1384
  %1422 = vst.msk [vmem:[%s3 + $0xf8] sm:$0xff] %vm1390, %v1385
  %1423 = vst.msk [vmem:[%s3 + $0x100] sm:$0xff] %vm1390, %v1386
  %1424 = vst.msk [vmem:[%s3 + $0x108] sm:$0xff] %vm1390, %v1387
  %1425 = vst.msk [vmem:[%s3 + $0x110] sm:$0xff] %vm1390, %v1388
  %1426 = vst.msk [vmem:[%s3 + $0x118] sm:$0xff] %vm1390, %v1389
  // Predicated region
  $region14: #{encoder_forward.4} parent=0 // pred_check
    _
  $region15: #{encoder_forward.4} parent=0 // pred_check_branch
    %1428 = sbr.rel (0) target = $region17
  $region16: #{encoder_forward.4} parent=0 // pred_region
    _
  $region17: #{encoder_forward.4} parent=0 // pred_fallthru
    _
  // Predicated region
  $region18: #{encoder_forward.4} parent=0 // pred_check
    _
  $region19: #{encoder_forward.4} parent=0 // pred_check_branch
    %1430 = sbr.rel (0) target = $region21
  $region20: #{encoder_forward.4} parent=0 // pred_region
    _
  $region21: #{encoder_forward.4} parent=0 // pred_fallthru
    _

// kernel: encoder_forward.5
$region0: #{encoder_forward.5}
  #allocation0 [shape = 'u32[]', space=smem, size = 0x4, offset = 0x4, fixed_abs, tag = 'smem constant byte address 0x4 - core index']
  #allocation1 [shape = 'u32[72,128]{1,0:T(1,128)}', space=vmem, size = 0x9000, scoped, tag = 'internal scratch']
  #allocation2 [shape = 'f32[2,32]{1,0:T(2,128)}', space=vmem, size = 0x400, scoped, tag = 'scratch operand']
  %s0 = inlined_call_operand.vmem [shape: f32[2,3136], index: 0, kind: input, shape index: {}]
  %s1 = inlined_call_operand.vmem [shape: f32[3136,1024], index: 1, kind: input, shape index: {}]
  %s2 = inlined_call_operand.vmem [shape: f32[1,1024], index: 2, kind: input, shape index: {}]
  %s3 = inlined_call_operand.vmem [shape: f32[1024,32], index: 3, kind: input, shape index: {}]
  %s4 = inlined_call_operand.vmem [shape: f32[1,32], index: 4, kind: input, shape index: {}]
  %s5 = inlined_call_operand.vmem [shape: f32[32,32], index: 5, kind: input, shape index: {}]
  %s6 = inlined_call_operand.vmem [shape: f32[1,32], index: 6, kind: input, shape index: {}]
  %s7 = inlined_call_operand.vmem [shape: f32[2,32], index: 7, kind: output, shape index: {}]
  %s8 = sld [smem:[#allocation0]]
  $region106: #{encoder_forward.5} parent=0
    _
  %s10 = ssub.s32 1, %s8
  %s11 = scalar_select 0, %s10, %s8
  $region1: #{encoder_forward.5} parent=0
    #allocation3 [shape = 'u8[6422528]{0}', space=vmem, size = 0x620000, scoped, tag = 'input window, operand 1']
    loop: start=0, step=1, limit=6
    $region2: #{encoder_forward.5} parent=1 // loop_pre_header
      _
    $region3: #{encoder_forward.5} parent=1 // loop_header
      %s13 = sphi 0, %s17
      %p14 = scmp.ge.s32.totalorder %s13, 6
      %s21 = sphi 0, %s21
      %s23 = sphi 0, %s21
      %s24 = sphi 0, %s23
      %s38 = sphi 0, %s24
      %s44 = sphi 0, %s46
      %s47 = sphi 0, %s44
      %s48 = sphi 0, %s47
      %s64 = sphi 0, %s48
      %s70 = sphi 0, %s72
      %s73 = sphi 0, %s70
      %s74 = sphi 0, %s73
      %s90 = sphi 0, %s74
      %s96 = sphi 0, %s98
      %s99 = sphi 0, %s96
      %s100 = sphi 0, %s99
      %s116 = sphi 0, %s100
      %s120 = sphi 0, %s120
      %s122 = sphi 0, %s120
      %s123 = sphi 0, %s122
      %s137 = sphi 0, %s123
      %s141 = sphi 0, %s141
      %s143 = sphi 0, %s141
      %s144 = sphi 0, %s143
      %s158 = sphi 0, %s144
      %s162 = sphi 0, %s162
      %s164 = sphi 0, %s162
      %s165 = sphi 0, %s164
      %s179 = sphi 0, %s165
      %s183 = sphi 0, %s183
      %s185 = sphi 0, %s183
      %s186 = sphi 0, %s185
      %s200 = sphi 0, %s186
    $region4: #{encoder_forward.5} parent=1 // loop_header_branch
      %16 = sbr.rel (%p14) target = $region8
    $region5: #{encoder_forward.5} parent=1 // loop_body
      %s18 = ssub.s32 %s13, 1
      %s19 = ssub.s32 %s13, 2
      %s20 = sadd.s32 %s13, 1
      %s22 = sadd.s32 %s21, 1
      %p25 = scmp.eq.s32.totalorder %s13, 3
      %p26 = scmp.ne.s32.totalorder %s21, %s23
      %p27 = scmp.eq.s32.totalorder %s13, 0
      %p28 = por %p26, %p27
      %p29 = scmp.ne.s32.totalorder %s21, %s23
      %p30 = scmp.eq.s32.totalorder %s18, 3
      %p31 = por %p29, %p30
      %p32 = scmp.ne.s32.totalorder %s23, %s24
      %p33 = scmp.eq.s32.totalorder %s18, 0
      %p34 = por %p32, %p33
      %p35 = scmp.ne.s32.totalorder %s23, %s24
      %p36 = scmp.eq.s32.totalorder %s19, 3
      %p37 = por %p35, %p36
      %p39 = scmp.ne.s32.totalorder %s24, %s38
      %p40 = scmp.eq.s32.totalorder %s19, 0
      %p41 = por %p39, %p40
      %s42 = ssub.s32 %s13, %s20
      %p43 = scmp.eq.s32.totalorder %s42, 0
      %s45 = sadd.s32 %s44, 1
      %s46 = scalar_select %p43, %s44, %s45
      %p49 = pneg %p43
      %p50 = scmp.eq.s32.totalorder %s13, 3
      %p51 = por %p49, %p50
      %p52 = scmp.ne.s32.totalorder %s44, %s47
      %p53 = scmp.eq.s32.totalorder %s13, 0
      %p54 = por %p52, %p53
      %p55 = scmp.ne.s32.totalorder %s44, %s47
      %p56 = scmp.eq.s32.totalorder %s18, 3
      %p57 = por %p55, %p56
      %p58 = scmp.ne.s32.totalorder %s47, %s48
      %p59 = scmp.eq.s32.totalorder %s18, 0
      %p60 = por %p58, %p59
      %p61 = scmp.ne.s32.totalorder %s47, %s48
      %p62 = scmp.eq.s32.totalorder %s19, 3
      %p63 = por %p61, %p62
      %p65 = scmp.ne.s32.totalorder %s48, %s64
      %p66 = scmp.eq.s32.totalorder %s19, 0
      %p67 = por %p65, %p66
      %s68 = ssub.s32 %s13, %s20
      %p69 = scmp.eq.s32.totalorder %s68, 0
      %s71 = sadd.s32 %s70, 1
      %s72 = scalar_select %p69, %s70, %s71
      %p75 = pneg %p69
      %p76 = scmp.eq.s32.totalorder %s13, 3
      %p77 = por %p75, %p76
      %p78 = scmp.ne.s32.totalorder %s70, %s73
      %p79 = scmp.eq.s32.totalorder %s13, 0
      %p80 = por %p78, %p79
      %p81 = scmp.ne.s32.totalorder %s70, %s73
      %p82 = scmp.eq.s32.totalorder %s18, 3
      %p83 = por %p81, %p82
      %p84 = scmp.ne.s32.totalorder %s73, %s74
      %p85 = scmp.eq.s32.totalorder %s18, 0
      %p86 = por %p84, %p85
      %p87 = scmp.ne.s32.totalorder %s73, %s74
      %p88 = scmp.eq.s32.totalorder %s19, 3
      %p89 = por %p87, %p88
      %p91 = scmp.ne.s32.totalorder %s74, %s90
      %p92 = scmp.eq.s32.totalorder %s19, 0
      %p93 = por %p91, %p92
      %s94 = ssub.s32 %s13, %s20
      %p95 = scmp.eq.s32.totalorder %s94, 0
      %s97 = sadd.s32 %s96, 1
      %s98 = scalar_select %p95, %s96, %s97
      %p101 = pneg %p95
      %p102 = scmp.eq.s32.totalorder %s13, 3
      %p103 = por %p101, %p102
      %p104 = scmp.ne.s32.totalorder %s96, %s99
      %p105 = scmp.eq.s32.totalorder %s13, 0
      %p106 = por %p104, %p105
      %p107 = scmp.ne.s32.totalorder %s96, %s99
      %p108 = scmp.eq.s32.totalorder %s18, 3
      %p109 = por %p107, %p108
      %p110 = scmp.ne.s32.totalorder %s99, %s100
      %p111 = scmp.eq.s32.totalorder %s18, 0
      %p112 = por %p110, %p111
      %p113 = scmp.ne.s32.totalorder %s99, %s100
      %p114 = scmp.eq.s32.totalorder %s19, 3
      %p115 = por %p113, %p114
      %p117 = scmp.ne.s32.totalorder %s100, %s116
      %p118 = scmp.eq.s32.totalorder %s19, 0
      %p119 = por %p117, %p118
      %s121 = sadd.s32 %s120, 1
      %p124 = scmp.eq.s32.totalorder %s13, 3
      %p125 = scmp.ne.s32.totalorder %s120, %s122
      %p126 = scmp.eq.s32.totalorder %s13, 0
      %p127 = por %p125, %p126
      %p128 = scmp.ne.s32.totalorder %s120, %s122
      %p129 = scmp.eq.s32.totalorder %s18, 3
      %p130 = por %p128, %p129
      %p131 = scmp.ne.s32.totalorder %s122, %s123
      %p132 = scmp.eq.s32.totalorder %s18, 0
      %p133 = por %p131, %p132
      %p134 = scmp.ne.s32.totalorder %s122, %s123
      %p135 = scmp.eq.s32.totalorder %s19, 3
      %p136 = por %p134, %p135
      %p138 = scmp.ne.s32.totalorder %s123, %s137
      %p139 = scmp.eq.s32.totalorder %s19, 0
      %p140 = por %p138, %p139
      %s142 = sadd.s32 %s141, 1
      %p145 = scmp.eq.s32.totalorder %s13, 3
      %p146 = scmp.ne.s32.totalorder %s141, %s143
      %p147 = scmp.eq.s32.totalorder %s13, 0
      %p148 = por %p146, %p147
      %p149 = scmp.ne.s32.totalorder %s141, %s143
      %p150 = scmp.eq.s32.totalorder %s18, 3
      %p151 = por %p149, %p150
      %p152 = scmp.ne.s32.totalorder %s143, %s144
      %p153 = scmp.eq.s32.totalorder %s18, 0
      %p154 = por %p152, %p153
      %p155 = scmp.ne.s32.totalorder %s143, %s144
      %p156 = scmp.eq.s32.totalorder %s19, 3
      %p157 = por %p155, %p156
      %p159 = scmp.ne.s32.totalorder %s144, %s158
      %p160 = scmp.eq.s32.totalorder %s19, 0
      %p161 = por %p159, %p160
      %s163 = sadd.s32 %s162, 1
      %p166 = scmp.eq.s32.totalorder %s13, 3
      %p167 = scmp.ne.s32.totalorder %s162, %s164
      %p168 = scmp.eq.s32.totalorder %s13, 0
      %p169 = por %p167, %p168
      %p170 = scmp.ne.s32.totalorder %s162, %s164
      %p171 = scmp.eq.s32.totalorder %s18, 3
      %p172 = por %p170, %p171
      %p173 = scmp.ne.s32.totalorder %s164, %s165
      %p174 = scmp.eq.s32.totalorder %s18, 0
      %p175 = por %p173, %p174
      %p176 = scmp.ne.s32.totalorder %s164, %s165
      %p177 = scmp.eq.s32.totalorder %s19, 3
      %p178 = por %p176, %p177
      %p180 = scmp.ne.s32.totalorder %s165, %s179
      %p181 = scmp.eq.s32.totalorder %s19, 0
      %p182 = por %p180, %p181
      %s184 = sadd.s32 %s183, 1
      %p187 = scmp.eq.s32.totalorder %s13, 3
      %p188 = scmp.ne.s32.totalorder %s183, %s185
      %p189 = scmp.eq.s32.totalorder %s13, 0
      %p190 = por %p188, %p189
      %p191 = scmp.ne.s32.totalorder %s183, %s185
      %p192 = scmp.eq.s32.totalorder %s18, 3
      %p193 = por %p191, %p192
      %p194 = scmp.ne.s32.totalorder %s185, %s186
      %p195 = scmp.eq.s32.totalorder %s18, 0
      %p196 = por %p194, %p195
      %p197 = scmp.ne.s32.totalorder %s185, %s186
      %p198 = scmp.eq.s32.totalorder %s19, 3
      %p199 = por %p197, %p198
      %p201 = scmp.ne.s32.totalorder %s186, %s200
      %p202 = scmp.eq.s32.totalorder %s19, 0
      %p203 = por %p201, %p202
      %p204 = scmp.le.s32.totalorder 1, %s13
      %p205 = scmp.lt.s32.totalorder %s13, 5
      %p206 = pnand %p204, %p205
      %p207 = pneg %p206
      // Predicated region
      $region9: #{encoder_forward.5} parent=5 // pred_check
        _
      $region10: #{encoder_forward.5} parent=5 // pred_check_branch
        %209 = sbr.rel (%p206) target = $region12
      $region11: #{encoder_forward.5} parent=5 // pred_region
        %s210 = ssub.s32 %s13, 1
        // Predicated region
        $region13: #{encoder_forward.5} parent=11 // pred_check
          %p211 = pneg %p34
        $region14: #{encoder_forward.5} parent=11 // pred_check_branch
          %213 = sbr.rel (%p211) target = $region16
        $region15: #{encoder_forward.5} parent=11 // pred_region
          _
        $region16: #{encoder_forward.5} parent=11 // pred_fallthru
          _
        // Predicated region
        $region17: #{encoder_forward.5} parent=11 // pred_check
          %p214 = pneg %p133
        $region18: #{encoder_forward.5} parent=11 // pred_check_branch
          %216 = sbr.rel (%p214) target = $region20
        $region19: #{encoder_forward.5} parent=11 // pred_region
          _
        $region20: #{encoder_forward.5} parent=11 // pred_fallthru
          _
        // Predicated region
        $region21: #{encoder_forward.5} parent=11 // pred_check
          %p217 = pneg %p154
        $region22: #{encoder_forward.5} parent=11 // pred_check_branch
          %219 = sbr.rel (%p217) target = $region24
        $region23: #{encoder_forward.5} parent=11 // pred_region
          _
        $region24: #{encoder_forward.5} parent=11 // pred_fallthru
          _
        // Predicated region
        $region25: #{encoder_forward.5} parent=11 // pred_check
          %p220 = pneg %p175
        $region26: #{encoder_forward.5} parent=11 // pred_check_branch
          %222 = sbr.rel (%p220) target = $region28
        $region27: #{encoder_forward.5} parent=11 // pred_region
          _
        $region28: #{encoder_forward.5} parent=11 // pred_fallthru
          _
      $region12: #{encoder_forward.5} parent=5 // pred_fallthru
        _
      %p223 = scmp.lt.s32.totalorder %s13, 4
      // Predicated region
      $region29: #{encoder_forward.5} parent=5 // pred_check
        %p224 = pneg %p223
      $region30: #{encoder_forward.5} parent=5 // pred_check_branch
        %226 = sbr.rel (%p224) target = $region32
      $region31: #{encoder_forward.5} parent=5 // pred_region
        // Predicated region
        $region33: #{encoder_forward.5} parent=31 // pred_check
          %p227 = pneg %p54
        $region34: #{encoder_forward.5} parent=31 // pred_check_branch
          %229 = sbr.rel (%p227) target = $region36
        $region35: #{encoder_forward.5} parent=31 // pred_region
          %s230 = sand.u32 %s44, 1
          %s231 = sand.u32 %s44, 1
          %s232 = smul.addr %s231, 6272
          %s233 = scalar_lea.vmem [#allocation3], %s232
          %s234 = smul.u32 2, %s13
          %s235 = smul.addr %s234, 8
          %s236 = scalar_lea.vmem %s1, %s235
          // Predicated region
          $region37: #{encoder_forward.5} parent=35 // pred_check
            _
          $region38: #{encoder_forward.5} parent=35 // pred_check_branch
            %238 = sbr.rel (0) target = $region40
          $region39: #{encoder_forward.5} parent=35 // pred_region
            // Predicated region
            $region41: #{encoder_forward.5} parent=39 // pred_check
              _
            $region42: #{encoder_forward.5} parent=39 // pred_check_branch
              %240 = sbr.rel (0) target = $region44
            $region43: #{encoder_forward.5} parent=39 // pred_region
              loop: start=0, step=1, limit=2
              $region45: #{encoder_forward.5} parent=43 // loop_pre_header
                _
              $region46: #{encoder_forward.5} parent=43 // loop_header
                %s242 = sphi 0, %s246
                %p243 = scmp.ge.s32.totalorder %s242, 2
                %s247 = sphi 0, %s1036
                %s248 = sphi %s236, %s1039
                %s249 = sphi %s233, %s1040
              $region47: #{encoder_forward.5} parent=43 // loop_header_branch
                %245 = sbr.rel (%p243) target = $region51
              $region48: #{encoder_forward.5} parent=43 // loop_body
                %v250 = vld [vmem:[%s248] sm:$0xff]
                %251 = vst [vmem:[%s249] sm:$0xff] %v250
                %v252 = vld [vmem:[%s248 + $0x40] sm:$0xff]
                %253 = vst [vmem:[%s249 + $0x10] sm:$0xff] %v252
                %v254 = vld [vmem:[%s248 + $0x80] sm:$0xff]
                %255 = vst [vmem:[%s249 + $0x20] sm:$0xff] %v254
                %v256 = vld [vmem:[%s248 + $0xc0] sm:$0xff]
                %257 = vst [vmem:[%s249 + $0x30] sm:$0xff] %v256
                %v258 = vld [vmem:[%s248 + $0x100] sm:$0xff]
                %259 = vst [vmem:[%s249 + $0x40] sm:$0xff] %v258
                %v260 = vld [vmem:[%s248 + $0x140] sm:$0xff]
                %261 = vst [vmem:[%s249 + $0x50] sm:$0xff] %v260
                %v262 = vld [vmem:[%s248 + $0x180] sm:$0xff]
                %263 = vst [vmem:[%s249 + $0x60] sm:$0xff] %v262
                %v264 = vld [vmem:[%s248 + $0x1c0] sm:$0xff]
                %265 = vst [vmem:[%s249 + $0x70] sm:$0xff] %v264
                %v266 = vld [vmem:[%s248 + $0x200] sm:$0xff]
                %267 = vst [vmem:[%s249 + $0x80] sm:$0xff] %v266
                %v268 = vld [vmem:[%s248 + $0x240] sm:$0xff]
                %269 = vst [vmem:[%s249 + $0x90] sm:$0xff] %v268
                %v270 = vld [vmem:[%s248 + $0x280] sm:$0xff]
                %271 = vst [vmem:[%s249 + $0xa0] sm:$0xff] %v270
                %v272 = vld [vmem:[%s248 + $0x2c0] sm:$0xff]
                %273 = vst [vmem:[%s249 + $0xb0] sm:$0xff] %v272
                %v274 = vld [vmem:[%s248 + $0x300] sm:$0xff]
                %275 = vst [vmem:[%s249 + $0xc0] sm:$0xff] %v274
                %v276 = vld [vmem:[%s248 + $0x340] sm:$0xff]
                %277 = vst [vmem:[%s249 + $0xd0] sm:$0xff] %v276
                %v278 = vld [vmem:[%s248 + $0x380] sm:$0xff]
                %279 = vst [vmem:[%s249 + $0xe0] sm:$0xff] %v278
                %v280 = vld [vmem:[%s248 + $0x3c0] sm:$0xff]
                %281 = vst [vmem:[%s249 + $0xf0] sm:$0xff] %v280
                %v282 = vld [vmem:[%s248 + $0x400] sm:$0xff]
                %283 = vst [vmem:[%s249 + $0x100] sm:$0xff] %v282
                %v284 = vld [vmem:[%s248 + $0x440] sm:$0xff]
                %285 = vst [vmem:[%s249 + $0x110] sm:$0xff] %v284
                %v286 = vld [vmem:[%s248 + $0x480] sm:$0xff]
                %287 = vst [vmem:[%s249 + $0x120] sm:$0xff] %v286
                %v288 = vld [vmem:[%s248 + $0x4c0] sm:$0xff]
                %289 = vst [vmem:[%s249 + $0x130] sm:$0xff] %v288
                %v290 = vld [vmem:[%s248 + $0x500] sm:$0xff]
                %291 = vst [vmem:[%s249 + $0x140] sm:$0xff] %v290
                %v292 = vld [vmem:[%s248 + $0x540] sm:$0xff]
                %293 = vst [vmem:[%s249 + $0x150] sm:$0xff] %v292
                %v294 = vld [vmem:[%s248 + $0x580] sm:$0xff]
                %295 = vst [vmem:[%s249 + $0x160] sm:$0xff] %v294
                %v296 = vld [vmem:[%s248 + $0x5c0] sm:$0xff]
                %297 = vst [vmem:[%s249 + $0x170] sm:$0xff] %v296
                %v298 = vld [vmem:[%s248 + $0x600] sm:$0xff]
                %299 = vst [vmem:[%s249 + $0x180] sm:$0xff] %v298
                %v300 = vld [vmem:[%s248 + $0x640] sm:$0xff]
                %301 = vst [vmem:[%s249 + $0x190] sm:$0xff] %v300
                %v302 = vld [vmem:[%s248 + $0x680] sm:$0xff]
                %303 = vst [vmem:[%s249 + $0x1a0] sm:$0xff] %v302
                %v304 = vld [vmem:[%s248 + $0x6c0] sm:$0xff]
                %305 = vst [vmem:[%s249 + $0x1b0] sm:$0xff] %v304
                %v306 = vld [vmem:[%s248 + $0x700] sm:$0xff]
                %307 = vst [vmem:[%s249 + $0x1c0] sm:$0xff] %v306
                %v308 = vld [vmem:[%s248 + $0x740] sm:$0xff]
                %309 = vst [vmem:[%s249 + $0x1d0] sm:$0xff] %v308
                %v310 = vld [vmem:[%s248 + $0x780] sm:$0xff]
                %311 = vst [vmem:[%s249 + $0x1e0] sm:$0xff] %v310
                %v312 = vld [vmem:[%s248 + $0x7c0] sm:$0xff]
                %313 = vst [vmem:[%s249 + $0x1f0] sm:$0xff] %v312
                %v314 = vld [vmem:[%s248 + $0x800] sm:$0xff]
                %315 = vst [vmem:[%s249 + $0x200] sm:$0xff] %v314
                %v316 = vld [vmem:[%s248 + $0x840] sm:$0xff]
                %317 = vst [vmem:[%s249 + $0x210] sm:$0xff] %v316
                %v318 = vld [vmem:[%s248 + $0x880] sm:$0xff]
                %319 = vst [vmem:[%s249 + $0x220] sm:$0xff] %v318
                %v320 = vld [vmem:[%s248 + $0x8c0] sm:$0xff]
                %321 = vst [vmem:[%s249 + $0x230] sm:$0xff] %v320
                %v322 = vld [vmem:[%s248 + $0x900] sm:$0xff]
                %323 = vst [vmem:[%s249 + $0x240] sm:$0xff] %v322
                %v324 = vld [vmem:[%s248 + $0x940] sm:$0xff]
                %325 = vst [vmem:[%s249 + $0x250] sm:$0xff] %v324
                %v326 = vld [vmem:[%s248 + $0x980] sm:$0xff]
                %327 = vst [vmem:[%s249 + $0x260] sm:$0xff] %v326
                %v328 = vld [vmem:[%s248 + $0x9c0] sm:$0xff]
                %329 = vst [vmem:[%s249 + $0x270] sm:$0xff] %v328
                %v330 = vld [vmem:[%s248 + $0xa00] sm:$0xff]
                %331 = vst [vmem:[%s249 + $0x280] sm:$0xff] %v330
                %v332 = vld [vmem:[%s248 + $0xa40] sm:$0xff]
                %333 = vst [vmem:[%s249 + $0x290] sm:$0xff] %v332
                %v334 = vld [vmem:[%s248 + $0xa80] sm:$0xff]
                %335 = vst [vmem:[%s249 + $0x2a0] sm:$0xff] %v334
                %v336 = vld [vmem:[%s248 + $0xac0] sm:$0xff]
                %337 = vst [vmem:[%s249 + $0x2b0] sm:$0xff] %v336
                %v338 = vld [vmem:[%s248 + $0xb00] sm:$0xff]
                %339 = vst [vmem:[%s249 + $0x2c0] sm:$0xff] %v338
                %v340 = vld [vmem:[%s248 + $0xb40] sm:$0xff]
                %341 = vst [vmem:[%s249 + $0x2d0] sm:$0xff] %v340
                %v342 = vld [vmem:[%s248 + $0xb80] sm:$0xff]
                %343 = vst [vmem:[%s249 + $0x2e0] sm:$0xff] %v342
                %v344 = vld [vmem:[%s248 + $0xbc0] sm:$0xff]
                %345 = vst [vmem:[%s249 + $0x2f0] sm:$0xff] %v344
                %v346 = vld [vmem:[%s248 + $0xc00] sm:$0xff]
                %347 = vst [vmem:[%s249 + $0x300] sm:$0xff] %v346
                %v348 = vld [vmem:[%s248 + $0xc40] sm:$0xff]
                %349 = vst [vmem:[%s249 + $0x310] sm:$0xff] %v348
                %v350 = vld [vmem:[%s248 + $0xc80] sm:$0xff]
                %351 = vst [vmem:[%s249 + $0x320] sm:$0xff] %v350
                %v352 = vld [vmem:[%s248 + $0xcc0] sm:$0xff]
                %353 = vst [vmem:[%s249 + $0x330] sm:$0xff] %v352
                %v354 = vld [vmem:[%s248 + $0xd00] sm:$0xff]
                %355 = vst [vmem:[%s249 + $0x340] sm:$0xff] %v354
                %v356 = vld [vmem:[%s248 + $0xd40] sm:$0xff]
                %357 = vst [vmem:[%s249 + $0x350] sm:$0xff] %v356
                %v358 = vld [vmem:[%s248 + $0xd80] sm:$0xff]
                %359 = vst [vmem:[%s249 + $0x360] sm:$0xff] %v358
                %v360 = vld [vmem:[%s248 + $0xdc0] sm:$0xff]
                %361 = vst [vmem:[%s249 + $0x370] sm:$0xff] %v360
                %v362 = vld [vmem:[%s248 + $0xe00] sm:$0xff]
                %363 = vst [vmem:[%s249 + $0x380] sm:$0xff] %v362
                %v364 = vld [vmem:[%s248 + $0xe40] sm:$0xff]
                %365 = vst [vmem:[%s249 + $0x390] sm:$0xff] %v364
                %v366 = vld [vmem:[%s248 + $0xe80] sm:$0xff]
                %367 = vst [vmem:[%s249 + $0x3a0] sm:$0xff] %v366
                %v368 = vld [vmem:[%s248 + $0xec0] sm:$0xff]
                %369 = vst [vmem:[%s249 + $0x3b0] sm:$0xff] %v368
                %v370 = vld [vmem:[%s248 + $0xf00] sm:$0xff]
                %371 = vst [vmem:[%s249 + $0x3c0] sm:$0xff] %v370
                %v372 = vld [vmem:[%s248 + $0xf40] sm:$0xff]
                %373 = vst [vmem:[%s249 + $0x3d0] sm:$0xff] %v372
                %v374 = vld [vmem:[%s248 + $0xf80] sm:$0xff]
                %375 = vst [vmem:[%s249 + $0x3e0] sm:$0xff] %v374
                %v376 = vld [vmem:[%s248 + $0xfc0] sm:$0xff]
                %377 = vst [vmem:[%s249 + $0x3f0] sm:$0xff] %v376
                %v378 = vld [vmem:[%s248 + $0x1000] sm:$0xff]
                %379 = vst [vmem:[%s249 + $0x400] sm:$0xff] %v378
                %v380 = vld [vmem:[%s248 + $0x1040] sm:$0xff]
                %381 = vst [vmem:[%s249 + $0x410] sm:$0xff] %v380
                %v382 = vld [vmem:[%s248 + $0x1080] sm:$0xff]
                %383 = vst [vmem:[%s249 + $0x420] sm:$0xff] %v382
                %v384 = vld [vmem:[%s248 + $0x10c0] sm:$0xff]
                %385 = vst [vmem:[%s249 + $0x430] sm:$0xff] %v384
                %v386 = vld [vmem:[%s248 + $0x1100] sm:$0xff]
                %387 = vst [vmem:[%s249 + $0x440] sm:$0xff] %v386
                %v388 = vld [vmem:[%s248 + $0x1140] sm:$0xff]
                %389 = vst [vmem:[%s249 + $0x450] sm:$0xff] %v388
                %v390 = vld [vmem:[%s248 + $0x1180] sm:$0xff]
                %391 = vst [vmem:[%s249 + $0x460] sm:$0xff] %v390
                %v392 = vld [vmem:[%s248 + $0x11c0] sm:$0xff]
                %393 = vst [vmem:[%s249 + $0x470] sm:$0xff] %v392
                %v394 = vld [vmem:[%s248 + $0x1200] sm:$0xff]
                %395 = vst [vmem:[%s249 + $0x480] sm:$0xff] %v394
                %v396 = vld [vmem:[%s248 + $0x1240] sm:$0xff]
                %397 = vst [vmem:[%s249 + $0x490] sm:$0xff] %v396
                %v398 = vld [vmem:[%s248 + $0x1280] sm:$0xff]
                %399 = vst [vmem:[%s249 + $0x4a0] sm:$0xff] %v398
                %v400 = vld [vmem:[%s248 + $0x12c0] sm:$0xff]
                %401 = vst [vmem:[%s249 + $0x4b0] sm:$0xff] %v400
                %v402 = vld [vmem:[%s248 + $0x1300] sm:$0xff]
                %403 = vst [vmem:[%s249 + $0x4c0] sm:$0xff] %v402
                %v404 = vld [vmem:[%s248 + $0x1340] sm:$0xff]
                %405 = vst [vmem:[%s249 + $0x4d0] sm:$0xff] %v404
                %v406 = vld [vmem:[%s248 + $0x1380] sm:$0xff]
                %407 = vst [vmem:[%s249 + $0x4e0] sm:$0xff] %v406
                %v408 = vld [vmem:[%s248 + $0x13c0] sm:$0xff]
                %409 = vst [vmem:[%s249 + $0x4f0] sm:$0xff] %v408
                %v410 = vld [vmem:[%s248 + $0x1400] sm:$0xff]
                %411 = vst [vmem:[%s249 + $0x500] sm:$0xff] %v410
                %v412 = vld [vmem:[%s248 + $0x1440] sm:$0xff]
                %413 = vst [vmem:[%s249 + $0x510] sm:$0xff] %v412
                %v414 = vld [vmem:[%s248 + $0x1480] sm:$0xff]
                %415 = vst [vmem:[%s249 + $0x520] sm:$0xff] %v414
                %v416 = vld [vmem:[%s248 + $0x14c0] sm:$0xff]
                %417 = vst [vmem:[%s249 + $0x530] sm:$0xff] %v416
                %v418 = vld [vmem:[%s248 + $0x1500] sm:$0xff]
                %419 = vst [vmem:[%s249 + $0x540] sm:$0xff] %v418
                %v420 = vld [vmem:[%s248 + $0x1540] sm:$0xff]
                %421 = vst [vmem:[%s249 + $0x550] sm:$0xff] %v420
                %v422 = vld [vmem:[%s248 + $0x1580] sm:$0xff]
                %423 = vst [vmem:[%s249 + $0x560] sm:$0xff] %v422
                %v424 = vld [vmem:[%s248 + $0x15c0] sm:$0xff]
                %425 = vst [vmem:[%s249 + $0x570] sm:$0xff] %v424
                %v426 = vld [vmem:[%s248 + $0x1600] sm:$0xff]
                %427 = vst [vmem:[%s249 + $0x580] sm:$0xff] %v426
                %v428 = vld [vmem:[%s248 + $0x1640] sm:$0xff]
                %429 = vst [vmem:[%s249 + $0x590] sm:$0xff] %v428
                %v430 = vld [vmem:[%s248 + $0x1680] sm:$0xff]
                %431 = vst [vmem:[%s249 + $0x5a0] sm:$0xff] %v430
                %v432 = vld [vmem:[%s248 + $0x16c0] sm:$0xff]
                %433 = vst [vmem:[%s249 + $0x5b0] sm:$0xff] %v432
                %v434 = vld [vmem:[%s248 + $0x1700] sm:$0xff]
                %435 = vst [vmem:[%s249 + $0x5c0] sm:$0xff] %v434
                %v436 = vld [vmem:[%s248 + $0x1740] sm:$0xff]
                %437 = vst [vmem:[%s249 + $0x5d0] sm:$0xff] %v436
                %v438 = vld [vmem:[%s248 + $0x1780] sm:$0xff]
                %439 = vst [vmem:[%s249 + $0x5e0] sm:$0xff] %v438
                %v440 = vld [vmem:[%s248 + $0x17c0] sm:$0xff]
                %441 = vst [vmem:[%s249 + $0x5f0] sm:$0xff] %v440
                %v442 = vld [vmem:[%s248 + $0x1800] sm:$0xff]
                %443 = vst [vmem:[%s249 + $0x600] sm:$0xff] %v442
                %v444 = vld [vmem:[%s248 + $0x1840] sm:$0xff]
                %445 = vst [vmem:[%s249 + $0x610] sm:$0xff] %v444
                %v446 = vld [vmem:[%s248 + $0x1880] sm:$0xff]
                %447 = vst [vmem:[%s249 + $0x620] sm:$0xff] %v446
                %v448 = vld [vmem:[%s248 + $0x18c0] sm:$0xff]
                %449 = vst [vmem:[%s249 + $0x630] sm:$0xff] %v448
                %v450 = vld [vmem:[%s248 + $0x1900] sm:$0xff]
                %451 = vst [vmem:[%s249 + $0x640] sm:$0xff] %v450
                %v452 = vld [vmem:[%s248 + $0x1940] sm:$0xff]
                %453 = vst [vmem:[%s249 + $0x650] sm:$0xff] %v452
                %v454 = vld [vmem:[%s248 + $0x1980] sm:$0xff]
                %455 = vst [vmem:[%s249 + $0x660] sm:$0xff] %v454
                %v456 = vld [vmem:[%s248 + $0x19c0] sm:$0xff]
                %457 = vst [vmem:[%s249 + $0x670] sm:$0xff] %v456
                %v458 = vld [vmem:[%s248 + $0x1a00] sm:$0xff]
                %459 = vst [vmem:[%s249 + $0x680] sm:$0xff] %v458
                %v460 = vld [vmem:[%s248 + $0x1a40] sm:$0xff]
                %461 = vst [vmem:[%s249 + $0x690] sm:$0xff] %v460
                %v462 = vld [vmem:[%s248 + $0x1a80] sm:$0xff]
                %463 = vst [vmem:[%s249 + $0x6a0] sm:$0xff] %v462
                %v464 = vld [vmem:[%s248 + $0x1ac0] sm:$0xff]
                %465 = vst [vmem:[%s249 + $0x6b0] sm:$0xff] %v464
                %v466 = vld [vmem:[%s248 + $0x1b00] sm:$0xff]
                %467 = vst [vmem:[%s249 + $0x6c0] sm:$0xff] %v466
                %v468 = vld [vmem:[%s248 + $0x1b40] sm:$0xff]
                %469 = vst [vmem:[%s249 + $0x6d0] sm:$0xff] %v468
                %v470 = vld [vmem:[%s248 + $0x1b80] sm:$0xff]
                %471 = vst [vmem:[%s249 + $0x6e0] sm:$0xff] %v470
                %v472 = vld [vmem:[%s248 + $0x1bc0] sm:$0xff]
                %473 = vst [vmem:[%s249 + $0x6f0] sm:$0xff] %v472
                %v474 = vld [vmem:[%s248 + $0x1c00] sm:$0xff]
                %475 = vst [vmem:[%s249 + $0x700] sm:$0xff] %v474
                %v476 = vld [vmem:[%s248 + $0x1c40] sm:$0xff]
                %477 = vst [vmem:[%s249 + $0x710] sm:$0xff] %v476
                %v478 = vld [vmem:[%s248 + $0x1c80] sm:$0xff]
                %479 = vst [vmem:[%s249 + $0x720] sm:$0xff] %v478
                %v480 = vld [vmem:[%s248 + $0x1cc0] sm:$0xff]
                %481 = vst [vmem:[%s249 + $0x730] sm:$0xff] %v480
                %v482 = vld [vmem:[%s248 + $0x1d00] sm:$0xff]
                %483 = vst [vmem:[%s249 + $0x740] sm:$0xff] %v482
                %v484 = vld [vmem:[%s248 + $0x1d40] sm:$0xff]
                %485 = vst [vmem:[%s249 + $0x750] sm:$0xff] %v484
                %v486 = vld [vmem:[%s248 + $0x1d80] sm:$0xff]
                %487 = vst [vmem:[%s249 + $0x760] sm:$0xff] %v486
                %v488 = vld [vmem:[%s248 + $0x1dc0] sm:$0xff]
                %489 = vst [vmem:[%s249 + $0x770] sm:$0xff] %v488
                %v490 = vld [vmem:[%s248 + $0x1e00] sm:$0xff]
                %491 = vst [vmem:[%s249 + $0x780] sm:$0xff] %v490
                %v492 = vld [vmem:[%s248 + $0x1e40] sm:$0xff]
                %493 = vst [vmem:[%s249 + $0x790] sm:$0xff] %v492
                %v494 = vld [vmem:[%s248 + $0x1e80] sm:$0xff]
                %495 = vst [vmem:[%s249 + $0x7a0] sm:$0xff] %v494
                %v496 = vld [vmem:[%s248 + $0x1ec0] sm:$0xff]
                %497 = vst [vmem:[%s249 + $0x7b0] sm:$0xff] %v496
                %v498 = vld [vmem:[%s248 + $0x1f00] sm:$0xff]
                %499 = vst [vmem:[%s249 + $0x7c0] sm:$0xff] %v498
                %v500 = vld [vmem:[%s248 + $0x1f40] sm:$0xff]
                %501 = vst [vmem:[%s249 + $0x7d0] sm:$0xff] %v500
                %v502 = vld [vmem:[%s248 + $0x1f80] sm:$0xff]
                %503 = vst [vmem:[%s249 + $0x7e0] sm:$0xff] %v502
                %v504 = vld [vmem:[%s248 + $0x1fc0] sm:$0xff]
                %505 = vst [vmem:[%s249 + $0x7f0] sm:$0xff] %v504
                %v506 = vld [vmem:[%s248 + $0x2000] sm:$0xff]
                %507 = vst [vmem:[%s249 + $0x800] sm:$0xff] %v506
                %v508 = vld [vmem:[%s248 + $0x2040] sm:$0xff]
                %509 = vst [vmem:[%s249 + $0x810] sm:$0xff] %v508
                %v510 = vld [vmem:[%s248 + $0x2080] sm:$0xff]
                %511 = vst [vmem:[%s249 + $0x820] sm:$0xff] %v510
                %v512 = vld [vmem:[%s248 + $0x20c0] sm:$0xff]
                %513 = vst [vmem:[%s249 + $0x830] sm:$0xff] %v512
                %v514 = vld [vmem:[%s248 + $0x2100] sm:$0xff]
                %515 = vst [vmem:[%s249 + $0x840] sm:$0xff] %v514
                %v516 = vld [vmem:[%s248 + $0x2140] sm:$0xff]
                %517 = vst [vmem:[%s249 + $0x850] sm:$0xff] %v516
                %v518 = vld [vmem:[%s248 + $0x2180] sm:$0xff]
                %519 = vst [vmem:[%s249 + $0x860] sm:$0xff] %v518
                %v520 = vld [vmem:[%s248 + $0x21c0] sm:$0xff]
                %521 = vst [vmem:[%s249 + $0x870] sm:$0xff] %v520
                %v522 = vld [vmem:[%s248 + $0x2200] sm:$0xff]
                %523 = vst [vmem:[%s249 + $0x880] sm:$0xff] %v522
                %v524 = vld [vmem:[%s248 + $0x2240] sm:$0xff]
                %525 = vst [vmem:[%s249 + $0x890] sm:$0xff] %v524
                %v526 = vld [vmem:[%s248 + $0x2280] sm:$0xff]
                %527 = vst [vmem:[%s249 + $0x8a0] sm:$0xff] %v526
                %v528 = vld [vmem:[%s248 + $0x22c0] sm:$0xff]
                %529 = vst [vmem:[%s249 + $0x8b0] sm:$0xff] %v528
                %v530 = vld [vmem:[%s248 + $0x2300] sm:$0xff]
                %531 = vst [vmem:[%s249 + $0x8c0] sm:$0xff] %v530
                %v532 = vld [vmem:[%s248 + $0x2340] sm:$0xff]
                %533 = vst [vmem:[%s249 + $0x8d0] sm:$0xff] %v532
                %v534 = vld [vmem:[%s248 + $0x2380] sm:$0xff]
                %535 = vst [vmem:[%s249 + $0x8e0] sm:$0xff] %v534
                %v536 = vld [vmem:[%s248 + $0x23c0] sm:$0xff]
                %537 = vst [vmem:[%s249 + $0x8f0] sm:$0xff] %v536
                %v538 = vld [vmem:[%s248 + $0x2400] sm:$0xff]
                %539 = vst [vmem:[%s249 + $0x900] sm:$0xff] %v538
                %v540 = vld [vmem:[%s248 + $0x2440] sm:$0xff]
                %541 = vst [vmem:[%s249 + $0x910] sm:$0xff] %v540
                %v542 = vld [vmem:[%s248 + $0x2480] sm:$0xff]
                %543 = vst [vmem:[%s249 + $0x920] sm:$0xff] %v542
                %v544 = vld [vmem:[%s248 + $0x24c0] sm:$0xff]
                %545 = vst [vmem:[%s249 + $0x930] sm:$0xff] %v544
                %v546 = vld [vmem:[%s248 + $0x2500] sm:$0xff]
                %547 = vst [vmem:[%s249 + $0x940] sm:$0xff] %v546
                %v548 = vld [vmem:[%s248 + $0x2540] sm:$0xff]
                %549 = vst [vmem:[%s249 + $0x950] sm:$0xff] %v548
                %v550 = vld [vmem:[%s248 + $0x2580] sm:$0xff]
                %551 = vst [vmem:[%s249 + $0x960] sm:$0xff] %v550
                %v552 = vld [vmem:[%s248 + $0x25c0] sm:$0xff]
                %553 = vst [vmem:[%s249 + $0x970] sm:$0xff] %v552
                %v554 = vld [vmem:[%s248 + $0x2600] sm:$0xff]
                %555 = vst [vmem:[%s249 + $0x980] sm:$0xff] %v554
                %v556 = vld [vmem:[%s248 + $0x2640] sm:$0xff]
                %557 = vst [vmem:[%s249 + $0x990] sm:$0xff] %v556
                %v558 = vld [vmem:[%s248 + $0x2680] sm:$0xff]
                %559 = vst [vmem:[%s249 + $0x9a0] sm:$0xff] %v558
                %v560 = vld [vmem:[%s248 + $0x26c0] sm:$0xff]
                %561 = vst [vmem:[%s249 + $0x9b0] sm:$0xff] %v560
                %v562 = vld [vmem:[%s248 + $0x2700] sm:$0xff]
                %563 = vst [vmem:[%s249 + $0x9c0] sm:$0xff] %v562
                %v564 = vld [vmem:[%s248 + $0x2740] sm:$0xff]
                %565 = vst [vmem:[%s249 + $0x9d0] sm:$0xff] %v564
                %v566 = vld [vmem:[%s248 + $0x2780] sm:$0xff]
                %567 = vst [vmem:[%s249 + $0x9e0] sm:$0xff] %v566
                %v568 = vld [vmem:[%s248 + $0x27c0] sm:$0xff]
                %569 = vst [vmem:[%s249 + $0x9f0] sm:$0xff] %v568
                %v570 = vld [vmem:[%s248 + $0x2800] sm:$0xff]
                %571 = vst [vmem:[%s249 + $0xa00] sm:$0xff] %v570
                %v572 = vld [vmem:[%s248 + $0x2840] sm:$0xff]
                %573 = vst [vmem:[%s249 + $0xa10] sm:$0xff] %v572
                %v574 = vld [vmem:[%s248 + $0x2880] sm:$0xff]
                %575 = vst [vmem:[%s249 + $0xa20] sm:$0xff] %v574
                %v576 = vld [vmem:[%s248 + $0x28c0] sm:$0xff]
                %577 = vst [vmem:[%s249 + $0xa30] sm:$0xff] %v576
                %v578 = vld [vmem:[%s248 + $0x2900] sm:$0xff]
                %579 = vst [vmem:[%s249 + $0xa40] sm:$0xff] %v578
                %v580 = vld [vmem:[%s248 + $0x2940] sm:$0xff]
                %581 = vst [vmem:[%s249 + $0xa50] sm:$0xff] %v580
                %v582 = vld [vmem:[%s248 + $0x2980] sm:$0xff]
                %583 = vst [vmem:[%s249 + $0xa60] sm:$0xff] %v582
                %v584 = vld [vmem:[%s248 + $0x29c0] sm:$0xff]
                %585 = vst [vmem:[%s249 + $0xa70] sm:$0xff] %v584
                %v586 = vld [vmem:[%s248 + $0x2a00] sm:$0xff]
                %587 = vst [vmem:[%s249 + $0xa80] sm:$0xff] %v586
                %v588 = vld [vmem:[%s248 + $0x2a40] sm:$0xff]
                %589 = vst [vmem:[%s249 + $0xa90] sm:$0xff] %v588
                %v590 = vld [vmem:[%s248 + $0x2a80] sm:$0xff]
                %591 = vst [vmem:[%s249 + $0xaa0] sm:$0xff] %v590
                %v592 = vld [vmem:[%s248 + $0x2ac0] sm:$0xff]
                %593 = vst [vmem:[%s249 + $0xab0] sm:$0xff] %v592
                %v594 = vld [vmem:[%s248 + $0x2b00] sm:$0xff]
                %595 = vst [vmem:[%s249 + $0xac0] sm:$0xff] %v594
                %v596 = vld [vmem:[%s248 + $0x2b40] sm:$0xff]
                %597 = vst [vmem:[%s249 + $0xad0] sm:$0xff] %v596
                %v598 = vld [vmem:[%s248 + $0x2b80] sm:$0xff]
                %599 = vst [vmem:[%s249 + $0xae0] sm:$0xff] %v598
                %v600 = vld [vmem:[%s248 + $0x2bc0] sm:$0xff]
                %601 = vst [vmem:[%s249 + $0xaf0] sm:$0xff] %v600
                %v602 = vld [vmem:[%s248 + $0x2c00] sm:$0xff]
                %603 = vst [vmem:[%s249 + $0xb00] sm:$0xff] %v602
                %v604 = vld [vmem:[%s248 + $0x2c40] sm:$0xff]
                %605 = vst [vmem:[%s249 + $0xb10] sm:$0xff] %v604
                %v606 = vld [vmem:[%s248 + $0x2c80] sm:$0xff]
                %607 = vst [vmem:[%s249 + $0xb20] sm:$0xff] %v606
                %v608 = vld [vmem:[%s248 + $0x2cc0] sm:$0xff]
                %609 = vst [vmem:[%s249 + $0xb30] sm:$0xff] %v608
                %v610 = vld [vmem:[%s248 + $0x2d00] sm:$0xff]
                %611 = vst [vmem:[%s249 + $0xb40] sm:$0xff] %v610
                %v612 = vld [vmem:[%s248 + $0x2d40] sm:$0xff]
                %613 = vst [vmem:[%s249 + $0xb50] sm:$0xff] %v612
                %v614 = vld [vmem:[%s248 + $0x2d80] sm:$0xff]
                %615 = vst [vmem:[%s249 + $0xb60] sm:$0xff] %v614
                %v616 = vld [vmem:[%s248 + $0x2dc0] sm:$0xff]
                %617 = vst [vmem:[%s249 + $0xb70] sm:$0xff] %v616
                %v618 = vld [vmem:[%s248 + $0x2e00] sm:$0xff]
                %619 = vst [vmem:[%s249 + $0xb80] sm:$0xff] %v618
                %v620 = vld [vmem:[%s248 + $0x2e40] sm:$0xff]
                %621 = vst [vmem:[%s249 + $0xb90] sm:$0xff] %v620
                %v622 = vld [vmem:[%s248 + $0x2e80] sm:$0xff]
                %623 = vst [vmem:[%s249 + $0xba0] sm:$0xff] %v622
                %v624 = vld [vmem:[%s248 + $0x2ec0] sm:$0xff]
                %625 = vst [vmem:[%s249 + $0xbb0] sm:$0xff] %v624
                %v626 = vld [vmem:[%s248 + $0x2f00] sm:$0xff]
                %627 = vst [vmem:[%s249 + $0xbc0] sm:$0xff] %v626
                %v628 = vld [vmem:[%s248 + $0x2f40] sm:$0xff]
                %629 = vst [vmem:[%s249 + $0xbd0] sm:$0xff] %v628
                %v630 = vld [vmem:[%s248 + $0x2f80] sm:$0xff]
                %631 = vst [vmem:[%s249 + $0xbe0] sm:$0xff] %v630
                %v632 = vld [vmem:[%s248 + $0x2fc0] sm:$0xff]
                %633 = vst [vmem:[%s249 + $0xbf0] sm:$0xff] %v632
                %v634 = vld [vmem:[%s248 + $0x3000] sm:$0xff]
                %635 = vst [vmem:[%s249 + $0xc00] sm:$0xff] %v634
                %v636 = vld [vmem:[%s248 + $0x3040] sm:$0xff]
                %637 = vst [vmem:[%s249 + $0xc10] sm:$0xff] %v636
                %v638 = vld [vmem:[%s248 + $0x3080] sm:$0xff]
                %639 = vst [vmem:[%s249 + $0xc20] sm:$0xff] %v638
                %v640 = vld [vmem:[%s248 + $0x30c0] sm:$0xff]
                %641 = vst [vmem:[%s249 + $0xc30] sm:$0xff] %v640
                %v642 = vld [vmem:[%s248 + $0x3100] sm:$0xff]
                %643 = vst [vmem:[%s249 + $0xc40] sm:$0xff] %v642
                %v644 = vld [vmem:[%s248 + $0x3140] sm:$0xff]
                %645 = vst [vmem:[%s249 + $0xc50] sm:$0xff] %v644
                %v646 = vld [vmem:[%s248 + $0x3180] sm:$0xff]
                %647 = vst [vmem:[%s249 + $0xc60] sm:$0xff] %v646
                %v648 = vld [vmem:[%s248 + $0x31c0] sm:$0xff]
                %649 = vst [vmem:[%s249 + $0xc70] sm:$0xff] %v648
                %v650 = vld [vmem:[%s248 + $0x3200] sm:$0xff]
                %651 = vst [vmem:[%s249 + $0xc80] sm:$0xff] %v650
                %v652 = vld [vmem:[%s248 + $0x3240] sm:$0xff]
                %653 = vst [vmem:[%s249 + $0xc90] sm:$0xff] %v652
                %v654 = vld [vmem:[%s248 + $0x3280] sm:$0xff]
                %655 = vst [vmem:[%s249 + $0xca0] sm:$0xff] %v654
                %v656 = vld [vmem:[%s248 + $0x32c0] sm:$0xff]
                %657 = vst [vmem:[%s249 + $0xcb0] sm:$0xff] %v656
                %v658 = vld [vmem:[%s248 + $0x3300] sm:$0xff]
                %659 = vst [vmem:[%s249 + $0xcc0] sm:$0xff] %v658
                %v660 = vld [vmem:[%s248 + $0x3340] sm:$0xff]
                %661 = vst [vmem:[%s249 + $0xcd0] sm:$0xff] %v660
                %v662 = vld [vmem:[%s248 + $0x3380] sm:$0xff]
                %663 = vst [vmem:[%s249 + $0xce0] sm:$0xff] %v662
                %v664 = vld [vmem:[%s248 + $0x33c0] sm:$0xff]
                %665 = vst [vmem:[%s249 + $0xcf0] sm:$0xff] %v664
                %v666 = vld [vmem:[%s248 + $0x3400] sm:$0xff]
                %667 = vst [vmem:[%s249 + $0xd00] sm:$0xff] %v666
                %v668 = vld [vmem:[%s248 + $0x3440] sm:$0xff]
                %669 = vst [vmem:[%s249 + $0xd10] sm:$0xff] %v668
                %v670 = vld [vmem:[%s248 + $0x3480] sm:$0xff]
                %671 = vst [vmem:[%s249 + $0xd20] sm:$0xff] %v670
                %v672 = vld [vmem:[%s248 + $0x34c0] sm:$0xff]
                %673 = vst [vmem:[%s249 + $0xd30] sm:$0xff] %v672
                %v674 = vld [vmem:[%s248 + $0x3500] sm:$0xff]
                %675 = vst [vmem:[%s249 + $0xd40] sm:$0xff] %v674
                %v676 = vld [vmem:[%s248 + $0x3540] sm:$0xff]
                %677 = vst [vmem:[%s249 + $0xd50] sm:$0xff] %v676
                %v678 = vld [vmem:[%s248 + $0x3580] sm:$0xff]
                %679 = vst [vmem:[%s249 + $0xd60] sm:$0xff] %v678
                %v680 = vld [vmem:[%s248 + $0x35c0] sm:$0xff]
                %681 = vst [vmem:[%s249 + $0xd70] sm:$0xff] %v680
                %v682 = vld [vmem:[%s248 + $0x3600] sm:$0xff]
                %683 = vst [vmem:[%s249 + $0xd80] sm:$0xff] %v682
                %v684 = vld [vmem:[%s248 + $0x3640] sm:$0xff]
                %685 = vst [vmem:[%s249 + $0xd90] sm:$0xff] %v684
                %v686 = vld [vmem:[%s248 + $0x3680] sm:$0xff]
                %687 = vst [vmem:[%s249 + $0xda0] sm:$0xff] %v686
                %v688 = vld [vmem:[%s248 + $0x36c0] sm:$0xff]
                %689 = vst [vmem:[%s249 + $0xdb0] sm:$0xff] %v688
                %v690 = vld [vmem:[%s248 + $0x3700] sm:$0xff]
                %691 = vst [vmem:[%s249 + $0xdc0] sm:$0xff] %v690
                %v692 = vld [vmem:[%s248 + $0x3740] sm:$0xff]
                %693 = vst [vmem:[%s249 + $0xdd0] sm:$0xff] %v692
                %v694 = vld [vmem:[%s248 + $0x3780] sm:$0xff]
                %695 = vst [vmem:[%s249 + $0xde0] sm:$0xff] %v694
                %v696 = vld [vmem:[%s248 + $0x37c0] sm:$0xff]
                %697 = vst [vmem:[%s249 + $0xdf0] sm:$0xff] %v696
                %v698 = vld [vmem:[%s248 + $0x3800] sm:$0xff]
                %699 = vst [vmem:[%s249 + $0xe00] sm:$0xff] %v698
                %v700 = vld [vmem:[%s248 + $0x3840] sm:$0xff]
                %701 = vst [vmem:[%s249 + $0xe10] sm:$0xff] %v700
                %v702 = vld [vmem:[%s248 + $0x3880] sm:$0xff]
                %703 = vst [vmem:[%s249 + $0xe20] sm:$0xff] %v702
                %v704 = vld [vmem:[%s248 + $0x38c0] sm:$0xff]
                %705 = vst [vmem:[%s249 + $0xe30] sm:$0xff] %v704
                %v706 = vld [vmem:[%s248 + $0x3900] sm:$0xff]
                %707 = vst [vmem:[%s249 + $0xe40] sm:$0xff] %v706
                %v708 = vld [vmem:[%s248 + $0x3940] sm:$0xff]
                %709 = vst [vmem:[%s249 + $0xe50] sm:$0xff] %v708
                %v710 = vld [vmem:[%s248 + $0x3980] sm:$0xff]
                %711 = vst [vmem:[%s249 + $0xe60] sm:$0xff] %v710
                %v712 = vld [vmem:[%s248 + $0x39c0] sm:$0xff]
                %713 = vst [vmem:[%s249 + $0xe70] sm:$0xff] %v712
                %v714 = vld [vmem:[%s248 + $0x3a00] sm:$0xff]
                %715 = vst [vmem:[%s249 + $0xe80] sm:$0xff] %v714
                %v716 = vld [vmem:[%s248 + $0x3a40] sm:$0xff]
                %717 = vst [vmem:[%s249 + $0xe90] sm:$0xff] %v716
                %v718 = vld [vmem:[%s248 + $0x3a80] sm:$0xff]
                %719 = vst [vmem:[%s249 + $0xea0] sm:$0xff] %v718
                %v720 = vld [vmem:[%s248 + $0x3ac0] sm:$0xff]
                %721 = vst [vmem:[%s249 + $0xeb0] sm:$0xff] %v720
                %v722 = vld [vmem:[%s248 + $0x3b00] sm:$0xff]
                %723 = vst [vmem:[%s249 + $0xec0] sm:$0xff] %v722
                %v724 = vld [vmem:[%s248 + $0x3b40] sm:$0xff]
                %725 = vst [vmem:[%s249 + $0xed0] sm:$0xff] %v724
                %v726 = vld [vmem:[%s248 + $0x3b80] sm:$0xff]
                %727 = vst [vmem:[%s249 + $0xee0] sm:$0xff] %v726
                %v728 = vld [vmem:[%s248 + $0x3bc0] sm:$0xff]
                %729 = vst [vmem:[%s249 + $0xef0] sm:$0xff] %v728
                %v730 = vld [vmem:[%s248 + $0x3c00] sm:$0xff]
                %731 = vst [vmem:[%s249 + $0xf00] sm:$0xff] %v730
                %v732 = vld [vmem:[%s248 + $0x3c40] sm:$0xff]
                %733 = vst [vmem:[%s249 + $0xf10] sm:$0xff] %v732
                %v734 = vld [vmem:[%s248 + $0x3c80] sm:$0xff]
                %735 = vst [vmem:[%s249 + $0xf20] sm:$0xff] %v734
                %v736 = vld [vmem:[%s248 + $0x3cc0] sm:$0xff]
                %737 = vst [vmem:[%s249 + $0xf30] sm:$0xff] %v736
                %v738 = vld [vmem:[%s248 + $0x3d00] sm:$0xff]
                %739 = vst [vmem:[%s249 + $0xf40] sm:$0xff] %v738
                %v740 = vld [vmem:[%s248 + $0x3d40] sm:$0xff]
                %741 = vst [vmem:[%s249 + $0xf50] sm:$0xff] %v740
                %v742 = vld [vmem:[%s248 + $0x3d80] sm:$0xff]
                %743 = vst [vmem:[%s249 + $0xf60] sm:$0xff] %v742
                %v744 = vld [vmem:[%s248 + $0x3dc0] sm:$0xff]
                %745 = vst [vmem:[%s249 + $0xf70] sm:$0xff] %v744
                %v746 = vld [vmem:[%s248 + $0x3e00] sm:$0xff]
                %747 = vst [vmem:[%s249 + $0xf80] sm:$0xff] %v746
                %v748 = vld [vmem:[%s248 + $0x3e40] sm:$0xff]
                %749 = vst [vmem:[%s249 + $0xf90] sm:$0xff] %v748
                %v750 = vld [vmem:[%s248 + $0x3e80] sm:$0xff]
                %751 = vst [vmem:[%s249 + $0xfa0] sm:$0xff] %v750
                %v752 = vld [vmem:[%s248 + $0x3ec0] sm:$0xff]
                %753 = vst [vmem:[%s249 + $0xfb0] sm:$0xff] %v752
                %v754 = vld [vmem:[%s248 + $0x3f00] sm:$0xff]
                %755 = vst [vmem:[%s249 + $0xfc0] sm:$0xff] %v754
                %v756 = vld [vmem:[%s248 + $0x3f40] sm:$0xff]
                %757 = vst [vmem:[%s249 + $0xfd0] sm:$0xff] %v756
                %v758 = vld [vmem:[%s248 + $0x3f80] sm:$0xff]
                %759 = vst [vmem:[%s249 + $0xfe0] sm:$0xff] %v758
                %v760 = vld [vmem:[%s248 + $0x3fc0] sm:$0xff]
                %761 = vst [vmem:[%s249 + $0xff0] sm:$0xff] %v760
                %v762 = vld [vmem:[%s248 + $0x4000] sm:$0xff]
                %763 = vst [vmem:[%s249 + $0x1000] sm:$0xff] %v762
                %v764 = vld [vmem:[%s248 + $0x4040] sm:$0xff]
                %765 = vst [vmem:[%s249 + $0x1010] sm:$0xff] %v764
                %v766 = vld [vmem:[%s248 + $0x4080] sm:$0xff]
                %767 = vst [vmem:[%s249 + $0x1020] sm:$0xff] %v766
                %v768 = vld [vmem:[%s248 + $0x40c0] sm:$0xff]
                %769 = vst [vmem:[%s249 + $0x1030] sm:$0xff] %v768
                %v770 = vld [vmem:[%s248 + $0x4100] sm:$0xff]
                %771 = vst [vmem:[%s249 + $0x1040] sm:$0xff] %v770
                %v772 = vld [vmem:[%s248 + $0x4140] sm:$0xff]
                %773 = vst [vmem:[%s249 + $0x1050] sm:$0xff] %v772
                %v774 = vld [vmem:[%s248 + $0x4180] sm:$0xff]
                %775 = vst [vmem:[%s249 + $0x1060] sm:$0xff] %v774
                %v776 = vld [vmem:[%s248 + $0x41c0] sm:$0xff]
                %777 = vst [vmem:[%s249 + $0x1070] sm:$0xff] %v776
                %v778 = vld [vmem:[%s248 + $0x4200] sm:$0xff]
                %779 = vst [vmem:[%s249 + $0x1080] sm:$0xff] %v778
                %v780 = vld [vmem:[%s248 + $0x4240] sm:$0xff]
                %781 = vst [vmem:[%s249 + $0x1090] sm:$0xff] %v780
                %v782 = vld [vmem:[%s248 + $0x4280] sm:$0xff]
                %783 = vst [vmem:[%s249 + $0x10a0] sm:$0xff] %v782
                %v784 = vld [vmem:[%s248 + $0x42c0] sm:$0xff]
                %785 = vst [vmem:[%s249 + $0x10b0] sm:$0xff] %v784
                %v786 = vld [vmem:[%s248 + $0x4300] sm:$0xff]
                %787 = vst [vmem:[%s249 + $0x10c0] sm:$0xff] %v786
                %v788 = vld [vmem:[%s248 + $0x4340] sm:$0xff]
                %789 = vst [vmem:[%s249 + $0x10d0] sm:$0xff] %v788
                %v790 = vld [vmem:[%s248 + $0x4380] sm:$0xff]
                %791 = vst [vmem:[%s249 + $0x10e0] sm:$0xff] %v790
                %v792 = vld [vmem:[%s248 + $0x43c0] sm:$0xff]
                %793 = vst [vmem:[%s249 + $0x10f0] sm:$0xff] %v792
                %v794 = vld [vmem:[%s248 + $0x4400] sm:$0xff]
                %795 = vst [vmem:[%s249 + $0x1100] sm:$0xff] %v794
                %v796 = vld [vmem:[%s248 + $0x4440] sm:$0xff]
                %797 = vst [vmem:[%s249 + $0x1110] sm:$0xff] %v796
                %v798 = vld [vmem:[%s248 + $0x4480] sm:$0xff]
                %799 = vst [vmem:[%s249 + $0x1120] sm:$0xff] %v798
                %v800 = vld [vmem:[%s248 + $0x44c0] sm:$0xff]
                %801 = vst [vmem:[%s249 + $0x1130] sm:$0xff] %v800
                %v802 = vld [vmem:[%s248 + $0x4500] sm:$0xff]
                %803 = vst [vmem:[%s249 + $0x1140] sm:$0xff] %v802
                %v804 = vld [vmem:[%s248 + $0x4540] sm:$0xff]
                %805 = vst [vmem:[%s249 + $0x1150] sm:$0xff] %v804
                %v806 = vld [vmem:[%s248 + $0x4580] sm:$0xff]
                %807 = vst [vmem:[%s249 + $0x1160] sm:$0xff] %v806
                %v808 = vld [vmem:[%s248 + $0x45c0] sm:$0xff]
                %809 = vst [vmem:[%s249 + $0x1170] sm:$0xff] %v808
                %v810 = vld [vmem:[%s248 + $0x4600] sm:$0xff]
                %811 = vst [vmem:[%s249 + $0x1180] sm:$0xff] %v810
                %v812 = vld [vmem:[%s248 + $0x4640] sm:$0xff]
                %813 = vst [vmem:[%s249 + $0x1190] sm:$0xff] %v812
                %v814 = vld [vmem:[%s248 + $0x4680] sm:$0xff]
                %815 = vst [vmem:[%s249 + $0x11a0] sm:$0xff] %v814
                %v816 = vld [vmem:[%s248 + $0x46c0] sm:$0xff]
                %817 = vst [vmem:[%s249 + $0x11b0] sm:$0xff] %v816
                %v818 = vld [vmem:[%s248 + $0x4700] sm:$0xff]
                %819 = vst [vmem:[%s249 + $0x11c0] sm:$0xff] %v818
                %v820 = vld [vmem:[%s248 + $0x4740] sm:$0xff]
                %821 = vst [vmem:[%s249 + $0x11d0] sm:$0xff] %v820
                %v822 = vld [vmem:[%s248 + $0x4780] sm:$0xff]
                %823 = vst [vmem:[%s249 + $0x11e0] sm:$0xff] %v822
                %v824 = vld [vmem:[%s248 + $0x47c0] sm:$0xff]
                %825 = vst [vmem:[%s249 + $0x11f0] sm:$0xff] %v824
                %v826 = vld [vmem:[%s248 + $0x4800] sm:$0xff]
                %827 = vst [vmem:[%s249 + $0x1200] sm:$0xff] %v826
                %v828 = vld [vmem:[%s248 + $0x4840] sm:$0xff]
                %829 = vst [vmem:[%s249 + $0x1210] sm:$0xff] %v828
                %v830 = vld [vmem:[%s248 + $0x4880] sm:$0xff]
                %831 = vst [vmem:[%s249 + $0x1220] sm:$0xff] %v830
                %v832 = vld [vmem:[%s248 + $0x48c0] sm:$0xff]
                %833 = vst [vmem:[%s249 + $0x1230] sm:$0xff] %v832
                %v834 = vld [vmem:[%s248 + $0x4900] sm:$0xff]
                %835 = vst [vmem:[%s249 + $0x1240] sm:$0xff] %v834
                %v836 = vld [vmem:[%s248 + $0x4940] sm:$0xff]
                %837 = vst [vmem:[%s249 + $0x1250] sm:$0xff] %v836
                %v838 = vld [vmem:[%s248 + $0x4980] sm:$0xff]
                %839 = vst [vmem:[%s249 + $0x1260] sm:$0xff] %v838
                %v840 = vld [vmem:[%s248 + $0x49c0] sm:$0xff]
                %841 = vst [vmem:[%s249 + $0x1270] sm:$0xff] %v840
                %v842 = vld [vmem:[%s248 + $0x4a00] sm:$0xff]
                %843 = vst [vmem:[%s249 + $0x1280] sm:$0xff] %v842
                %v844 = vld [vmem:[%s248 + $0x4a40] sm:$0xff]
                %845 = vst [vmem:[%s249 + $0x1290] sm:$0xff] %v844
                %v846 = vld [vmem:[%s248 + $0x4a80] sm:$0xff]
                %847 = vst [vmem:[%s249 + $0x12a0] sm:$0xff] %v846
                %v848 = vld [vmem:[%s248 + $0x4ac0] sm:$0xff]
                %849 = vst [vmem:[%s249 + $0x12b0] sm:$0xff] %v848
                %v850 = vld [vmem:[%s248 + $0x4b00] sm:$0xff]
                %851 = vst [vmem:[%s249 + $0x12c0] sm:$0xff] %v850
                %v852 = vld [vmem:[%s248 + $0x4b40] sm:$0xff]
                %853 = vst [vmem:[%s249 + $0x12d0] sm:$0xff] %v852
                %v854 = vld [vmem:[%s248 + $0x4b80] sm:$0xff]
                %855 = vst [vmem:[%s249 + $0x12e0] sm:$0xff] %v854
                %v856 = vld [vmem:[%s248 + $0x4bc0] sm:$0xff]
                %857 = vst [vmem:[%s249 + $0x12f0] sm:$0xff] %v856
                %v858 = vld [vmem:[%s248 + $0x4c00] sm:$0xff]
                %859 = vst [vmem:[%s249 + $0x1300] sm:$0xff] %v858
                %v860 = vld [vmem:[%s248 + $0x4c40] sm:$0xff]
                %861 = vst [vmem:[%s249 + $0x1310] sm:$0xff] %v860
                %v862 = vld [vmem:[%s248 + $0x4c80] sm:$0xff]
                %863 = vst [vmem:[%s249 + $0x1320] sm:$0xff] %v862
                %v864 = vld [vmem:[%s248 + $0x4cc0] sm:$0xff]
                %865 = vst [vmem:[%s249 + $0x1330] sm:$0xff] %v864
                %v866 = vld [vmem:[%s248 + $0x4d00] sm:$0xff]
                %867 = vst [vmem:[%s249 + $0x1340] sm:$0xff] %v866
                %v868 = vld [vmem:[%s248 + $0x4d40] sm:$0xff]
                %869 = vst [vmem:[%s249 + $0x1350] sm:$0xff] %v868
                %v870 = vld [vmem:[%s248 + $0x4d80] sm:$0xff]
                %871 = vst [vmem:[%s249 + $0x1360] sm:$0xff] %v870
                %v872 = vld [vmem:[%s248 + $0x4dc0] sm:$0xff]
                %873 = vst [vmem:[%s249 + $0x1370] sm:$0xff] %v872
                %v874 = vld [vmem:[%s248 + $0x4e00] sm:$0xff]
                %875 = vst [vmem:[%s249 + $0x1380] sm:$0xff] %v874
                %v876 = vld [vmem:[%s248 + $0x4e40] sm:$0xff]
                %877 = vst [vmem:[%s249 + $0x1390] sm:$0xff] %v876
                %v878 = vld [vmem:[%s248 + $0x4e80] sm:$0xff]
                %879 = vst [vmem:[%s249 + $0x13a0] sm:$0xff] %v878
                %v880 = vld [vmem:[%s248 + $0x4ec0] sm:$0xff]
                %881 = vst [vmem:[%s249 + $0x13b0] sm:$0xff] %v880
                %v882 = vld [vmem:[%s248 + $0x4f00] sm:$0xff]
                %883 = vst [vmem:[%s249 + $0x13c0] sm:$0xff] %v882
                %v884 = vld [vmem:[%s248 + $0x4f40] sm:$0xff]
                %885 = vst [vmem:[%s249 + $0x13d0] sm:$0xff] %v884
                %v886 = vld [vmem:[%s248 + $0x4f80] sm:$0xff]
                %887 = vst [vmem:[%s249 + $0x13e0] sm:$0xff] %v886
                %v888 = vld [vmem:[%s248 + $0x4fc0] sm:$0xff]
                %889 = vst [vmem:[%s249 + $0x13f0] sm:$0xff] %v888
                %v890 = vld [vmem:[%s248 + $0x5000] sm:$0xff]
                %891 = vst [vmem:[%s249 + $0x1400] sm:$0xff] %v890
                %v892 = vld [vmem:[%s248 + $0x5040] sm:$0xff]
                %893 = vst [vmem:[%s249 + $0x1410] sm:$0xff] %v892
                %v894 = vld [vmem:[%s248 + $0x5080] sm:$0xff]
                %895 = vst [vmem:[%s249 + $0x1420] sm:$0xff] %v894
                %v896 = vld [vmem:[%s248 + $0x50c0] sm:$0xff]
                %897 = vst [vmem:[%s249 + $0x1430] sm:$0xff] %v896
                %v898 = vld [vmem:[%s248 + $0x5100] sm:$0xff]
                %899 = vst [vmem:[%s249 + $0x1440] sm:$0xff] %v898
                %v900 = vld [vmem:[%s248 + $0x5140] sm:$0xff]
                %901 = vst [vmem:[%s249 + $0x1450] sm:$0xff] %v900
                %v902 = vld [vmem:[%s248 + $0x5180] sm:$0xff]
                %903 = vst [vmem:[%s249 + $0x1460] sm:$0xff] %v902
                %v904 = vld [vmem:[%s248 + $0x51c0] sm:$0xff]
                %905 = vst [vmem:[%s249 + $0x1470] sm:$0xff] %v904
                %v906 = vld [vmem:[%s248 + $0x5200] sm:$0xff]
                %907 = vst [vmem:[%s249 + $0x1480] sm:$0xff] %v906
                %v908 = vld [vmem:[%s248 + $0x5240] sm:$0xff]
                %909 = vst [vmem:[%s249 + $0x1490] sm:$0xff] %v908
                %v910 = vld [vmem:[%s248 + $0x5280] sm:$0xff]
                %911 = vst [vmem:[%s249 + $0x14a0] sm:$0xff] %v910
                %v912 = vld [vmem:[%s248 + $0x52c0] sm:$0xff]
                %913 = vst [vmem:[%s249 + $0x14b0] sm:$0xff] %v912
                %v914 = vld [vmem:[%s248 + $0x5300] sm:$0xff]
                %915 = vst [vmem:[%s249 + $0x14c0] sm:$0xff] %v914
                %v916 = vld [vmem:[%s248 + $0x5340] sm:$0xff]
                %917 = vst [vmem:[%s249 + $0x14d0] sm:$0xff] %v916
                %v918 = vld [vmem:[%s248 + $0x5380] sm:$0xff]
                %919 = vst [vmem:[%s249 + $0x14e0] sm:$0xff] %v918
                %v920 = vld [vmem:[%s248 + $0x53c0] sm:$0xff]
                %921 = vst [vmem:[%s249 + $0x14f0] sm:$0xff] %v920
                %v922 = vld [vmem:[%s248 + $0x5400] sm:$0xff]
                %923 = vst [vmem:[%s249 + $0x1500] sm:$0xff] %v922
                %v924 = vld [vmem:[%s248 + $0x5440] sm:$0xff]
                %925 = vst [vmem:[%s249 + $0x1510] sm:$0xff] %v924
                %v926 = vld [vmem:[%s248 + $0x5480] sm:$0xff]
                %927 = vst [vmem:[%s249 + $0x1520] sm:$0xff] %v926
                %v928 = vld [vmem:[%s248 + $0x54c0] sm:$0xff]
                %929 = vst [vmem:[%s249 + $0x1530] sm:$0xff] %v928
                %v930 = vld [vmem:[%s248 + $0x5500] sm:$0xff]
                %931 = vst [vmem:[%s249 + $0x1540] sm:$0xff] %v930
                %v932 = vld [vmem:[%s248 + $0x5540] sm:$0xff]
                %933 = vst [vmem:[%s249 + $0x1550] sm:$0xff] %v932
                %v934 = vld [vmem:[%s248 + $0x5580] sm:$0xff]
                %935 = vst [vmem:[%s249 + $0x1560] sm:$0xff] %v934
                %v936 = vld [vmem:[%s248 + $0x55c0] sm:$0xff]
                %937 = vst [vmem:[%s249 + $0x1570] sm:$0xff] %v936
                %v938 = vld [vmem:[%s248 + $0x5600] sm:$0xff]
                %939 = vst [vmem:[%s249 + $0x1580] sm:$0xff] %v938
                %v940 = vld [vmem:[%s248 + $0x5640] sm:$0xff]
                %941 = vst [vmem:[%s249 + $0x1590] sm:$0xff] %v940
                %v942 = vld [vmem:[%s248 + $0x5680] sm:$0xff]
                %943 = vst [vmem:[%s249 + $0x15a0] sm:$0xff] %v942
                %v944 = vld [vmem:[%s248 + $0x56c0] sm:$0xff]
                %945 = vst [vmem:[%s249 + $0x15b0] sm:$0xff] %v944
                %v946 = vld [vmem:[%s248 + $0x5700] sm:$0xff]
                %947 = vst [vmem:[%s249 + $0x15c0] sm:$0xff] %v946
                %v948 = vld [vmem:[%s248 + $0x5740] sm:$0xff]
                %949 = vst [vmem:[%s249 + $0x15d0] sm:$0xff] %v948
                %v950 = vld [vmem:[%s248 + $0x5780] sm:$0xff]
                %951 = vst [vmem:[%s249 + $0x15e0] sm:$0xff] %v950
                %v952 = vld [vmem:[%s248 + $0x57c0] sm:$0xff]
                %953 = vst [vmem:[%s249 + $0x15f0] sm:$0xff] %v952
                %v954 = vld [vmem:[%s248 + $0x5800] sm:$0xff]
                %955 = vst [vmem:[%s249 + $0x1600] sm:$0xff] %v954
                %v956 = vld [vmem:[%s248 + $0x5840] sm:$0xff]
                %957 = vst [vmem:[%s249 + $0x1610] sm:$0xff] %v956
                %v958 = vld [vmem:[%s248 + $0x5880] sm:$0xff]
                %959 = vst [vmem:[%s249 + $0x1620] sm:$0xff] %v958
                %v960 = vld [vmem:[%s248 + $0x58c0] sm:$0xff]
                %961 = vst [vmem:[%s249 + $0x1630] sm:$0xff] %v960
                %v962 = vld [vmem:[%s248 + $0x5900] sm:$0xff]
                %963 = vst [vmem:[%s249 + $0x1640] sm:$0xff] %v962
                %v964 = vld [vmem:[%s248 + $0x5940] sm:$0xff]
                %965 = vst [vmem:[%s249 + $0x1650] sm:$0xff] %v964
                %v966 = vld [vmem:[%s248 + $0x5980] sm:$0xff]
                %967 = vst [vmem:[%s249 + $0x1660] sm:$0xff] %v966
                %v968 = vld [vmem:[%s248 + $0x59c0] sm:$0xff]
                %969 = vst [vmem:[%s249 + $0x1670] sm:$0xff] %v968
                %v970 = vld [vmem:[%s248 + $0x5a00] sm:$0xff]
                %971 = vst [vmem:[%s249 + $0x1680] sm:$0xff] %v970
                %v972 = vld [vmem:[%s248 + $0x5a40] sm:$0xff]
                %973 = vst [vmem:[%s249 + $0x1690] sm:$0xff] %v972
                %v974 = vld [vmem:[%s248 + $0x5a80] sm:$0xff]
                %975 = vst [vmem:[%s249 + $0x16a0] sm:$0xff] %v974
                %v976 = vld [vmem:[%s248 + $0x5ac0] sm:$0xff]
                %977 = vst [vmem:[%s249 + $0x16b0] sm:$0xff] %v976
                %v978 = vld [vmem:[%s248 + $0x5b00] sm:$0xff]
                %979 = vst [vmem:[%s249 + $0x16c0] sm:$0xff] %v978
                %v980 = vld [vmem:[%s248 + $0x5b40] sm:$0xff]
                %981 = vst [vmem:[%s249 + $0x16d0] sm:$0xff] %v980
                %v982 = vld [vmem:[%s248 + $0x5b80] sm:$0xff]
                %983 = vst [vmem:[%s249 + $0x16e0] sm:$0xff] %v982
                %v984 = vld [vmem:[%s248 + $0x5bc0] sm:$0xff]
                %985 = vst [vmem:[%s249 + $0x16f0] sm:$0xff] %v984
                %v986 = vld [vmem:[%s248 + $0x5c00] sm:$0xff]
                %987 = vst [vmem:[%s249 + $0x1700] sm:$0xff] %v986
                %v988 = vld [vmem:[%s248 + $0x5c40] sm:$0xff]
                %989 = vst [vmem:[%s249 + $0x1710] sm:$0xff] %v988
                %v990 = vld [vmem:[%s248 + $0x5c80] sm:$0xff]
                %991 = vst [vmem:[%s249 + $0x1720] sm:$0xff] %v990
                %v992 = vld [vmem:[%s248 + $0x5cc0] sm:$0xff]
                %993 = vst [vmem:[%s249 + $0x1730] sm:$0xff] %v992
                %v994 = vld [vmem:[%s248 + $0x5d00] sm:$0xff]
                %995 = vst [vmem:[%s249 + $0x1740] sm:$0xff] %v994
                %v996 = vld [vmem:[%s248 + $0x5d40] sm:$0xff]
                %997 = vst [vmem:[%s249 + $0x1750] sm:$0xff] %v996
                %v998 = vld [vmem:[%s248 + $0x5d80] sm:$0xff]
                %999 = vst [vmem:[%s249 + $0x1760] sm:$0xff] %v998
                %v1000 = vld [vmem:[%s248 + $0x5dc0] sm:$0xff]
                %1001 = vst [vmem:[%s249 + $0x1770] sm:$0xff] %v1000
                %v1002 = vld [vmem:[%s248 + $0x5e00] sm:$0xff]
                %1003 = vst [vmem:[%s249 + $0x1780] sm:$0xff] %v1002
                %v1004 = vld [vmem:[%s248 + $0x5e40] sm:$0xff]
                %1005 = vst [vmem:[%s249 + $0x1790] sm:$0xff] %v1004
                %v1006 = vld [vmem:[%s248 + $0x5e80] sm:$0xff]
                %1007 = vst [vmem:[%s249 + $0x17a0] sm:$0xff] %v1006
                %v1008 = vld [vmem:[%s248 + $0x5ec0] sm:$0xff]
                %1009 = vst [vmem:[%s249 + $0x17b0] sm:$0xff] %v1008
                %v1010 = vld [vmem:[%s248 + $0x5f00] sm:$0xff]
                %1011 = vst [vmem:[%s249 + $0x17c0] sm:$0xff] %v1010
                %v1012 = vld [vmem:[%s248 + $0x5f40] sm:$0xff]
                %1013 = vst [vmem:[%s249 + $0x17d0] sm:$0xff] %v1012
                %v1014 = vld [vmem:[%s248 + $0x5f80] sm:$0xff]
                %1015 = vst [vmem:[%s249 + $0x17e0] sm:$0xff] %v1014
                %v1016 = vld [vmem:[%s248 + $0x5fc0] sm:$0xff]
                %1017 = vst [vmem:[%s249 + $0x17f0] sm:$0xff] %v1016
                %v1018 = vld [vmem:[%s248 + $0x6000] sm:$0xff]
                %1019 = vst [vmem:[%s249 + $0x1800] sm:$0xff] %v1018
                %v1020 = vld [vmem:[%s248 + $0x6040] sm:$0xff]
                %1021 = vst [vmem:[%s249 + $0x1810] sm:$0xff] %v1020
                %v1022 = vld [vmem:[%s248 + $0x6080] sm:$0xff]
                %1023 = vst [vmem:[%s249 + $0x1820] sm:$0xff] %v1022
                %v1024 = vld [vmem:[%s248 + $0x60c0] sm:$0xff]
                %1025 = vst [vmem:[%s249 + $0x1830] sm:$0xff] %v1024
                %v1026 = vld [vmem:[%s248 + $0x6100] sm:$0xff]
                %1027 = vst [vmem:[%s249 + $0x1840] sm:$0xff] %v1026
                %v1028 = vld [vmem:[%s248 + $0x6140] sm:$0xff]
                %1029 = vst [vmem:[%s249 + $0x1850] sm:$0xff] %v1028
                %v1030 = vld [vmem:[%s248 + $0x6180] sm:$0xff]
                %1031 = vst [vmem:[%s249 + $0x1860] sm:$0xff] %v1030
                %v1032 = vld [vmem:[%s248 + $0x61c0] sm:$0xff]
                %1033 = vst [vmem:[%s249 + $0x1870] sm:$0xff] %v1032
                %s1034 = sadd.s32 1, %s247
                %p1035 = scmp.ge.s32.totalorder %s1034, 2
                %s1036 = scalar_select %p1035, 0, %s1034
                %s1037 = smul.u32 %s1036, 8
                %s1038 = smul.u32 %s1036, 8
                %s1039 = scalar_lea.vmem %s236, %s1037
                %s1040 = scalar_lea.vmem %s233, %s1038 [#allocation3]
              $region49: #{encoder_forward.5} parent=43 // loop_footer
                %s246 = sadd.s32 1, %s242
              $region50: #{encoder_forward.5} parent=43 // loop_footer_branch
                %241 = sbr.rel target = $region46
              $region51: #{encoder_forward.5} parent=43 // loop_exit
                _
            $region44: #{encoder_forward.5} parent=39 // pred_fallthru
              _
            // Predicated region
            $region52: #{encoder_forward.5} parent=39 // pred_check
              _
            $region53: #{encoder_forward.5} parent=39 // pred_check_branch
              %1042 = sbr.rel target = $region55
            $region54: #{encoder_forward.5} parent=39 // pred_region
              %s1043 = scalar_lea.vmem %s236, 16
              %s1044 = scalar_lea.vmem %s233, 16 [#allocation3]
              loop: start=0, step=1, limit=2
              $region56: #{encoder_forward.5} parent=54 // loop_pre_header
                _
              $region57: #{encoder_forward.5} parent=54 // loop_header
                %s1046 = sphi 0, %s1050
                %p1047 = scmp.ge.s32.totalorder %s1046, 2
                %s1051 = sphi 0, %s1840
                %s1052 = sphi %s236, %s1843
                %s1053 = sphi %s233, %s1844
              $region58: #{encoder_forward.5} parent=54 // loop_header_branch
                %1049 = sbr.rel (%p1047) target = $region62
              $region59: #{encoder_forward.5} parent=54 // loop_body
                %v1054 = vld [vmem:[%s1052] sm:$0xff]
                %1055 = vst [vmem:[%s1053] sm:$0xff] %v1054
                %v1056 = vld [vmem:[%s1052 + $0x40] sm:$0xff]
                %1057 = vst [vmem:[%s1053 + $0x10] sm:$0xff] %v1056
                %v1058 = vld [vmem:[%s1052 + $0x80] sm:$0xff]
                %1059 = vst [vmem:[%s1053 + $0x20] sm:$0xff] %v1058
                %v1060 = vld [vmem:[%s1052 + $0xc0] sm:$0xff]
                %1061 = vst [vmem:[%s1053 + $0x30] sm:$0xff] %v1060
                %v1062 = vld [vmem:[%s1052 + $0x100] sm:$0xff]
                %1063 = vst [vmem:[%s1053 + $0x40] sm:$0xff] %v1062
                %v1064 = vld [vmem:[%s1052 + $0x140] sm:$0xff]
                %1065 = vst [vmem:[%s1053 + $0x50] sm:$0xff] %v1064
                %v1066 = vld [vmem:[%s1052 + $0x180] sm:$0xff]
                %1067 = vst [vmem:[%s1053 + $0x60] sm:$0xff] %v1066
                %v1068 = vld [vmem:[%s1052 + $0x1c0] sm:$0xff]
                %1069 = vst [vmem:[%s1053 + $0x70] sm:$0xff] %v1068
                %v1070 = vld [vmem:[%s1052 + $0x200] sm:$0xff]
                %1071 = vst [vmem:[%s1053 + $0x80] sm:$0xff] %v1070
                %v1072 = vld [vmem:[%s1052 + $0x240] sm:$0xff]
                %1073 = vst [vmem:[%s1053 + $0x90] sm:$0xff] %v1072
                %v1074 = vld [vmem:[%s1052 + $0x280] sm:$0xff]
                %1075 = vst [vmem:[%s1053 + $0xa0] sm:$0xff] %v1074
                %v1076 = vld [vmem:[%s1052 + $0x2c0] sm:$0xff]
                %1077 = vst [vmem:[%s1053 + $0xb0] sm:$0xff] %v1076
                %v1078 = vld [vmem:[%s1052 + $0x300] sm:$0xff]
                %1079 = vst [vmem:[%s1053 + $0xc0] sm:$0xff] %v1078
                %v1080 = vld [vmem:[%s1052 + $0x340] sm:$0xff]
                %1081 = vst [vmem:[%s1053 + $0xd0] sm:$0xff] %v1080
                %v1082 = vld [vmem:[%s1052 + $0x380] sm:$0xff]
                %1083 = vst [vmem:[%s1053 + $0xe0] sm:$0xff] %v1082
                %v1084 = vld [vmem:[%s1052 + $0x3c0] sm:$0xff]
                %1085 = vst [vmem:[%s1053 + $0xf0] sm:$0xff] %v1084
                %v1086 = vld [vmem:[%s1052 + $0x400] sm:$0xff]
                %1087 = vst [vmem:[%s1053 + $0x100] sm:$0xff] %v1086
                %v1088 = vld [vmem:[%s1052 + $0x440] sm:$0xff]
                %1089 = vst [vmem:[%s1053 + $0x110] sm:$0xff] %v1088
                %v1090 = vld [vmem:[%s1052 + $0x480] sm:$0xff]
                %1091 = vst [vmem:[%s1053 + $0x120] sm:$0xff] %v1090
                %v1092 = vld [vmem:[%s1052 + $0x4c0] sm:$0xff]
                %1093 = vst [vmem:[%s1053 + $0x130] sm:$0xff] %v1092
                %v1094 = vld [vmem:[%s1052 + $0x500] sm:$0xff]
                %1095 = vst [vmem:[%s1053 + $0x140] sm:$0xff] %v1094
                %v1096 = vld [vmem:[%s1052 + $0x540] sm:$0xff]
                %1097 = vst [vmem:[%s1053 + $0x150] sm:$0xff] %v1096
                %v1098 = vld [vmem:[%s1052 + $0x580] sm:$0xff]
                %1099 = vst [vmem:[%s1053 + $0x160] sm:$0xff] %v1098
                %v1100 = vld [vmem:[%s1052 + $0x5c0] sm:$0xff]
                %1101 = vst [vmem:[%s1053 + $0x170] sm:$0xff] %v1100
                %v1102 = vld [vmem:[%s1052 + $0x600] sm:$0xff]
                %1103 = vst [vmem:[%s1053 + $0x180] sm:$0xff] %v1102
                %v1104 = vld [vmem:[%s1052 + $0x640] sm:$0xff]
                %1105 = vst [vmem:[%s1053 + $0x190] sm:$0xff] %v1104
                %v1106 = vld [vmem:[%s1052 + $0x680] sm:$0xff]
                %1107 = vst [vmem:[%s1053 + $0x1a0] sm:$0xff] %v1106
                %v1108 = vld [vmem:[%s1052 + $0x6c0] sm:$0xff]
                %1109 = vst [vmem:[%s1053 + $0x1b0] sm:$0xff] %v1108
                %v1110 = vld [vmem:[%s1052 + $0x700] sm:$0xff]
                %1111 = vst [vmem:[%s1053 + $0x1c0] sm:$0xff] %v1110
                %v1112 = vld [vmem:[%s1052 + $0x740] sm:$0xff]
                %1113 = vst [vmem:[%s1053 + $0x1d0] sm:$0xff] %v1112
                %v1114 = vld [vmem:[%s1052 + $0x780] sm:$0xff]
                %1115 = vst [vmem:[%s1053 + $0x1e0] sm:$0xff] %v1114
                %v1116 = vld [vmem:[%s1052 + $0x7c0] sm:$0xff]
                %1117 = vst [vmem:[%s1053 + $0x1f0] sm:$0xff] %v1116
                %v1118 = vld [vmem:[%s1052 + $0x800] sm:$0xff]
                %1119 = vst [vmem:[%s1053 + $0x200] sm:$0xff] %v1118
                %v1120 = vld [vmem:[%s1052 + $0x840] sm:$0xff]
                %1121 = vst [vmem:[%s1053 + $0x210] sm:$0xff] %v1120
                %v1122 = vld [vmem:[%s1052 + $0x880] sm:$0xff]
                %1123 = vst [vmem:[%s1053 + $0x220] sm:$0xff] %v1122
                %v1124 = vld [vmem:[%s1052 + $0x8c0] sm:$0xff]
                %1125 = vst [vmem:[%s1053 + $0x230] sm:$0xff] %v1124
                %v1126 = vld [vmem:[%s1052 + $0x900] sm:$0xff]
                %1127 = vst [vmem:[%s1053 + $0x240] sm:$0xff] %v1126
                %v1128 = vld [vmem:[%s1052 + $0x940] sm:$0xff]
                %1129 = vst [vmem:[%s1053 + $0x250] sm:$0xff] %v1128
                %v1130 = vld [vmem:[%s1052 + $0x980] sm:$0xff]
                %1131 = vst [vmem:[%s1053 + $0x260] sm:$0xff] %v1130
                %v1132 = vld [vmem:[%s1052 + $0x9c0] sm:$0xff]
                %1133 = vst [vmem:[%s1053 + $0x270] sm:$0xff] %v1132
                %v1134 = vld [vmem:[%s1052 + $0xa00] sm:$0xff]
                %1135 = vst [vmem:[%s1053 + $0x280] sm:$0xff] %v1134
                %v1136 = vld [vmem:[%s1052 + $0xa40] sm:$0xff]
                %1137 = vst [vmem:[%s1053 + $0x290] sm:$0xff] %v1136
                %v1138 = vld [vmem:[%s1052 + $0xa80] sm:$0xff]
                %1139 = vst [vmem:[%s1053 + $0x2a0] sm:$0xff] %v1138
                %v1140 = vld [vmem:[%s1052 + $0xac0] sm:$0xff]
                %1141 = vst [vmem:[%s1053 + $0x2b0] sm:$0xff] %v1140
                %v1142 = vld [vmem:[%s1052 + $0xb00] sm:$0xff]
                %1143 = vst [vmem:[%s1053 + $0x2c0] sm:$0xff] %v1142
                %v1144 = vld [vmem:[%s1052 + $0xb40] sm:$0xff]
                %1145 = vst [vmem:[%s1053 + $0x2d0] sm:$0xff] %v1144
                %v1146 = vld [vmem:[%s1052 + $0xb80] sm:$0xff]
                %1147 = vst [vmem:[%s1053 + $0x2e0] sm:$0xff] %v1146
                %v1148 = vld [vmem:[%s1052 + $0xbc0] sm:$0xff]
                %1149 = vst [vmem:[%s1053 + $0x2f0] sm:$0xff] %v1148
                %v1150 = vld [vmem:[%s1052 + $0xc00] sm:$0xff]
                %1151 = vst [vmem:[%s1053 + $0x300] sm:$0xff] %v1150
                %v1152 = vld [vmem:[%s1052 + $0xc40] sm:$0xff]
                %1153 = vst [vmem:[%s1053 + $0x310] sm:$0xff] %v1152
                %v1154 = vld [vmem:[%s1052 + $0xc80] sm:$0xff]
                %1155 = vst [vmem:[%s1053 + $0x320] sm:$0xff] %v1154
                %v1156 = vld [vmem:[%s1052 + $0xcc0] sm:$0xff]
                %1157 = vst [vmem:[%s1053 + $0x330] sm:$0xff] %v1156
                %v1158 = vld [vmem:[%s1052 + $0xd00] sm:$0xff]
                %1159 = vst [vmem:[%s1053 + $0x340] sm:$0xff] %v1158
                %v1160 = vld [vmem:[%s1052 + $0xd40] sm:$0xff]
                %1161 = vst [vmem:[%s1053 + $0x350] sm:$0xff] %v1160
                %v1162 = vld [vmem:[%s1052 + $0xd80] sm:$0xff]
                %1163 = vst [vmem:[%s1053 + $0x360] sm:$0xff] %v1162
                %v1164 = vld [vmem:[%s1052 + $0xdc0] sm:$0xff]
                %1165 = vst [vmem:[%s1053 + $0x370] sm:$0xff] %v1164
                %v1166 = vld [vmem:[%s1052 + $0xe00] sm:$0xff]
                %1167 = vst [vmem:[%s1053 + $0x380] sm:$0xff] %v1166
                %v1168 = vld [vmem:[%s1052 + $0xe40] sm:$0xff]
                %1169 = vst [vmem:[%s1053 + $0x390] sm:$0xff] %v1168
                %v1170 = vld [vmem:[%s1052 + $0xe80] sm:$0xff]
                %1171 = vst [vmem:[%s1053 + $0x3a0] sm:$0xff] %v1170
                %v1172 = vld [vmem:[%s1052 + $0xec0] sm:$0xff]
                %1173 = vst [vmem:[%s1053 + $0x3b0] sm:$0xff] %v1172
                %v1174 = vld [vmem:[%s1052 + $0xf00] sm:$0xff]
                %1175 = vst [vmem:[%s1053 + $0x3c0] sm:$0xff] %v1174
                %v1176 = vld [vmem:[%s1052 + $0xf40] sm:$0xff]
                %1177 = vst [vmem:[%s1053 + $0x3d0] sm:$0xff] %v1176
                %v1178 = vld [vmem:[%s1052 + $0xf80] sm:$0xff]
                %1179 = vst [vmem:[%s1053 + $0x3e0] sm:$0xff] %v1178
                %v1180 = vld [vmem:[%s1052 + $0xfc0] sm:$0xff]
                %1181 = vst [vmem:[%s1053 + $0x3f0] sm:$0xff] %v1180
                %v1182 = vld [vmem:[%s1052 + $0x1000] sm:$0xff]
                %1183 = vst [vmem:[%s1053 + $0x400] sm:$0xff] %v1182
                %v1184 = vld [vmem:[%s1052 + $0x1040] sm:$0xff]
                %1185 = vst [vmem:[%s1053 + $0x410] sm:$0xff] %v1184
                %v1186 = vld [vmem:[%s1052 + $0x1080] sm:$0xff]
                %1187 = vst [vmem:[%s1053 + $0x420] sm:$0xff] %v1186
                %v1188 = vld [vmem:[%s1052 + $0x10c0] sm:$0xff]
                %1189 = vst [vmem:[%s1053 + $0x430] sm:$0xff] %v1188
                %v1190 = vld [vmem:[%s1052 + $0x1100] sm:$0xff]
                %1191 = vst [vmem:[%s1053 + $0x440] sm:$0xff] %v1190
                %v1192 = vld [vmem:[%s1052 + $0x1140] sm:$0xff]
                %1193 = vst [vmem:[%s1053 + $0x450] sm:$0xff] %v1192
                %v1194 = vld [vmem:[%s1052 + $0x1180] sm:$0xff]
                %1195 = vst [vmem:[%s1053 + $0x460] sm:$0xff] %v1194
                %v1196 = vld [vmem:[%s1052 + $0x11c0] sm:$0xff]
                %1197 = vst [vmem:[%s1053 + $0x470] sm:$0xff] %v1196
                %v1198 = vld [vmem:[%s1052 + $0x1200] sm:$0xff]
                %1199 = vst [vmem:[%s1053 + $0x480] sm:$0xff] %v1198
                %v1200 = vld [vmem:[%s1052 + $0x1240] sm:$0xff]
                %1201 = vst [vmem:[%s1053 + $0x490] sm:$0xff] %v1200
                %v1202 = vld [vmem:[%s1052 + $0x1280] sm:$0xff]
                %1203 = vst [vmem:[%s1053 + $0x4a0] sm:$0xff] %v1202
                %v1204 = vld [vmem:[%s1052 + $0x12c0] sm:$0xff]
                %1205 = vst [vmem:[%s1053 + $0x4b0] sm:$0xff] %v1204
                %v1206 = vld [vmem:[%s1052 + $0x1300] sm:$0xff]
                %1207 = vst [vmem:[%s1053 + $0x4c0] sm:$0xff] %v1206
                %v1208 = vld [vmem:[%s1052 + $0x1340] sm:$0xff]
                %1209 = vst [vmem:[%s1053 + $0x4d0] sm:$0xff] %v1208
                %v1210 = vld [vmem:[%s1052 + $0x1380] sm:$0xff]
                %1211 = vst [vmem:[%s1053 + $0x4e0] sm:$0xff] %v1210
                %v1212 = vld [vmem:[%s1052 + $0x13c0] sm:$0xff]
                %1213 = vst [vmem:[%s1053 + $0x4f0] sm:$0xff] %v1212
                %v1214 = vld [vmem:[%s1052 + $0x1400] sm:$0xff]
                %1215 = vst [vmem:[%s1053 + $0x500] sm:$0xff] %v1214
                %v1216 = vld [vmem:[%s1052 + $0x1440] sm:$0xff]
                %1217 = vst [vmem:[%s1053 + $0x510] sm:$0xff] %v1216
                %v1218 = vld [vmem:[%s1052 + $0x1480] sm:$0xff]
                %1219 = vst [vmem:[%s1053 + $0x520] sm:$0xff] %v1218
                %v1220 = vld [vmem:[%s1052 + $0x14c0] sm:$0xff]
                %1221 = vst [vmem:[%s1053 + $0x530] sm:$0xff] %v1220
                %v1222 = vld [vmem:[%s1052 + $0x1500] sm:$0xff]
                %1223 = vst [vmem:[%s1053 + $0x540] sm:$0xff] %v1222
                %v1224 = vld [vmem:[%s1052 + $0x1540] sm:$0xff]
                %1225 = vst [vmem:[%s1053 + $0x550] sm:$0xff] %v1224
                %v1226 = vld [vmem:[%s1052 + $0x1580] sm:$0xff]
                %1227 = vst [vmem:[%s1053 + $0x560] sm:$0xff] %v1226
                %v1228 = vld [vmem:[%s1052 + $0x15c0] sm:$0xff]
                %1229 = vst [vmem:[%s1053 + $0x570] sm:$0xff] %v1228
                %v1230 = vld [vmem:[%s1052 + $0x1600] sm:$0xff]
                %1231 = vst [vmem:[%s1053 + $0x580] sm:$0xff] %v1230
                %v1232 = vld [vmem:[%s1052 + $0x1640] sm:$0xff]
                %1233 = vst [vmem:[%s1053 + $0x590] sm:$0xff] %v1232
                %v1234 = vld [vmem:[%s1052 + $0x1680] sm:$0xff]
                %1235 = vst [vmem:[%s1053 + $0x5a0] sm:$0xff] %v1234
                %v1236 = vld [vmem:[%s1052 + $0x16c0] sm:$0xff]
                %1237 = vst [vmem:[%s1053 + $0x5b0] sm:$0xff] %v1236
                %v1238 = vld [vmem:[%s1052 + $0x1700] sm:$0xff]
                %1239 = vst [vmem:[%s1053 + $0x5c0] sm:$0xff] %v1238
                %v1240 = vld [vmem:[%s1052 + $0x1740] sm:$0xff]
                %1241 = vst [vmem:[%s1053 + $0x5d0] sm:$0xff] %v1240
                %v1242 = vld [vmem:[%s1052 + $0x1780] sm:$0xff]
                %1243 = vst [vmem:[%s1053 + $0x5e0] sm:$0xff] %v1242
                %v1244 = vld [vmem:[%s1052 + $0x17c0] sm:$0xff]
                %1245 = vst [vmem:[%s1053 + $0x5f0] sm:$0xff] %v1244
                %v1246 = vld [vmem:[%s1052 + $0x1800] sm:$0xff]
                %1247 = vst [vmem:[%s1053 + $0x600] sm:$0xff] %v1246
                %v1248 = vld [vmem:[%s1052 + $0x1840] sm:$0xff]
                %1249 = vst [vmem:[%s1053 + $0x610] sm:$0xff] %v1248
                %v1250 = vld [vmem:[%s1052 + $0x1880] sm:$0xff]
                %1251 = vst [vmem:[%s1053 + $0x620] sm:$0xff] %v1250
                %v1252 = vld [vmem:[%s1052 + $0x18c0] sm:$0xff]
                %1253 = vst [vmem:[%s1053 + $0x630] sm:$0xff] %v1252
                %v1254 = vld [vmem:[%s1052 + $0x1900] sm:$0xff]
                %1255 = vst [vmem:[%s1053 + $0x640] sm:$0xff] %v1254
                %v1256 = vld [vmem:[%s1052 + $0x1940] sm:$0xff]
                %1257 = vst [vmem:[%s1053 + $0x650] sm:$0xff] %v1256
                %v1258 = vld [vmem:[%s1052 + $0x1980] sm:$0xff]
                %1259 = vst [vmem:[%s1053 + $0x660] sm:$0xff] %v1258
                %v1260 = vld [vmem:[%s1052 + $0x19c0] sm:$0xff]
                %1261 = vst [vmem:[%s1053 + $0x670] sm:$0xff] %v1260
                %v1262 = vld [vmem:[%s1052 + $0x1a00] sm:$0xff]
                %1263 = vst [vmem:[%s1053 + $0x680] sm:$0xff] %v1262
                %v1264 = vld [vmem:[%s1052 + $0x1a40] sm:$0xff]
                %1265 = vst [vmem:[%s1053 + $0x690] sm:$0xff] %v1264
                %v1266 = vld [vmem:[%s1052 + $0x1a80] sm:$0xff]
                %1267 = vst [vmem:[%s1053 + $0x6a0] sm:$0xff] %v1266
                %v1268 = vld [vmem:[%s1052 + $0x1ac0] sm:$0xff]
                %1269 = vst [vmem:[%s1053 + $0x6b0] sm:$0xff] %v1268
                %v1270 = vld [vmem:[%s1052 + $0x1b00] sm:$0xff]
                %1271 = vst [vmem:[%s1053 + $0x6c0] sm:$0xff] %v1270
                %v1272 = vld [vmem:[%s1052 + $0x1b40] sm:$0xff]
                %1273 = vst [vmem:[%s1053 + $0x6d0] sm:$0xff] %v1272
                %v1274 = vld [vmem:[%s1052 + $0x1b80] sm:$0xff]
                %1275 = vst [vmem:[%s1053 + $0x6e0] sm:$0xff] %v1274
                %v1276 = vld [vmem:[%s1052 + $0x1bc0] sm:$0xff]
                %1277 = vst [vmem:[%s1053 + $0x6f0] sm:$0xff] %v1276
                %v1278 = vld [vmem:[%s1052 + $0x1c00] sm:$0xff]
                %1279 = vst [vmem:[%s1053 + $0x700] sm:$0xff] %v1278
                %v1280 = vld [vmem:[%s1052 + $0x1c40] sm:$0xff]
                %1281 = vst [vmem:[%s1053 + $0x710] sm:$0xff] %v1280
                %v1282 = vld [vmem:[%s1052 + $0x1c80] sm:$0xff]
                %1283 = vst [vmem:[%s1053 + $0x720] sm:$0xff] %v1282
                %v1284 = vld [vmem:[%s1052 + $0x1cc0] sm:$0xff]
                %1285 = vst [vmem:[%s1053 + $0x730] sm:$0xff] %v1284
                %v1286 = vld [vmem:[%s1052 + $0x1d00] sm:$0xff]
                %1287 = vst [vmem:[%s1053 + $0x740] sm:$0xff] %v1286
                %v1288 = vld [vmem:[%s1052 + $0x1d40] sm:$0xff]
                %1289 = vst [vmem:[%s1053 + $0x750] sm:$0xff] %v1288
                %v1290 = vld [vmem:[%s1052 + $0x1d80] sm:$0xff]
                %1291 = vst [vmem:[%s1053 + $0x760] sm:$0xff] %v1290
                %v1292 = vld [vmem:[%s1052 + $0x1dc0] sm:$0xff]
                %1293 = vst [vmem:[%s1053 + $0x770] sm:$0xff] %v1292
                %v1294 = vld [vmem:[%s1052 + $0x1e00] sm:$0xff]
                %1295 = vst [vmem:[%s1053 + $0x780] sm:$0xff] %v1294
                %v1296 = vld [vmem:[%s1052 + $0x1e40] sm:$0xff]
                %1297 = vst [vmem:[%s1053 + $0x790] sm:$0xff] %v1296
                %v1298 = vld [vmem:[%s1052 + $0x1e80] sm:$0xff]
                %1299 = vst [vmem:[%s1053 + $0x7a0] sm:$0xff] %v1298
                %v1300 = vld [vmem:[%s1052 + $0x1ec0] sm:$0xff]
                %1301 = vst [vmem:[%s1053 + $0x7b0] sm:$0xff] %v1300
                %v1302 = vld [vmem:[%s1052 + $0x1f00] sm:$0xff]
                %1303 = vst [vmem:[%s1053 + $0x7c0] sm:$0xff] %v1302
                %v1304 = vld [vmem:[%s1052 + $0x1f40] sm:$0xff]
                %1305 = vst [vmem:[%s1053 + $0x7d0] sm:$0xff] %v1304
                %v1306 = vld [vmem:[%s1052 + $0x1f80] sm:$0xff]
                %1307 = vst [vmem:[%s1053 + $0x7e0] sm:$0xff] %v1306
                %v1308 = vld [vmem:[%s1052 + $0x1fc0] sm:$0xff]
                %1309 = vst [vmem:[%s1053 + $0x7f0] sm:$0xff] %v1308
                %v1310 = vld [vmem:[%s1052 + $0x2000] sm:$0xff]
                %1311 = vst [vmem:[%s1053 + $0x800] sm:$0xff] %v1310
                %v1312 = vld [vmem:[%s1052 + $0x2040] sm:$0xff]
                %1313 = vst [vmem:[%s1053 + $0x810] sm:$0xff] %v1312
                %v1314 = vld [vmem:[%s1052 + $0x2080] sm:$0xff]
                %1315 = vst [vmem:[%s1053 + $0x820] sm:$0xff] %v1314
                %v1316 = vld [vmem:[%s1052 + $0x20c0] sm:$0xff]
                %1317 = vst [vmem:[%s1053 + $0x830] sm:$0xff] %v1316
                %v1318 = vld [vmem:[%s1052 + $0x2100] sm:$0xff]
                %1319 = vst [vmem:[%s1053 + $0x840] sm:$0xff] %v1318
                %v1320 = vld [vmem:[%s1052 + $0x2140] sm:$0xff]
                %1321 = vst [vmem:[%s1053 + $0x850] sm:$0xff] %v1320
                %v1322 = vld [vmem:[%s1052 + $0x2180] sm:$0xff]
                %1323 = vst [vmem:[%s1053 + $0x860] sm:$0xff] %v1322
                %v1324 = vld [vmem:[%s1052 + $0x21c0] sm:$0xff]
                %1325 = vst [vmem:[%s1053 + $0x870] sm:$0xff] %v1324
                %v1326 = vld [vmem:[%s1052 + $0x2200] sm:$0xff]
                %1327 = vst [vmem:[%s1053 + $0x880] sm:$0xff] %v1326
                %v1328 = vld [vmem:[%s1052 + $0x2240] sm:$0xff]
                %1329 = vst [vmem:[%s1053 + $0x890] sm:$0xff] %v1328
                %v1330 = vld [vmem:[%s1052 + $0x2280] sm:$0xff]
                %1331 = vst [vmem:[%s1053 + $0x8a0] sm:$0xff] %v1330
                %v1332 = vld [vmem:[%s1052 + $0x22c0] sm:$0xff]
                %1333 = vst [vmem:[%s1053 + $0x8b0] sm:$0xff] %v1332
                %v1334 = vld [vmem:[%s1052 + $0x2300] sm:$0xff]
                %1335 = vst [vmem:[%s1053 + $0x8c0] sm:$0xff] %v1334
                %v1336 = vld [vmem:[%s1052 + $0x2340] sm:$0xff]
                %1337 = vst [vmem:[%s1053 + $0x8d0] sm:$0xff] %v1336
                %v1338 = vld [vmem:[%s1052 + $0x2380] sm:$0xff]
                %1339 = vst [vmem:[%s1053 + $0x8e0] sm:$0xff] %v1338
                %v1340 = vld [vmem:[%s1052 + $0x23c0] sm:$0xff]
                %1341 = vst [vmem:[%s1053 + $0x8f0] sm:$0xff] %v1340
                %v1342 = vld [vmem:[%s1052 + $0x2400] sm:$0xff]
                %1343 = vst [vmem:[%s1053 + $0x900] sm:$0xff] %v1342
                %v1344 = vld [vmem:[%s1052 + $0x2440] sm:$0xff]
                %1345 = vst [vmem:[%s1053 + $0x910] sm:$0xff] %v1344
                %v1346 = vld [vmem:[%s1052 + $0x2480] sm:$0xff]
                %1347 = vst [vmem:[%s1053 + $0x920] sm:$0xff] %v1346
                %v1348 = vld [vmem:[%s1052 + $0x24c0] sm:$0xff]
                %1349 = vst [vmem:[%s1053 + $0x930] sm:$0xff] %v1348
                %v1350 = vld [vmem:[%s1052 + $0x2500] sm:$0xff]
                %1351 = vst [vmem:[%s1053 + $0x940] sm:$0xff] %v1350
                %v1352 = vld [vmem:[%s1052 + $0x2540] sm:$0xff]
                %1353 = vst [vmem:[%s1053 + $0x950] sm:$0xff] %v1352
                %v1354 = vld [vmem:[%s1052 + $0x2580] sm:$0xff]
                %1355 = vst [vmem:[%s1053 + $0x960] sm:$0xff] %v1354
                %v1356 = vld [vmem:[%s1052 + $0x25c0] sm:$0xff]
                %1357 = vst [vmem:[%s1053 + $0x970] sm:$0xff] %v1356
                %v1358 = vld [vmem:[%s1052 + $0x2600] sm:$0xff]
                %1359 = vst [vmem:[%s1053 + $0x980] sm:$0xff] %v1358
                %v1360 = vld [vmem:[%s1052 + $0x2640] sm:$0xff]
                %1361 = vst [vmem:[%s1053 + $0x990] sm:$0xff] %v1360
                %v1362 = vld [vmem:[%s1052 + $0x2680] sm:$0xff]
                %1363 = vst [vmem:[%s1053 + $0x9a0] sm:$0xff] %v1362
                %v1364 = vld [vmem:[%s1052 + $0x26c0] sm:$0xff]
                %1365 = vst [vmem:[%s1053 + $0x9b0] sm:$0xff] %v1364
                %v1366 = vld [vmem:[%s1052 + $0x2700] sm:$0xff]
                %1367 = vst [vmem:[%s1053 + $0x9c0] sm:$0xff] %v1366
                %v1368 = vld [vmem:[%s1052 + $0x2740] sm:$0xff]
                %1369 = vst [vmem:[%s1053 + $0x9d0] sm:$0xff] %v1368
                %v1370 = vld [vmem:[%s1052 + $0x2780] sm:$0xff]
                %1371 = vst [vmem:[%s1053 + $0x9e0] sm:$0xff] %v1370
                %v1372 = vld [vmem:[%s1052 + $0x27c0] sm:$0xff]
                %1373 = vst [vmem:[%s1053 + $0x9f0] sm:$0xff] %v1372
                %v1374 = vld [vmem:[%s1052 + $0x2800] sm:$0xff]
                %1375 = vst [vmem:[%s1053 + $0xa00] sm:$0xff] %v1374
                %v1376 = vld [vmem:[%s1052 + $0x2840] sm:$0xff]
                %1377 = vst [vmem:[%s1053 + $0xa10] sm:$0xff] %v1376
                %v1378 = vld [vmem:[%s1052 + $0x2880] sm:$0xff]
                %1379 = vst [vmem:[%s1053 + $0xa20] sm:$0xff] %v1378
                %v1380 = vld [vmem:[%s1052 + $0x28c0] sm:$0xff]
                %1381 = vst [vmem:[%s1053 + $0xa30] sm:$0xff] %v1380
                %v1382 = vld [vmem:[%s1052 + $0x2900] sm:$0xff]
                %1383 = vst [vmem:[%s1053 + $0xa40] sm:$0xff] %v1382
                %v1384 = vld [vmem:[%s1052 + $0x2940] sm:$0xff]
                %1385 = vst [vmem:[%s1053 + $0xa50] sm:$0xff] %v1384
                %v1386 = vld [vmem:[%s1052 + $0x2980] sm:$0xff]
                %1387 = vst [vmem:[%s1053 + $0xa60] sm:$0xff] %v1386
                %v1388 = vld [vmem:[%s1052 + $0x29c0] sm:$0xff]
                %1389 = vst [vmem:[%s1053 + $0xa70] sm:$0xff] %v1388
                %v1390 = vld [vmem:[%s1052 + $0x2a00] sm:$0xff]
                %1391 = vst [vmem:[%s1053 + $0xa80] sm:$0xff] %v1390
                %v1392 = vld [vmem:[%s1052 + $0x2a40] sm:$0xff]
                %1393 = vst [vmem:[%s1053 + $0xa90] sm:$0xff] %v1392
                %v1394 = vld [vmem:[%s1052 + $0x2a80] sm:$0xff]
                %1395 = vst [vmem:[%s1053 + $0xaa0] sm:$0xff] %v1394
                %v1396 = vld [vmem:[%s1052 + $0x2ac0] sm:$0xff]
                %1397 = vst [vmem:[%s1053 + $0xab0] sm:$0xff] %v1396
                %v1398 = vld [vmem:[%s1052 + $0x2b00] sm:$0xff]
                %1399 = vst [vmem:[%s1053 + $0xac0] sm:$0xff] %v1398
                %v1400 = vld [vmem:[%s1052 + $0x2b40] sm:$0xff]
                %1401 = vst [vmem:[%s1053 + $0xad0] sm:$0xff] %v1400
                %v1402 = vld [vmem:[%s1052 + $0x2b80] sm:$0xff]
                %1403 = vst [vmem:[%s1053 + $0xae0] sm:$0xff] %v1402
                %v1404 = vld [vmem:[%s1052 + $0x2bc0] sm:$0xff]
                %1405 = vst [vmem:[%s1053 + $0xaf0] sm:$0xff] %v1404
                %v1406 = vld [vmem:[%s1052 + $0x2c00] sm:$0xff]
                %1407 = vst [vmem:[%s1053 + $0xb00] sm:$0xff] %v1406
                %v1408 = vld [vmem:[%s1052 + $0x2c40] sm:$0xff]
                %1409 = vst [vmem:[%s1053 + $0xb10] sm:$0xff] %v1408
                %v1410 = vld [vmem:[%s1052 + $0x2c80] sm:$0xff]
                %1411 = vst [vmem:[%s1053 + $0xb20] sm:$0xff] %v1410
                %v1412 = vld [vmem:[%s1052 + $0x2cc0] sm:$0xff]
                %1413 = vst [vmem:[%s1053 + $0xb30] sm:$0xff] %v1412
                %v1414 = vld [vmem:[%s1052 + $0x2d00] sm:$0xff]
                %1415 = vst [vmem:[%s1053 + $0xb40] sm:$0xff] %v1414
                %v1416 = vld [vmem:[%s1052 + $0x2d40] sm:$0xff]
                %1417 = vst [vmem:[%s1053 + $0xb50] sm:$0xff] %v1416
                %v1418 = vld [vmem:[%s1052 + $0x2d80] sm:$0xff]
                %1419 = vst [vmem:[%s1053 + $0xb60] sm:$0xff] %v1418
                %v1420 = vld [vmem:[%s1052 + $0x2dc0] sm:$0xff]
                %1421 = vst [vmem:[%s1053 + $0xb70] sm:$0xff] %v1420
                %v1422 = vld [vmem:[%s1052 + $0x2e00] sm:$0xff]
                %1423 = vst [vmem:[%s1053 + $0xb80] sm:$0xff] %v1422
                %v1424 = vld [vmem:[%s1052 + $0x2e40] sm:$0xff]
                %1425 = vst [vmem:[%s1053 + $0xb90] sm:$0xff] %v1424
                %v1426 = vld [vmem:[%s1052 + $0x2e80] sm:$0xff]
                %1427 = vst [vmem:[%s1053 + $0xba0] sm:$0xff] %v1426
                %v1428 = vld [vmem:[%s1052 + $0x2ec0] sm:$0xff]
                %1429 = vst [vmem:[%s1053 + $0xbb0] sm:$0xff] %v1428
                %v1430 = vld [vmem:[%s1052 + $0x2f00] sm:$0xff]
                %1431 = vst [vmem:[%s1053 + $0xbc0] sm:$0xff] %v1430
                %v1432 = vld [vmem:[%s1052 + $0x2f40] sm:$0xff]
                %1433 = vst [vmem:[%s1053 + $0xbd0] sm:$0xff] %v1432
                %v1434 = vld [vmem:[%s1052 + $0x2f80] sm:$0xff]
                %1435 = vst [vmem:[%s1053 + $0xbe0] sm:$0xff] %v1434
                %v1436 = vld [vmem:[%s1052 + $0x2fc0] sm:$0xff]
                %1437 = vst [vmem:[%s1053 + $0xbf0] sm:$0xff] %v1436
                %v1438 = vld [vmem:[%s1052 + $0x3000] sm:$0xff]
                %1439 = vst [vmem:[%s1053 + $0xc00] sm:$0xff] %v1438
                %v1440 = vld [vmem:[%s1052 + $0x3040] sm:$0xff]
                %1441 = vst [vmem:[%s1053 + $0xc10] sm:$0xff] %v1440
                %v1442 = vld [vmem:[%s1052 + $0x3080] sm:$0xff]
                %1443 = vst [vmem:[%s1053 + $0xc20] sm:$0xff] %v1442
                %v1444 = vld [vmem:[%s1052 + $0x30c0] sm:$0xff]
                %1445 = vst [vmem:[%s1053 + $0xc30] sm:$0xff] %v1444
                %v1446 = vld [vmem:[%s1052 + $0x3100] sm:$0xff]
                %1447 = vst [vmem:[%s1053 + $0xc40] sm:$0xff] %v1446
                %v1448 = vld [vmem:[%s1052 + $0x3140] sm:$0xff]
                %1449 = vst [vmem:[%s1053 + $0xc50] sm:$0xff] %v1448
                %v1450 = vld [vmem:[%s1052 + $0x3180] sm:$0xff]
                %1451 = vst [vmem:[%s1053 + $0xc60] sm:$0xff] %v1450
                %v1452 = vld [vmem:[%s1052 + $0x31c0] sm:$0xff]
                %1453 = vst [vmem:[%s1053 + $0xc70] sm:$0xff] %v1452
                %v1454 = vld [vmem:[%s1052 + $0x3200] sm:$0xff]
                %1455 = vst [vmem:[%s1053 + $0xc80] sm:$0xff] %v1454
                %v1456 = vld [vmem:[%s1052 + $0x3240] sm:$0xff]
                %1457 = vst [vmem:[%s1053 + $0xc90] sm:$0xff] %v1456
                %v1458 = vld [vmem:[%s1052 + $0x3280] sm:$0xff]
                %1459 = vst [vmem:[%s1053 + $0xca0] sm:$0xff] %v1458
                %v1460 = vld [vmem:[%s1052 + $0x32c0] sm:$0xff]
                %1461 = vst [vmem:[%s1053 + $0xcb0] sm:$0xff] %v1460
                %v1462 = vld [vmem:[%s1052 + $0x3300] sm:$0xff]
                %1463 = vst [vmem:[%s1053 + $0xcc0] sm:$0xff] %v1462
                %v1464 = vld [vmem:[%s1052 + $0x3340] sm:$0xff]
                %1465 = vst [vmem:[%s1053 + $0xcd0] sm:$0xff] %v1464
                %v1466 = vld [vmem:[%s1052 + $0x3380] sm:$0xff]
                %1467 = vst [vmem:[%s1053 + $0xce0] sm:$0xff] %v1466
                %v1468 = vld [vmem:[%s1052 + $0x33c0] sm:$0xff]
                %1469 = vst [vmem:[%s1053 + $0xcf0] sm:$0xff] %v1468
                %v1470 = vld [vmem:[%s1052 + $0x3400] sm:$0xff]
                %1471 = vst [vmem:[%s1053 + $0xd00] sm:$0xff] %v1470
                %v1472 = vld [vmem:[%s1052 + $0x3440] sm:$0xff]
                %1473 = vst [vmem:[%s1053 + $0xd10] sm:$0xff] %v1472
                %v1474 = vld [vmem:[%s1052 + $0x3480] sm:$0xff]
                %1475 = vst [vmem:[%s1053 + $0xd20] sm:$0xff] %v1474
                %v1476 = vld [vmem:[%s1052 + $0x34c0] sm:$0xff]
                %1477 = vst [vmem:[%s1053 + $0xd30] sm:$0xff] %v1476
                %v1478 = vld [vmem:[%s1052 + $0x3500] sm:$0xff]
                %1479 = vst [vmem:[%s1053 + $0xd40] sm:$0xff] %v1478
                %v1480 = vld [vmem:[%s1052 + $0x3540] sm:$0xff]
                %1481 = vst [vmem:[%s1053 + $0xd50] sm:$0xff] %v1480
                %v1482 = vld [vmem:[%s1052 + $0x3580] sm:$0xff]
                %1483 = vst [vmem:[%s1053 + $0xd60] sm:$0xff] %v1482
                %v1484 = vld [vmem:[%s1052 + $0x35c0] sm:$0xff]
                %1485 = vst [vmem:[%s1053 + $0xd70] sm:$0xff] %v1484
                %v1486 = vld [vmem:[%s1052 + $0x3600] sm:$0xff]
                %1487 = vst [vmem:[%s1053 + $0xd80] sm:$0xff] %v1486
                %v1488 = vld [vmem:[%s1052 + $0x3640] sm:$0xff]
                %1489 = vst [vmem:[%s1053 + $0xd90] sm:$0xff] %v1488
                %v1490 = vld [vmem:[%s1052 + $0x3680] sm:$0xff]
                %1491 = vst [vmem:[%s1053 + $0xda0] sm:$0xff] %v1490
                %v1492 = vld [vmem:[%s1052 + $0x36c0] sm:$0xff]
                %1493 = vst [vmem:[%s1053 + $0xdb0] sm:$0xff] %v1492
                %v1494 = vld [vmem:[%s1052 + $0x3700] sm:$0xff]
                %1495 = vst [vmem:[%s1053 + $0xdc0] sm:$0xff] %v1494
                %v1496 = vld [vmem:[%s1052 + $0x3740] sm:$0xff]
                %1497 = vst [vmem:[%s1053 + $0xdd0] sm:$0xff] %v1496
                %v1498 = vld [vmem:[%s1052 + $0x3780] sm:$0xff]
                %1499 = vst [vmem:[%s1053 + $0xde0] sm:$0xff] %v1498
                %v1500 = vld [vmem:[%s1052 + $0x37c0] sm:$0xff]
                %1501 = vst [vmem:[%s1053 + $0xdf0] sm:$0xff] %v1500
                %v1502 = vld [vmem:[%s1052 + $0x3800] sm:$0xff]
                %1503 = vst [vmem:[%s1053 + $0xe00] sm:$0xff] %v1502
                %v1504 = vld [vmem:[%s1052 + $0x3840] sm:$0xff]
                %1505 = vst [vmem:[%s1053 + $0xe10] sm:$0xff] %v1504
                %v1506 = vld [vmem:[%s1052 + $0x3880] sm:$0xff]
                %1507 = vst [vmem:[%s1053 + $0xe20] sm:$0xff] %v1506
                %v1508 = vld [vmem:[%s1052 + $0x38c0] sm:$0xff]
                %1509 = vst [vmem:[%s1053 + $0xe30] sm:$0xff] %v1508
                %v1510 = vld [vmem:[%s1052 + $0x3900] sm:$0xff]
                %1511 = vst [vmem:[%s1053 + $0xe40] sm:$0xff] %v1510
                %v1512 = vld [vmem:[%s1052 + $0x3940] sm:$0xff]
                %1513 = vst [vmem:[%s1053 + $0xe50] sm:$0xff] %v1512
                %v1514 = vld [vmem:[%s1052 + $0x3980] sm:$0xff]
                %1515 = vst [vmem:[%s1053 + $0xe60] sm:$0xff] %v1514
                %v1516 = vld [vmem:[%s1052 + $0x39c0] sm:$0xff]
                %1517 = vst [vmem:[%s1053 + $0xe70] sm:$0xff] %v1516
                %v1518 = vld [vmem:[%s1052 + $0x3a00] sm:$0xff]
                %1519 = vst [vmem:[%s1053 + $0xe80] sm:$0xff] %v1518
                %v1520 = vld [vmem:[%s1052 + $0x3a40] sm:$0xff]
                %1521 = vst [vmem:[%s1053 + $0xe90] sm:$0xff] %v1520
                %v1522 = vld [vmem:[%s1052 + $0x3a80] sm:$0xff]
                %1523 = vst [vmem:[%s1053 + $0xea0] sm:$0xff] %v1522
                %v1524 = vld [vmem:[%s1052 + $0x3ac0] sm:$0xff]
                %1525 = vst [vmem:[%s1053 + $0xeb0] sm:$0xff] %v1524
                %v1526 = vld [vmem:[%s1052 + $0x3b00] sm:$0xff]
                %1527 = vst [vmem:[%s1053 + $0xec0] sm:$0xff] %v1526
                %v1528 = vld [vmem:[%s1052 + $0x3b40] sm:$0xff]
                %1529 = vst [vmem:[%s1053 + $0xed0] sm:$0xff] %v1528
                %v1530 = vld [vmem:[%s1052 + $0x3b80] sm:$0xff]
                %1531 = vst [vmem:[%s1053 + $0xee0] sm:$0xff] %v1530
                %v1532 = vld [vmem:[%s1052 + $0x3bc0] sm:$0xff]
                %1533 = vst [vmem:[%s1053 + $0xef0] sm:$0xff] %v1532
                %v1534 = vld [vmem:[%s1052 + $0x3c00] sm:$0xff]
                %1535 = vst [vmem:[%s1053 + $0xf00] sm:$0xff] %v1534
                %v1536 = vld [vmem:[%s1052 + $0x3c40] sm:$0xff]
                %1537 = vst [vmem:[%s1053 + $0xf10] sm:$0xff] %v1536
                %v1538 = vld [vmem:[%s1052 + $0x3c80] sm:$0xff]
                %1539 = vst [vmem:[%s1053 + $0xf20] sm:$0xff] %v1538
                %v1540 = vld [vmem:[%s1052 + $0x3cc0] sm:$0xff]
                %1541 = vst [vmem:[%s1053 + $0xf30] sm:$0xff] %v1540
                %v1542 = vld [vmem:[%s1052 + $0x3d00] sm:$0xff]
                %1543 = vst [vmem:[%s1053 + $0xf40] sm:$0xff] %v1542
                %v1544 = vld [vmem:[%s1052 + $0x3d40] sm:$0xff]
                %1545 = vst [vmem:[%s1053 + $0xf50] sm:$0xff] %v1544
                %v1546 = vld [vmem:[%s1052 + $0x3d80] sm:$0xff]
                %1547 = vst [vmem:[%s1053 + $0xf60] sm:$0xff] %v1546
                %v1548 = vld [vmem:[%s1052 + $0x3dc0] sm:$0xff]
                %1549 = vst [vmem:[%s1053 + $0xf70] sm:$0xff] %v1548
                %v1550 = vld [vmem:[%s1052 + $0x3e00] sm:$0xff]
                %1551 = vst [vmem:[%s1053 + $0xf80] sm:$0xff] %v1550
                %v1552 = vld [vmem:[%s1052 + $0x3e40] sm:$0xff]
                %1553 = vst [vmem:[%s1053 + $0xf90] sm:$0xff] %v1552
                %v1554 = vld [vmem:[%s1052 + $0x3e80] sm:$0xff]
                %1555 = vst [vmem:[%s1053 + $0xfa0] sm:$0xff] %v1554
                %v1556 = vld [vmem:[%s1052 + $0x3ec0] sm:$0xff]
                %1557 = vst [vmem:[%s1053 + $0xfb0] sm:$0xff] %v1556
                %v1558 = vld [vmem:[%s1052 + $0x3f00] sm:$0xff]
                %1559 = vst [vmem:[%s1053 + $0xfc0] sm:$0xff] %v1558
                %v1560 = vld [vmem:[%s1052 + $0x3f40] sm:$0xff]
                %1561 = vst [vmem:[%s1053 + $0xfd0] sm:$0xff] %v1560
                %v1562 = vld [vmem:[%s1052 + $0x3f80] sm:$0xff]
                %1563 = vst [vmem:[%s1053 + $0xfe0] sm:$0xff] %v1562
                %v1564 = vld [vmem:[%s1052 + $0x3fc0] sm:$0xff]
                %1565 = vst [vmem:[%s1053 + $0xff0] sm:$0xff] %v1564
                %v1566 = vld [vmem:[%s1052 + $0x4000] sm:$0xff]
                %1567 = vst [vmem:[%s1053 + $0x1000] sm:$0xff] %v1566
                %v1568 = vld [vmem:[%s1052 + $0x4040] sm:$0xff]
                %1569 = vst [vmem:[%s1053 + $0x1010] sm:$0xff] %v1568
                %v1570 = vld [vmem:[%s1052 + $0x4080] sm:$0xff]
                %1571 = vst [vmem:[%s1053 + $0x1020] sm:$0xff] %v1570
                %v1572 = vld [vmem:[%s1052 + $0x40c0] sm:$0xff]
                %1573 = vst [vmem:[%s1053 + $0x1030] sm:$0xff] %v1572
                %v1574 = vld [vmem:[%s1052 + $0x4100] sm:$0xff]
                %1575 = vst [vmem:[%s1053 + $0x1040] sm:$0xff] %v1574
                %v1576 = vld [vmem:[%s1052 + $0x4140] sm:$0xff]
                %1577 = vst [vmem:[%s1053 + $0x1050] sm:$0xff] %v1576
                %v1578 = vld [vmem:[%s1052 + $0x4180] sm:$0xff]
                %1579 = vst [vmem:[%s1053 + $0x1060] sm:$0xff] %v1578
                %v1580 = vld [vmem:[%s1052 + $0x41c0] sm:$0xff]
                %1581 = vst [vmem:[%s1053 + $0x1070] sm:$0xff] %v1580
                %v1582 = vld [vmem:[%s1052 + $0x4200] sm:$0xff]
                %1583 = vst [vmem:[%s1053 + $0x1080] sm:$0xff] %v1582
                %v1584 = vld [vmem:[%s1052 + $0x4240] sm:$0xff]
                %1585 = vst [vmem:[%s1053 + $0x1090] sm:$0xff] %v1584
                %v1586 = vld [vmem:[%s1052 + $0x4280] sm:$0xff]
                %1587 = vst [vmem:[%s1053 + $0x10a0] sm:$0xff] %v1586
                %v1588 = vld [vmem:[%s1052 + $0x42c0] sm:$0xff]
                %1589 = vst [vmem:[%s1053 + $0x10b0] sm:$0xff] %v1588
                %v1590 = vld [vmem:[%s1052 + $0x4300] sm:$0xff]
                %1591 = vst [vmem:[%s1053 + $0x10c0] sm:$0xff] %v1590
                %v1592 = vld [vmem:[%s1052 + $0x4340] sm:$0xff]
                %1593 = vst [vmem:[%s1053 + $0x10d0] sm:$0xff] %v1592
                %v1594 = vld [vmem:[%s1052 + $0x4380] sm:$0xff]
                %1595 = vst [vmem:[%s1053 + $0x10e0] sm:$0xff] %v1594
                %v1596 = vld [vmem:[%s1052 + $0x43c0] sm:$0xff]
                %1597 = vst [vmem:[%s1053 + $0x10f0] sm:$0xff] %v1596
                %v1598 = vld [vmem:[%s1052 + $0x4400] sm:$0xff]
                %1599 = vst [vmem:[%s1053 + $0x1100] sm:$0xff] %v1598
                %v1600 = vld [vmem:[%s1052 + $0x4440] sm:$0xff]
                %1601 = vst [vmem:[%s1053 + $0x1110] sm:$0xff] %v1600
                %v1602 = vld [vmem:[%s1052 + $0x4480] sm:$0xff]
                %1603 = vst [vmem:[%s1053 + $0x1120] sm:$0xff] %v1602
                %v1604 = vld [vmem:[%s1052 + $0x44c0] sm:$0xff]
                %1605 = vst [vmem:[%s1053 + $0x1130] sm:$0xff] %v1604
                %v1606 = vld [vmem:[%s1052 + $0x4500] sm:$0xff]
                %1607 = vst [vmem:[%s1053 + $0x1140] sm:$0xff] %v1606
                %v1608 = vld [vmem:[%s1052 + $0x4540] sm:$0xff]
                %1609 = vst [vmem:[%s1053 + $0x1150] sm:$0xff] %v1608
                %v1610 = vld [vmem:[%s1052 + $0x4580] sm:$0xff]
                %1611 = vst [vmem:[%s1053 + $0x1160] sm:$0xff] %v1610
                %v1612 = vld [vmem:[%s1052 + $0x45c0] sm:$0xff]
                %1613 = vst [vmem:[%s1053 + $0x1170] sm:$0xff] %v1612
                %v1614 = vld [vmem:[%s1052 + $0x4600] sm:$0xff]
                %1615 = vst [vmem:[%s1053 + $0x1180] sm:$0xff] %v1614
                %v1616 = vld [vmem:[%s1052 + $0x4640] sm:$0xff]
                %1617 = vst [vmem:[%s1053 + $0x1190] sm:$0xff] %v1616
                %v1618 = vld [vmem:[%s1052 + $0x4680] sm:$0xff]
                %1619 = vst [vmem:[%s1053 + $0x11a0] sm:$0xff] %v1618
                %v1620 = vld [vmem:[%s1052 + $0x46c0] sm:$0xff]
                %1621 = vst [vmem:[%s1053 + $0x11b0] sm:$0xff] %v1620
                %v1622 = vld [vmem:[%s1052 + $0x4700] sm:$0xff]
                %1623 = vst [vmem:[%s1053 + $0x11c0] sm:$0xff] %v1622
                %v1624 = vld [vmem:[%s1052 + $0x4740] sm:$0xff]
                %1625 = vst [vmem:[%s1053 + $0x11d0] sm:$0xff] %v1624
                %v1626 = vld [vmem:[%s1052 + $0x4780] sm:$0xff]
                %1627 = vst [vmem:[%s1053 + $0x11e0] sm:$0xff] %v1626
                %v1628 = vld [vmem:[%s1052 + $0x47c0] sm:$0xff]
                %1629 = vst [vmem:[%s1053 + $0x11f0] sm:$0xff] %v1628
                %v1630 = vld [vmem:[%s1052 + $0x4800] sm:$0xff]
                %1631 = vst [vmem:[%s1053 + $0x1200] sm:$0xff] %v1630
                %v1632 = vld [vmem:[%s1052 + $0x4840] sm:$0xff]
                %1633 = vst [vmem:[%s1053 + $0x1210] sm:$0xff] %v1632
                %v1634 = vld [vmem:[%s1052 + $0x4880] sm:$0xff]
                %1635 = vst [vmem:[%s1053 + $0x1220] sm:$0xff] %v1634
                %v1636 = vld [vmem:[%s1052 + $0x48c0] sm:$0xff]
                %1637 = vst [vmem:[%s1053 + $0x1230] sm:$0xff] %v1636
                %v1638 = vld [vmem:[%s1052 + $0x4900] sm:$0xff]
                %1639 = vst [vmem:[%s1053 + $0x1240] sm:$0xff] %v1638
                %v1640 = vld [vmem:[%s1052 + $0x4940] sm:$0xff]
                %1641 = vst [vmem:[%s1053 + $0x1250] sm:$0xff] %v1640
                %v1642 = vld [vmem:[%s1052 + $0x4980] sm:$0xff]
                %1643 = vst [vmem:[%s1053 + $0x1260] sm:$0xff] %v1642
                %v1644 = vld [vmem:[%s1052 + $0x49c0] sm:$0xff]
                %1645 = vst [vmem:[%s1053 + $0x1270] sm:$0xff] %v1644
                %v1646 = vld [vmem:[%s1052 + $0x4a00] sm:$0xff]
                %1647 = vst [vmem:[%s1053 + $0x1280] sm:$0xff] %v1646
                %v1648 = vld [vmem:[%s1052 + $0x4a40] sm:$0xff]
                %1649 = vst [vmem:[%s1053 + $0x1290] sm:$0xff] %v1648
                %v1650 = vld [vmem:[%s1052 + $0x4a80] sm:$0xff]
                %1651 = vst [vmem:[%s1053 + $0x12a0] sm:$0xff] %v1650
                %v1652 = vld [vmem:[%s1052 + $0x4ac0] sm:$0xff]
                %1653 = vst [vmem:[%s1053 + $0x12b0] sm:$0xff] %v1652
                %v1654 = vld [vmem:[%s1052 + $0x4b00] sm:$0xff]
                %1655 = vst [vmem:[%s1053 + $0x12c0] sm:$0xff] %v1654
                %v1656 = vld [vmem:[%s1052 + $0x4b40] sm:$0xff]
                %1657 = vst [vmem:[%s1053 + $0x12d0] sm:$0xff] %v1656
                %v1658 = vld [vmem:[%s1052 + $0x4b80] sm:$0xff]
                %1659 = vst [vmem:[%s1053 + $0x12e0] sm:$0xff] %v1658
                %v1660 = vld [vmem:[%s1052 + $0x4bc0] sm:$0xff]
                %1661 = vst [vmem:[%s1053 + $0x12f0] sm:$0xff] %v1660
                %v1662 = vld [vmem:[%s1052 + $0x4c00] sm:$0xff]
                %1663 = vst [vmem:[%s1053 + $0x1300] sm:$0xff] %v1662
                %v1664 = vld [vmem:[%s1052 + $0x4c40] sm:$0xff]
                %1665 = vst [vmem:[%s1053 + $0x1310] sm:$0xff] %v1664
                %v1666 = vld [vmem:[%s1052 + $0x4c80] sm:$0xff]
                %1667 = vst [vmem:[%s1053 + $0x1320] sm:$0xff] %v1666
                %v1668 = vld [vmem:[%s1052 + $0x4cc0] sm:$0xff]
                %1669 = vst [vmem:[%s1053 + $0x1330] sm:$0xff] %v1668
                %v1670 = vld [vmem:[%s1052 + $0x4d00] sm:$0xff]
                %1671 = vst [vmem:[%s1053 + $0x1340] sm:$0xff] %v1670
                %v1672 = vld [vmem:[%s1052 + $0x4d40] sm:$0xff]
                %1673 = vst [vmem:[%s1053 + $0x1350] sm:$0xff] %v1672
                %v1674 = vld [vmem:[%s1052 + $0x4d80] sm:$0xff]
                %1675 = vst [vmem:[%s1053 + $0x1360] sm:$0xff] %v1674
                %v1676 = vld [vmem:[%s1052 + $0x4dc0] sm:$0xff]
                %1677 = vst [vmem:[%s1053 + $0x1370] sm:$0xff] %v1676
                %v1678 = vld [vmem:[%s1052 + $0x4e00] sm:$0xff]
                %1679 = vst [vmem:[%s1053 + $0x1380] sm:$0xff] %v1678
                %v1680 = vld [vmem:[%s1052 + $0x4e40] sm:$0xff]
                %1681 = vst [vmem:[%s1053 + $0x1390] sm:$0xff] %v1680
                %v1682 = vld [vmem:[%s1052 + $0x4e80] sm:$0xff]
                %1683 = vst [vmem:[%s1053 + $0x13a0] sm:$0xff] %v1682
                %v1684 = vld [vmem:[%s1052 + $0x4ec0] sm:$0xff]
                %1685 = vst [vmem:[%s1053 + $0x13b0] sm:$0xff] %v1684
                %v1686 = vld [vmem:[%s1052 + $0x4f00] sm:$0xff]
                %1687 = vst [vmem:[%s1053 + $0x13c0] sm:$0xff] %v1686
                %v1688 = vld [vmem:[%s1052 + $0x4f40] sm:$0xff]
                %1689 = vst [vmem:[%s1053 + $0x13d0] sm:$0xff] %v1688
                %v1690 = vld [vmem:[%s1052 + $0x4f80] sm:$0xff]
                %1691 = vst [vmem:[%s1053 + $0x13e0] sm:$0xff] %v1690
                %v1692 = vld [vmem:[%s1052 + $0x4fc0] sm:$0xff]
                %1693 = vst [vmem:[%s1053 + $0x13f0] sm:$0xff] %v1692
                %v1694 = vld [vmem:[%s1052 + $0x5000] sm:$0xff]
                %1695 = vst [vmem:[%s1053 + $0x1400] sm:$0xff] %v1694
                %v1696 = vld [vmem:[%s1052 + $0x5040] sm:$0xff]
                %1697 = vst [vmem:[%s1053 + $0x1410] sm:$0xff] %v1696
                %v1698 = vld [vmem:[%s1052 + $0x5080] sm:$0xff]
                %1699 = vst [vmem:[%s1053 + $0x1420] sm:$0xff] %v1698
                %v1700 = vld [vmem:[%s1052 + $0x50c0] sm:$0xff]
                %1701 = vst [vmem:[%s1053 + $0x1430] sm:$0xff] %v1700
                %v1702 = vld [vmem:[%s1052 + $0x5100] sm:$0xff]
                %1703 = vst [vmem:[%s1053 + $0x1440] sm:$0xff] %v1702
                %v1704 = vld [vmem:[%s1052 + $0x5140] sm:$0xff]
                %1705 = vst [vmem:[%s1053 + $0x1450] sm:$0xff] %v1704
                %v1706 = vld [vmem:[%s1052 + $0x5180] sm:$0xff]
                %1707 = vst [vmem:[%s1053 + $0x1460] sm:$0xff] %v1706
                %v1708 = vld [vmem:[%s1052 + $0x51c0] sm:$0xff]
                %1709 = vst [vmem:[%s1053 + $0x1470] sm:$0xff] %v1708
                %v1710 = vld [vmem:[%s1052 + $0x5200] sm:$0xff]
                %1711 = vst [vmem:[%s1053 + $0x1480] sm:$0xff] %v1710
                %v1712 = vld [vmem:[%s1052 + $0x5240] sm:$0xff]
                %1713 = vst [vmem:[%s1053 + $0x1490] sm:$0xff] %v1712
                %v1714 = vld [vmem:[%s1052 + $0x5280] sm:$0xff]
                %1715 = vst [vmem:[%s1053 + $0x14a0] sm:$0xff] %v1714
                %v1716 = vld [vmem:[%s1052 + $0x52c0] sm:$0xff]
                %1717 = vst [vmem:[%s1053 + $0x14b0] sm:$0xff] %v1716
                %v1718 = vld [vmem:[%s1052 + $0x5300] sm:$0xff]
                %1719 = vst [vmem:[%s1053 + $0x14c0] sm:$0xff] %v1718
                %v1720 = vld [vmem:[%s1052 + $0x5340] sm:$0xff]
                %1721 = vst [vmem:[%s1053 + $0x14d0] sm:$0xff] %v1720
                %v1722 = vld [vmem:[%s1052 + $0x5380] sm:$0xff]
                %1723 = vst [vmem:[%s1053 + $0x14e0] sm:$0xff] %v1722
                %v1724 = vld [vmem:[%s1052 + $0x53c0] sm:$0xff]
                %1725 = vst [vmem:[%s1053 + $0x14f0] sm:$0xff] %v1724
                %v1726 = vld [vmem:[%s1052 + $0x5400] sm:$0xff]
                %1727 = vst [vmem:[%s1053 + $0x1500] sm:$0xff] %v1726
                %v1728 = vld [vmem:[%s1052 + $0x5440] sm:$0xff]
                %1729 = vst [vmem:[%s1053 + $0x1510] sm:$0xff] %v1728
                %v1730 = vld [vmem:[%s1052 + $0x5480] sm:$0xff]
                %1731 = vst [vmem:[%s1053 + $0x1520] sm:$0xff] %v1730
                %v1732 = vld [vmem:[%s1052 + $0x54c0] sm:$0xff]
                %1733 = vst [vmem:[%s1053 + $0x1530] sm:$0xff] %v1732
                %v1734 = vld [vmem:[%s1052 + $0x5500] sm:$0xff]
                %1735 = vst [vmem:[%s1053 + $0x1540] sm:$0xff] %v1734
                %v1736 = vld [vmem:[%s1052 + $0x5540] sm:$0xff]
                %1737 = vst [vmem:[%s1053 + $0x1550] sm:$0xff] %v1736
                %v1738 = vld [vmem:[%s1052 + $0x5580] sm:$0xff]
                %1739 = vst [vmem:[%s1053 + $0x1560] sm:$0xff] %v1738
                %v1740 = vld [vmem:[%s1052 + $0x55c0] sm:$0xff]
                %1741 = vst [vmem:[%s1053 + $0x1570] sm:$0xff] %v1740
                %v1742 = vld [vmem:[%s1052 + $0x5600] sm:$0xff]
                %1743 = vst [vmem:[%s1053 + $0x1580] sm:$0xff] %v1742
                %v1744 = vld [vmem:[%s1052 + $0x5640] sm:$0xff]
                %1745 = vst [vmem:[%s1053 + $0x1590] sm:$0xff] %v1744
                %v1746 = vld [vmem:[%s1052 + $0x5680] sm:$0xff]
                %1747 = vst [vmem:[%s1053 + $0x15a0] sm:$0xff] %v1746
                %v1748 = vld [vmem:[%s1052 + $0x56c0] sm:$0xff]
                %1749 = vst [vmem:[%s1053 + $0x15b0] sm:$0xff] %v1748
                %v1750 = vld [vmem:[%s1052 + $0x5700] sm:$0xff]
                %1751 = vst [vmem:[%s1053 + $0x15c0] sm:$0xff] %v1750
                %v1752 = vld [vmem:[%s1052 + $0x5740] sm:$0xff]
                %1753 = vst [vmem:[%s1053 + $0x15d0] sm:$0xff] %v1752
                %v1754 = vld [vmem:[%s1052 + $0x5780] sm:$0xff]
                %1755 = vst [vmem:[%s1053 + $0x15e0] sm:$0xff] %v1754
                %v1756 = vld [vmem:[%s1052 + $0x57c0] sm:$0xff]
                %1757 = vst [vmem:[%s1053 + $0x15f0] sm:$0xff] %v1756
                %v1758 = vld [vmem:[%s1052 + $0x5800] sm:$0xff]
                %1759 = vst [vmem:[%s1053 + $0x1600] sm:$0xff] %v1758
                %v1760 = vld [vmem:[%s1052 + $0x5840] sm:$0xff]
                %1761 = vst [vmem:[%s1053 + $0x1610] sm:$0xff] %v1760
                %v1762 = vld [vmem:[%s1052 + $0x5880] sm:$0xff]
                %1763 = vst [vmem:[%s1053 + $0x1620] sm:$0xff] %v1762
                %v1764 = vld [vmem:[%s1052 + $0x58c0] sm:$0xff]
                %1765 = vst [vmem:[%s1053 + $0x1630] sm:$0xff] %v1764
                %v1766 = vld [vmem:[%s1052 + $0x5900] sm:$0xff]
                %1767 = vst [vmem:[%s1053 + $0x1640] sm:$0xff] %v1766
                %v1768 = vld [vmem:[%s1052 + $0x5940] sm:$0xff]
                %1769 = vst [vmem:[%s1053 + $0x1650] sm:$0xff] %v1768
                %v1770 = vld [vmem:[%s1052 + $0x5980] sm:$0xff]
                %1771 = vst [vmem:[%s1053 + $0x1660] sm:$0xff] %v1770
                %v1772 = vld [vmem:[%s1052 + $0x59c0] sm:$0xff]
                %1773 = vst [vmem:[%s1053 + $0x1670] sm:$0xff] %v1772
                %v1774 = vld [vmem:[%s1052 + $0x5a00] sm:$0xff]
                %1775 = vst [vmem:[%s1053 + $0x1680] sm:$0xff] %v1774
                %v1776 = vld [vmem:[%s1052 + $0x5a40] sm:$0xff]
                %1777 = vst [vmem:[%s1053 + $0x1690] sm:$0xff] %v1776
                %v1778 = vld [vmem:[%s1052 + $0x5a80] sm:$0xff]
                %1779 = vst [vmem:[%s1053 + $0x16a0] sm:$0xff] %v1778
                %v1780 = vld [vmem:[%s1052 + $0x5ac0] sm:$0xff]
                %1781 = vst [vmem:[%s1053 + $0x16b0] sm:$0xff] %v1780
                %v1782 = vld [vmem:[%s1052 + $0x5b00] sm:$0xff]
                %1783 = vst [vmem:[%s1053 + $0x16c0] sm:$0xff] %v1782
                %v1784 = vld [vmem:[%s1052 + $0x5b40] sm:$0xff]
                %1785 = vst [vmem:[%s1053 + $0x16d0] sm:$0xff] %v1784
                %v1786 = vld [vmem:[%s1052 + $0x5b80] sm:$0xff]
                %1787 = vst [vmem:[%s1053 + $0x16e0] sm:$0xff] %v1786
                %v1788 = vld [vmem:[%s1052 + $0x5bc0] sm:$0xff]
                %1789 = vst [vmem:[%s1053 + $0x16f0] sm:$0xff] %v1788
                %v1790 = vld [vmem:[%s1052 + $0x5c00] sm:$0xff]
                %1791 = vst [vmem:[%s1053 + $0x1700] sm:$0xff] %v1790
                %v1792 = vld [vmem:[%s1052 + $0x5c40] sm:$0xff]
                %1793 = vst [vmem:[%s1053 + $0x1710] sm:$0xff] %v1792
                %v1794 = vld [vmem:[%s1052 + $0x5c80] sm:$0xff]
                %1795 = vst [vmem:[%s1053 + $0x1720] sm:$0xff] %v1794
                %v1796 = vld [vmem:[%s1052 + $0x5cc0] sm:$0xff]
                %1797 = vst [vmem:[%s1053 + $0x1730] sm:$0xff] %v1796
                %v1798 = vld [vmem:[%s1052 + $0x5d00] sm:$0xff]
                %1799 = vst [vmem:[%s1053 + $0x1740] sm:$0xff] %v1798
                %v1800 = vld [vmem:[%s1052 + $0x5d40] sm:$0xff]
                %1801 = vst [vmem:[%s1053 + $0x1750] sm:$0xff] %v1800
                %v1802 = vld [vmem:[%s1052 + $0x5d80] sm:$0xff]
                %1803 = vst [vmem:[%s1053 + $0x1760] sm:$0xff] %v1802
                %v1804 = vld [vmem:[%s1052 + $0x5dc0] sm:$0xff]
                %1805 = vst [vmem:[%s1053 + $0x1770] sm:$0xff] %v1804
                %v1806 = vld [vmem:[%s1052 + $0x5e00] sm:$0xff]
                %1807 = vst [vmem:[%s1053 + $0x1780] sm:$0xff] %v1806
                %v1808 = vld [vmem:[%s1052 + $0x5e40] sm:$0xff]
                %1809 = vst [vmem:[%s1053 + $0x1790] sm:$0xff] %v1808
                %v1810 = vld [vmem:[%s1052 + $0x5e80] sm:$0xff]
                %1811 = vst [vmem:[%s1053 + $0x17a0] sm:$0xff] %v1810
                %v1812 = vld [vmem:[%s1052 + $0x5ec0] sm:$0xff]
                %1813 = vst [vmem:[%s1053 + $0x17b0] sm:$0xff] %v1812
                %v1814 = vld [vmem:[%s1052 + $0x5f00] sm:$0xff]
                %1815 = vst [vmem:[%s1053 + $0x17c0] sm:$0xff] %v1814
                %v1816 = vld [vmem:[%s1052 + $0x5f40] sm:$0xff]
                %1817 = vst [vmem:[%s1053 + $0x17d0] sm:$0xff] %v1816
                %v1818 = vld [vmem:[%s1052 + $0x5f80] sm:$0xff]
                %1819 = vst [vmem:[%s1053 + $0x17e0] sm:$0xff] %v1818
                %v1820 = vld [vmem:[%s1052 + $0x5fc0] sm:$0xff]
                %1821 = vst [vmem:[%s1053 + $0x17f0] sm:$0xff] %v1820
                %v1822 = vld [vmem:[%s1052 + $0x6000] sm:$0xff]
                %1823 = vst [vmem:[%s1053 + $0x1800] sm:$0xff] %v1822
                %v1824 = vld [vmem:[%s1052 + $0x6040] sm:$0xff]
                %1825 = vst [vmem:[%s1053 + $0x1810] sm:$0xff] %v1824
                %v1826 = vld [vmem:[%s1052 + $0x6080] sm:$0xff]
                %1827 = vst [vmem:[%s1053 + $0x1820] sm:$0xff] %v1826
                %v1828 = vld [vmem:[%s1052 + $0x60c0] sm:$0xff]
                %1829 = vst [vmem:[%s1053 + $0x1830] sm:$0xff] %v1828
                %v1830 = vld [vmem:[%s1052 + $0x6100] sm:$0xff]
                %1831 = vst [vmem:[%s1053 + $0x1840] sm:$0xff] %v1830
                %v1832 = vld [vmem:[%s1052 + $0x6140] sm:$0xff]
                %1833 = vst [vmem:[%s1053 + $0x1850] sm:$0xff] %v1832
                %v1834 = vld [vmem:[%s1052 + $0x6180] sm:$0xff]
                %1835 = vst [vmem:[%s1053 + $0x1860] sm:$0xff] %v1834
                %v1836 = vld [vmem:[%s1052 + $0x61c0] sm:$0xff]
                %1837 = vst [vmem:[%s1053 + $0x1870] sm:$0xff] %v1836
                %s1838 = sadd.s32 1, %s1051
                %p1839 = scmp.ge.s32.totalorder %s1838, 2
                %s1840 = scalar_select %p1839, 0, %s1838
                %s1841 = smul.u32 %s1840, 8
                %s1842 = smul.u32 %s1840, 8
                %s1843 = scalar_lea.vmem %s236, %s1841
                %s1844 = scalar_lea.vmem %s233, %s1842 [#allocation3]
              $region60: #{encoder_forward.5} parent=54 // loop_footer
                %s1050 = sadd.s32 1, %s1046
              $region61: #{encoder_forward.5} parent=54 // loop_footer_branch
                %1045 = sbr.rel target = $region57
              $region62: #{encoder_forward.5} parent=54 // loop_exit
                _
              %s1846 = ssub.s32 1, 1
              loop: start=0, step=1, limit=1
              $region63: #{encoder_forward.5} parent=54 // loop_pre_header
                _
              $region64: #{encoder_forward.5} parent=54 // loop_header
                %s1848 = sphi 0, %s1852
                %p1849 = scmp.ge.s32.totalorder %s1848, 1
                %s1853 = sphi %s1043, %s1043
                %s1854 = sphi %s1044, %s1044
              $region65: #{encoder_forward.5} parent=54 // loop_header_branch
                %1851 = sbr.rel (%p1849) target = $region69
              $region66: #{encoder_forward.5} parent=54 // loop_body
                %v1855 = vld [vmem:[%s1853] sm:%s1846]
                %1856 = vst [vmem:[%s1854] sm:%s1846] %v1855
                %v1857 = vld [vmem:[%s1853 + $0x40] sm:%s1846]
                %1858 = vst [vmem:[%s1854 + $0x10] sm:%s1846] %v1857
                %v1859 = vld [vmem:[%s1853 + $0x80] sm:%s1846]
                %1860 = vst [vmem:[%s1854 + $0x20] sm:%s1846] %v1859
                %v1861 = vld [vmem:[%s1853 + $0xc0] sm:%s1846]
                %1862 = vst [vmem:[%s1854 + $0x30] sm:%s1846] %v1861
                %v1863 = vld [vmem:[%s1853 + $0x100] sm:%s1846]
                %1864 = vst [vmem:[%s1854 + $0x40] sm:%s1846] %v1863
                %v1865 = vld [vmem:[%s1853 + $0x140] sm:%s1846]
                %1866 = vst [vmem:[%s1854 + $0x50] sm:%s1846] %v1865
                %v1867 = vld [vmem:[%s1853 + $0x180] sm:%s1846]
                %1868 = vst [vmem:[%s1854 + $0x60] sm:%s1846] %v1867
                %v1869 = vld [vmem:[%s1853 + $0x1c0] sm:%s1846]
                %1870 = vst [vmem:[%s1854 + $0x70] sm:%s1846] %v1869
                %v1871 = vld [vmem:[%s1853 + $0x200] sm:%s1846]
                %1872 = vst [vmem:[%s1854 + $0x80] sm:%s1846] %v1871
                %v1873 = vld [vmem:[%s1853 + $0x240] sm:%s1846]
                %1874 = vst [vmem:[%s1854 + $0x90] sm:%s1846] %v1873
                %v1875 = vld [vmem:[%s1853 + $0x280] sm:%s1846]
                %1876 = vst [vmem:[%s1854 + $0xa0] sm:%s1846] %v1875
                %v1877 = vld [vmem:[%s1853 + $0x2c0] sm:%s1846]
                %1878 = vst [vmem:[%s1854 + $0xb0] sm:%s1846] %v1877
                %v1879 = vld [vmem:[%s1853 + $0x300] sm:%s1846]
                %1880 = vst [vmem:[%s1854 + $0xc0] sm:%s1846] %v1879
                %v1881 = vld [vmem:[%s1853 + $0x340] sm:%s1846]
                %1882 = vst [vmem:[%s1854 + $0xd0] sm:%s1846] %v1881
                %v1883 = vld [vmem:[%s1853 + $0x380] sm:%s1846]
                %1884 = vst [vmem:[%s1854 + $0xe0] sm:%s1846] %v1883
                %v1885 = vld [vmem:[%s1853 + $0x3c0] sm:%s1846]
                %1886 = vst [vmem:[%s1854 + $0xf0] sm:%s1846] %v1885
                %v1887 = vld [vmem:[%s1853 + $0x400] sm:%s1846]
                %1888 = vst [vmem:[%s1854 + $0x100] sm:%s1846] %v1887
                %v1889 = vld [vmem:[%s1853 + $0x440] sm:%s1846]
                %1890 = vst [vmem:[%s1854 + $0x110] sm:%s1846] %v1889
                %v1891 = vld [vmem:[%s1853 + $0x480] sm:%s1846]
                %1892 = vst [vmem:[%s1854 + $0x120] sm:%s1846] %v1891
                %v1893 = vld [vmem:[%s1853 + $0x4c0] sm:%s1846]
                %1894 = vst [vmem:[%s1854 + $0x130] sm:%s1846] %v1893
                %v1895 = vld [vmem:[%s1853 + $0x500] sm:%s1846]
                %1896 = vst [vmem:[%s1854 + $0x140] sm:%s1846] %v1895
                %v1897 = vld [vmem:[%s1853 + $0x540] sm:%s1846]
                %1898 = vst [vmem:[%s1854 + $0x150] sm:%s1846] %v1897
                %v1899 = vld [vmem:[%s1853 + $0x580] sm:%s1846]
                %1900 = vst [vmem:[%s1854 + $0x160] sm:%s1846] %v1899
                %v1901 = vld [vmem:[%s1853 + $0x5c0] sm:%s1846]
                %1902 = vst [vmem:[%s1854 + $0x170] sm:%s1846] %v1901
                %v1903 = vld [vmem:[%s1853 + $0x600] sm:%s1846]
                %1904 = vst [vmem:[%s1854 + $0x180] sm:%s1846] %v1903
                %v1905 = vld [vmem:[%s1853 + $0x640] sm:%s1846]
                %1906 = vst [vmem:[%s1854 + $0x190] sm:%s1846] %v1905
                %v1907 = vld [vmem:[%s1853 + $0x680] sm:%s1846]
                %1908 = vst [vmem:[%s1854 + $0x1a0] sm:%s1846] %v1907
                %v1909 = vld [vmem:[%s1853 + $0x6c0] sm:%s1846]
                %1910 = vst [vmem:[%s1854 + $0x1b0] sm:%s1846] %v1909
                %v1911 = vld [vmem:[%s1853 + $0x700] sm:%s1846]
                %1912 = vst [vmem:[%s1854 + $0x1c0] sm:%s1846] %v1911
                %v1913 = vld [vmem:[%s1853 + $0x740] sm:%s1846]
                %1914 = vst [vmem:[%s1854 + $0x1d0] sm:%s1846] %v1913
                %v1915 = vld [vmem:[%s1853 + $0x780] sm:%s1846]
                %1916 = vst [vmem:[%s1854 + $0x1e0] sm:%s1846] %v1915
                %v1917 = vld [vmem:[%s1853 + $0x7c0] sm:%s1846]
                %1918 = vst [vmem:[%s1854 + $0x1f0] sm:%s1846] %v1917
                %v1919 = vld [vmem:[%s1853 + $0x800] sm:%s1846]
                %1920 = vst [vmem:[%s1854 + $0x200] sm:%s1846] %v1919
                %v1921 = vld [vmem:[%s1853 + $0x840] sm:%s1846]
                %1922 = vst [vmem:[%s1854 + $0x210] sm:%s1846] %v1921
                %v1923 = vld [vmem:[%s1853 + $0x880] sm:%s1846]
                %1924 = vst [vmem:[%s1854 + $0x220] sm:%s1846] %v1923
                %v1925 = vld [vmem:[%s1853 + $0x8c0] sm:%s1846]
                %1926 = vst [vmem:[%s1854 + $0x230] sm:%s1846] %v1925
                %v1927 = vld [vmem:[%s1853 + $0x900] sm:%s1846]
                %1928 = vst [vmem:[%s1854 + $0x240] sm:%s1846] %v1927
                %v1929 = vld [vmem:[%s1853 + $0x940] sm:%s1846]
                %1930 = vst [vmem:[%s1854 + $0x250] sm:%s1846] %v1929
                %v1931 = vld [vmem:[%s1853 + $0x980] sm:%s1846]
                %1932 = vst [vmem:[%s1854 + $0x260] sm:%s1846] %v1931
                %v1933 = vld [vmem:[%s1853 + $0x9c0] sm:%s1846]
                %1934 = vst [vmem:[%s1854 + $0x270] sm:%s1846] %v1933
                %v1935 = vld [vmem:[%s1853 + $0xa00] sm:%s1846]
                %1936 = vst [vmem:[%s1854 + $0x280] sm:%s1846] %v1935
                %v1937 = vld [vmem:[%s1853 + $0xa40] sm:%s1846]
                %1938 = vst [vmem:[%s1854 + $0x290] sm:%s1846] %v1937
                %v1939 = vld [vmem:[%s1853 + $0xa80] sm:%s1846]
                %1940 = vst [vmem:[%s1854 + $0x2a0] sm:%s1846] %v1939
                %v1941 = vld [vmem:[%s1853 + $0xac0] sm:%s1846]
                %1942 = vst [vmem:[%s1854 + $0x2b0] sm:%s1846] %v1941
                %v1943 = vld [vmem:[%s1853 + $0xb00] sm:%s1846]
                %1944 = vst [vmem:[%s1854 + $0x2c0] sm:%s1846] %v1943
                %v1945 = vld [vmem:[%s1853 + $0xb40] sm:%s1846]
                %1946 = vst [vmem:[%s1854 + $0x2d0] sm:%s1846] %v1945
                %v1947 = vld [vmem:[%s1853 + $0xb80] sm:%s1846]
                %1948 = vst [vmem:[%s1854 + $0x2e0] sm:%s1846] %v1947
                %v1949 = vld [vmem:[%s1853 + $0xbc0] sm:%s1846]
                %1950 = vst [vmem:[%s1854 + $0x2f0] sm:%s1846] %v1949
                %v1951 = vld [vmem:[%s1853 + $0xc00] sm:%s1846]
                %1952 = vst [vmem:[%s1854 + $0x300] sm:%s1846] %v1951
                %v1953 = vld [vmem:[%s1853 + $0xc40] sm:%s1846]
                %1954 = vst [vmem:[%s1854 + $0x310] sm:%s1846] %v1953
                %v1955 = vld [vmem:[%s1853 + $0xc80] sm:%s1846]
                %1956 = vst [vmem:[%s1854 + $0x320] sm:%s1846] %v1955
                %v1957 = vld [vmem:[%s1853 + $0xcc0] sm:%s1846]
                %1958 = vst [vmem:[%s1854 + $0x330] sm:%s1846] %v1957
                %v1959 = vld [vmem:[%s1853 + $0xd00] sm:%s1846]
                %1960 = vst [vmem:[%s1854 + $0x340] sm:%s1846] %v1959
                %v1961 = vld [vmem:[%s1853 + $0xd40] sm:%s1846]
                %1962 = vst [vmem:[%s1854 + $0x350] sm:%s1846] %v1961
                %v1963 = vld [vmem:[%s1853 + $0xd80] sm:%s1846]
                %1964 = vst [vmem:[%s1854 + $0x360] sm:%s1846] %v1963
                %v1965 = vld [vmem:[%s1853 + $0xdc0] sm:%s1846]
                %1966 = vst [vmem:[%s1854 + $0x370] sm:%s1846] %v1965
                %v1967 = vld [vmem:[%s1853 + $0xe00] sm:%s1846]
                %1968 = vst [vmem:[%s1854 + $0x380] sm:%s1846] %v1967
                %v1969 = vld [vmem:[%s1853 + $0xe40] sm:%s1846]
                %1970 = vst [vmem:[%s1854 + $0x390] sm:%s1846] %v1969
                %v1971 = vld [vmem:[%s1853 + $0xe80] sm:%s1846]
                %1972 = vst [vmem:[%s1854 + $0x3a0] sm:%s1846] %v1971
                %v1973 = vld [vmem:[%s1853 + $0xec0] sm:%s1846]
                %1974 = vst [vmem:[%s1854 + $0x3b0] sm:%s1846] %v1973
                %v1975 = vld [vmem:[%s1853 + $0xf00] sm:%s1846]
                %1976 = vst [vmem:[%s1854 + $0x3c0] sm:%s1846] %v1975
                %v1977 = vld [vmem:[%s1853 + $0xf40] sm:%s1846]
                %1978 = vst [vmem:[%s1854 + $0x3d0] sm:%s1846] %v1977
                %v1979 = vld [vmem:[%s1853 + $0xf80] sm:%s1846]
                %1980 = vst [vmem:[%s1854 + $0x3e0] sm:%s1846] %v1979
                %v1981 = vld [vmem:[%s1853 + $0xfc0] sm:%s1846]
                %1982 = vst [vmem:[%s1854 + $0x3f0] sm:%s1846] %v1981
                %v1983 = vld [vmem:[%s1853 + $0x1000] sm:%s1846]
                %1984 = vst [vmem:[%s1854 + $0x400] sm:%s1846] %v1983
                %v1985 = vld [vmem:[%s1853 + $0x1040] sm:%s1846]
                %1986 = vst [vmem:[%s1854 + $0x410] sm:%s1846] %v1985
                %v1987 = vld [vmem:[%s1853 + $0x1080] sm:%s1846]
                %1988 = vst [vmem:[%s1854 + $0x420] sm:%s1846] %v1987
                %v1989 = vld [vmem:[%s1853 + $0x10c0] sm:%s1846]
                %1990 = vst [vmem:[%s1854 + $0x430] sm:%s1846] %v1989
                %v1991 = vld [vmem:[%s1853 + $0x1100] sm:%s1846]
                %1992 = vst [vmem:[%s1854 + $0x440] sm:%s1846] %v1991
                %v1993 = vld [vmem:[%s1853 + $0x1140] sm:%s1846]
                %1994 = vst [vmem:[%s1854 + $0x450] sm:%s1846] %v1993
                %v1995 = vld [vmem:[%s1853 + $0x1180] sm:%s1846]
                %1996 = vst [vmem:[%s1854 + $0x460] sm:%s1846] %v1995
                %v1997 = vld [vmem:[%s1853 + $0x11c0] sm:%s1846]
                %1998 = vst [vmem:[%s1854 + $0x470] sm:%s1846] %v1997
                %v1999 = vld [vmem:[%s1853 + $0x1200] sm:%s1846]
                %2000 = vst [vmem:[%s1854 + $0x480] sm:%s1846] %v1999
                %v2001 = vld [vmem:[%s1853 + $0x1240] sm:%s1846]
                %2002 = vst [vmem:[%s1854 + $0x490] sm:%s1846] %v2001
                %v2003 = vld [vmem:[%s1853 + $0x1280] sm:%s1846]
                %2004 = vst [vmem:[%s1854 + $0x4a0] sm:%s1846] %v2003
                %v2005 = vld [vmem:[%s1853 + $0x12c0] sm:%s1846]
                %2006 = vst [vmem:[%s1854 + $0x4b0] sm:%s1846] %v2005
                %v2007 = vld [vmem:[%s1853 + $0x1300] sm:%s1846]
                %2008 = vst [vmem:[%s1854 + $0x4c0] sm:%s1846] %v2007
                %v2009 = vld [vmem:[%s1853 + $0x1340] sm:%s1846]
                %2010 = vst [vmem:[%s1854 + $0x4d0] sm:%s1846] %v2009
                %v2011 = vld [vmem:[%s1853 + $0x1380] sm:%s1846]
                %2012 = vst [vmem:[%s1854 + $0x4e0] sm:%s1846] %v2011
                %v2013 = vld [vmem:[%s1853 + $0x13c0] sm:%s1846]
                %2014 = vst [vmem:[%s1854 + $0x4f0] sm:%s1846] %v2013
                %v2015 = vld [vmem:[%s1853 + $0x1400] sm:%s1846]
                %2016 = vst [vmem:[%s1854 + $0x500] sm:%s1846] %v2015
                %v2017 = vld [vmem:[%s1853 + $0x1440] sm:%s1846]
                %2018 = vst [vmem:[%s1854 + $0x510] sm:%s1846] %v2017
                %v2019 = vld [vmem:[%s1853 + $0x1480] sm:%s1846]
                %2020 = vst [vmem:[%s1854 + $0x520] sm:%s1846] %v2019
                %v2021 = vld [vmem:[%s1853 + $0x14c0] sm:%s1846]
                %2022 = vst [vmem:[%s1854 + $0x530] sm:%s1846] %v2021
                %v2023 = vld [vmem:[%s1853 + $0x1500] sm:%s1846]
                %2024 = vst [vmem:[%s1854 + $0x540] sm:%s1846] %v2023
                %v2025 = vld [vmem:[%s1853 + $0x1540] sm:%s1846]
                %2026 = vst [vmem:[%s1854 + $0x550] sm:%s1846] %v2025
                %v2027 = vld [vmem:[%s1853 + $0x1580] sm:%s1846]
                %2028 = vst [vmem:[%s1854 + $0x560] sm:%s1846] %v2027
                %v2029 = vld [vmem:[%s1853 + $0x15c0] sm:%s1846]
                %2030 = vst [vmem:[%s1854 + $0x570] sm:%s1846] %v2029
                %v2031 = vld [vmem:[%s1853 + $0x1600] sm:%s1846]
                %2032 = vst [vmem:[%s1854 + $0x580] sm:%s1846] %v2031
                %v2033 = vld [vmem:[%s1853 + $0x1640] sm:%s1846]
                %2034 = vst [vmem:[%s1854 + $0x590] sm:%s1846] %v2033
                %v2035 = vld [vmem:[%s1853 + $0x1680] sm:%s1846]
                %2036 = vst [vmem:[%s1854 + $0x5a0] sm:%s1846] %v2035
                %v2037 = vld [vmem:[%s1853 + $0x16c0] sm:%s1846]
                %2038 = vst [vmem:[%s1854 + $0x5b0] sm:%s1846] %v2037
                %v2039 = vld [vmem:[%s1853 + $0x1700] sm:%s1846]
                %2040 = vst [vmem:[%s1854 + $0x5c0] sm:%s1846] %v2039
                %v2041 = vld [vmem:[%s1853 + $0x1740] sm:%s1846]
                %2042 = vst [vmem:[%s1854 + $0x5d0] sm:%s1846] %v2041
                %v2043 = vld [vmem:[%s1853 + $0x1780] sm:%s1846]
                %2044 = vst [vmem:[%s1854 + $0x5e0] sm:%s1846] %v2043
                %v2045 = vld [vmem:[%s1853 + $0x17c0] sm:%s1846]
                %2046 = vst [vmem:[%s1854 + $0x5f0] sm:%s1846] %v2045
                %v2047 = vld [vmem:[%s1853 + $0x1800] sm:%s1846]
                %2048 = vst [vmem:[%s1854 + $0x600] sm:%s1846] %v2047
                %v2049 = vld [vmem:[%s1853 + $0x1840] sm:%s1846]
                %2050 = vst [vmem:[%s1854 + $0x610] sm:%s1846] %v2049
                %v2051 = vld [vmem:[%s1853 + $0x1880] sm:%s1846]
                %2052 = vst [vmem:[%s1854 + $0x620] sm:%s1846] %v2051
                %v2053 = vld [vmem:[%s1853 + $0x18c0] sm:%s1846]
                %2054 = vst [vmem:[%s1854 + $0x630] sm:%s1846] %v2053
                %v2055 = vld [vmem:[%s1853 + $0x1900] sm:%s1846]
                %2056 = vst [vmem:[%s1854 + $0x640] sm:%s1846] %v2055
                %v2057 = vld [vmem:[%s1853 + $0x1940] sm:%s1846]
                %2058 = vst [vmem:[%s1854 + $0x650] sm:%s1846] %v2057
                %v2059 = vld [vmem:[%s1853 + $0x1980] sm:%s1846]
                %2060 = vst [vmem:[%s1854 + $0x660] sm:%s1846] %v2059
                %v2061 = vld [vmem:[%s1853 + $0x19c0] sm:%s1846]
                %2062 = vst [vmem:[%s1854 + $0x670] sm:%s1846] %v2061
                %v2063 = vld [vmem:[%s1853 + $0x1a00] sm:%s1846]
                %2064 = vst [vmem:[%s1854 + $0x680] sm:%s1846] %v2063
                %v2065 = vld [vmem:[%s1853 + $0x1a40] sm:%s1846]
                %2066 = vst [vmem:[%s1854 + $0x690] sm:%s1846] %v2065
                %v2067 = vld [vmem:[%s1853 + $0x1a80] sm:%s1846]
                %2068 = vst [vmem:[%s1854 + $0x6a0] sm:%s1846] %v2067
                %v2069 = vld [vmem:[%s1853 + $0x1ac0] sm:%s1846]
                %2070 = vst [vmem:[%s1854 + $0x6b0] sm:%s1846] %v2069
                %v2071 = vld [vmem:[%s1853 + $0x1b00] sm:%s1846]
                %2072 = vst [vmem:[%s1854 + $0x6c0] sm:%s1846] %v2071
                %v2073 = vld [vmem:[%s1853 + $0x1b40] sm:%s1846]
                %2074 = vst [vmem:[%s1854 + $0x6d0] sm:%s1846] %v2073
                %v2075 = vld [vmem:[%s1853 + $0x1b80] sm:%s1846]
                %2076 = vst [vmem:[%s1854 + $0x6e0] sm:%s1846] %v2075
                %v2077 = vld [vmem:[%s1853 + $0x1bc0] sm:%s1846]
                %2078 = vst [vmem:[%s1854 + $0x6f0] sm:%s1846] %v2077
                %v2079 = vld [vmem:[%s1853 + $0x1c00] sm:%s1846]
                %2080 = vst [vmem:[%s1854 + $0x700] sm:%s1846] %v2079
                %v2081 = vld [vmem:[%s1853 + $0x1c40] sm:%s1846]
                %2082 = vst [vmem:[%s1854 + $0x710] sm:%s1846] %v2081
                %v2083 = vld [vmem:[%s1853 + $0x1c80] sm:%s1846]
                %2084 = vst [vmem:[%s1854 + $0x720] sm:%s1846] %v2083
                %v2085 = vld [vmem:[%s1853 + $0x1cc0] sm:%s1846]
                %2086 = vst [vmem:[%s1854 + $0x730] sm:%s1846] %v2085
                %v2087 = vld [vmem:[%s1853 + $0x1d00] sm:%s1846]
                %2088 = vst [vmem:[%s1854 + $0x740] sm:%s1846] %v2087
                %v2089 = vld [vmem:[%s1853 + $0x1d40] sm:%s1846]
                %2090 = vst [vmem:[%s1854 + $0x750] sm:%s1846] %v2089
                %v2091 = vld [vmem:[%s1853 + $0x1d80] sm:%s1846]
                %2092 = vst [vmem:[%s1854 + $0x760] sm:%s1846] %v2091
                %v2093 = vld [vmem:[%s1853 + $0x1dc0] sm:%s1846]
                %2094 = vst [vmem:[%s1854 + $0x770] sm:%s1846] %v2093
                %v2095 = vld [vmem:[%s1853 + $0x1e00] sm:%s1846]
                %2096 = vst [vmem:[%s1854 + $0x780] sm:%s1846] %v2095
                %v2097 = vld [vmem:[%s1853 + $0x1e40] sm:%s1846]
                %2098 = vst [vmem:[%s1854 + $0x790] sm:%s1846] %v2097
                %v2099 = vld [vmem:[%s1853 + $0x1e80] sm:%s1846]
                %2100 = vst [vmem:[%s1854 + $0x7a0] sm:%s1846] %v2099
                %v2101 = vld [vmem:[%s1853 + $0x1ec0] sm:%s1846]
                %2102 = vst [vmem:[%s1854 + $0x7b0] sm:%s1846] %v2101
                %v2103 = vld [vmem:[%s1853 + $0x1f00] sm:%s1846]
                %2104 = vst [vmem:[%s1854 + $0x7c0] sm:%s1846] %v2103
                %v2105 = vld [vmem:[%s1853 + $0x1f40] sm:%s1846]
                %2106 = vst [vmem:[%s1854 + $0x7d0] sm:%s1846] %v2105
                %v2107 = vld [vmem:[%s1853 + $0x1f80] sm:%s1846]
                %2108 = vst [vmem:[%s1854 + $0x7e0] sm:%s1846] %v2107
                %v2109 = vld [vmem:[%s1853 + $0x1fc0] sm:%s1846]
                %2110 = vst [vmem:[%s1854 + $0x7f0] sm:%s1846] %v2109
                %v2111 = vld [vmem:[%s1853 + $0x2000] sm:%s1846]
                %2112 = vst [vmem:[%s1854 + $0x800] sm:%s1846] %v2111
                %v2113 = vld [vmem:[%s1853 + $0x2040] sm:%s1846]
                %2114 = vst [vmem:[%s1854 + $0x810] sm:%s1846] %v2113
                %v2115 = vld [vmem:[%s1853 + $0x2080] sm:%s1846]
                %2116 = vst [vmem:[%s1854 + $0x820] sm:%s1846] %v2115
                %v2117 = vld [vmem:[%s1853 + $0x20c0] sm:%s1846]
                %2118 = vst [vmem:[%s1854 + $0x830] sm:%s1846] %v2117
                %v2119 = vld [vmem:[%s1853 + $0x2100] sm:%s1846]
                %2120 = vst [vmem:[%s1854 + $0x840] sm:%s1846] %v2119
                %v2121 = vld [vmem:[%s1853 + $0x2140] sm:%s1846]
                %2122 = vst [vmem:[%s1854 + $0x850] sm:%s1846] %v2121
                %v2123 = vld [vmem:[%s1853 + $0x2180] sm:%s1846]
                %2124 = vst [vmem:[%s1854 + $0x860] sm:%s1846] %v2123
                %v2125 = vld [vmem:[%s1853 + $0x21c0] sm:%s1846]
                %2126 = vst [vmem:[%s1854 + $0x870] sm:%s1846] %v2125
                %v2127 = vld [vmem:[%s1853 + $0x2200] sm:%s1846]
                %2128 = vst [vmem:[%s1854 + $0x880] sm:%s1846] %v2127
                %v2129 = vld [vmem:[%s1853 + $0x2240] sm:%s1846]
                %2130 = vst [vmem:[%s1854 + $0x890] sm:%s1846] %v2129
                %v2131 = vld [vmem:[%s1853 + $0x2280] sm:%s1846]
                %2132 = vst [vmem:[%s1854 + $0x8a0] sm:%s1846] %v2131
                %v2133 = vld [vmem:[%s1853 + $0x22c0] sm:%s1846]
                %2134 = vst [vmem:[%s1854 + $0x8b0] sm:%s1846] %v2133
                %v2135 = vld [vmem:[%s1853 + $0x2300] sm:%s1846]
                %2136 = vst [vmem:[%s1854 + $0x8c0] sm:%s1846] %v2135
                %v2137 = vld [vmem:[%s1853 + $0x2340] sm:%s1846]
                %2138 = vst [vmem:[%s1854 + $0x8d0] sm:%s1846] %v2137
                %v2139 = vld [vmem:[%s1853 + $0x2380] sm:%s1846]
                %2140 = vst [vmem:[%s1854 + $0x8e0] sm:%s1846] %v2139
                %v2141 = vld [vmem:[%s1853 + $0x23c0] sm:%s1846]
                %2142 = vst [vmem:[%s1854 + $0x8f0] sm:%s1846] %v2141
                %v2143 = vld [vmem:[%s1853 + $0x2400] sm:%s1846]
                %2144 = vst [vmem:[%s1854 + $0x900] sm:%s1846] %v2143
                %v2145 = vld [vmem:[%s1853 + $0x2440] sm:%s1846]
                %2146 = vst [vmem:[%s1854 + $0x910] sm:%s1846] %v2145
                %v2147 = vld [vmem:[%s1853 + $0x2480] sm:%s1846]
                %2148 = vst [vmem:[%s1854 + $0x920] sm:%s1846] %v2147
                %v2149 = vld [vmem:[%s1853 + $0x24c0] sm:%s1846]
                %2150 = vst [vmem:[%s1854 + $0x930] sm:%s1846] %v2149
                %v2151 = vld [vmem:[%s1853 + $0x2500] sm:%s1846]
                %2152 = vst [vmem:[%s1854 + $0x940] sm:%s1846] %v2151
                %v2153 = vld [vmem:[%s1853 + $0x2540] sm:%s1846]
                %2154 = vst [vmem:[%s1854 + $0x950] sm:%s1846] %v2153
                %v2155 = vld [vmem:[%s1853 + $0x2580] sm:%s1846]
                %2156 = vst [vmem:[%s1854 + $0x960] sm:%s1846] %v2155
                %v2157 = vld [vmem:[%s1853 + $0x25c0] sm:%s1846]
                %2158 = vst [vmem:[%s1854 + $0x970] sm:%s1846] %v2157
                %v2159 = vld [vmem:[%s1853 + $0x2600] sm:%s1846]
                %2160 = vst [vmem:[%s1854 + $0x980] sm:%s1846] %v2159
                %v2161 = vld [vmem:[%s1853 + $0x2640] sm:%s1846]
                %2162 = vst [vmem:[%s1854 + $0x990] sm:%s1846] %v2161
                %v2163 = vld [vmem:[%s1853 + $0x2680] sm:%s1846]
                %2164 = vst [vmem:[%s1854 + $0x9a0] sm:%s1846] %v2163
                %v2165 = vld [vmem:[%s1853 + $0x26c0] sm:%s1846]
                %2166 = vst [vmem:[%s1854 + $0x9b0] sm:%s1846] %v2165
                %v2167 = vld [vmem:[%s1853 + $0x2700] sm:%s1846]
                %2168 = vst [vmem:[%s1854 + $0x9c0] sm:%s1846] %v2167
                %v2169 = vld [vmem:[%s1853 + $0x2740] sm:%s1846]
                %2170 = vst [vmem:[%s1854 + $0x9d0] sm:%s1846] %v2169
                %v2171 = vld [vmem:[%s1853 + $0x2780] sm:%s1846]
                %2172 = vst [vmem:[%s1854 + $0x9e0] sm:%s1846] %v2171
                %v2173 = vld [vmem:[%s1853 + $0x27c0] sm:%s1846]
                %2174 = vst [vmem:[%s1854 + $0x9f0] sm:%s1846] %v2173
                %v2175 = vld [vmem:[%s1853 + $0x2800] sm:%s1846]
                %2176 = vst [vmem:[%s1854 + $0xa00] sm:%s1846] %v2175
                %v2177 = vld [vmem:[%s1853 + $0x2840] sm:%s1846]
                %2178 = vst [vmem:[%s1854 + $0xa10] sm:%s1846] %v2177
                %v2179 = vld [vmem:[%s1853 + $0x2880] sm:%s1846]
                %2180 = vst [vmem:[%s1854 + $0xa20] sm:%s1846] %v2179
                %v2181 = vld [vmem:[%s1853 + $0x28c0] sm:%s1846]
                %2182 = vst [vmem:[%s1854 + $0xa30] sm:%s1846] %v2181
                %v2183 = vld [vmem:[%s1853 + $0x2900] sm:%s1846]
                %2184 = vst [vmem:[%s1854 + $0xa40] sm:%s1846] %v2183
                %v2185 = vld [vmem:[%s1853 + $0x2940] sm:%s1846]
                %2186 = vst [vmem:[%s1854 + $0xa50] sm:%s1846] %v2185
                %v2187 = vld [vmem:[%s1853 + $0x2980] sm:%s1846]
                %2188 = vst [vmem:[%s1854 + $0xa60] sm:%s1846] %v2187
                %v2189 = vld [vmem:[%s1853 + $0x29c0] sm:%s1846]
                %2190 = vst [vmem:[%s1854 + $0xa70] sm:%s1846] %v2189
                %v2191 = vld [vmem:[%s1853 + $0x2a00] sm:%s1846]
                %2192 = vst [vmem:[%s1854 + $0xa80] sm:%s1846] %v2191
                %v2193 = vld [vmem:[%s1853 + $0x2a40] sm:%s1846]
                %2194 = vst [vmem:[%s1854 + $0xa90] sm:%s1846] %v2193
                %v2195 = vld [vmem:[%s1853 + $0x2a80] sm:%s1846]
                %2196 = vst [vmem:[%s1854 + $0xaa0] sm:%s1846] %v2195
                %v2197 = vld [vmem:[%s1853 + $0x2ac0] sm:%s1846]
                %2198 = vst [vmem:[%s1854 + $0xab0] sm:%s1846] %v2197
                %v2199 = vld [vmem:[%s1853 + $0x2b00] sm:%s1846]
                %2200 = vst [vmem:[%s1854 + $0xac0] sm:%s1846] %v2199
                %v2201 = vld [vmem:[%s1853 + $0x2b40] sm:%s1846]
                %2202 = vst [vmem:[%s1854 + $0xad0] sm:%s1846] %v2201
                %v2203 = vld [vmem:[%s1853 + $0x2b80] sm:%s1846]
                %2204 = vst [vmem:[%s1854 + $0xae0] sm:%s1846] %v2203
                %v2205 = vld [vmem:[%s1853 + $0x2bc0] sm:%s1846]
                %2206 = vst [vmem:[%s1854 + $0xaf0] sm:%s1846] %v2205
                %v2207 = vld [vmem:[%s1853 + $0x2c00] sm:%s1846]
                %2208 = vst [vmem:[%s1854 + $0xb00] sm:%s1846] %v2207
                %v2209 = vld [vmem:[%s1853 + $0x2c40] sm:%s1846]
                %2210 = vst [vmem:[%s1854 + $0xb10] sm:%s1846] %v2209
                %v2211 = vld [vmem:[%s1853 + $0x2c80] sm:%s1846]
                %2212 = vst [vmem:[%s1854 + $0xb20] sm:%s1846] %v2211
                %v2213 = vld [vmem:[%s1853 + $0x2cc0] sm:%s1846]
                %2214 = vst [vmem:[%s1854 + $0xb30] sm:%s1846] %v2213
                %v2215 = vld [vmem:[%s1853 + $0x2d00] sm:%s1846]
                %2216 = vst [vmem:[%s1854 + $0xb40] sm:%s1846] %v2215
                %v2217 = vld [vmem:[%s1853 + $0x2d40] sm:%s1846]
                %2218 = vst [vmem:[%s1854 + $0xb50] sm:%s1846] %v2217
                %v2219 = vld [vmem:[%s1853 + $0x2d80] sm:%s1846]
                %2220 = vst [vmem:[%s1854 + $0xb60] sm:%s1846] %v2219
                %v2221 = vld [vmem:[%s1853 + $0x2dc0] sm:%s1846]
                %2222 = vst [vmem:[%s1854 + $0xb70] sm:%s1846] %v2221
                %v2223 = vld [vmem:[%s1853 + $0x2e00] sm:%s1846]
                %2224 = vst [vmem:[%s1854 + $0xb80] sm:%s1846] %v2223
                %v2225 = vld [vmem:[%s1853 + $0x2e40] sm:%s1846]
                %2226 = vst [vmem:[%s1854 + $0xb90] sm:%s1846] %v2225
                %v2227 = vld [vmem:[%s1853 + $0x2e80] sm:%s1846]
                %2228 = vst [vmem:[%s1854 + $0xba0] sm:%s1846] %v2227
                %v2229 = vld [vmem:[%s1853 + $0x2ec0] sm:%s1846]
                %2230 = vst [vmem:[%s1854 + $0xbb0] sm:%s1846] %v2229
                %v2231 = vld [vmem:[%s1853 + $0x2f00] sm:%s1846]
                %2232 = vst [vmem:[%s1854 + $0xbc0] sm:%s1846] %v2231
                %v2233 = vld [vmem:[%s1853 + $0x2f40] sm:%s1846]
                %2234 = vst [vmem:[%s1854 + $0xbd0] sm:%s1846] %v2233
                %v2235 = vld [vmem:[%s1853 + $0x2f80] sm:%s1846]
                %2236 = vst [vmem:[%s1854 + $0xbe0] sm:%s1846] %v2235
                %v2237 = vld [vmem:[%s1853 + $0x2fc0] sm:%s1846]
                %2238 = vst [vmem:[%s1854 + $0xbf0] sm:%s1846] %v2237
                %v2239 = vld [vmem:[%s1853 + $0x3000] sm:%s1846]
                %2240 = vst [vmem:[%s1854 + $0xc00] sm:%s1846] %v2239
                %v2241 = vld [vmem:[%s1853 + $0x3040] sm:%s1846]
                %2242 = vst [vmem:[%s1854 + $0xc10] sm:%s1846] %v2241
                %v2243 = vld [vmem:[%s1853 + $0x3080] sm:%s1846]
                %2244 = vst [vmem:[%s1854 + $0xc20] sm:%s1846] %v2243
                %v2245 = vld [vmem:[%s1853 + $0x30c0] sm:%s1846]
                %2246 = vst [vmem:[%s1854 + $0xc30] sm:%s1846] %v2245
                %v2247 = vld [vmem:[%s1853 + $0x3100] sm:%s1846]
                %2248 = vst [vmem:[%s1854 + $0xc40] sm:%s1846] %v2247
                %v2249 = vld [vmem:[%s1853 + $0x3140] sm:%s1846]
                %2250 = vst [vmem:[%s1854 + $0xc50] sm:%s1846] %v2249
                %v2251 = vld [vmem:[%s1853 + $0x3180] sm:%s1846]
                %2252 = vst [vmem:[%s1854 + $0xc60] sm:%s1846] %v2251
                %v2253 = vld [vmem:[%s1853 + $0x31c0] sm:%s1846]
                %2254 = vst [vmem:[%s1854 + $0xc70] sm:%s1846] %v2253
                %v2255 = vld [vmem:[%s1853 + $0x3200] sm:%s1846]
                %2256 = vst [vmem:[%s1854 + $0xc80] sm:%s1846] %v2255
                %v2257 = vld [vmem:[%s1853 + $0x3240] sm:%s1846]
                %2258 = vst [vmem:[%s1854 + $0xc90] sm:%s1846] %v2257
                %v2259 = vld [vmem:[%s1853 + $0x3280] sm:%s1846]
                %2260 = vst [vmem:[%s1854 + $0xca0] sm:%s1846] %v2259
                %v2261 = vld [vmem:[%s1853 + $0x32c0] sm:%s1846]
                %2262 = vst [vmem:[%s1854 + $0xcb0] sm:%s1846] %v2261
                %v2263 = vld [vmem:[%s1853 + $0x3300] sm:%s1846]
                %2264 = vst [vmem:[%s1854 + $0xcc0] sm:%s1846] %v2263
                %v2265 = vld [vmem:[%s1853 + $0x3340] sm:%s1846]
                %2266 = vst [vmem:[%s1854 + $0xcd0] sm:%s1846] %v2265
                %v2267 = vld [vmem:[%s1853 + $0x3380] sm:%s1846]
                %2268 = vst [vmem:[%s1854 + $0xce0] sm:%s1846] %v2267
                %v2269 = vld [vmem:[%s1853 + $0x33c0] sm:%s1846]
                %2270 = vst [vmem:[%s1854 + $0xcf0] sm:%s1846] %v2269
                %v2271 = vld [vmem:[%s1853 + $0x3400] sm:%s1846]
                %2272 = vst [vmem:[%s1854 + $0xd00] sm:%s1846] %v2271
                %v2273 = vld [vmem:[%s1853 + $0x3440] sm:%s1846]
                %2274 = vst [vmem:[%s1854 + $0xd10] sm:%s1846] %v2273
                %v2275 = vld [vmem:[%s1853 + $0x3480] sm:%s1846]
                %2276 = vst [vmem:[%s1854 + $0xd20] sm:%s1846] %v2275
                %v2277 = vld [vmem:[%s1853 + $0x34c0] sm:%s1846]
                %2278 = vst [vmem:[%s1854 + $0xd30] sm:%s1846] %v2277
                %v2279 = vld [vmem:[%s1853 + $0x3500] sm:%s1846]
                %2280 = vst [vmem:[%s1854 + $0xd40] sm:%s1846] %v2279
                %v2281 = vld [vmem:[%s1853 + $0x3540] sm:%s1846]
                %2282 = vst [vmem:[%s1854 + $0xd50] sm:%s1846] %v2281
                %v2283 = vld [vmem:[%s1853 + $0x3580] sm:%s1846]
                %2284 = vst [vmem:[%s1854 + $0xd60] sm:%s1846] %v2283
                %v2285 = vld [vmem:[%s1853 + $0x35c0] sm:%s1846]
                %2286 = vst [vmem:[%s1854 + $0xd70] sm:%s1846] %v2285
                %v2287 = vld [vmem:[%s1853 + $0x3600] sm:%s1846]
                %2288 = vst [vmem:[%s1854 + $0xd80] sm:%s1846] %v2287
                %v2289 = vld [vmem:[%s1853 + $0x3640] sm:%s1846]
                %2290 = vst [vmem:[%s1854 + $0xd90] sm:%s1846] %v2289
                %v2291 = vld [vmem:[%s1853 + $0x3680] sm:%s1846]
                %2292 = vst [vmem:[%s1854 + $0xda0] sm:%s1846] %v2291
                %v2293 = vld [vmem:[%s1853 + $0x36c0] sm:%s1846]
                %2294 = vst [vmem:[%s1854 + $0xdb0] sm:%s1846] %v2293
                %v2295 = vld [vmem:[%s1853 + $0x3700] sm:%s1846]
                %2296 = vst [vmem:[%s1854 + $0xdc0] sm:%s1846] %v2295
                %v2297 = vld [vmem:[%s1853 + $0x3740] sm:%s1846]
                %2298 = vst [vmem:[%s1854 + $0xdd0] sm:%s1846] %v2297
                %v2299 = vld [vmem:[%s1853 + $0x3780] sm:%s1846]
                %2300 = vst [vmem:[%s1854 + $0xde0] sm:%s1846] %v2299
                %v2301 = vld [vmem:[%s1853 + $0x37c0] sm:%s1846]
                %2302 = vst [vmem:[%s1854 + $0xdf0] sm:%s1846] %v2301
                %v2303 = vld [vmem:[%s1853 + $0x3800] sm:%s1846]
                %2304 = vst [vmem:[%s1854 + $0xe00] sm:%s1846] %v2303
                %v2305 = vld [vmem:[%s1853 + $0x3840] sm:%s1846]
                %2306 = vst [vmem:[%s1854 + $0xe10] sm:%s1846] %v2305
                %v2307 = vld [vmem:[%s1853 + $0x3880] sm:%s1846]
                %2308 = vst [vmem:[%s1854 + $0xe20] sm:%s1846] %v2307
                %v2309 = vld [vmem:[%s1853 + $0x38c0] sm:%s1846]
                %2310 = vst [vmem:[%s1854 + $0xe30] sm:%s1846] %v2309
                %v2311 = vld [vmem:[%s1853 + $0x3900] sm:%s1846]
                %2312 = vst [vmem:[%s1854 + $0xe40] sm:%s1846] %v2311
                %v2313 = vld [vmem:[%s1853 + $0x3940] sm:%s1846]
                %2314 = vst [vmem:[%s1854 + $0xe50] sm:%s1846] %v2313
                %v2315 = vld [vmem:[%s1853 + $0x3980] sm:%s1846]
                %2316 = vst [vmem:[%s1854 + $0xe60] sm:%s1846] %v2315
                %v2317 = vld [vmem:[%s1853 + $0x39c0] sm:%s1846]
                %2318 = vst [vmem:[%s1854 + $0xe70] sm:%s1846] %v2317
                %v2319 = vld [vmem:[%s1853 + $0x3a00] sm:%s1846]
                %2320 = vst [vmem:[%s1854 + $0xe80] sm:%s1846] %v2319
                %v2321 = vld [vmem:[%s1853 + $0x3a40] sm:%s1846]
                %2322 = vst [vmem:[%s1854 + $0xe90] sm:%s1846] %v2321
                %v2323 = vld [vmem:[%s1853 + $0x3a80] sm:%s1846]
                %2324 = vst [vmem:[%s1854 + $0xea0] sm:%s1846] %v2323
                %v2325 = vld [vmem:[%s1853 + $0x3ac0] sm:%s1846]
                %2326 = vst [vmem:[%s1854 + $0xeb0] sm:%s1846] %v2325
                %v2327 = vld [vmem:[%s1853 + $0x3b00] sm:%s1846]
                %2328 = vst [vmem:[%s1854 + $0xec0] sm:%s1846] %v2327
                %v2329 = vld [vmem:[%s1853 + $0x3b40] sm:%s1846]
                %2330 = vst [vmem:[%s1854 + $0xed0] sm:%s1846] %v2329
                %v2331 = vld [vmem:[%s1853 + $0x3b80] sm:%s1846]
                %2332 = vst [vmem:[%s1854 + $0xee0] sm:%s1846] %v2331
                %v2333 = vld [vmem:[%s1853 + $0x3bc0] sm:%s1846]
                %2334 = vst [vmem:[%s1854 + $0xef0] sm:%s1846] %v2333
                %v2335 = vld [vmem:[%s1853 + $0x3c00] sm:%s1846]
                %2336 = vst [vmem:[%s1854 + $0xf00] sm:%s1846] %v2335
                %v2337 = vld [vmem:[%s1853 + $0x3c40] sm:%s1846]
                %2338 = vst [vmem:[%s1854 + $0xf10] sm:%s1846] %v2337
                %v2339 = vld [vmem:[%s1853 + $0x3c80] sm:%s1846]
                %2340 = vst [vmem:[%s1854 + $0xf20] sm:%s1846] %v2339
                %v2341 = vld [vmem:[%s1853 + $0x3cc0] sm:%s1846]
                %2342 = vst [vmem:[%s1854 + $0xf30] sm:%s1846] %v2341
                %v2343 = vld [vmem:[%s1853 + $0x3d00] sm:%s1846]
                %2344 = vst [vmem:[%s1854 + $0xf40] sm:%s1846] %v2343
                %v2345 = vld [vmem:[%s1853 + $0x3d40] sm:%s1846]
                %2346 = vst [vmem:[%s1854 + $0xf50] sm:%s1846] %v2345
                %v2347 = vld [vmem:[%s1853 + $0x3d80] sm:%s1846]
                %2348 = vst [vmem:[%s1854 + $0xf60] sm:%s1846] %v2347
                %v2349 = vld [vmem:[%s1853 + $0x3dc0] sm:%s1846]
                %2350 = vst [vmem:[%s1854 + $0xf70] sm:%s1846] %v2349
                %v2351 = vld [vmem:[%s1853 + $0x3e00] sm:%s1846]
                %2352 = vst [vmem:[%s1854 + $0xf80] sm:%s1846] %v2351
                %v2353 = vld [vmem:[%s1853 + $0x3e40] sm:%s1846]
                %2354 = vst [vmem:[%s1854 + $0xf90] sm:%s1846] %v2353
                %v2355 = vld [vmem:[%s1853 + $0x3e80] sm:%s1846]
                %2356 = vst [vmem:[%s1854 + $0xfa0] sm:%s1846] %v2355
                %v2357 = vld [vmem:[%s1853 + $0x3ec0] sm:%s1846]
                %2358 = vst [vmem:[%s1854 + $0xfb0] sm:%s1846] %v2357
                %v2359 = vld [vmem:[%s1853 + $0x3f00] sm:%s1846]
                %2360 = vst [vmem:[%s1854 + $0xfc0] sm:%s1846] %v2359
                %v2361 = vld [vmem:[%s1853 + $0x3f40] sm:%s1846]
                %2362 = vst [vmem:[%s1854 + $0xfd0] sm:%s1846] %v2361
                %v2363 = vld [vmem:[%s1853 + $0x3f80] sm:%s1846]
                %2364 = vst [vmem:[%s1854 + $0xfe0] sm:%s1846] %v2363
                %v2365 = vld [vmem:[%s1853 + $0x3fc0] sm:%s1846]
                %2366 = vst [vmem:[%s1854 + $0xff0] sm:%s1846] %v2365
                %v2367 = vld [vmem:[%s1853 + $0x4000] sm:%s1846]
                %2368 = vst [vmem:[%s1854 + $0x1000] sm:%s1846] %v2367
                %v2369 = vld [vmem:[%s1853 + $0x4040] sm:%s1846]
                %2370 = vst [vmem:[%s1854 + $0x1010] sm:%s1846] %v2369
                %v2371 = vld [vmem:[%s1853 + $0x4080] sm:%s1846]
                %2372 = vst [vmem:[%s1854 + $0x1020] sm:%s1846] %v2371
                %v2373 = vld [vmem:[%s1853 + $0x40c0] sm:%s1846]
                %2374 = vst [vmem:[%s1854 + $0x1030] sm:%s1846] %v2373
                %v2375 = vld [vmem:[%s1853 + $0x4100] sm:%s1846]
                %2376 = vst [vmem:[%s1854 + $0x1040] sm:%s1846] %v2375
                %v2377 = vld [vmem:[%s1853 + $0x4140] sm:%s1846]
                %2378 = vst [vmem:[%s1854 + $0x1050] sm:%s1846] %v2377
                %v2379 = vld [vmem:[%s1853 + $0x4180] sm:%s1846]
                %2380 = vst [vmem:[%s1854 + $0x1060] sm:%s1846] %v2379
                %v2381 = vld [vmem:[%s1853 + $0x41c0] sm:%s1846]
                %2382 = vst [vmem:[%s1854 + $0x1070] sm:%s1846] %v2381
                %v2383 = vld [vmem:[%s1853 + $0x4200] sm:%s1846]
                %2384 = vst [vmem:[%s1854 + $0x1080] sm:%s1846] %v2383
                %v2385 = vld [vmem:[%s1853 + $0x4240] sm:%s1846]
                %2386 = vst [vmem:[%s1854 + $0x1090] sm:%s1846] %v2385
                %v2387 = vld [vmem:[%s1853 + $0x4280] sm:%s1846]
                %2388 = vst [vmem:[%s1854 + $0x10a0] sm:%s1846] %v2387
                %v2389 = vld [vmem:[%s1853 + $0x42c0] sm:%s1846]
                %2390 = vst [vmem:[%s1854 + $0x10b0] sm:%s1846] %v2389
                %v2391 = vld [vmem:[%s1853 + $0x4300] sm:%s1846]
                %2392 = vst [vmem:[%s1854 + $0x10c0] sm:%s1846] %v2391
                %v2393 = vld [vmem:[%s1853 + $0x4340] sm:%s1846]
                %2394 = vst [vmem:[%s1854 + $0x10d0] sm:%s1846] %v2393
                %v2395 = vld [vmem:[%s1853 + $0x4380] sm:%s1846]
                %2396 = vst [vmem:[%s1854 + $0x10e0] sm:%s1846] %v2395
                %v2397 = vld [vmem:[%s1853 + $0x43c0] sm:%s1846]
                %2398 = vst [vmem:[%s1854 + $0x10f0] sm:%s1846] %v2397
                %v2399 = vld [vmem:[%s1853 + $0x4400] sm:%s1846]
                %2400 = vst [vmem:[%s1854 + $0x1100] sm:%s1846] %v2399
                %v2401 = vld [vmem:[%s1853 + $0x4440] sm:%s1846]
                %2402 = vst [vmem:[%s1854 + $0x1110] sm:%s1846] %v2401
                %v2403 = vld [vmem:[%s1853 + $0x4480] sm:%s1846]
                %2404 = vst [vmem:[%s1854 + $0x1120] sm:%s1846] %v2403
                %v2405 = vld [vmem:[%s1853 + $0x44c0] sm:%s1846]
                %2406 = vst [vmem:[%s1854 + $0x1130] sm:%s1846] %v2405
                %v2407 = vld [vmem:[%s1853 + $0x4500] sm:%s1846]
                %2408 = vst [vmem:[%s1854 + $0x1140] sm:%s1846] %v2407
                %v2409 = vld [vmem:[%s1853 + $0x4540] sm:%s1846]
                %2410 = vst [vmem:[%s1854 + $0x1150] sm:%s1846] %v2409
                %v2411 = vld [vmem:[%s1853 + $0x4580] sm:%s1846]
                %2412 = vst [vmem:[%s1854 + $0x1160] sm:%s1846] %v2411
                %v2413 = vld [vmem:[%s1853 + $0x45c0] sm:%s1846]
                %2414 = vst [vmem:[%s1854 + $0x1170] sm:%s1846] %v2413
                %v2415 = vld [vmem:[%s1853 + $0x4600] sm:%s1846]
                %2416 = vst [vmem:[%s1854 + $0x1180] sm:%s1846] %v2415
                %v2417 = vld [vmem:[%s1853 + $0x4640] sm:%s1846]
                %2418 = vst [vmem:[%s1854 + $0x1190] sm:%s1846] %v2417
                %v2419 = vld [vmem:[%s1853 + $0x4680] sm:%s1846]
                %2420 = vst [vmem:[%s1854 + $0x11a0] sm:%s1846] %v2419
                %v2421 = vld [vmem:[%s1853 + $0x46c0] sm:%s1846]
                %2422 = vst [vmem:[%s1854 + $0x11b0] sm:%s1846] %v2421
                %v2423 = vld [vmem:[%s1853 + $0x4700] sm:%s1846]
                %2424 = vst [vmem:[%s1854 + $0x11c0] sm:%s1846] %v2423
                %v2425 = vld [vmem:[%s1853 + $0x4740] sm:%s1846]
                %2426 = vst [vmem:[%s1854 + $0x11d0] sm:%s1846] %v2425
                %v2427 = vld [vmem:[%s1853 + $0x4780] sm:%s1846]
                %2428 = vst [vmem:[%s1854 + $0x11e0] sm:%s1846] %v2427
                %v2429 = vld [vmem:[%s1853 + $0x47c0] sm:%s1846]
                %2430 = vst [vmem:[%s1854 + $0x11f0] sm:%s1846] %v2429
                %v2431 = vld [vmem:[%s1853 + $0x4800] sm:%s1846]
                %2432 = vst [vmem:[%s1854 + $0x1200] sm:%s1846] %v2431
                %v2433 = vld [vmem:[%s1853 + $0x4840] sm:%s1846]
                %2434 = vst [vmem:[%s1854 + $0x1210] sm:%s1846] %v2433
                %v2435 = vld [vmem:[%s1853 + $0x4880] sm:%s1846]
                %2436 = vst [vmem:[%s1854 + $0x1220] sm:%s1846] %v2435
                %v2437 = vld [vmem:[%s1853 + $0x48c0] sm:%s1846]
                %2438 = vst [vmem:[%s1854 + $0x1230] sm:%s1846] %v2437
                %v2439 = vld [vmem:[%s1853 + $0x4900] sm:%s1846]
                %2440 = vst [vmem:[%s1854 + $0x1240] sm:%s1846] %v2439
                %v2441 = vld [vmem:[%s1853 + $0x4940] sm:%s1846]
                %2442 = vst [vmem:[%s1854 + $0x1250] sm:%s1846] %v2441
                %v2443 = vld [vmem:[%s1853 + $0x4980] sm:%s1846]
                %2444 = vst [vmem:[%s1854 + $0x1260] sm:%s1846] %v2443
                %v2445 = vld [vmem:[%s1853 + $0x49c0] sm:%s1846]
                %2446 = vst [vmem:[%s1854 + $0x1270] sm:%s1846] %v2445
                %v2447 = vld [vmem:[%s1853 + $0x4a00] sm:%s1846]
                %2448 = vst [vmem:[%s1854 + $0x1280] sm:%s1846] %v2447
                %v2449 = vld [vmem:[%s1853 + $0x4a40] sm:%s1846]
                %2450 = vst [vmem:[%s1854 + $0x1290] sm:%s1846] %v2449
                %v2451 = vld [vmem:[%s1853 + $0x4a80] sm:%s1846]
                %2452 = vst [vmem:[%s1854 + $0x12a0] sm:%s1846] %v2451
                %v2453 = vld [vmem:[%s1853 + $0x4ac0] sm:%s1846]
                %2454 = vst [vmem:[%s1854 + $0x12b0] sm:%s1846] %v2453
                %v2455 = vld [vmem:[%s1853 + $0x4b00] sm:%s1846]
                %2456 = vst [vmem:[%s1854 + $0x12c0] sm:%s1846] %v2455
                %v2457 = vld [vmem:[%s1853 + $0x4b40] sm:%s1846]
                %2458 = vst [vmem:[%s1854 + $0x12d0] sm:%s1846] %v2457
                %v2459 = vld [vmem:[%s1853 + $0x4b80] sm:%s1846]
                %2460 = vst [vmem:[%s1854 + $0x12e0] sm:%s1846] %v2459
                %v2461 = vld [vmem:[%s1853 + $0x4bc0] sm:%s1846]
                %2462 = vst [vmem:[%s1854 + $0x12f0] sm:%s1846] %v2461
                %v2463 = vld [vmem:[%s1853 + $0x4c00] sm:%s1846]
                %2464 = vst [vmem:[%s1854 + $0x1300] sm:%s1846] %v2463
                %v2465 = vld [vmem:[%s1853 + $0x4c40] sm:%s1846]
                %2466 = vst [vmem:[%s1854 + $0x1310] sm:%s1846] %v2465
                %v2467 = vld [vmem:[%s1853 + $0x4c80] sm:%s1846]
                %2468 = vst [vmem:[%s1854 + $0x1320] sm:%s1846] %v2467
                %v2469 = vld [vmem:[%s1853 + $0x4cc0] sm:%s1846]
                %2470 = vst [vmem:[%s1854 + $0x1330] sm:%s1846] %v2469
                %v2471 = vld [vmem:[%s1853 + $0x4d00] sm:%s1846]
                %2472 = vst [vmem:[%s1854 + $0x1340] sm:%s1846] %v2471
                %v2473 = vld [vmem:[%s1853 + $0x4d40] sm:%s1846]
                %2474 = vst [vmem:[%s1854 + $0x1350] sm:%s1846] %v2473
                %v2475 = vld [vmem:[%s1853 + $0x4d80] sm:%s1846]
                %2476 = vst [vmem:[%s1854 + $0x1360] sm:%s1846] %v2475
                %v2477 = vld [vmem:[%s1853 + $0x4dc0] sm:%s1846]
                %2478 = vst [vmem:[%s1854 + $0x1370] sm:%s1846] %v2477
                %v2479 = vld [vmem:[%s1853 + $0x4e00] sm:%s1846]
                %2480 = vst [vmem:[%s1854 + $0x1380] sm:%s1846] %v2479
                %v2481 = vld [vmem:[%s1853 + $0x4e40] sm:%s1846]
                %2482 = vst [vmem:[%s1854 + $0x1390] sm:%s1846] %v2481
                %v2483 = vld [vmem:[%s1853 + $0x4e80] sm:%s1846]
                %2484 = vst [vmem:[%s1854 + $0x13a0] sm:%s1846] %v2483
                %v2485 = vld [vmem:[%s1853 + $0x4ec0] sm:%s1846]
                %2486 = vst [vmem:[%s1854 + $0x13b0] sm:%s1846] %v2485
                %v2487 = vld [vmem:[%s1853 + $0x4f00] sm:%s1846]
                %2488 = vst [vmem:[%s1854 + $0x13c0] sm:%s1846] %v2487
                %v2489 = vld [vmem:[%s1853 + $0x4f40] sm:%s1846]
                %2490 = vst [vmem:[%s1854 + $0x13d0] sm:%s1846] %v2489
                %v2491 = vld [vmem:[%s1853 + $0x4f80] sm:%s1846]
                %2492 = vst [vmem:[%s1854 + $0x13e0] sm:%s1846] %v2491
                %v2493 = vld [vmem:[%s1853 + $0x4fc0] sm:%s1846]
                %2494 = vst [vmem:[%s1854 + $0x13f0] sm:%s1846] %v2493
                %v2495 = vld [vmem:[%s1853 + $0x5000] sm:%s1846]
                %2496 = vst [vmem:[%s1854 + $0x1400] sm:%s1846] %v2495
                %v2497 = vld [vmem:[%s1853 + $0x5040] sm:%s1846]
                %2498 = vst [vmem:[%s1854 + $0x1410] sm:%s1846] %v2497
                %v2499 = vld [vmem:[%s1853 + $0x5080] sm:%s1846]
                %2500 = vst [vmem:[%s1854 + $0x1420] sm:%s1846] %v2499
                %v2501 = vld [vmem:[%s1853 + $0x50c0] sm:%s1846]
                %2502 = vst [vmem:[%s1854 + $0x1430] sm:%s1846] %v2501
                %v2503 = vld [vmem:[%s1853 + $0x5100] sm:%s1846]
                %2504 = vst [vmem:[%s1854 + $0x1440] sm:%s1846] %v2503
                %v2505 = vld [vmem:[%s1853 + $0x5140] sm:%s1846]
                %2506 = vst [vmem:[%s1854 + $0x1450] sm:%s1846] %v2505
                %v2507 = vld [vmem:[%s1853 + $0x5180] sm:%s1846]
                %2508 = vst [vmem:[%s1854 + $0x1460] sm:%s1846] %v2507
                %v2509 = vld [vmem:[%s1853 + $0x51c0] sm:%s1846]
                %2510 = vst [vmem:[%s1854 + $0x1470] sm:%s1846] %v2509
                %v2511 = vld [vmem:[%s1853 + $0x5200] sm:%s1846]
                %2512 = vst [vmem:[%s1854 + $0x1480] sm:%s1846] %v2511
                %v2513 = vld [vmem:[%s1853 + $0x5240] sm:%s1846]
                %2514 = vst [vmem:[%s1854 + $0x1490] sm:%s1846] %v2513
                %v2515 = vld [vmem:[%s1853 + $0x5280] sm:%s1846]
                %2516 = vst [vmem:[%s1854 + $0x14a0] sm:%s1846] %v2515
                %v2517 = vld [vmem:[%s1853 + $0x52c0] sm:%s1846]
                %2518 = vst [vmem:[%s1854 + $0x14b0] sm:%s1846] %v2517
                %v2519 = vld [vmem:[%s1853 + $0x5300] sm:%s1846]
                %2520 = vst [vmem:[%s1854 + $0x14c0] sm:%s1846] %v2519
                %v2521 = vld [vmem:[%s1853 + $0x5340] sm:%s1846]
                %2522 = vst [vmem:[%s1854 + $0x14d0] sm:%s1846] %v2521
                %v2523 = vld [vmem:[%s1853 + $0x5380] sm:%s1846]
                %2524 = vst [vmem:[%s1854 + $0x14e0] sm:%s1846] %v2523
                %v2525 = vld [vmem:[%s1853 + $0x53c0] sm:%s1846]
                %2526 = vst [vmem:[%s1854 + $0x14f0] sm:%s1846] %v2525
                %v2527 = vld [vmem:[%s1853 + $0x5400] sm:%s1846]
                %2528 = vst [vmem:[%s1854 + $0x1500] sm:%s1846] %v2527
                %v2529 = vld [vmem:[%s1853 + $0x5440] sm:%s1846]
                %2530 = vst [vmem:[%s1854 + $0x1510] sm:%s1846] %v2529
                %v2531 = vld [vmem:[%s1853 + $0x5480] sm:%s1846]
                %2532 = vst [vmem:[%s1854 + $0x1520] sm:%s1846] %v2531
                %v2533 = vld [vmem:[%s1853 + $0x54c0] sm:%s1846]
                %2534 = vst [vmem:[%s1854 + $0x1530] sm:%s1846] %v2533
                %v2535 = vld [vmem:[%s1853 + $0x5500] sm:%s1846]
                %2536 = vst [vmem:[%s1854 + $0x1540] sm:%s1846] %v2535
                %v2537 = vld [vmem:[%s1853 + $0x5540] sm:%s1846]
                %2538 = vst [vmem:[%s1854 + $0x1550] sm:%s1846] %v2537
                %v2539 = vld [vmem:[%s1853 + $0x5580] sm:%s1846]
                %2540 = vst [vmem:[%s1854 + $0x1560] sm:%s1846] %v2539
                %v2541 = vld [vmem:[%s1853 + $0x55c0] sm:%s1846]
                %2542 = vst [vmem:[%s1854 + $0x1570] sm:%s1846] %v2541
                %v2543 = vld [vmem:[%s1853 + $0x5600] sm:%s1846]
                %2544 = vst [vmem:[%s1854 + $0x1580] sm:%s1846] %v2543
                %v2545 = vld [vmem:[%s1853 + $0x5640] sm:%s1846]
                %2546 = vst [vmem:[%s1854 + $0x1590] sm:%s1846] %v2545
                %v2547 = vld [vmem:[%s1853 + $0x5680] sm:%s1846]
                %2548 = vst [vmem:[%s1854 + $0x15a0] sm:%s1846] %v2547
                %v2549 = vld [vmem:[%s1853 + $0x56c0] sm:%s1846]
                %2550 = vst [vmem:[%s1854 + $0x15b0] sm:%s1846] %v2549
                %v2551 = vld [vmem:[%s1853 + $0x5700] sm:%s1846]
                %2552 = vst [vmem:[%s1854 + $0x15c0] sm:%s1846] %v2551
                %v2553 = vld [vmem:[%s1853 + $0x5740] sm:%s1846]
                %2554 = vst [vmem:[%s1854 + $0x15d0] sm:%s1846] %v2553
                %v2555 = vld [vmem:[%s1853 + $0x5780] sm:%s1846]
                %2556 = vst [vmem:[%s1854 + $0x15e0] sm:%s1846] %v2555
                %v2557 = vld [vmem:[%s1853 + $0x57c0] sm:%s1846]
                %2558 = vst [vmem:[%s1854 + $0x15f0] sm:%s1846] %v2557
                %v2559 = vld [vmem:[%s1853 + $0x5800] sm:%s1846]
                %2560 = vst [vmem:[%s1854 + $0x1600] sm:%s1846] %v2559
                %v2561 = vld [vmem:[%s1853 + $0x5840] sm:%s1846]
                %2562 = vst [vmem:[%s1854 + $0x1610] sm:%s1846] %v2561
                %v2563 = vld [vmem:[%s1853 + $0x5880] sm:%s1846]
                %2564 = vst [vmem:[%s1854 + $0x1620] sm:%s1846] %v2563
                %v2565 = vld [vmem:[%s1853 + $0x58c0] sm:%s1846]
                %2566 = vst [vmem:[%s1854 + $0x1630] sm:%s1846] %v2565
                %v2567 = vld [vmem:[%s1853 + $0x5900] sm:%s1846]
                %2568 = vst [vmem:[%s1854 + $0x1640] sm:%s1846] %v2567
                %v2569 = vld [vmem:[%s1853 + $0x5940] sm:%s1846]
                %2570 = vst [vmem:[%s1854 + $0x1650] sm:%s1846] %v2569
                %v2571 = vld [vmem:[%s1853 + $0x5980] sm:%s1846]
                %2572 = vst [vmem:[%s1854 + $0x1660] sm:%s1846] %v2571
                %v2573 = vld [vmem:[%s1853 + $0x59c0] sm:%s1846]
                %2574 = vst [vmem:[%s1854 + $0x1670] sm:%s1846] %v2573
                %v2575 = vld [vmem:[%s1853 + $0x5a00] sm:%s1846]
                %2576 = vst [vmem:[%s1854 + $0x1680] sm:%s1846] %v2575
                %v2577 = vld [vmem:[%s1853 + $0x5a40] sm:%s1846]
                %2578 = vst [vmem:[%s1854 + $0x1690] sm:%s1846] %v2577
                %v2579 = vld [vmem:[%s1853 + $0x5a80] sm:%s1846]
                %2580 = vst [vmem:[%s1854 + $0x16a0] sm:%s1846] %v2579
                %v2581 = vld [vmem:[%s1853 + $0x5ac0] sm:%s1846]
                %2582 = vst [vmem:[%s1854 + $0x16b0] sm:%s1846] %v2581
                %v2583 = vld [vmem:[%s1853 + $0x5b00] sm:%s1846]
                %2584 = vst [vmem:[%s1854 + $0x16c0] sm:%s1846] %v2583
                %v2585 = vld [vmem:[%s1853 + $0x5b40] sm:%s1846]
                %2586 = vst [vmem:[%s1854 + $0x16d0] sm:%s1846] %v2585
                %v2587 = vld [vmem:[%s1853 + $0x5b80] sm:%s1846]
                %2588 = vst [vmem:[%s1854 + $0x16e0] sm:%s1846] %v2587
                %v2589 = vld [vmem:[%s1853 + $0x5bc0] sm:%s1846]
                %2590 = vst [vmem:[%s1854 + $0x16f0] sm:%s1846] %v2589
                %v2591 = vld [vmem:[%s1853 + $0x5c00] sm:%s1846]
                %2592 = vst [vmem:[%s1854 + $0x1700] sm:%s1846] %v2591
                %v2593 = vld [vmem:[%s1853 + $0x5c40] sm:%s1846]
                %2594 = vst [vmem:[%s1854 + $0x1710] sm:%s1846] %v2593
                %v2595 = vld [vmem:[%s1853 + $0x5c80] sm:%s1846]
                %2596 = vst [vmem:[%s1854 + $0x1720] sm:%s1846] %v2595
                %v2597 = vld [vmem:[%s1853 + $0x5cc0] sm:%s1846]
                %2598 = vst [vmem:[%s1854 + $0x1730] sm:%s1846] %v2597
                %v2599 = vld [vmem:[%s1853 + $0x5d00] sm:%s1846]
                %2600 = vst [vmem:[%s1854 + $0x1740] sm:%s1846] %v2599
                %v2601 = vld [vmem:[%s1853 + $0x5d40] sm:%s1846]
                %2602 = vst [vmem:[%s1854 + $0x1750] sm:%s1846] %v2601
                %v2603 = vld [vmem:[%s1853 + $0x5d80] sm:%s1846]
                %2604 = vst [vmem:[%s1854 + $0x1760] sm:%s1846] %v2603
                %v2605 = vld [vmem:[%s1853 + $0x5dc0] sm:%s1846]
                %2606 = vst [vmem:[%s1854 + $0x1770] sm:%s1846] %v2605
                %v2607 = vld [vmem:[%s1853 + $0x5e00] sm:%s1846]
                %2608 = vst [vmem:[%s1854 + $0x1780] sm:%s1846] %v2607
                %v2609 = vld [vmem:[%s1853 + $0x5e40] sm:%s1846]
                %2610 = vst [vmem:[%s1854 + $0x1790] sm:%s1846] %v2609
                %v2611 = vld [vmem:[%s1853 + $0x5e80] sm:%s1846]
                %2612 = vst [vmem:[%s1854 + $0x17a0] sm:%s1846] %v2611
                %v2613 = vld [vmem:[%s1853 + $0x5ec0] sm:%s1846]
                %2614 = vst [vmem:[%s1854 + $0x17b0] sm:%s1846] %v2613
                %v2615 = vld [vmem:[%s1853 + $0x5f00] sm:%s1846]
                %2616 = vst [vmem:[%s1854 + $0x17c0] sm:%s1846] %v2615
                %v2617 = vld [vmem:[%s1853 + $0x5f40] sm:%s1846]
                %2618 = vst [vmem:[%s1854 + $0x17d0] sm:%s1846] %v2617
                %v2619 = vld [vmem:[%s1853 + $0x5f80] sm:%s1846]
                %2620 = vst [vmem:[%s1854 + $0x17e0] sm:%s1846] %v2619
                %v2621 = vld [vmem:[%s1853 + $0x5fc0] sm:%s1846]
                %2622 = vst [vmem:[%s1854 + $0x17f0] sm:%s1846] %v2621
                %v2623 = vld [vmem:[%s1853 + $0x6000] sm:%s1846]
                %2624 = vst [vmem:[%s1854 + $0x1800] sm:%s1846] %v2623
                %v2625 = vld [vmem:[%s1853 + $0x6040] sm:%s1846]
                %2626 = vst [vmem:[%s1854 + $0x1810] sm:%s1846] %v2625
                %v2627 = vld [vmem:[%s1853 + $0x6080] sm:%s1846]
                %2628 = vst [vmem:[%s1854 + $0x1820] sm:%s1846] %v2627
                %v2629 = vld [vmem:[%s1853 + $0x60c0] sm:%s1846]
                %2630 = vst [vmem:[%s1854 + $0x1830] sm:%s1846] %v2629
                %v2631 = vld [vmem:[%s1853 + $0x6100] sm:%s1846]
                %2632 = vst [vmem:[%s1854 + $0x1840] sm:%s1846] %v2631
                %v2633 = vld [vmem:[%s1853 + $0x6140] sm:%s1846]
                %2634 = vst [vmem:[%s1854 + $0x1850] sm:%s1846] %v2633
                %v2635 = vld [vmem:[%s1853 + $0x6180] sm:%s1846]
                %2636 = vst [vmem:[%s1854 + $0x1860] sm:%s1846] %v2635
                %v2637 = vld [vmem:[%s1853 + $0x61c0] sm:%s1846]
                %2638 = vst [vmem:[%s1854 + $0x1870] sm:%s1846] %v2637
              $region67: #{encoder_forward.5} parent=54 // loop_footer
                %s1852 = sadd.s32 1, %s1848
              $region68: #{encoder_forward.5} parent=54 // loop_footer_branch
                %1847 = sbr.rel target = $region64
              $region69: #{encoder_forward.5} parent=54 // loop_exit
                _
            $region55: #{encoder_forward.5} parent=39 // pred_fallthru
              _
          $region40: #{encoder_forward.5} parent=35 // pred_fallthru
            _
          %2639 = vnop
        $region36: #{encoder_forward.5} parent=31 // pred_fallthru
          _
        // Predicated region
        $region70: #{encoder_forward.5} parent=31 // pred_check
          %p2640 = pneg %p80
        $region71: #{encoder_forward.5} parent=31 // pred_check_branch
          %2642 = sbr.rel (%p2640) target = $region73
        $region72: #{encoder_forward.5} parent=31 // pred_region
          %s2643 = smul.u32 2, %s13
          %p2644 = scmp.lt.s32.totalorder %s2643, 7
          %s2645 = scalar_select %p2644, %s2643, 7
          %s2646 = scalar_lea.vmem %s2, %s2645
          %s2647 = smul.u32 2, %s13
        $region73: #{encoder_forward.5} parent=31 // pred_fallthru
          _
        // Predicated region
        $region74: #{encoder_forward.5} parent=31 // pred_check
          %p2648 = pneg %p106
        $region75: #{encoder_forward.5} parent=31 // pred_check_branch
          %2650 = sbr.rel (%p2648) target = $region77
        $region76: #{encoder_forward.5} parent=31 // pred_region
          %s2651 = smul.u32 32, %s13
          %p2652 = scmp.lt.s32.totalorder %s2651, 127
          %s2653 = scalar_select %p2652, %s2651, 127
          %s2654 = smul.addr %s2653, 8
          %s2655 = scalar_lea.vmem %s3, %s2654
          %s2656 = smul.u32 32, %s13
        $region77: #{encoder_forward.5} parent=31 // pred_fallthru
          _
      $region32: #{encoder_forward.5} parent=5 // pred_fallthru
        _
      %p2657 = scmp.le.s32.totalorder 1, %s13
      %p2658 = scmp.lt.s32.totalorder %s13, 5
      %p2659 = pnand %p2657, %p2658
      %p2660 = pneg %p2659
      // Predicated region
      $region78: #{encoder_forward.5} parent=5 // pred_check
        _
      $region79: #{encoder_forward.5} parent=5 // pred_check_branch
        %2662 = sbr.rel (%p2659) target = $region81
      $region80: #{encoder_forward.5} parent=5 // pred_region
        %s2663 = ssub.s32 %s13, 1
        %s2664 = sand.u32 %s47, 1
        %s2665 = sand.u32 %s47, 1
        %s2666 = smul.addr %s2665, 6272
        %s2667 = scalar_lea.vmem [#allocation3], %s2666
        // Predicated region
        $region82: #{encoder_forward.5} parent=80 // pred_check
          %p2668 = pneg %p60
        $region83: #{encoder_forward.5} parent=80 // pred_check_branch
          %2670 = sbr.rel (%p2668) target = $region85
        $region84: #{encoder_forward.5} parent=80 // pred_region
          _
        $region85: #{encoder_forward.5} parent=80 // pred_fallthru
          _
        %p2671 = pneg %p34
        %p2672 = pneg %p31
        %s2673 = sand.u32 %s47, 1
        %s2674 = sand.u32 %s47, 1
        %s2675 = smul.addr %s2674, 6272
        %s2676 = scalar_lea.vmem [#allocation3], %s2675
        %p2677 = pneg %p60
        %p2678 = pneg %p57
        %s2679 = smul.u32 2, %s18
        %p2680 = scmp.lt.s32.totalorder %s2679, 7
        %s2681 = scalar_select %p2680, %s2679, 7
        %s2682 = scalar_lea.vmem %s2, %s2681
        %p2683 = pneg %p86
        %p2684 = pneg %p83
        %s2685 = smul.u32 32, %s18
        %p2686 = scmp.lt.s32.totalorder %s2685, 127
        %s2687 = scalar_select %p2686, %s2685, 127
        %s2688 = smul.addr %s2687, 8
        %s2689 = scalar_lea.vmem %s3, %s2688
        %p2690 = pneg %p112
        %p2691 = pneg %p109
        %p2692 = pneg %p133
        %p2693 = pneg %p130
        %p2694 = pneg %p154
        %p2695 = pneg %p151
        %p2696 = pneg %p175
        %p2697 = pneg %p172
        %p2698 = pneg %p196
        %p2699 = pneg %p193
        %s2700 = smul.u32 2, %s18
        %s2701 = smul.u32 2, %s18
        %p2702 = scmp.lt.s32.totalorder %s2701, 7
        %s2703 = scalar_select %p2702, %s2701, 7
        %s2704 = scalar_lea.vmem %s2, %s2703
        %s2705 = smul.u32 2, %s18
        %s2706 = smul.u32 32, %s18
        %p2707 = scmp.lt.s32.totalorder %s2706, 127
        %s2708 = scalar_select %p2707, %s2706, 127
        %s2709 = smul.addr %s2708, 8
        %s2710 = scalar_lea.vmem %s3, %s2709
        %s2711 = smul.u32 32, %s18
        %p2712 = scmp.eq.s32.totalorder %s18, 0
        // Predicated region
        $region86: #{encoder_forward.5} parent=80 // pred_check
          %p2713 = pneg %p2712
        $region87: #{encoder_forward.5} parent=80 // pred_check_branch
          %2715 = sbr.rel (%p2713) target = $region89
        $region88: #{encoder_forward.5} parent=80 // pred_region
          %vm2716 = vcmask 254976
          %2717 = vst.msk [vmem:[#allocation2] sm:$0x3] %vm2716, 0.0
        $region89: #{encoder_forward.5} parent=80 // pred_fallthru
          _
        %v2718 = vld [vmem:[%s0] sm:$0xff]
        %v2719 = vld [vmem:[%s0 + $0x8] sm:$0xff]
        %v2720 = vld [vmem:[%s0 + $0x10] sm:$0xff]
        %v2721 = vld [vmem:[%s0 + $0x18] sm:$0xff]
        %v2722 = vld [vmem:[%s0 + $0x20] sm:$0xff]
        %v2723 = vld [vmem:[%s0 + $0x28] sm:$0xff]
        %v2724 = vld [vmem:[%s0 + $0x30] sm:$0x3]
        %v2725 = vld [vmem:[%s2667] sm:$0xff]
        %v2726 = vld [vmem:[%s2667 + $0x8] sm:$0xff]
        %v2727 = vld [vmem:[%s2667 + $0x10] sm:$0xff]
        %v2728 = vld [vmem:[%s2667 + $0x18] sm:$0xff]
        %v2729 = vld [vmem:[%s2667 + $0x20] sm:$0xff]
        %v2730 = vld [vmem:[%s2667 + $0x28] sm:$0xff]
        %v2731 = vld [vmem:[%s2667 + $0x30] sm:$0xff]
        %v2732 = vld [vmem:[%s2667 + $0x38] sm:$0xff]
        %v2733 = vld [vmem:[%s2667 + $0x40] sm:$0xff]
        %v2734 = vld [vmem:[%s2667 + $0x48] sm:$0xff]
        %v2735 = vld [vmem:[%s2667 + $0x50] sm:$0xff]
        %v2736 = vld [vmem:[%s2667 + $0x58] sm:$0xff]
        %v2737 = vld [vmem:[%s2667 + $0x60] sm:$0xff]
        %v2738 = vld [vmem:[%s2667 + $0x68] sm:$0xff]
        %v2739 = vld [vmem:[%s2667 + $0x70] sm:$0xff]
        %v2740 = vld [vmem:[%s2667 + $0x78] sm:$0xff]
        %v2741 = vld [vmem:[%s2667 + $0x80] sm:$0xff]
        %v2742 = vld [vmem:[%s2667 + $0x88] sm:$0xff]
        %v2743 = vld [vmem:[%s2667 + $0x90] sm:$0xff]
        %v2744 = vld [vmem:[%s2667 + $0x98] sm:$0xff]
        %v2745 = vld [vmem:[%s2667 + $0xa0] sm:$0xff]
        %v2746 = vld [vmem:[%s2667 + $0xa8] sm:$0xff]
        %v2747 = vld [vmem:[%s2667 + $0xb0] sm:$0xff]
        %v2748 = vld [vmem:[%s2667 + $0xb8] sm:$0xff]
        %v2749 = vld [vmem:[%s2667 + $0xc0] sm:$0xff]
        %v2750 = vld [vmem:[%s2667 + $0xc8] sm:$0xff]
        %v2751 = vld [vmem:[%s2667 + $0xd0] sm:$0xff]
        %v2752 = vld [vmem:[%s2667 + $0xd8] sm:$0xff]
        %v2753 = vld [vmem:[%s2667 + $0xe0] sm:$0xff]
        %v2754 = vld [vmem:[%s2667 + $0xe8] sm:$0xff]
        %v2755 = vld [vmem:[%s2667 + $0xf0] sm:$0xff]
        %v2756 = vld [vmem:[%s2667 + $0xf8] sm:$0xff]
        %v2757 = vld [vmem:[%s2667 + $0x100] sm:$0xff]
        %v2758 = vld [vmem:[%s2667 + $0x108] sm:$0xff]
        %v2759 = vld [vmem:[%s2667 + $0x110] sm:$0xff]
        %v2760 = vld [vmem:[%s2667 + $0x118] sm:$0xff]
        %v2761 = vld [vmem:[%s2667 + $0x120] sm:$0xff]
        %v2762 = vld [vmem:[%s2667 + $0x128] sm:$0xff]
        %v2763 = vld [vmem:[%s2667 + $0x130] sm:$0xff]
        %v2764 = vld [vmem:[%s2667 + $0x138] sm:$0xff]
        %v2765 = vld [vmem:[%s2667 + $0x140] sm:$0xff]
        %v2766 = vld [vmem:[%s2667 + $0x148] sm:$0xff]
        %v2767 = vld [vmem:[%s2667 + $0x150] sm:$0xff]
        %v2768 = vld [vmem:[%s2667 + $0x158] sm:$0xff]
        %v2769 = vld [vmem:[%s2667 + $0x160] sm:$0xff]
        %v2770 = vld [vmem:[%s2667 + $0x168] sm:$0xff]
        %v2771 = vld [vmem:[%s2667 + $0x170] sm:$0xff]
        %v2772 = vld [vmem:[%s2667 + $0x178] sm:$0xff]
        %v2773 = vld [vmem:[%s2667 + $0x180] sm:$0xff]
        %v2774 = vld [vmem:[%s2667 + $0x188] sm:$0xff]
        %v2775 = vld [vmem:[%s2667 + $0x190] sm:$0xff]
        %v2776 = vld [vmem:[%s2667 + $0x198] sm:$0xff]
        %v2777 = vld [vmem:[%s2667 + $0x1a0] sm:$0xff]
        %v2778 = vld [vmem:[%s2667 + $0x1a8] sm:$0xff]
        %v2779 = vld [vmem:[%s2667 + $0x1b0] sm:$0xff]
        %v2780 = vld [vmem:[%s2667 + $0x1b8] sm:$0xff]
        %v2781 = vld [vmem:[%s2667 + $0x1c0] sm:$0xff]
        %v2782 = vld [vmem:[%s2667 + $0x1c8] sm:$0xff]
        %v2783 = vld [vmem:[%s2667 + $0x1d0] sm:$0xff]
        %v2784 = vld [vmem:[%s2667 + $0x1d8] sm:$0xff]
        %v2785 = vld [vmem:[%s2667 + $0x1e0] sm:$0xff]
        %v2786 = vld [vmem:[%s2667 + $0x1e8] sm:$0xff]
        %v2787 = vld [vmem:[%s2667 + $0x1f0] sm:$0xff]
        %v2788 = vld [vmem:[%s2667 + $0x1f8] sm:$0xff]
        %v2789 = vld [vmem:[%s2667 + $0x200] sm:$0xff]
        %v2790 = vld [vmem:[%s2667 + $0x208] sm:$0xff]
        %v2791 = vld [vmem:[%s2667 + $0x210] sm:$0xff]
        %v2792 = vld [vmem:[%s2667 + $0x218] sm:$0xff]
        %v2793 = vld [vmem:[%s2667 + $0x220] sm:$0xff]
        %v2794 = vld [vmem:[%s2667 + $0x228] sm:$0xff]
        %v2795 = vld [vmem:[%s2667 + $0x230] sm:$0xff]
        %v2796 = vld [vmem:[%s2667 + $0x238] sm:$0xff]
        %v2797 = vld [vmem:[%s2667 + $0x240] sm:$0xff]
        %v2798 = vld [vmem:[%s2667 + $0x248] sm:$0xff]
        %v2799 = vld [vmem:[%s2667 + $0x250] sm:$0xff]
        %v2800 = vld [vmem:[%s2667 + $0x258] sm:$0xff]
        %v2801 = vld [vmem:[%s2667 + $0x260] sm:$0xff]
        %v2802 = vld [vmem:[%s2667 + $0x268] sm:$0xff]
        %v2803 = vld [vmem:[%s2667 + $0x270] sm:$0xff]
        %v2804 = vld [vmem:[%s2667 + $0x278] sm:$0xff]
        %v2805 = vld [vmem:[%s2667 + $0x280] sm:$0xff]
        %v2806 = vld [vmem:[%s2667 + $0x288] sm:$0xff]
        %v2807 = vld [vmem:[%s2667 + $0x290] sm:$0xff]
        %v2808 = vld [vmem:[%s2667 + $0x298] sm:$0xff]
        %v2809 = vld [vmem:[%s2667 + $0x2a0] sm:$0xff]
        %v2810 = vld [vmem:[%s2667 + $0x2a8] sm:$0xff]
        %v2811 = vld [vmem:[%s2667 + $0x2b0] sm:$0xff]
        %v2812 = vld [vmem:[%s2667 + $0x2b8] sm:$0xff]
        %v2813 = vld [vmem:[%s2667 + $0x2c0] sm:$0xff]
        %v2814 = vld [vmem:[%s2667 + $0x2c8] sm:$0xff]
        %v2815 = vld [vmem:[%s2667 + $0x2d0] sm:$0xff]
        %v2816 = vld [vmem:[%s2667 + $0x2d8] sm:$0xff]
        %v2817 = vld [vmem:[%s2667 + $0x2e0] sm:$0xff]
        %v2818 = vld [vmem:[%s2667 + $0x2e8] sm:$0xff]
        %v2819 = vld [vmem:[%s2667 + $0x2f0] sm:$0xff]
        %v2820 = vld [vmem:[%s2667 + $0x2f8] sm:$0xff]
        %v2821 = vld [vmem:[%s2667 + $0x300] sm:$0xff]
        %v2822 = vld [vmem:[%s2667 + $0x308] sm:$0xff]
        %v2823 = vld [vmem:[%s2667 + $0x310] sm:$0xff]
        %v2824 = vld [vmem:[%s2667 + $0x318] sm:$0xff]
        %v2825 = vld [vmem:[%s2667 + $0x320] sm:$0xff]
        %v2826 = vld [vmem:[%s2667 + $0x328] sm:$0xff]
        %v2827 = vld [vmem:[%s2667 + $0x330] sm:$0xff]
        %v2828 = vld [vmem:[%s2667 + $0x338] sm:$0xff]
        %v2829 = vld [vmem:[%s2667 + $0x340] sm:$0xff]
        %v2830 = vld [vmem:[%s2667 + $0x348] sm:$0xff]
        %v2831 = vld [vmem:[%s2667 + $0x350] sm:$0xff]
        %v2832 = vld [vmem:[%s2667 + $0x358] sm:$0xff]
        %v2833 = vld [vmem:[%s2667 + $0x360] sm:$0xff]
        %v2834 = vld [vmem:[%s2667 + $0x368] sm:$0xff]
        %v2835 = vld [vmem:[%s2667 + $0x370] sm:$0xff]
        %v2836 = vld [vmem:[%s2667 + $0x378] sm:$0xff]
        %v2837 = vld [vmem:[%s2667 + $0x380] sm:$0xff]
        %v2838 = vld [vmem:[%s2667 + $0x388] sm:$0xff]
        %v2839 = vld [vmem:[%s2667 + $0x390] sm:$0xff]
        %v2840 = vld [vmem:[%s2667 + $0x398] sm:$0xff]
        %v2841 = vld [vmem:[%s2667 + $0x3a0] sm:$0xff]
        %v2842 = vld [vmem:[%s2667 + $0x3a8] sm:$0xff]
        %v2843 = vld [vmem:[%s2667 + $0x3b0] sm:$0xff]
        %v2844 = vld [vmem:[%s2667 + $0x3b8] sm:$0xff]
        %v2845 = vld [vmem:[%s2667 + $0x3c0] sm:$0xff]
        %v2846 = vld [vmem:[%s2667 + $0x3c8] sm:$0xff]
        %v2847 = vld [vmem:[%s2667 + $0x3d0] sm:$0xff]
        %v2848 = vld [vmem:[%s2667 + $0x3d8] sm:$0xff]
        %v2849 = vld [vmem:[%s2667 + $0x3e0] sm:$0xff]
        %v2850 = vld [vmem:[%s2667 + $0x3e8] sm:$0xff]
        %v2851 = vld [vmem:[%s2667 + $0x3f0] sm:$0xff]
        %v2852 = vld [vmem:[%s2667 + $0x3f8] sm:$0xff]
        %v2853 = vld [vmem:[%s2667 + $0x400] sm:$0xff]
        %v2854 = vld [vmem:[%s2667 + $0x408] sm:$0xff]
        %v2855 = vld [vmem:[%s2667 + $0x410] sm:$0xff]
        %v2856 = vld [vmem:[%s2667 + $0x418] sm:$0xff]
        %v2857 = vld [vmem:[%s2667 + $0x420] sm:$0xff]
        %v2858 = vld [vmem:[%s2667 + $0x428] sm:$0xff]
        %v2859 = vld [vmem:[%s2667 + $0x430] sm:$0xff]
        %v2860 = vld [vmem:[%s2667 + $0x438] sm:$0xff]
        %v2861 = vld [vmem:[%s2667 + $0x440] sm:$0xff]
        %v2862 = vld [vmem:[%s2667 + $0x448] sm:$0xff]
        %v2863 = vld [vmem:[%s2667 + $0x450] sm:$0xff]
        %v2864 = vld [vmem:[%s2667 + $0x458] sm:$0xff]
        %v2865 = vld [vmem:[%s2667 + $0x460] sm:$0xff]
        %v2866 = vld [vmem:[%s2667 + $0x468] sm:$0xff]
        %v2867 = vld [vmem:[%s2667 + $0x470] sm:$0xff]
        %v2868 = vld [vmem:[%s2667 + $0x478] sm:$0xff]
        %v2869 = vld [vmem:[%s2667 + $0x480] sm:$0xff]
        %v2870 = vld [vmem:[%s2667 + $0x488] sm:$0xff]
        %v2871 = vld [vmem:[%s2667 + $0x490] sm:$0xff]
        %v2872 = vld [vmem:[%s2667 + $0x498] sm:$0xff]
        %v2873 = vld [vmem:[%s2667 + $0x4a0] sm:$0xff]
        %v2874 = vld [vmem:[%s2667 + $0x4a8] sm:$0xff]
        %v2875 = vld [vmem:[%s2667 + $0x4b0] sm:$0xff]
        %v2876 = vld [vmem:[%s2667 + $0x4b8] sm:$0xff]
        %v2877 = vld [vmem:[%s2667 + $0x4c0] sm:$0xff]
        %v2878 = vld [vmem:[%s2667 + $0x4c8] sm:$0xff]
        %v2879 = vld [vmem:[%s2667 + $0x4d0] sm:$0xff]
        %v2880 = vld [vmem:[%s2667 + $0x4d8] sm:$0xff]
        %v2881 = vld [vmem:[%s2667 + $0x4e0] sm:$0xff]
        %v2882 = vld [vmem:[%s2667 + $0x4e8] sm:$0xff]
        %v2883 = vld [vmem:[%s2667 + $0x4f0] sm:$0xff]
        %v2884 = vld [vmem:[%s2667 + $0x4f8] sm:$0xff]
        %v2885 = vld [vmem:[%s2667 + $0x500] sm:$0xff]
        %v2886 = vld [vmem:[%s2667 + $0x508] sm:$0xff]
        %v2887 = vld [vmem:[%s2667 + $0x510] sm:$0xff]
        %v2888 = vld [vmem:[%s2667 + $0x518] sm:$0xff]
        %v2889 = vld [vmem:[%s2667 + $0x520] sm:$0xff]
        %v2890 = vld [vmem:[%s2667 + $0x528] sm:$0xff]
        %v2891 = vld [vmem:[%s2667 + $0x530] sm:$0xff]
        %v2892 = vld [vmem:[%s2667 + $0x538] sm:$0xff]
        %v2893 = vld [vmem:[%s2667 + $0x540] sm:$0xff]
        %v2894 = vld [vmem:[%s2667 + $0x548] sm:$0xff]
        %v2895 = vld [vmem:[%s2667 + $0x550] sm:$0xff]
        %v2896 = vld [vmem:[%s2667 + $0x558] sm:$0xff]
        %v2897 = vld [vmem:[%s2667 + $0x560] sm:$0xff]
        %v2898 = vld [vmem:[%s2667 + $0x568] sm:$0xff]
        %v2899 = vld [vmem:[%s2667 + $0x570] sm:$0xff]
        %v2900 = vld [vmem:[%s2667 + $0x578] sm:$0xff]
        %v2901 = vld [vmem:[%s2667 + $0x580] sm:$0xff]
        %v2902 = vld [vmem:[%s2667 + $0x588] sm:$0xff]
        %v2903 = vld [vmem:[%s2667 + $0x590] sm:$0xff]
        %v2904 = vld [vmem:[%s2667 + $0x598] sm:$0xff]
        %v2905 = vld [vmem:[%s2667 + $0x5a0] sm:$0xff]
        %v2906 = vld [vmem:[%s2667 + $0x5a8] sm:$0xff]
        %v2907 = vld [vmem:[%s2667 + $0x5b0] sm:$0xff]
        %v2908 = vld [vmem:[%s2667 + $0x5b8] sm:$0xff]
        %v2909 = vld [vmem:[%s2667 + $0x5c0] sm:$0xff]
        %v2910 = vld [vmem:[%s2667 + $0x5c8] sm:$0xff]
        %v2911 = vld [vmem:[%s2667 + $0x5d0] sm:$0xff]
        %v2912 = vld [vmem:[%s2667 + $0x5d8] sm:$0xff]
        %v2913 = vld [vmem:[%s2667 + $0x5e0] sm:$0xff]
        %v2914 = vld [vmem:[%s2667 + $0x5e8] sm:$0xff]
        %v2915 = vld [vmem:[%s2667 + $0x5f0] sm:$0xff]
        %v2916 = vld [vmem:[%s2667 + $0x5f8] sm:$0xff]
        %v2917 = vld [vmem:[%s2667 + $0x600] sm:$0xff]
        %v2918 = vld [vmem:[%s2667 + $0x608] sm:$0xff]
        %v2919 = vld [vmem:[%s2667 + $0x610] sm:$0xff]
        %v2920 = vld [vmem:[%s2667 + $0x618] sm:$0xff]
        %v2921 = vld [vmem:[%s2667 + $0x620] sm:$0xff]
        %v2922 = vld [vmem:[%s2667 + $0x628] sm:$0xff]
        %v2923 = vld [vmem:[%s2667 + $0x630] sm:$0xff]
        %v2924 = vld [vmem:[%s2667 + $0x638] sm:$0xff]
        %v2925 = vld [vmem:[%s2667 + $0x640] sm:$0xff]
        %v2926 = vld [vmem:[%s2667 + $0x648] sm:$0xff]
        %v2927 = vld [vmem:[%s2667 + $0x650] sm:$0xff]
        %v2928 = vld [vmem:[%s2667 + $0x658] sm:$0xff]
        %v2929 = vld [vmem:[%s2667 + $0x660] sm:$0xff]
        %v2930 = vld [vmem:[%s2667 + $0x668] sm:$0xff]
        %v2931 = vld [vmem:[%s2667 + $0x670] sm:$0xff]
        %v2932 = vld [vmem:[%s2667 + $0x678] sm:$0xff]
        %v2933 = vld [vmem:[%s2667 + $0x680] sm:$0xff]
        %v2934 = vld [vmem:[%s2667 + $0x688] sm:$0xff]
        %v2935 = vld [vmem:[%s2667 + $0x690] sm:$0xff]
        %v2936 = vld [vmem:[%s2667 + $0x698] sm:$0xff]
        %v2937 = vld [vmem:[%s2667 + $0x6a0] sm:$0xff]
        %v2938 = vld [vmem:[%s2667 + $0x6a8] sm:$0xff]
        %v2939 = vld [vmem:[%s2667 + $0x6b0] sm:$0xff]
        %v2940 = vld [vmem:[%s2667 + $0x6b8] sm:$0xff]
        %v2941 = vld [vmem:[%s2667 + $0x6c0] sm:$0xff]
        %v2942 = vld [vmem:[%s2667 + $0x6c8] sm:$0xff]
        %v2943 = vld [vmem:[%s2667 + $0x6d0] sm:$0xff]
        %v2944 = vld [vmem:[%s2667 + $0x6d8] sm:$0xff]
        %v2945 = vld [vmem:[%s2667 + $0x6e0] sm:$0xff]
        %v2946 = vld [vmem:[%s2667 + $0x6e8] sm:$0xff]
        %v2947 = vld [vmem:[%s2667 + $0x6f0] sm:$0xff]
        %v2948 = vld [vmem:[%s2667 + $0x6f8] sm:$0xff]
        %v2949 = vld [vmem:[%s2667 + $0x700] sm:$0xff]
        %v2950 = vld [vmem:[%s2667 + $0x708] sm:$0xff]
        %v2951 = vld [vmem:[%s2667 + $0x710] sm:$0xff]
        %v2952 = vld [vmem:[%s2667 + $0x718] sm:$0xff]
        %v2953 = vld [vmem:[%s2667 + $0x720] sm:$0xff]
        %v2954 = vld [vmem:[%s2667 + $0x728] sm:$0xff]
        %v2955 = vld [vmem:[%s2667 + $0x730] sm:$0xff]
        %v2956 = vld [vmem:[%s2667 + $0x738] sm:$0xff]
        %v2957 = vld [vmem:[%s2667 + $0x740] sm:$0xff]
        %v2958 = vld [vmem:[%s2667 + $0x748] sm:$0xff]
        %v2959 = vld [vmem:[%s2667 + $0x750] sm:$0xff]
        %v2960 = vld [vmem:[%s2667 + $0x758] sm:$0xff]
        %v2961 = vld [vmem:[%s2667 + $0x760] sm:$0xff]
        %v2962 = vld [vmem:[%s2667 + $0x768] sm:$0xff]
        %v2963 = vld [vmem:[%s2667 + $0x770] sm:$0xff]
        %v2964 = vld [vmem:[%s2667 + $0x778] sm:$0xff]
        %v2965 = vld [vmem:[%s2667 + $0x780] sm:$0xff]
        %v2966 = vld [vmem:[%s2667 + $0x788] sm:$0xff]
        %v2967 = vld [vmem:[%s2667 + $0x790] sm:$0xff]
        %v2968 = vld [vmem:[%s2667 + $0x798] sm:$0xff]
        %v2969 = vld [vmem:[%s2667 + $0x7a0] sm:$0xff]
        %v2970 = vld [vmem:[%s2667 + $0x7a8] sm:$0xff]
        %v2971 = vld [vmem:[%s2667 + $0x7b0] sm:$0xff]
        %v2972 = vld [vmem:[%s2667 + $0x7b8] sm:$0xff]
        %v2973 = vld [vmem:[%s2667 + $0x7c0] sm:$0xff]
        %v2974 = vld [vmem:[%s2667 + $0x7c8] sm:$0xff]
        %v2975 = vld [vmem:[%s2667 + $0x7d0] sm:$0xff]
        %v2976 = vld [vmem:[%s2667 + $0x7d8] sm:$0xff]
        %v2977 = vld [vmem:[%s2667 + $0x7e0] sm:$0xff]
        %v2978 = vld [vmem:[%s2667 + $0x7e8] sm:$0xff]
        %v2979 = vld [vmem:[%s2667 + $0x7f0] sm:$0xff]
        %v2980 = vld [vmem:[%s2667 + $0x7f8] sm:$0xff]
        %v2981 = vld [vmem:[%s2667 + $0x800] sm:$0xff]
        %v2982 = vld [vmem:[%s2667 + $0x808] sm:$0xff]
        %v2983 = vld [vmem:[%s2667 + $0x810] sm:$0xff]
        %v2984 = vld [vmem:[%s2667 + $0x818] sm:$0xff]
        %v2985 = vld [vmem:[%s2667 + $0x820] sm:$0xff]
        %v2986 = vld [vmem:[%s2667 + $0x828] sm:$0xff]
        %v2987 = vld [vmem:[%s2667 + $0x830] sm:$0xff]
        %v2988 = vld [vmem:[%s2667 + $0x838] sm:$0xff]
        %v2989 = vld [vmem:[%s2667 + $0x840] sm:$0xff]
        %v2990 = vld [vmem:[%s2667 + $0x848] sm:$0xff]
        %v2991 = vld [vmem:[%s2667 + $0x850] sm:$0xff]
        %v2992 = vld [vmem:[%s2667 + $0x858] sm:$0xff]
        %v2993 = vld [vmem:[%s2667 + $0x860] sm:$0xff]
        %v2994 = vld [vmem:[%s2667 + $0x868] sm:$0xff]
        %v2995 = vld [vmem:[%s2667 + $0x870] sm:$0xff]
        %v2996 = vld [vmem:[%s2667 + $0x878] sm:$0xff]
        %v2997 = vld [vmem:[%s2667 + $0x880] sm:$0xff]
        %v2998 = vld [vmem:[%s2667 + $0x888] sm:$0xff]
        %v2999 = vld [vmem:[%s2667 + $0x890] sm:$0xff]
        %v3000 = vld [vmem:[%s2667 + $0x898] sm:$0xff]
        %v3001 = vld [vmem:[%s2667 + $0x8a0] sm:$0xff]
        %v3002 = vld [vmem:[%s2667 + $0x8a8] sm:$0xff]
        %v3003 = vld [vmem:[%s2667 + $0x8b0] sm:$0xff]
        %v3004 = vld [vmem:[%s2667 + $0x8b8] sm:$0xff]
        %v3005 = vld [vmem:[%s2667 + $0x8c0] sm:$0xff]
        %v3006 = vld [vmem:[%s2667 + $0x8c8] sm:$0xff]
        %v3007 = vld [vmem:[%s2667 + $0x8d0] sm:$0xff]
        %v3008 = vld [vmem:[%s2667 + $0x8d8] sm:$0xff]
        %v3009 = vld [vmem:[%s2667 + $0x8e0] sm:$0xff]
        %v3010 = vld [vmem:[%s2667 + $0x8e8] sm:$0xff]
        %v3011 = vld [vmem:[%s2667 + $0x8f0] sm:$0xff]
        %v3012 = vld [vmem:[%s2667 + $0x8f8] sm:$0xff]
        %v3013 = vld [vmem:[%s2667 + $0x900] sm:$0xff]
        %v3014 = vld [vmem:[%s2667 + $0x908] sm:$0xff]
        %v3015 = vld [vmem:[%s2667 + $0x910] sm:$0xff]
        %v3016 = vld [vmem:[%s2667 + $0x918] sm:$0xff]
        %v3017 = vld [vmem:[%s2667 + $0x920] sm:$0xff]
        %v3018 = vld [vmem:[%s2667 + $0x928] sm:$0xff]
        %v3019 = vld [vmem:[%s2667 + $0x930] sm:$0xff]
        %v3020 = vld [vmem:[%s2667 + $0x938] sm:$0xff]
        %v3021 = vld [vmem:[%s2667 + $0x940] sm:$0xff]
        %v3022 = vld [vmem:[%s2667 + $0x948] sm:$0xff]
        %v3023 = vld [vmem:[%s2667 + $0x950] sm:$0xff]
        %v3024 = vld [vmem:[%s2667 + $0x958] sm:$0xff]
        %v3025 = vld [vmem:[%s2667 + $0x960] sm:$0xff]
        %v3026 = vld [vmem:[%s2667 + $0x968] sm:$0xff]
        %v3027 = vld [vmem:[%s2667 + $0x970] sm:$0xff]
        %v3028 = vld [vmem:[%s2667 + $0x978] sm:$0xff]
        %v3029 = vld [vmem:[%s2667 + $0x980] sm:$0xff]
        %v3030 = vld [vmem:[%s2667 + $0x988] sm:$0xff]
        %v3031 = vld [vmem:[%s2667 + $0x990] sm:$0xff]
        %v3032 = vld [vmem:[%s2667 + $0x998] sm:$0xff]
        %v3033 = vld [vmem:[%s2667 + $0x9a0] sm:$0xff]
        %v3034 = vld [vmem:[%s2667 + $0x9a8] sm:$0xff]
        %v3035 = vld [vmem:[%s2667 + $0x9b0] sm:$0xff]
        %v3036 = vld [vmem:[%s2667 + $0x9b8] sm:$0xff]
        %v3037 = vld [vmem:[%s2667 + $0x9c0] sm:$0xff]
        %v3038 = vld [vmem:[%s2667 + $0x9c8] sm:$0xff]
        %v3039 = vld [vmem:[%s2667 + $0x9d0] sm:$0xff]
        %v3040 = vld [vmem:[%s2667 + $0x9d8] sm:$0xff]
        %v3041 = vld [vmem:[%s2667 + $0x9e0] sm:$0xff]
        %v3042 = vld [vmem:[%s2667 + $0x9e8] sm:$0xff]
        %v3043 = vld [vmem:[%s2667 + $0x9f0] sm:$0xff]
        %v3044 = vld [vmem:[%s2667 + $0x9f8] sm:$0xff]
        %v3045 = vld [vmem:[%s2667 + $0xa00] sm:$0xff]
        %v3046 = vld [vmem:[%s2667 + $0xa08] sm:$0xff]
        %v3047 = vld [vmem:[%s2667 + $0xa10] sm:$0xff]
        %v3048 = vld [vmem:[%s2667 + $0xa18] sm:$0xff]
        %v3049 = vld [vmem:[%s2667 + $0xa20] sm:$0xff]
        %v3050 = vld [vmem:[%s2667 + $0xa28] sm:$0xff]
        %v3051 = vld [vmem:[%s2667 + $0xa30] sm:$0xff]
        %v3052 = vld [vmem:[%s2667 + $0xa38] sm:$0xff]
        %v3053 = vld [vmem:[%s2667 + $0xa40] sm:$0xff]
        %v3054 = vld [vmem:[%s2667 + $0xa48] sm:$0xff]
        %v3055 = vld [vmem:[%s2667 + $0xa50] sm:$0xff]
        %v3056 = vld [vmem:[%s2667 + $0xa58] sm:$0xff]
        %v3057 = vld [vmem:[%s2667 + $0xa60] sm:$0xff]
        %v3058 = vld [vmem:[%s2667 + $0xa68] sm:$0xff]
        %v3059 = vld [vmem:[%s2667 + $0xa70] sm:$0xff]
        %v3060 = vld [vmem:[%s2667 + $0xa78] sm:$0xff]
        %v3061 = vld [vmem:[%s2667 + $0xa80] sm:$0xff]
        %v3062 = vld [vmem:[%s2667 + $0xa88] sm:$0xff]
        %v3063 = vld [vmem:[%s2667 + $0xa90] sm:$0xff]
        %v3064 = vld [vmem:[%s2667 + $0xa98] sm:$0xff]
        %v3065 = vld [vmem:[%s2667 + $0xaa0] sm:$0xff]
        %v3066 = vld [vmem:[%s2667 + $0xaa8] sm:$0xff]
        %v3067 = vld [vmem:[%s2667 + $0xab0] sm:$0xff]
        %v3068 = vld [vmem:[%s2667 + $0xab8] sm:$0xff]
        %v3069 = vld [vmem:[%s2667 + $0xac0] sm:$0xff]
        %v3070 = vld [vmem:[%s2667 + $0xac8] sm:$0xff]
        %v3071 = vld [vmem:[%s2667 + $0xad0] sm:$0xff]
        %v3072 = vld [vmem:[%s2667 + $0xad8] sm:$0xff]
        %v3073 = vld [vmem:[%s2667 + $0xae0] sm:$0xff]
        %v3074 = vld [vmem:[%s2667 + $0xae8] sm:$0xff]
        %v3075 = vld [vmem:[%s2667 + $0xaf0] sm:$0xff]
        %v3076 = vld [vmem:[%s2667 + $0xaf8] sm:$0xff]
        %v3077 = vld [vmem:[%s2667 + $0xb00] sm:$0xff]
        %v3078 = vld [vmem:[%s2667 + $0xb08] sm:$0xff]
        %v3079 = vld [vmem:[%s2667 + $0xb10] sm:$0xff]
        %v3080 = vld [vmem:[%s2667 + $0xb18] sm:$0xff]
        %v3081 = vld [vmem:[%s2667 + $0xb20] sm:$0xff]
        %v3082 = vld [vmem:[%s2667 + $0xb28] sm:$0xff]
        %v3083 = vld [vmem:[%s2667 + $0xb30] sm:$0xff]
        %v3084 = vld [vmem:[%s2667 + $0xb38] sm:$0xff]
        %v3085 = vld [vmem:[%s2667 + $0xb40] sm:$0xff]
        %v3086 = vld [vmem:[%s2667 + $0xb48] sm:$0xff]
        %v3087 = vld [vmem:[%s2667 + $0xb50] sm:$0xff]
        %v3088 = vld [vmem:[%s2667 + $0xb58] sm:$0xff]
        %v3089 = vld [vmem:[%s2667 + $0xb60] sm:$0xff]
        %v3090 = vld [vmem:[%s2667 + $0xb68] sm:$0xff]
        %v3091 = vld [vmem:[%s2667 + $0xb70] sm:$0xff]
        %v3092 = vld [vmem:[%s2667 + $0xb78] sm:$0xff]
        %v3093 = vld [vmem:[%s2667 + $0xb80] sm:$0xff]
        %v3094 = vld [vmem:[%s2667 + $0xb88] sm:$0xff]
        %v3095 = vld [vmem:[%s2667 + $0xb90] sm:$0xff]
        %v3096 = vld [vmem:[%s2667 + $0xb98] sm:$0xff]
        %v3097 = vld [vmem:[%s2667 + $0xba0] sm:$0xff]
        %v3098 = vld [vmem:[%s2667 + $0xba8] sm:$0xff]
        %v3099 = vld [vmem:[%s2667 + $0xbb0] sm:$0xff]
        %v3100 = vld [vmem:[%s2667 + $0xbb8] sm:$0xff]
        %v3101 = vld [vmem:[%s2667 + $0xbc0] sm:$0xff]
        %v3102 = vld [vmem:[%s2667 + $0xbc8] sm:$0xff]
        %v3103 = vld [vmem:[%s2667 + $0xbd0] sm:$0xff]
        %v3104 = vld [vmem:[%s2667 + $0xbd8] sm:$0xff]
        %v3105 = vld [vmem:[%s2667 + $0xbe0] sm:$0xff]
        %v3106 = vld [vmem:[%s2667 + $0xbe8] sm:$0xff]
        %v3107 = vld [vmem:[%s2667 + $0xbf0] sm:$0xff]
        %v3108 = vld [vmem:[%s2667 + $0xbf8] sm:$0xff]
        %v3109 = vld [vmem:[%s2667 + $0xc00] sm:$0xff]
        %v3110 = vld [vmem:[%s2667 + $0xc08] sm:$0xff]
        %v3111 = vld [vmem:[%s2667 + $0xc10] sm:$0xff]
        %v3112 = vld [vmem:[%s2667 + $0xc18] sm:$0xff]
        %v3113 = vld [vmem:[%s2667 + $0xc20] sm:$0xff]
        %v3114 = vld [vmem:[%s2667 + $0xc28] sm:$0xff]
        %v3115 = vld [vmem:[%s2667 + $0xc30] sm:$0xff]
        %v3116 = vld [vmem:[%s2667 + $0xc38] sm:$0xff]
        %v3117 = vld [vmem:[%s2667 + $0xc40] sm:$0xff]
        %v3118 = vld [vmem:[%s2667 + $0xc48] sm:$0xff]
        %v3119 = vld [vmem:[%s2667 + $0xc50] sm:$0xff]
        %v3120 = vld [vmem:[%s2667 + $0xc58] sm:$0xff]
        %v3121 = vld [vmem:[%s2667 + $0xc60] sm:$0xff]
        %v3122 = vld [vmem:[%s2667 + $0xc68] sm:$0xff]
        %v3123 = vld [vmem:[%s2667 + $0xc70] sm:$0xff]
        %v3124 = vld [vmem:[%s2667 + $0xc78] sm:$0xff]
        %v3125 = vld [vmem:[%s2667 + $0xc80] sm:$0xff]
        %v3126 = vld [vmem:[%s2667 + $0xc88] sm:$0xff]
        %v3127 = vld [vmem:[%s2667 + $0xc90] sm:$0xff]
        %v3128 = vld [vmem:[%s2667 + $0xc98] sm:$0xff]
        %v3129 = vld [vmem:[%s2667 + $0xca0] sm:$0xff]
        %v3130 = vld [vmem:[%s2667 + $0xca8] sm:$0xff]
        %v3131 = vld [vmem:[%s2667 + $0xcb0] sm:$0xff]
        %v3132 = vld [vmem:[%s2667 + $0xcb8] sm:$0xff]
        %v3133 = vld [vmem:[%s2667 + $0xcc0] sm:$0xff]
        %v3134 = vld [vmem:[%s2667 + $0xcc8] sm:$0xff]
        %v3135 = vld [vmem:[%s2667 + $0xcd0] sm:$0xff]
        %v3136 = vld [vmem:[%s2667 + $0xcd8] sm:$0xff]
        %v3137 = vld [vmem:[%s2667 + $0xce0] sm:$0xff]
        %v3138 = vld [vmem:[%s2667 + $0xce8] sm:$0xff]
        %v3139 = vld [vmem:[%s2667 + $0xcf0] sm:$0xff]
        %v3140 = vld [vmem:[%s2667 + $0xcf8] sm:$0xff]
        %v3141 = vld [vmem:[%s2667 + $0xd00] sm:$0xff]
        %v3142 = vld [vmem:[%s2667 + $0xd08] sm:$0xff]
        %v3143 = vld [vmem:[%s2667 + $0xd10] sm:$0xff]
        %v3144 = vld [vmem:[%s2667 + $0xd18] sm:$0xff]
        %v3145 = vld [vmem:[%s2667 + $0xd20] sm:$0xff]
        %v3146 = vld [vmem:[%s2667 + $0xd28] sm:$0xff]
        %v3147 = vld [vmem:[%s2667 + $0xd30] sm:$0xff]
        %v3148 = vld [vmem:[%s2667 + $0xd38] sm:$0xff]
        %v3149 = vld [vmem:[%s2667 + $0xd40] sm:$0xff]
        %v3150 = vld [vmem:[%s2667 + $0xd48] sm:$0xff]
        %v3151 = vld [vmem:[%s2667 + $0xd50] sm:$0xff]
        %v3152 = vld [vmem:[%s2667 + $0xd58] sm:$0xff]
        %v3153 = vld [vmem:[%s2667 + $0xd60] sm:$0xff]
        %v3154 = vld [vmem:[%s2667 + $0xd68] sm:$0xff]
        %v3155 = vld [vmem:[%s2667 + $0xd70] sm:$0xff]
        %v3156 = vld [vmem:[%s2667 + $0xd78] sm:$0xff]
        %v3157 = vld [vmem:[%s2667 + $0xd80] sm:$0xff]
        %v3158 = vld [vmem:[%s2667 + $0xd88] sm:$0xff]
        %v3159 = vld [vmem:[%s2667 + $0xd90] sm:$0xff]
        %v3160 = vld [vmem:[%s2667 + $0xd98] sm:$0xff]
        %v3161 = vld [vmem:[%s2667 + $0xda0] sm:$0xff]
        %v3162 = vld [vmem:[%s2667 + $0xda8] sm:$0xff]
        %v3163 = vld [vmem:[%s2667 + $0xdb0] sm:$0xff]
        %v3164 = vld [vmem:[%s2667 + $0xdb8] sm:$0xff]
        %v3165 = vld [vmem:[%s2667 + $0xdc0] sm:$0xff]
        %v3166 = vld [vmem:[%s2667 + $0xdc8] sm:$0xff]
        %v3167 = vld [vmem:[%s2667 + $0xdd0] sm:$0xff]
        %v3168 = vld [vmem:[%s2667 + $0xdd8] sm:$0xff]
        %v3169 = vld [vmem:[%s2667 + $0xde0] sm:$0xff]
        %v3170 = vld [vmem:[%s2667 + $0xde8] sm:$0xff]
        %v3171 = vld [vmem:[%s2667 + $0xdf0] sm:$0xff]
        %v3172 = vld [vmem:[%s2667 + $0xdf8] sm:$0xff]
        %v3173 = vld [vmem:[%s2667 + $0xe00] sm:$0xff]
        %v3174 = vld [vmem:[%s2667 + $0xe08] sm:$0xff]
        %v3175 = vld [vmem:[%s2667 + $0xe10] sm:$0xff]
        %v3176 = vld [vmem:[%s2667 + $0xe18] sm:$0xff]
        %v3177 = vld [vmem:[%s2667 + $0xe20] sm:$0xff]
        %v3178 = vld [vmem:[%s2667 + $0xe28] sm:$0xff]
        %v3179 = vld [vmem:[%s2667 + $0xe30] sm:$0xff]
        %v3180 = vld [vmem:[%s2667 + $0xe38] sm:$0xff]
        %v3181 = vld [vmem:[%s2667 + $0xe40] sm:$0xff]
        %v3182 = vld [vmem:[%s2667 + $0xe48] sm:$0xff]
        %v3183 = vld [vmem:[%s2667 + $0xe50] sm:$0xff]
        %v3184 = vld [vmem:[%s2667 + $0xe58] sm:$0xff]
        %v3185 = vld [vmem:[%s2667 + $0xe60] sm:$0xff]
        %v3186 = vld [vmem:[%s2667 + $0xe68] sm:$0xff]
        %v3187 = vld [vmem:[%s2667 + $0xe70] sm:$0xff]
        %v3188 = vld [vmem:[%s2667 + $0xe78] sm:$0xff]
        %v3189 = vld [vmem:[%s2667 + $0xe80] sm:$0xff]
        %v3190 = vld [vmem:[%s2667 + $0xe88] sm:$0xff]
        %v3191 = vld [vmem:[%s2667 + $0xe90] sm:$0xff]
        %v3192 = vld [vmem:[%s2667 + $0xe98] sm:$0xff]
        %v3193 = vld [vmem:[%s2667 + $0xea0] sm:$0xff]
        %v3194 = vld [vmem:[%s2667 + $0xea8] sm:$0xff]
        %v3195 = vld [vmem:[%s2667 + $0xeb0] sm:$0xff]
        %v3196 = vld [vmem:[%s2667 + $0xeb8] sm:$0xff]
        %v3197 = vld [vmem:[%s2667 + $0xec0] sm:$0xff]
        %v3198 = vld [vmem:[%s2667 + $0xec8] sm:$0xff]
        %v3199 = vld [vmem:[%s2667 + $0xed0] sm:$0xff]
        %v3200 = vld [vmem:[%s2667 + $0xed8] sm:$0xff]
        %v3201 = vld [vmem:[%s2667 + $0xee0] sm:$0xff]
        %v3202 = vld [vmem:[%s2667 + $0xee8] sm:$0xff]
        %v3203 = vld [vmem:[%s2667 + $0xef0] sm:$0xff]
        %v3204 = vld [vmem:[%s2667 + $0xef8] sm:$0xff]
        %v3205 = vld [vmem:[%s2667 + $0xf00] sm:$0xff]
        %v3206 = vld [vmem:[%s2667 + $0xf08] sm:$0xff]
        %v3207 = vld [vmem:[%s2667 + $0xf10] sm:$0xff]
        %v3208 = vld [vmem:[%s2667 + $0xf18] sm:$0xff]
        %v3209 = vld [vmem:[%s2667 + $0xf20] sm:$0xff]
        %v3210 = vld [vmem:[%s2667 + $0xf28] sm:$0xff]
        %v3211 = vld [vmem:[%s2667 + $0xf30] sm:$0xff]
        %v3212 = vld [vmem:[%s2667 + $0xf38] sm:$0xff]
        %v3213 = vld [vmem:[%s2667 + $0xf40] sm:$0xff]
        %v3214 = vld [vmem:[%s2667 + $0xf48] sm:$0xff]
        %v3215 = vld [vmem:[%s2667 + $0xf50] sm:$0xff]
        %v3216 = vld [vmem:[%s2667 + $0xf58] sm:$0xff]
        %v3217 = vld [vmem:[%s2667 + $0xf60] sm:$0xff]
        %v3218 = vld [vmem:[%s2667 + $0xf68] sm:$0xff]
        %v3219 = vld [vmem:[%s2667 + $0xf70] sm:$0xff]
        %v3220 = vld [vmem:[%s2667 + $0xf78] sm:$0xff]
        %v3221 = vld [vmem:[%s2667 + $0xf80] sm:$0xff]
        %v3222 = vld [vmem:[%s2667 + $0xf88] sm:$0xff]
        %v3223 = vld [vmem:[%s2667 + $0xf90] sm:$0xff]
        %v3224 = vld [vmem:[%s2667 + $0xf98] sm:$0xff]
        %v3225 = vld [vmem:[%s2667 + $0xfa0] sm:$0xff]
        %v3226 = vld [vmem:[%s2667 + $0xfa8] sm:$0xff]
        %v3227 = vld [vmem:[%s2667 + $0xfb0] sm:$0xff]
        %v3228 = vld [vmem:[%s2667 + $0xfb8] sm:$0xff]
        %v3229 = vld [vmem:[%s2667 + $0xfc0] sm:$0xff]
        %v3230 = vld [vmem:[%s2667 + $0xfc8] sm:$0xff]
        %v3231 = vld [vmem:[%s2667 + $0xfd0] sm:$0xff]
        %v3232 = vld [vmem:[%s2667 + $0xfd8] sm:$0xff]
        %v3233 = vld [vmem:[%s2667 + $0xfe0] sm:$0xff]
        %v3234 = vld [vmem:[%s2667 + $0xfe8] sm:$0xff]
        %v3235 = vld [vmem:[%s2667 + $0xff0] sm:$0xff]
        %v3236 = vld [vmem:[%s2667 + $0xff8] sm:$0xff]
        %v3237 = vld [vmem:[%s2667 + $0x1000] sm:$0xff]
        %v3238 = vld [vmem:[%s2667 + $0x1008] sm:$0xff]
        %v3239 = vld [vmem:[%s2667 + $0x1010] sm:$0xff]
        %v3240 = vld [vmem:[%s2667 + $0x1018] sm:$0xff]
        %v3241 = vld [vmem:[%s2667 + $0x1020] sm:$0xff]
        %v3242 = vld [vmem:[%s2667 + $0x1028] sm:$0xff]
        %v3243 = vld [vmem:[%s2667 + $0x1030] sm:$0xff]
        %v3244 = vld [vmem:[%s2667 + $0x1038] sm:$0xff]
        %v3245 = vld [vmem:[%s2667 + $0x1040] sm:$0xff]
        %v3246 = vld [vmem:[%s2667 + $0x1048] sm:$0xff]
        %v3247 = vld [vmem:[%s2667 + $0x1050] sm:$0xff]
        %v3248 = vld [vmem:[%s2667 + $0x1058] sm:$0xff]
        %v3249 = vld [vmem:[%s2667 + $0x1060] sm:$0xff]
        %v3250 = vld [vmem:[%s2667 + $0x1068] sm:$0xff]
        %v3251 = vld [vmem:[%s2667 + $0x1070] sm:$0xff]
        %v3252 = vld [vmem:[%s2667 + $0x1078] sm:$0xff]
        %v3253 = vld [vmem:[%s2667 + $0x1080] sm:$0xff]
        %v3254 = vld [vmem:[%s2667 + $0x1088] sm:$0xff]
        %v3255 = vld [vmem:[%s2667 + $0x1090] sm:$0xff]
        %v3256 = vld [vmem:[%s2667 + $0x1098] sm:$0xff]
        %v3257 = vld [vmem:[%s2667 + $0x10a0] sm:$0xff]
        %v3258 = vld [vmem:[%s2667 + $0x10a8] sm:$0xff]
        %v3259 = vld [vmem:[%s2667 + $0x10b0] sm:$0xff]
        %v3260 = vld [vmem:[%s2667 + $0x10b8] sm:$0xff]
        %v3261 = vld [vmem:[%s2667 + $0x10c0] sm:$0xff]
        %v3262 = vld [vmem:[%s2667 + $0x10c8] sm:$0xff]
        %v3263 = vld [vmem:[%s2667 + $0x10d0] sm:$0xff]
        %v3264 = vld [vmem:[%s2667 + $0x10d8] sm:$0xff]
        %v3265 = vld [vmem:[%s2667 + $0x10e0] sm:$0xff]
        %v3266 = vld [vmem:[%s2667 + $0x10e8] sm:$0xff]
        %v3267 = vld [vmem:[%s2667 + $0x10f0] sm:$0xff]
        %v3268 = vld [vmem:[%s2667 + $0x10f8] sm:$0xff]
        %v3269 = vld [vmem:[%s2667 + $0x1100] sm:$0xff]
        %v3270 = vld [vmem:[%s2667 + $0x1108] sm:$0xff]
        %v3271 = vld [vmem:[%s2667 + $0x1110] sm:$0xff]
        %v3272 = vld [vmem:[%s2667 + $0x1118] sm:$0xff]
        %v3273 = vld [vmem:[%s2667 + $0x1120] sm:$0xff]
        %v3274 = vld [vmem:[%s2667 + $0x1128] sm:$0xff]
        %v3275 = vld [vmem:[%s2667 + $0x1130] sm:$0xff]
        %v3276 = vld [vmem:[%s2667 + $0x1138] sm:$0xff]
        %v3277 = vld [vmem:[%s2667 + $0x1140] sm:$0xff]
        %v3278 = vld [vmem:[%s2667 + $0x1148] sm:$0xff]
        %v3279 = vld [vmem:[%s2667 + $0x1150] sm:$0xff]
        %v3280 = vld [vmem:[%s2667 + $0x1158] sm:$0xff]
        %v3281 = vld [vmem:[%s2667 + $0x1160] sm:$0xff]
        %v3282 = vld [vmem:[%s2667 + $0x1168] sm:$0xff]
        %v3283 = vld [vmem:[%s2667 + $0x1170] sm:$0xff]
        %v3284 = vld [vmem:[%s2667 + $0x1178] sm:$0xff]
        %v3285 = vld [vmem:[%s2667 + $0x1180] sm:$0xff]
        %v3286 = vld [vmem:[%s2667 + $0x1188] sm:$0xff]
        %v3287 = vld [vmem:[%s2667 + $0x1190] sm:$0xff]
        %v3288 = vld [vmem:[%s2667 + $0x1198] sm:$0xff]
        %v3289 = vld [vmem:[%s2667 + $0x11a0] sm:$0xff]
        %v3290 = vld [vmem:[%s2667 + $0x11a8] sm:$0xff]
        %v3291 = vld [vmem:[%s2667 + $0x11b0] sm:$0xff]
        %v3292 = vld [vmem:[%s2667 + $0x11b8] sm:$0xff]
        %v3293 = vld [vmem:[%s2667 + $0x11c0] sm:$0xff]
        %v3294 = vld [vmem:[%s2667 + $0x11c8] sm:$0xff]
        %v3295 = vld [vmem:[%s2667 + $0x11d0] sm:$0xff]
        %v3296 = vld [vmem:[%s2667 + $0x11d8] sm:$0xff]
        %v3297 = vld [vmem:[%s2667 + $0x11e0] sm:$0xff]
        %v3298 = vld [vmem:[%s2667 + $0x11e8] sm:$0xff]
        %v3299 = vld [vmem:[%s2667 + $0x11f0] sm:$0xff]
        %v3300 = vld [vmem:[%s2667 + $0x11f8] sm:$0xff]
        %v3301 = vld [vmem:[%s2667 + $0x1200] sm:$0xff]
        %v3302 = vld [vmem:[%s2667 + $0x1208] sm:$0xff]
        %v3303 = vld [vmem:[%s2667 + $0x1210] sm:$0xff]
        %v3304 = vld [vmem:[%s2667 + $0x1218] sm:$0xff]
        %v3305 = vld [vmem:[%s2667 + $0x1220] sm:$0xff]
        %v3306 = vld [vmem:[%s2667 + $0x1228] sm:$0xff]
        %v3307 = vld [vmem:[%s2667 + $0x1230] sm:$0xff]
        %v3308 = vld [vmem:[%s2667 + $0x1238] sm:$0xff]
        %v3309 = vld [vmem:[%s2667 + $0x1240] sm:$0xff]
        %v3310 = vld [vmem:[%s2667 + $0x1248] sm:$0xff]
        %v3311 = vld [vmem:[%s2667 + $0x1250] sm:$0xff]
        %v3312 = vld [vmem:[%s2667 + $0x1258] sm:$0xff]
        %v3313 = vld [vmem:[%s2667 + $0x1260] sm:$0xff]
        %v3314 = vld [vmem:[%s2667 + $0x1268] sm:$0xff]
        %v3315 = vld [vmem:[%s2667 + $0x1270] sm:$0xff]
        %v3316 = vld [vmem:[%s2667 + $0x1278] sm:$0xff]
        %v3317 = vld [vmem:[%s2667 + $0x1280] sm:$0xff]
        %v3318 = vld [vmem:[%s2667 + $0x1288] sm:$0xff]
        %v3319 = vld [vmem:[%s2667 + $0x1290] sm:$0xff]
        %v3320 = vld [vmem:[%s2667 + $0x1298] sm:$0xff]
        %v3321 = vld [vmem:[%s2667 + $0x12a0] sm:$0xff]
        %v3322 = vld [vmem:[%s2667 + $0x12a8] sm:$0xff]
        %v3323 = vld [vmem:[%s2667 + $0x12b0] sm:$0xff]
        %v3324 = vld [vmem:[%s2667 + $0x12b8] sm:$0xff]
        %v3325 = vld [vmem:[%s2667 + $0x12c0] sm:$0xff]
        %v3326 = vld [vmem:[%s2667 + $0x12c8] sm:$0xff]
        %v3327 = vld [vmem:[%s2667 + $0x12d0] sm:$0xff]
        %v3328 = vld [vmem:[%s2667 + $0x12d8] sm:$0xff]
        %v3329 = vld [vmem:[%s2667 + $0x12e0] sm:$0xff]
        %v3330 = vld [vmem:[%s2667 + $0x12e8] sm:$0xff]
        %v3331 = vld [vmem:[%s2667 + $0x12f0] sm:$0xff]
        %v3332 = vld [vmem:[%s2667 + $0x12f8] sm:$0xff]
        %v3333 = vld [vmem:[%s2667 + $0x1300] sm:$0xff]
        %v3334 = vld [vmem:[%s2667 + $0x1308] sm:$0xff]
        %v3335 = vld [vmem:[%s2667 + $0x1310] sm:$0xff]
        %v3336 = vld [vmem:[%s2667 + $0x1318] sm:$0xff]
        %v3337 = vld [vmem:[%s2667 + $0x1320] sm:$0xff]
        %v3338 = vld [vmem:[%s2667 + $0x1328] sm:$0xff]
        %v3339 = vld [vmem:[%s2667 + $0x1330] sm:$0xff]
        %v3340 = vld [vmem:[%s2667 + $0x1338] sm:$0xff]
        %v3341 = vld [vmem:[%s2667 + $0x1340] sm:$0xff]
        %v3342 = vld [vmem:[%s2667 + $0x1348] sm:$0xff]
        %v3343 = vld [vmem:[%s2667 + $0x1350] sm:$0xff]
        %v3344 = vld [vmem:[%s2667 + $0x1358] sm:$0xff]
        %v3345 = vld [vmem:[%s2667 + $0x1360] sm:$0xff]
        %v3346 = vld [vmem:[%s2667 + $0x1368] sm:$0xff]
        %v3347 = vld [vmem:[%s2667 + $0x1370] sm:$0xff]
        %v3348 = vld [vmem:[%s2667 + $0x1378] sm:$0xff]
        %v3349 = vld [vmem:[%s2667 + $0x1380] sm:$0xff]
        %v3350 = vld [vmem:[%s2667 + $0x1388] sm:$0xff]
        %v3351 = vld [vmem:[%s2667 + $0x1390] sm:$0xff]
        %v3352 = vld [vmem:[%s2667 + $0x1398] sm:$0xff]
        %v3353 = vld [vmem:[%s2667 + $0x13a0] sm:$0xff]
        %v3354 = vld [vmem:[%s2667 + $0x13a8] sm:$0xff]
        %v3355 = vld [vmem:[%s2667 + $0x13b0] sm:$0xff]
        %v3356 = vld [vmem:[%s2667 + $0x13b8] sm:$0xff]
        %v3357 = vld [vmem:[%s2667 + $0x13c0] sm:$0xff]
        %v3358 = vld [vmem:[%s2667 + $0x13c8] sm:$0xff]
        %v3359 = vld [vmem:[%s2667 + $0x13d0] sm:$0xff]
        %v3360 = vld [vmem:[%s2667 + $0x13d8] sm:$0xff]
        %v3361 = vld [vmem:[%s2667 + $0x13e0] sm:$0xff]
        %v3362 = vld [vmem:[%s2667 + $0x13e8] sm:$0xff]
        %v3363 = vld [vmem:[%s2667 + $0x13f0] sm:$0xff]
        %v3364 = vld [vmem:[%s2667 + $0x13f8] sm:$0xff]
        %v3365 = vld [vmem:[%s2667 + $0x1400] sm:$0xff]
        %v3366 = vld [vmem:[%s2667 + $0x1408] sm:$0xff]
        %v3367 = vld [vmem:[%s2667 + $0x1410] sm:$0xff]
        %v3368 = vld [vmem:[%s2667 + $0x1418] sm:$0xff]
        %v3369 = vld [vmem:[%s2667 + $0x1420] sm:$0xff]
        %v3370 = vld [vmem:[%s2667 + $0x1428] sm:$0xff]
        %v3371 = vld [vmem:[%s2667 + $0x1430] sm:$0xff]
        %v3372 = vld [vmem:[%s2667 + $0x1438] sm:$0xff]
        %v3373 = vld [vmem:[%s2667 + $0x1440] sm:$0xff]
        %v3374 = vld [vmem:[%s2667 + $0x1448] sm:$0xff]
        %v3375 = vld [vmem:[%s2667 + $0x1450] sm:$0xff]
        %v3376 = vld [vmem:[%s2667 + $0x1458] sm:$0xff]
        %v3377 = vld [vmem:[%s2667 + $0x1460] sm:$0xff]
        %v3378 = vld [vmem:[%s2667 + $0x1468] sm:$0xff]
        %v3379 = vld [vmem:[%s2667 + $0x1470] sm:$0xff]
        %v3380 = vld [vmem:[%s2667 + $0x1478] sm:$0xff]
        %v3381 = vld [vmem:[%s2667 + $0x1480] sm:$0xff]
        %v3382 = vld [vmem:[%s2667 + $0x1488] sm:$0xff]
        %v3383 = vld [vmem:[%s2667 + $0x1490] sm:$0xff]
        %v3384 = vld [vmem:[%s2667 + $0x1498] sm:$0xff]
        %v3385 = vld [vmem:[%s2667 + $0x14a0] sm:$0xff]
        %v3386 = vld [vmem:[%s2667 + $0x14a8] sm:$0xff]
        %v3387 = vld [vmem:[%s2667 + $0x14b0] sm:$0xff]
        %v3388 = vld [vmem:[%s2667 + $0x14b8] sm:$0xff]
        %v3389 = vld [vmem:[%s2667 + $0x14c0] sm:$0xff]
        %v3390 = vld [vmem:[%s2667 + $0x14c8] sm:$0xff]
        %v3391 = vld [vmem:[%s2667 + $0x14d0] sm:$0xff]
        %v3392 = vld [vmem:[%s2667 + $0x14d8] sm:$0xff]
        %v3393 = vld [vmem:[%s2667 + $0x14e0] sm:$0xff]
        %v3394 = vld [vmem:[%s2667 + $0x14e8] sm:$0xff]
        %v3395 = vld [vmem:[%s2667 + $0x14f0] sm:$0xff]
        %v3396 = vld [vmem:[%s2667 + $0x14f8] sm:$0xff]
        %v3397 = vld [vmem:[%s2667 + $0x1500] sm:$0xff]
        %v3398 = vld [vmem:[%s2667 + $0x1508] sm:$0xff]
        %v3399 = vld [vmem:[%s2667 + $0x1510] sm:$0xff]
        %v3400 = vld [vmem:[%s2667 + $0x1518] sm:$0xff]
        %v3401 = vld [vmem:[%s2667 + $0x1520] sm:$0xff]
        %v3402 = vld [vmem:[%s2667 + $0x1528] sm:$0xff]
        %v3403 = vld [vmem:[%s2667 + $0x1530] sm:$0xff]
        %v3404 = vld [vmem:[%s2667 + $0x1538] sm:$0xff]
        %v3405 = vld [vmem:[%s2667 + $0x1540] sm:$0xff]
        %v3406 = vld [vmem:[%s2667 + $0x1548] sm:$0xff]
        %v3407 = vld [vmem:[%s2667 + $0x1550] sm:$0xff]
        %v3408 = vld [vmem:[%s2667 + $0x1558] sm:$0xff]
        %v3409 = vld [vmem:[%s2667 + $0x1560] sm:$0xff]
        %v3410 = vld [vmem:[%s2667 + $0x1568] sm:$0xff]
        %v3411 = vld [vmem:[%s2667 + $0x1570] sm:$0xff]
        %v3412 = vld [vmem:[%s2667 + $0x1578] sm:$0xff]
        %v3413 = vld [vmem:[%s2667 + $0x1580] sm:$0xff]
        %v3414 = vld [vmem:[%s2667 + $0x1588] sm:$0xff]
        %v3415 = vld [vmem:[%s2667 + $0x1590] sm:$0xff]
        %v3416 = vld [vmem:[%s2667 + $0x1598] sm:$0xff]
        %v3417 = vld [vmem:[%s2667 + $0x15a0] sm:$0xff]
        %v3418 = vld [vmem:[%s2667 + $0x15a8] sm:$0xff]
        %v3419 = vld [vmem:[%s2667 + $0x15b0] sm:$0xff]
        %v3420 = vld [vmem:[%s2667 + $0x15b8] sm:$0xff]
        %v3421 = vld [vmem:[%s2667 + $0x15c0] sm:$0xff]
        %v3422 = vld [vmem:[%s2667 + $0x15c8] sm:$0xff]
        %v3423 = vld [vmem:[%s2667 + $0x15d0] sm:$0xff]
        %v3424 = vld [vmem:[%s2667 + $0x15d8] sm:$0xff]
        %v3425 = vld [vmem:[%s2667 + $0x15e0] sm:$0xff]
        %v3426 = vld [vmem:[%s2667 + $0x15e8] sm:$0xff]
        %v3427 = vld [vmem:[%s2667 + $0x15f0] sm:$0xff]
        %v3428 = vld [vmem:[%s2667 + $0x15f8] sm:$0xff]
        %v3429 = vld [vmem:[%s2667 + $0x1600] sm:$0xff]
        %v3430 = vld [vmem:[%s2667 + $0x1608] sm:$0xff]
        %v3431 = vld [vmem:[%s2667 + $0x1610] sm:$0xff]
        %v3432 = vld [vmem:[%s2667 + $0x1618] sm:$0xff]
        %v3433 = vld [vmem:[%s2667 + $0x1620] sm:$0xff]
        %v3434 = vld [vmem:[%s2667 + $0x1628] sm:$0xff]
        %v3435 = vld [vmem:[%s2667 + $0x1630] sm:$0xff]
        %v3436 = vld [vmem:[%s2667 + $0x1638] sm:$0xff]
        %v3437 = vld [vmem:[%s2667 + $0x1640] sm:$0xff]
        %v3438 = vld [vmem:[%s2667 + $0x1648] sm:$0xff]
        %v3439 = vld [vmem:[%s2667 + $0x1650] sm:$0xff]
        %v3440 = vld [vmem:[%s2667 + $0x1658] sm:$0xff]
        %v3441 = vld [vmem:[%s2667 + $0x1660] sm:$0xff]
        %v3442 = vld [vmem:[%s2667 + $0x1668] sm:$0xff]
        %v3443 = vld [vmem:[%s2667 + $0x1670] sm:$0xff]
        %v3444 = vld [vmem:[%s2667 + $0x1678] sm:$0xff]
        %v3445 = vld [vmem:[%s2667 + $0x1680] sm:$0xff]
        %v3446 = vld [vmem:[%s2667 + $0x1688] sm:$0xff]
        %v3447 = vld [vmem:[%s2667 + $0x1690] sm:$0xff]
        %v3448 = vld [vmem:[%s2667 + $0x1698] sm:$0xff]
        %v3449 = vld [vmem:[%s2667 + $0x16a0] sm:$0xff]
        %v3450 = vld [vmem:[%s2667 + $0x16a8] sm:$0xff]
        %v3451 = vld [vmem:[%s2667 + $0x16b0] sm:$0xff]
        %v3452 = vld [vmem:[%s2667 + $0x16b8] sm:$0xff]
        %v3453 = vld [vmem:[%s2667 + $0x16c0] sm:$0xff]
        %v3454 = vld [vmem:[%s2667 + $0x16c8] sm:$0xff]
        %v3455 = vld [vmem:[%s2667 + $0x16d0] sm:$0xff]
        %v3456 = vld [vmem:[%s2667 + $0x16d8] sm:$0xff]
        %v3457 = vld [vmem:[%s2667 + $0x16e0] sm:$0xff]
        %v3458 = vld [vmem:[%s2667 + $0x16e8] sm:$0xff]
        %v3459 = vld [vmem:[%s2667 + $0x16f0] sm:$0xff]
        %v3460 = vld [vmem:[%s2667 + $0x16f8] sm:$0xff]
        %v3461 = vld [vmem:[%s2667 + $0x1700] sm:$0xff]
        %v3462 = vld [vmem:[%s2667 + $0x1708] sm:$0xff]
        %v3463 = vld [vmem:[%s2667 + $0x1710] sm:$0xff]
        %v3464 = vld [vmem:[%s2667 + $0x1718] sm:$0xff]
        %v3465 = vld [vmem:[%s2667 + $0x1720] sm:$0xff]
        %v3466 = vld [vmem:[%s2667 + $0x1728] sm:$0xff]
        %v3467 = vld [vmem:[%s2667 + $0x1730] sm:$0xff]
        %v3468 = vld [vmem:[%s2667 + $0x1738] sm:$0xff]
        %v3469 = vld [vmem:[%s2667 + $0x1740] sm:$0xff]
        %v3470 = vld [vmem:[%s2667 + $0x1748] sm:$0xff]
        %v3471 = vld [vmem:[%s2667 + $0x1750] sm:$0xff]
        %v3472 = vld [vmem:[%s2667 + $0x1758] sm:$0xff]
        %v3473 = vld [vmem:[%s2667 + $0x1760] sm:$0xff]
        %v3474 = vld [vmem:[%s2667 + $0x1768] sm:$0xff]
        %v3475 = vld [vmem:[%s2667 + $0x1770] sm:$0xff]
        %v3476 = vld [vmem:[%s2667 + $0x1778] sm:$0xff]
        %v3477 = vld [vmem:[%s2667 + $0x1780] sm:$0xff]
        %v3478 = vld [vmem:[%s2667 + $0x1788] sm:$0xff]
        %v3479 = vld [vmem:[%s2667 + $0x1790] sm:$0xff]
        %v3480 = vld [vmem:[%s2667 + $0x1798] sm:$0xff]
        %v3481 = vld [vmem:[%s2667 + $0x17a0] sm:$0xff]
        %v3482 = vld [vmem:[%s2667 + $0x17a8] sm:$0xff]
        %v3483 = vld [vmem:[%s2667 + $0x17b0] sm:$0xff]
        %v3484 = vld [vmem:[%s2667 + $0x17b8] sm:$0xff]
        %v3485 = vld [vmem:[%s2667 + $0x17c0] sm:$0xff]
        %v3486 = vld [vmem:[%s2667 + $0x17c8] sm:$0xff]
        %v3487 = vld [vmem:[%s2667 + $0x17d0] sm:$0xff]
        %v3488 = vld [vmem:[%s2667 + $0x17d8] sm:$0xff]
        %v3489 = vld [vmem:[%s2667 + $0x17e0] sm:$0xff]
        %v3490 = vld [vmem:[%s2667 + $0x17e8] sm:$0xff]
        %v3491 = vld [vmem:[%s2667 + $0x17f0] sm:$0xff]
        %v3492 = vld [vmem:[%s2667 + $0x17f8] sm:$0xff]
        %v3493 = vld [vmem:[%s2667 + $0x1800] sm:$0xff]
        %v3494 = vld [vmem:[%s2667 + $0x1808] sm:$0xff]
        %v3495 = vld [vmem:[%s2667 + $0x1810] sm:$0xff]
        %v3496 = vld [vmem:[%s2667 + $0x1818] sm:$0xff]
        %v3497 = vld [vmem:[%s2667 + $0x1820] sm:$0xff]
        %v3498 = vld [vmem:[%s2667 + $0x1828] sm:$0xff]
        %v3499 = vld [vmem:[%s2667 + $0x1830] sm:$0xff]
        %v3500 = vld [vmem:[%s2667 + $0x1838] sm:$0xff]
        %v3501 = vld [vmem:[%s2667 + $0x1840] sm:$0xff]
        %v3502 = vld [vmem:[%s2667 + $0x1848] sm:$0xff]
        %v3503 = vld [vmem:[%s2667 + $0x1850] sm:$0xff]
        %v3504 = vld [vmem:[%s2667 + $0x1858] sm:$0xff]
        %v3505 = vld [vmem:[%s2667 + $0x1860] sm:$0xff]
        %v3506 = vld [vmem:[%s2667 + $0x1868] sm:$0xff]
        %v3507 = vld [vmem:[%s2667 + $0x1870] sm:$0xff]
        %v3508 = vld [vmem:[%s2667 + $0x1878] sm:$0xff]
        %v3509 = vld [vmem:[%s2704] sm:$0x3]
        %v3511 = vperm.slane %v3509, 0
        %v3512 = vperm.slane %v3509, 1
        %3522 = vst [vmem:[#allocation1] ss:$4 sm:$0xff] %v2718
        %s3523 = scalar_lea.vmem [#allocation1], 32
        %3524 = vst [vmem:[%s3523] ss:$4 sm:$0xff] %v2719
        %v3525 = vld.sshfl [vmem:[#allocation1] sm:$0xff pattern:$0x73625140]
        %v3526 = vld.sshfl [vmem:[#allocation1 + $0x8] sm:$0xff pattern:$0x73625140]
        %v3527 = vld.sshfl [vmem:[#allocation1 + $0x10] sm:$0xff pattern:$0x73625140]
        %v3528 = vld.sshfl [vmem:[#allocation1 + $0x18] sm:$0xff pattern:$0x73625140]
        %v3529 = vld.sshfl [vmem:[#allocation1 + $0x20] sm:$0xff pattern:$0x73625140]
        %v3530 = vld.sshfl [vmem:[#allocation1 + $0x28] sm:$0xff pattern:$0x73625140]
        %v3531 = vld.sshfl [vmem:[#allocation1 + $0x30] sm:$0xff pattern:$0x73625140]
        %v3532 = vld.sshfl [vmem:[#allocation1 + $0x38] sm:$0xff pattern:$0x73625140]
        %3533 = vst [vmem:[#allocation1] ss:$4 sm:$0xff] %v2720
        %3534 = vst [vmem:[%s3523] ss:$4 sm:$0xff] %v2721
        %v3535 = vld.sshfl [vmem:[#allocation1] sm:$0xff pattern:$0x73625140]
        %v3536 = vld.sshfl [vmem:[#allocation1 + $0x8] sm:$0xff pattern:$0x73625140]
        %v3537 = vld.sshfl [vmem:[#allocation1 + $0x10] sm:$0xff pattern:$0x73625140]
        %v3538 = vld.sshfl [vmem:[#allocation1 + $0x18] sm:$0xff pattern:$0x73625140]
        %v3539 = vld.sshfl [vmem:[#allocation1 + $0x20] sm:$0xff pattern:$0x73625140]
        %v3540 = vld.sshfl [vmem:[#allocation1 + $0x28] sm:$0xff pattern:$0x73625140]
        %v3541 = vld.sshfl [vmem:[#allocation1 + $0x30] sm:$0xff pattern:$0x73625140]
        %v3542 = vld.sshfl [vmem:[#allocation1 + $0x38] sm:$0xff pattern:$0x73625140]
        %3543 = vst [vmem:[#allocation1] ss:$4 sm:$0xff] %v2722
        %3544 = vst [vmem:[%s3523] ss:$4 sm:$0xff] %v2723
        %v3545 = vld.sshfl [vmem:[#allocation1] sm:$0xff pattern:$0x73625140]
        %v3546 = vld.sshfl [vmem:[#allocation1 + $0x8] sm:$0xff pattern:$0x73625140]
        %v3547 = vld.sshfl [vmem:[#allocation1 + $0x10] sm:$0xff pattern:$0x73625140]
        %v3548 = vld.sshfl [vmem:[#allocation1 + $0x18] sm:$0xff pattern:$0x73625140]
        %v3549 = vld.sshfl [vmem:[#allocation1 + $0x20] sm:$0xff pattern:$0x73625140]
        %v3550 = vld.sshfl [vmem:[#allocation1 + $0x28] sm:$0xff pattern:$0x73625140]
        %v3551 = vld.sshfl [vmem:[#allocation1 + $0x30] sm:$0xff pattern:$0x73625140]
        %v3552 = vld.sshfl [vmem:[#allocation1 + $0x38] sm:$0xff pattern:$0x73625140]
        %3553 = vst [vmem:[#allocation1] ss:$4 sm:$0xff] %v2724
        %v3554 = vld.sshfl [vmem:[#allocation1] sm:$0xff pattern:$0x73625140]
        %vm3579 = vcmask 523264
        %v3580 = vsel %vm3579, %v3554, 0
        %3582 = vmatpush.msra.mxu0 %v2755
        %3583 = vmatpush.msra.mxu0 %v2753
        %3584 = vmatpush.msra.mxu0 %v2751
        %3585 = vmatpush.msra.mxu0 %v2749
        %3586 = vmatpush.msra.mxu0 %v2747
        %3587 = vmatpush.msra.mxu0 %v2745
        %3588 = vmatpush.msra.mxu0 %v2743
        %3589 = vmatpush.msra.mxu0 %v2741
        %3590 = vmatpush.msra.mxu0 %v2739
        %3591 = vmatpush.msra.mxu0 %v2737
        %3592 = vmatpush.msra.mxu0 %v2735
        %3593 = vmatpush.msra.mxu0 %v2733
        %3594 = vmatpush.msra.mxu0 %v2731
        %3595 = vmatpush.msra.mxu0 %v2729
        %3596 = vmatpush.msra.mxu0 %v2727
        %3597 = vmatpush.msra.mxu0 %v2725
        %3598 = vmatmul.f32.gmra.mxu0 %v3525
        %v3599 = vpop.f32.mrf.mxu0
        %v3600 = vadd.f32 %v3511, %v3599
        %3601 = vdwg.mxu0
        %3602 = vmatpush.msra.mxu0 %v2787
        %3603 = vmatpush.msra.mxu0 %v2785
        %3604 = vmatpush.msra.mxu0 %v2783
        %3605 = vmatpush.msra.mxu0 %v2781
        %3606 = vmatpush.msra.mxu0 %v2779
        %3607 = vmatpush.msra.mxu0 %v2777
        %3608 = vmatpush.msra.mxu0 %v2775
        %3609 = vmatpush.msra.mxu0 %v2773
        %3610 = vmatpush.msra.mxu0 %v2771
        %3611 = vmatpush.msra.mxu0 %v2769
        %3612 = vmatpush.msra.mxu0 %v2767
        %3613 = vmatpush.msra.mxu0 %v2765
        %3614 = vmatpush.msra.mxu0 %v2763
        %3615 = vmatpush.msra.mxu0 %v2761
        %3616 = vmatpush.msra.mxu0 %v2759
        %3617 = vmatpush.msra.mxu0 %v2757
        %3618 = vmatmul.f32.gmra.mxu0 %v3526
        %v3619 = vpop.f32.mrf.mxu0
        %v3620 = vadd.f32 %v3600, %v3619
        %3621 = vdwg.mxu0
        %3622 = vmatpush.msra.mxu0 %v2819
        %3623 = vmatpush.msra.mxu0 %v2817
        %3624 = vmatpush.msra.mxu0 %v2815
        %3625 = vmatpush.msra.mxu0 %v2813
        %3626 = vmatpush.msra.mxu0 %v2811
        %3627 = vmatpush.msra.mxu0 %v2809
        %3628 = vmatpush.msra.mxu0 %v2807
        %3629 = vmatpush.msra.mxu0 %v2805
        %3630 = vmatpush.msra.mxu0 %v2803
        %3631 = vmatpush.msra.mxu0 %v2801
        %3632 = vmatpush.msra.mxu0 %v2799
        %3633 = vmatpush.msra.mxu0 %v2797
        %3634 = vmatpush.msra.mxu0 %v2795
        %3635 = vmatpush.msra.mxu0 %v2793
        %3636 = vmatpush.msra.mxu0 %v2791
        %3637 = vmatpush.msra.mxu0 %v2789
        %3638 = vmatmul.f32.gmra.mxu0 %v3527
        %v3639 = vpop.f32.mrf.mxu0
        %v3640 = vadd.f32 %v3620, %v3639
        %3641 = vdwg.mxu0
        %3642 = vmatpush.msra.mxu0 %v2851
        %3643 = vmatpush.msra.mxu0 %v2849
        %3644 = vmatpush.msra.mxu0 %v2847
        %3645 = vmatpush.msra.mxu0 %v2845
        %3646 = vmatpush.msra.mxu0 %v2843
        %3647 = vmatpush.msra.mxu0 %v2841
        %3648 = vmatpush.msra.mxu0 %v2839
        %3649 = vmatpush.msra.mxu0 %v2837
        %3650 = vmatpush.msra.mxu0 %v2835
        %3651 = vmatpush.msra.mxu0 %v2833
        %3652 = vmatpush.msra.mxu0 %v2831
        %3653 = vmatpush.msra.mxu0 %v2829
        %3654 = vmatpush.msra.mxu0 %v2827
        %3655 = vmatpush.msra.mxu0 %v2825
        %3656 = vmatpush.msra.mxu0 %v2823
        %3657 = vmatpush.msra.mxu0 %v2821
        %3658 = vmatmul.f32.gmra.mxu0 %v3528
        %v3659 = vpop.f32.mrf.mxu0
        %v3660 = vadd.f32 %v3640, %v3659
        %3661 = vdwg.mxu0
        %3662 = vmatpush.msra.mxu0 %v2883
        %3663 = vmatpush.msra.mxu0 %v2881
        %3664 = vmatpush.msra.mxu0 %v2879
        %3665 = vmatpush.msra.mxu0 %v2877
        %3666 = vmatpush.msra.mxu0 %v2875
        %3667 = vmatpush.msra.mxu0 %v2873
        %3668 = vmatpush.msra.mxu0 %v2871
        %3669 = vmatpush.msra.mxu0 %v2869
        %3670 = vmatpush.msra.mxu0 %v2867
        %3671 = vmatpush.msra.mxu0 %v2865
        %3672 = vmatpush.msra.mxu0 %v2863
        %3673 = vmatpush.msra.mxu0 %v2861
        %3674 = vmatpush.msra.mxu0 %v2859
        %3675 = vmatpush.msra.mxu0 %v2857
        %3676 = vmatpush.msra.mxu0 %v2855
        %3677 = vmatpush.msra.mxu0 %v2853
        %3678 = vmatmul.f32.gmra.mxu0 %v3529
        %v3679 = vpop.f32.mrf.mxu0
        %v3680 = vadd.f32 %v3660, %v3679
        %3681 = vdwg.mxu0
        %3682 = vmatpush.msra.mxu0 %v2915
        %3683 = vmatpush.msra.mxu0 %v2913
        %3684 = vmatpush.msra.mxu0 %v2911
        %3685 = vmatpush.msra.mxu0 %v2909
        %3686 = vmatpush.msra.mxu0 %v2907
        %3687 = vmatpush.msra.mxu0 %v2905
        %3688 = vmatpush.msra.mxu0 %v2903
        %3689 = vmatpush.msra.mxu0 %v2901
        %3690 = vmatpush.msra.mxu0 %v2899
        %3691 = vmatpush.msra.mxu0 %v2897
        %3692 = vmatpush.msra.mxu0 %v2895
        %3693 = vmatpush.msra.mxu0 %v2893
        %3694 = vmatpush.msra.mxu0 %v2891
        %3695 = vmatpush.msra.mxu0 %v2889
        %3696 = vmatpush.msra.mxu0 %v2887
        %3697 = vmatpush.msra.mxu0 %v2885
        %3698 = vmatmul.f32.gmra.mxu0 %v3530
        %v3699 = vpop.f32.mrf.mxu0
        %v3700 = vadd.f32 %v3680, %v3699
        %3701 = vdwg.mxu0
        %3702 = vmatpush.msra.mxu0 %v2947
        %3703 = vmatpush.msra.mxu0 %v2945
        %3704 = vmatpush.msra.mxu0 %v2943
        %3705 = vmatpush.msra.mxu0 %v2941
        %3706 = vmatpush.msra.mxu0 %v2939
        %3707 = vmatpush.msra.mxu0 %v2937
        %3708 = vmatpush.msra.mxu0 %v2935
        %3709 = vmatpush.msra.mxu0 %v2933
        %3710 = vmatpush.msra.mxu0 %v2931
        %3711 = vmatpush.msra.mxu0 %v2929
        %3712 = vmatpush.msra.mxu0 %v2927
        %3713 = vmatpush.msra.mxu0 %v2925
        %3714 = vmatpush.msra.mxu0 %v2923
        %3715 = vmatpush.msra.mxu0 %v2921
        %3716 = vmatpush.msra.mxu0 %v2919
        %3717 = vmatpush.msra.mxu0 %v2917
        %3718 = vmatmul.f32.gmra.mxu0 %v3531
        %v3719 = vpop.f32.mrf.mxu0
        %v3720 = vadd.f32 %v3700, %v3719
        %3721 = vdwg.mxu0
        %3722 = vmatpush.msra.mxu0 %v2979
        %3723 = vmatpush.msra.mxu0 %v2977
        %3724 = vmatpush.msra.mxu0 %v2975
        %3725 = vmatpush.msra.mxu0 %v2973
        %3726 = vmatpush.msra.mxu0 %v2971
        %3727 = vmatpush.msra.mxu0 %v2969
        %3728 = vmatpush.msra.mxu0 %v2967
        %3729 = vmatpush.msra.mxu0 %v2965
        %3730 = vmatpush.msra.mxu0 %v2963
        %3731 = vmatpush.msra.mxu0 %v2961
        %3732 = vmatpush.msra.mxu0 %v2959
        %3733 = vmatpush.msra.mxu0 %v2957
        %3734 = vmatpush.msra.mxu0 %v2955
        %3735 = vmatpush.msra.mxu0 %v2953
        %3736 = vmatpush.msra.mxu0 %v2951
        %3737 = vmatpush.msra.mxu0 %v2949
        %3738 = vmatmul.f32.gmra.mxu0 %v3532
        %v3739 = vpop.f32.mrf.mxu0
        %v3740 = vadd.f32 %v3720, %v3739
        %3741 = vdwg.mxu0
        %3742 = vmatpush.msra.mxu0 %v3011
        %3743 = vmatpush.msra.mxu0 %v3009
        %3744 = vmatpush.msra.mxu0 %v3007
        %3745 = vmatpush.msra.mxu0 %v3005
        %3746 = vmatpush.msra.mxu0 %v3003
        %3747 = vmatpush.msra.mxu0 %v3001
        %3748 = vmatpush.msra.mxu0 %v2999
        %3749 = vmatpush.msra.mxu0 %v2997
        %3750 = vmatpush.msra.mxu0 %v2995
        %3751 = vmatpush.msra.mxu0 %v2993
        %3752 = vmatpush.msra.mxu0 %v2991
        %3753 = vmatpush.msra.mxu0 %v2989
        %3754 = vmatpush.msra.mxu0 %v2987
        %3755 = vmatpush.msra.mxu0 %v2985
        %3756 = vmatpush.msra.mxu0 %v2983
        %3757 = vmatpush.msra.mxu0 %v2981
        %3758 = vmatmul.f32.gmra.mxu0 %v3535
        %v3759 = vpop.f32.mrf.mxu0
        %v3760 = vadd.f32 %v3740, %v3759
        %3761 = vdwg.mxu0
        %3762 = vmatpush.msra.mxu0 %v3043
        %3763 = vmatpush.msra.mxu0 %v3041
        %3764 = vmatpush.msra.mxu0 %v3039
        %3765 = vmatpush.msra.mxu0 %v3037
        %3766 = vmatpush.msra.mxu0 %v3035
        %3767 = vmatpush.msra.mxu0 %v3033
        %3768 = vmatpush.msra.mxu0 %v3031
        %3769 = vmatpush.msra.mxu0 %v3029
        %3770 = vmatpush.msra.mxu0 %v3027
        %3771 = vmatpush.msra.mxu0 %v3025
        %3772 = vmatpush.msra.mxu0 %v3023
        %3773 = vmatpush.msra.mxu0 %v3021
        %3774 = vmatpush.msra.mxu0 %v3019
        %3775 = vmatpush.msra.mxu0 %v3017
        %3776 = vmatpush.msra.mxu0 %v3015
        %3777 = vmatpush.msra.mxu0 %v3013
        %3778 = vmatmul.f32.gmra.mxu0 %v3536
        %v3779 = vpop.f32.mrf.mxu0
        %v3780 = vadd.f32 %v3760, %v3779
        %3781 = vdwg.mxu0
        %3782 = vmatpush.msra.mxu0 %v3075
        %3783 = vmatpush.msra.mxu0 %v3073
        %3784 = vmatpush.msra.mxu0 %v3071
        %3785 = vmatpush.msra.mxu0 %v3069
        %3786 = vmatpush.msra.mxu0 %v3067
        %3787 = vmatpush.msra.mxu0 %v3065
        %3788 = vmatpush.msra.mxu0 %v3063
        %3789 = vmatpush.msra.mxu0 %v3061
        %3790 = vmatpush.msra.mxu0 %v3059
        %3791 = vmatpush.msra.mxu0 %v3057
        %3792 = vmatpush.msra.mxu0 %v3055
        %3793 = vmatpush.msra.mxu0 %v3053
        %3794 = vmatpush.msra.mxu0 %v3051
        %3795 = vmatpush.msra.mxu0 %v3049
        %3796 = vmatpush.msra.mxu0 %v3047
        %3797 = vmatpush.msra.mxu0 %v3045
        %3798 = vmatmul.f32.gmra.mxu0 %v3537
        %v3799 = vpop.f32.mrf.mxu0
        %v3800 = vadd.f32 %v3780, %v3799
        %3801 = vdwg.mxu0
        %3802 = vmatpush.msra.mxu0 %v3107
        %3803 = vmatpush.msra.mxu0 %v3105
        %3804 = vmatpush.msra.mxu0 %v3103
        %3805 = vmatpush.msra.mxu0 %v3101
        %3806 = vmatpush.msra.mxu0 %v3099
        %3807 = vmatpush.msra.mxu0 %v3097
        %3808 = vmatpush.msra.mxu0 %v3095
        %3809 = vmatpush.msra.mxu0 %v3093
        %3810 = vmatpush.msra.mxu0 %v3091
        %3811 = vmatpush.msra.mxu0 %v3089
        %3812 = vmatpush.msra.mxu0 %v3087
        %3813 = vmatpush.msra.mxu0 %v3085
        %3814 = vmatpush.msra.mxu0 %v3083
        %3815 = vmatpush.msra.mxu0 %v3081
        %3816 = vmatpush.msra.mxu0 %v3079
        %3817 = vmatpush.msra.mxu0 %v3077
        %3818 = vmatmul.f32.gmra.mxu0 %v3538
        %v3819 = vpop.f32.mrf.mxu0
        %v3820 = vadd.f32 %v3800, %v3819
        %3821 = vdwg.mxu0
        %3822 = vmatpush.msra.mxu0 %v3139
        %3823 = vmatpush.msra.mxu0 %v3137
        %3824 = vmatpush.msra.mxu0 %v3135
        %3825 = vmatpush.msra.mxu0 %v3133
        %3826 = vmatpush.msra.mxu0 %v3131
        %3827 = vmatpush.msra.mxu0 %v3129
        %3828 = vmatpush.msra.mxu0 %v3127
        %3829 = vmatpush.msra.mxu0 %v3125
        %3830 = vmatpush.msra.mxu0 %v3123
        %3831 = vmatpush.msra.mxu0 %v3121
        %3832 = vmatpush.msra.mxu0 %v3119
        %3833 = vmatpush.msra.mxu0 %v3117
        %3834 = vmatpush.msra.mxu0 %v3115
        %3835 = vmatpush.msra.mxu0 %v3113
        %3836 = vmatpush.msra.mxu0 %v3111
        %3837 = vmatpush.msra.mxu0 %v3109
        %3838 = vmatmul.f32.gmra.mxu0 %v3539
        %v3839 = vpop.f32.mrf.mxu0
        %v3840 = vadd.f32 %v3820, %v3839
        %3841 = vdwg.mxu0
        %3842 = vmatpush.msra.mxu0 %v3171
        %3843 = vmatpush.msra.mxu0 %v3169
        %3844 = vmatpush.msra.mxu0 %v3167
        %3845 = vmatpush.msra.mxu0 %v3165
        %3846 = vmatpush.msra.mxu0 %v3163
        %3847 = vmatpush.msra.mxu0 %v3161
        %3848 = vmatpush.msra.mxu0 %v3159
        %3849 = vmatpush.msra.mxu0 %v3157
        %3850 = vmatpush.msra.mxu0 %v3155
        %3851 = vmatpush.msra.mxu0 %v3153
        %3852 = vmatpush.msra.mxu0 %v3151
        %3853 = vmatpush.msra.mxu0 %v3149
        %3854 = vmatpush.msra.mxu0 %v3147
        %3855 = vmatpush.msra.mxu0 %v3145
        %3856 = vmatpush.msra.mxu0 %v3143
        %3857 = vmatpush.msra.mxu0 %v3141
        %3858 = vmatmul.f32.gmra.mxu0 %v3540
        %v3859 = vpop.f32.mrf.mxu0
        %v3860 = vadd.f32 %v3840, %v3859
        %3861 = vdwg.mxu0
        %3862 = vmatpush.msra.mxu0 %v3203
        %3863 = vmatpush.msra.mxu0 %v3201
        %3864 = vmatpush.msra.mxu0 %v3199
        %3865 = vmatpush.msra.mxu0 %v3197
        %3866 = vmatpush.msra.mxu0 %v3195
        %3867 = vmatpush.msra.mxu0 %v3193
        %3868 = vmatpush.msra.mxu0 %v3191
        %3869 = vmatpush.msra.mxu0 %v3189
        %3870 = vmatpush.msra.mxu0 %v3187
        %3871 = vmatpush.msra.mxu0 %v3185
        %3872 = vmatpush.msra.mxu0 %v3183
        %3873 = vmatpush.msra.mxu0 %v3181
        %3874 = vmatpush.msra.mxu0 %v3179
        %3875 = vmatpush.msra.mxu0 %v3177
        %3876 = vmatpush.msra.mxu0 %v3175
        %3877 = vmatpush.msra.mxu0 %v3173
        %3878 = vmatmul.f32.gmra.mxu0 %v3541
        %v3879 = vpop.f32.mrf.mxu0
        %v3880 = vadd.f32 %v3860, %v3879
        %3881 = vdwg.mxu0
        %3882 = vmatpush.msra.mxu0 %v3235
        %3883 = vmatpush.msra.mxu0 %v3233
        %3884 = vmatpush.msra.mxu0 %v3231
        %3885 = vmatpush.msra.mxu0 %v3229
        %3886 = vmatpush.msra.mxu0 %v3227
        %3887 = vmatpush.msra.mxu0 %v3225
        %3888 = vmatpush.msra.mxu0 %v3223
        %3889 = vmatpush.msra.mxu0 %v3221
        %3890 = vmatpush.msra.mxu0 %v3219
        %3891 = vmatpush.msra.mxu0 %v3217
        %3892 = vmatpush.msra.mxu0 %v3215
        %3893 = vmatpush.msra.mxu0 %v3213
        %3894 = vmatpush.msra.mxu0 %v3211
        %3895 = vmatpush.msra.mxu0 %v3209
        %3896 = vmatpush.msra.mxu0 %v3207
        %3897 = vmatpush.msra.mxu0 %v3205
        %3898 = vmatmul.f32.gmra.mxu0 %v3542
        %v3899 = vpop.f32.mrf.mxu0
        %v3900 = vadd.f32 %v3880, %v3899
        %3901 = vdwg.mxu0
        %3902 = vmatpush.msra.mxu0 %v3267
        %3903 = vmatpush.msra.mxu0 %v3265
        %3904 = vmatpush.msra.mxu0 %v3263
        %3905 = vmatpush.msra.mxu0 %v3261
        %3906 = vmatpush.msra.mxu0 %v3259
        %3907 = vmatpush.msra.mxu0 %v3257
        %3908 = vmatpush.msra.mxu0 %v3255
        %3909 = vmatpush.msra.mxu0 %v3253
        %3910 = vmatpush.msra.mxu0 %v3251
        %3911 = vmatpush.msra.mxu0 %v3249
        %3912 = vmatpush.msra.mxu0 %v3247
        %3913 = vmatpush.msra.mxu0 %v3245
        %3914 = vmatpush.msra.mxu0 %v3243
        %3915 = vmatpush.msra.mxu0 %v3241
        %3916 = vmatpush.msra.mxu0 %v3239
        %3917 = vmatpush.msra.mxu0 %v3237
        %3918 = vmatmul.f32.gmra.mxu0 %v3545
        %v3919 = vpop.f32.mrf.mxu0
        %v3920 = vadd.f32 %v3900, %v3919
        %3921 = vdwg.mxu0
        %3922 = vmatpush.msra.mxu0 %v3299
        %3923 = vmatpush.msra.mxu0 %v3297
        %3924 = vmatpush.msra.mxu0 %v3295
        %3925 = vmatpush.msra.mxu0 %v3293
        %3926 = vmatpush.msra.mxu0 %v3291
        %3927 = vmatpush.msra.mxu0 %v3289
        %3928 = vmatpush.msra.mxu0 %v3287
        %3929 = vmatpush.msra.mxu0 %v3285
        %3930 = vmatpush.msra.mxu0 %v3283
        %3931 = vmatpush.msra.mxu0 %v3281
        %3932 = vmatpush.msra.mxu0 %v3279
        %3933 = vmatpush.msra.mxu0 %v3277
        %3934 = vmatpush.msra.mxu0 %v3275
        %3935 = vmatpush.msra.mxu0 %v3273
        %3936 = vmatpush.msra.mxu0 %v3271
        %3937 = vmatpush.msra.mxu0 %v3269
        %3938 = vmatmul.f32.gmra.mxu0 %v3546
        %v3939 = vpop.f32.mrf.mxu0
        %v3940 = vadd.f32 %v3920, %v3939
        %3941 = vdwg.mxu0
        %3942 = vmatpush.msra.mxu0 %v3331
        %3943 = vmatpush.msra.mxu0 %v3329
        %3944 = vmatpush.msra.mxu0 %v3327
        %3945 = vmatpush.msra.mxu0 %v3325
        %3946 = vmatpush.msra.mxu0 %v3323
        %3947 = vmatpush.msra.mxu0 %v3321
        %3948 = vmatpush.msra.mxu0 %v3319
        %3949 = vmatpush.msra.mxu0 %v3317
        %3950 = vmatpush.msra.mxu0 %v3315
        %3951 = vmatpush.msra.mxu0 %v3313
        %3952 = vmatpush.msra.mxu0 %v3311
        %3953 = vmatpush.msra.mxu0 %v3309
        %3954 = vmatpush.msra.mxu0 %v3307
        %3955 = vmatpush.msra.mxu0 %v3305
        %3956 = vmatpush.msra.mxu0 %v3303
        %3957 = vmatpush.msra.mxu0 %v3301
        %3958 = vmatmul.f32.gmra.mxu0 %v3547
        %v3959 = vpop.f32.mrf.mxu0
        %v3960 = vadd.f32 %v3940, %v3959
        %3961 = vdwg.mxu0
        %3962 = vmatpush.msra.mxu0 %v3363
        %3963 = vmatpush.msra.mxu0 %v3361
        %3964 = vmatpush.msra.mxu0 %v3359
        %3965 = vmatpush.msra.mxu0 %v3357
        %3966 = vmatpush.msra.mxu0 %v3355
        %3967 = vmatpush.msra.mxu0 %v3353
        %3968 = vmatpush.msra.mxu0 %v3351
        %3969 = vmatpush.msra.mxu0 %v3349
        %3970 = vmatpush.msra.mxu0 %v3347
        %3971 = vmatpush.msra.mxu0 %v3345
        %3972 = vmatpush.msra.mxu0 %v3343
        %3973 = vmatpush.msra.mxu0 %v3341
        %3974 = vmatpush.msra.mxu0 %v3339
        %3975 = vmatpush.msra.mxu0 %v3337
        %3976 = vmatpush.msra.mxu0 %v3335
        %3977 = vmatpush.msra.mxu0 %v3333
        %3978 = vmatmul.f32.gmra.mxu0 %v3548
        %v3979 = vpop.f32.mrf.mxu0
        %v3980 = vadd.f32 %v3960, %v3979
        %3981 = vdwg.mxu0
        %3982 = vmatpush.msra.mxu0 %v3395
        %3983 = vmatpush.msra.mxu0 %v3393
        %3984 = vmatpush.msra.mxu0 %v3391
        %3985 = vmatpush.msra.mxu0 %v3389
        %3986 = vmatpush.msra.mxu0 %v3387
        %3987 = vmatpush.msra.mxu0 %v3385
        %3988 = vmatpush.msra.mxu0 %v3383
        %3989 = vmatpush.msra.mxu0 %v3381
        %3990 = vmatpush.msra.mxu0 %v3379
        %3991 = vmatpush.msra.mxu0 %v3377
        %3992 = vmatpush.msra.mxu0 %v3375
        %3993 = vmatpush.msra.mxu0 %v3373
        %3994 = vmatpush.msra.mxu0 %v3371
        %3995 = vmatpush.msra.mxu0 %v3369
        %3996 = vmatpush.msra.mxu0 %v3367
        %3997 = vmatpush.msra.mxu0 %v3365
        %3998 = vmatmul.f32.gmra.mxu0 %v3549
        %v3999 = vpop.f32.mrf.mxu0
        %v4000 = vadd.f32 %v3980, %v3999
        %4001 = vdwg.mxu0
        %4002 = vmatpush.msra.mxu0 %v3427
        %4003 = vmatpush.msra.mxu0 %v3425
        %4004 = vmatpush.msra.mxu0 %v3423
        %4005 = vmatpush.msra.mxu0 %v3421
        %4006 = vmatpush.msra.mxu0 %v3419
        %4007 = vmatpush.msra.mxu0 %v3417
        %4008 = vmatpush.msra.mxu0 %v3415
        %4009 = vmatpush.msra.mxu0 %v3413
        %4010 = vmatpush.msra.mxu0 %v3411
        %4011 = vmatpush.msra.mxu0 %v3409
        %4012 = vmatpush.msra.mxu0 %v3407
        %4013 = vmatpush.msra.mxu0 %v3405
        %4014 = vmatpush.msra.mxu0 %v3403
        %4015 = vmatpush.msra.mxu0 %v3401
        %4016 = vmatpush.msra.mxu0 %v3399
        %4017 = vmatpush.msra.mxu0 %v3397
        %4018 = vmatmul.f32.gmra.mxu0 %v3550
        %v4019 = vpop.f32.mrf.mxu0
        %v4020 = vadd.f32 %v4000, %v4019
        %4021 = vdwg.mxu0
        %4022 = vmatpush.msra.mxu0 %v3459
        %4023 = vmatpush.msra.mxu0 %v3457
        %4024 = vmatpush.msra.mxu0 %v3455
        %4025 = vmatpush.msra.mxu0 %v3453
        %4026 = vmatpush.msra.mxu0 %v3451
        %4027 = vmatpush.msra.mxu0 %v3449
        %4028 = vmatpush.msra.mxu0 %v3447
        %4029 = vmatpush.msra.mxu0 %v3445
        %4030 = vmatpush.msra.mxu0 %v3443
        %4031 = vmatpush.msra.mxu0 %v3441
        %4032 = vmatpush.msra.mxu0 %v3439
        %4033 = vmatpush.msra.mxu0 %v3437
        %4034 = vmatpush.msra.mxu0 %v3435
        %4035 = vmatpush.msra.mxu0 %v3433
        %4036 = vmatpush.msra.mxu0 %v3431
        %4037 = vmatpush.msra.mxu0 %v3429
        %4038 = vmatmul.f32.gmra.mxu0 %v3551
        %v4039 = vpop.f32.mrf.mxu0
        %v4040 = vadd.f32 %v4020, %v4039
        %4041 = vdwg.mxu0
        %4042 = vmatpush.msra.mxu0 %v3491
        %4043 = vmatpush.msra.mxu0 %v3489
        %4044 = vmatpush.msra.mxu0 %v3487
        %4045 = vmatpush.msra.mxu0 %v3485
        %4046 = vmatpush.msra.mxu0 %v3483
        %4047 = vmatpush.msra.mxu0 %v3481
        %4048 = vmatpush.msra.mxu0 %v3479
        %4049 = vmatpush.msra.mxu0 %v3477
        %4050 = vmatpush.msra.mxu0 %v3475
        %4051 = vmatpush.msra.mxu0 %v3473
        %4052 = vmatpush.msra.mxu0 %v3471
        %4053 = vmatpush.msra.mxu0 %v3469
        %4054 = vmatpush.msra.mxu0 %v3467
        %4055 = vmatpush.msra.mxu0 %v3465
        %4056 = vmatpush.msra.mxu0 %v3463
        %4057 = vmatpush.msra.mxu0 %v3461
        %4058 = vmatmul.f32.gmra.mxu0 %v3552
        %v4059 = vpop.f32.mrf.mxu0
        %v4060 = vadd.f32 %v4040, %v4059
        %4061 = vdwg.mxu0
        %4062 = vmatpush.msra.mxu0 0.0
        %4063 = vmatpush.msra.mxu0 0.0
        %4064 = vmatpush.msra.mxu0 0.0
        %4065 = vmatpush.msra.mxu0 0.0
        %4066 = vmatpush.msra.mxu0 0.0
        %4067 = vmatpush.msra.mxu0 0.0
        %4068 = vmatpush.msra.mxu0 0.0
        %4069 = vmatpush.msra.mxu0 0.0
        %4070 = vmatpush.msra.mxu0 %v3507
        %4071 = vmatpush.msra.mxu0 %v3505
        %4072 = vmatpush.msra.mxu0 %v3503
        %4073 = vmatpush.msra.mxu0 %v3501
        %4074 = vmatpush.msra.mxu0 %v3499
        %4075 = vmatpush.msra.mxu0 %v3497
        %4076 = vmatpush.msra.mxu0 %v3495
        %4077 = vmatpush.msra.mxu0 %v3493
        %4078 = vmatmul.f32.gmra.mxu0 %v3580
        %v4079 = vpop.f32.mrf.mxu0
        %v4080 = vadd.f32 %v4060, %v4079
        %4081 = vdwg.mxu0
        %4082 = vmatpush.msra.mxu0 %v2756
        %4083 = vmatpush.msra.mxu0 %v2754
        %4084 = vmatpush.msra.mxu0 %v2752
        %4085 = vmatpush.msra.mxu0 %v2750
        %4086 = vmatpush.msra.mxu0 %v2748
        %4087 = vmatpush.msra.mxu0 %v2746
        %4088 = vmatpush.msra.mxu0 %v2744
        %4089 = vmatpush.msra.mxu0 %v2742
        %4090 = vmatpush.msra.mxu0 %v2740
        %4091 = vmatpush.msra.mxu0 %v2738
        %4092 = vmatpush.msra.mxu0 %v2736
        %4093 = vmatpush.msra.mxu0 %v2734
        %4094 = vmatpush.msra.mxu0 %v2732
        %4095 = vmatpush.msra.mxu0 %v2730
        %4096 = vmatpush.msra.mxu0 %v2728
        %4097 = vmatpush.msra.mxu0 %v2726
        %4098 = vmatmul.f32.gmra.mxu0 %v3525
        %v4099 = vpop.f32.mrf.mxu0
        %v4100 = vadd.f32 %v3512, %v4099
        %4101 = vdwg.mxu0
        %4102 = vmatpush.msra.mxu0 %v2788
        %4103 = vmatpush.msra.mxu0 %v2786
        %4104 = vmatpush.msra.mxu0 %v2784
        %4105 = vmatpush.msra.mxu0 %v2782
        %4106 = vmatpush.msra.mxu0 %v2780
        %4107 = vmatpush.msra.mxu0 %v2778
        %4108 = vmatpush.msra.mxu0 %v2776
        %4109 = vmatpush.msra.mxu0 %v2774
        %4110 = vmatpush.msra.mxu0 %v2772
        %4111 = vmatpush.msra.mxu0 %v2770
        %4112 = vmatpush.msra.mxu0 %v2768
        %4113 = vmatpush.msra.mxu0 %v2766
        %4114 = vmatpush.msra.mxu0 %v2764
        %4115 = vmatpush.msra.mxu0 %v2762
        %4116 = vmatpush.msra.mxu0 %v2760
        %4117 = vmatpush.msra.mxu0 %v2758
        %4118 = vmatmul.f32.gmra.mxu0 %v3526
        %v4119 = vpop.f32.mrf.mxu0
        %v4120 = vadd.f32 %v4100, %v4119
        %4121 = vdwg.mxu0
        %4122 = vmatpush.msra.mxu0 %v2820
        %4123 = vmatpush.msra.mxu0 %v2818
        %4124 = vmatpush.msra.mxu0 %v2816
        %4125 = vmatpush.msra.mxu0 %v2814
        %4126 = vmatpush.msra.mxu0 %v2812
        %4127 = vmatpush.msra.mxu0 %v2810
        %4128 = vmatpush.msra.mxu0 %v2808
        %4129 = vmatpush.msra.mxu0 %v2806
        %4130 = vmatpush.msra.mxu0 %v2804
        %4131 = vmatpush.msra.mxu0 %v2802
        %4132 = vmatpush.msra.mxu0 %v2800
        %4133 = vmatpush.msra.mxu0 %v2798
        %4134 = vmatpush.msra.mxu0 %v2796
        %4135 = vmatpush.msra.mxu0 %v2794
        %4136 = vmatpush.msra.mxu0 %v2792
        %4137 = vmatpush.msra.mxu0 %v2790
        %4138 = vmatmul.f32.gmra.mxu0 %v3527
        %v4139 = vpop.f32.mrf.mxu0
        %v4140 = vadd.f32 %v4120, %v4139
        %4141 = vdwg.mxu0
        %4142 = vmatpush.msra.mxu0 %v2852
        %4143 = vmatpush.msra.mxu0 %v2850
        %4144 = vmatpush.msra.mxu0 %v2848
        %4145 = vmatpush.msra.mxu0 %v2846
        %4146 = vmatpush.msra.mxu0 %v2844
        %4147 = vmatpush.msra.mxu0 %v2842
        %4148 = vmatpush.msra.mxu0 %v2840
        %4149 = vmatpush.msra.mxu0 %v2838
        %4150 = vmatpush.msra.mxu0 %v2836
        %4151 = vmatpush.msra.mxu0 %v2834
        %4152 = vmatpush.msra.mxu0 %v2832
        %4153 = vmatpush.msra.mxu0 %v2830
        %4154 = vmatpush.msra.mxu0 %v2828
        %4155 = vmatpush.msra.mxu0 %v2826
        %4156 = vmatpush.msra.mxu0 %v2824
        %4157 = vmatpush.msra.mxu0 %v2822
        %4158 = vmatmul.f32.gmra.mxu0 %v3528
        %v4159 = vpop.f32.mrf.mxu0
        %v4160 = vadd.f32 %v4140, %v4159
        %4161 = vdwg.mxu0
        %4162 = vmatpush.msra.mxu0 %v2884
        %4163 = vmatpush.msra.mxu0 %v2882
        %4164 = vmatpush.msra.mxu0 %v2880
        %4165 = vmatpush.msra.mxu0 %v2878
        %4166 = vmatpush.msra.mxu0 %v2876
        %4167 = vmatpush.msra.mxu0 %v2874
        %4168 = vmatpush.msra.mxu0 %v2872
        %4169 = vmatpush.msra.mxu0 %v2870
        %4170 = vmatpush.msra.mxu0 %v2868
        %4171 = vmatpush.msra.mxu0 %v2866
        %4172 = vmatpush.msra.mxu0 %v2864
        %4173 = vmatpush.msra.mxu0 %v2862
        %4174 = vmatpush.msra.mxu0 %v2860
        %4175 = vmatpush.msra.mxu0 %v2858
        %4176 = vmatpush.msra.mxu0 %v2856
        %4177 = vmatpush.msra.mxu0 %v2854
        %4178 = vmatmul.f32.gmra.mxu0 %v3529
        %v4179 = vpop.f32.mrf.mxu0
        %v4180 = vadd.f32 %v4160, %v4179
        %4181 = vdwg.mxu0
        %4182 = vmatpush.msra.mxu0 %v2916
        %4183 = vmatpush.msra.mxu0 %v2914
        %4184 = vmatpush.msra.mxu0 %v2912
        %4185 = vmatpush.msra.mxu0 %v2910
        %4186 = vmatpush.msra.mxu0 %v2908
        %4187 = vmatpush.msra.mxu0 %v2906
        %4188 = vmatpush.msra.mxu0 %v2904
        %4189 = vmatpush.msra.mxu0 %v2902
        %4190 = vmatpush.msra.mxu0 %v2900
        %4191 = vmatpush.msra.mxu0 %v2898
        %4192 = vmatpush.msra.mxu0 %v2896
        %4193 = vmatpush.msra.mxu0 %v2894
        %4194 = vmatpush.msra.mxu0 %v2892
        %4195 = vmatpush.msra.mxu0 %v2890
        %4196 = vmatpush.msra.mxu0 %v2888
        %4197 = vmatpush.msra.mxu0 %v2886
        %4198 = vmatmul.f32.gmra.mxu0 %v3530
        %v4199 = vpop.f32.mrf.mxu0
        %v4200 = vadd.f32 %v4180, %v4199
        %4201 = vdwg.mxu0
        %4202 = vmatpush.msra.mxu0 %v2948
        %4203 = vmatpush.msra.mxu0 %v2946
        %4204 = vmatpush.msra.mxu0 %v2944
        %4205 = vmatpush.msra.mxu0 %v2942
        %4206 = vmatpush.msra.mxu0 %v2940
        %4207 = vmatpush.msra.mxu0 %v2938
        %4208 = vmatpush.msra.mxu0 %v2936
        %4209 = vmatpush.msra.mxu0 %v2934
        %4210 = vmatpush.msra.mxu0 %v2932
        %4211 = vmatpush.msra.mxu0 %v2930
        %4212 = vmatpush.msra.mxu0 %v2928
        %4213 = vmatpush.msra.mxu0 %v2926
        %4214 = vmatpush.msra.mxu0 %v2924
        %4215 = vmatpush.msra.mxu0 %v2922
        %4216 = vmatpush.msra.mxu0 %v2920
        %4217 = vmatpush.msra.mxu0 %v2918
        %4218 = vmatmul.f32.gmra.mxu0 %v3531
        %v4219 = vpop.f32.mrf.mxu0
        %v4220 = vadd.f32 %v4200, %v4219
        %4221 = vdwg.mxu0
        %4222 = vmatpush.msra.mxu0 %v2980
        %4223 = vmatpush.msra.mxu0 %v2978
        %4224 = vmatpush.msra.mxu0 %v2976
        %4225 = vmatpush.msra.mxu0 %v2974
        %4226 = vmatpush.msra.mxu0 %v2972
        %4227 = vmatpush.msra.mxu0 %v2970
        %4228 = vmatpush.msra.mxu0 %v2968
        %4229 = vmatpush.msra.mxu0 %v2966
        %4230 = vmatpush.msra.mxu0 %v2964
        %4231 = vmatpush.msra.mxu0 %v2962
        %4232 = vmatpush.msra.mxu0 %v2960
        %4233 = vmatpush.msra.mxu0 %v2958
        %4234 = vmatpush.msra.mxu0 %v2956
        %4235 = vmatpush.msra.mxu0 %v2954
        %4236 = vmatpush.msra.mxu0 %v2952
        %4237 = vmatpush.msra.mxu0 %v2950
        %4238 = vmatmul.f32.gmra.mxu0 %v3532
        %v4239 = vpop.f32.mrf.mxu0
        %v4240 = vadd.f32 %v4220, %v4239
        %4241 = vdwg.mxu0
        %4242 = vmatpush.msra.mxu0 %v3012
        %4243 = vmatpush.msra.mxu0 %v3010
        %4244 = vmatpush.msra.mxu0 %v3008
        %4245 = vmatpush.msra.mxu0 %v3006
        %4246 = vmatpush.msra.mxu0 %v3004
        %4247 = vmatpush.msra.mxu0 %v3002
        %4248 = vmatpush.msra.mxu0 %v3000
        %4249 = vmatpush.msra.mxu0 %v2998
        %4250 = vmatpush.msra.mxu0 %v2996
        %4251 = vmatpush.msra.mxu0 %v2994
        %4252 = vmatpush.msra.mxu0 %v2992
        %4253 = vmatpush.msra.mxu0 %v2990
        %4254 = vmatpush.msra.mxu0 %v2988
        %4255 = vmatpush.msra.mxu0 %v2986
        %4256 = vmatpush.msra.mxu0 %v2984
        %4257 = vmatpush.msra.mxu0 %v2982
        %4258 = vmatmul.f32.gmra.mxu0 %v3535
        %v4259 = vpop.f32.mrf.mxu0
        %v4260 = vadd.f32 %v4240, %v4259
        %4261 = vdwg.mxu0
        %4262 = vmatpush.msra.mxu0 %v3044
        %4263 = vmatpush.msra.mxu0 %v3042
        %4264 = vmatpush.msra.mxu0 %v3040
        %4265 = vmatpush.msra.mxu0 %v3038
        %4266 = vmatpush.msra.mxu0 %v3036
        %4267 = vmatpush.msra.mxu0 %v3034
        %4268 = vmatpush.msra.mxu0 %v3032
        %4269 = vmatpush.msra.mxu0 %v3030
        %4270 = vmatpush.msra.mxu0 %v3028
        %4271 = vmatpush.msra.mxu0 %v3026
        %4272 = vmatpush.msra.mxu0 %v3024
        %4273 = vmatpush.msra.mxu0 %v3022
        %4274 = vmatpush.msra.mxu0 %v3020
        %4275 = vmatpush.msra.mxu0 %v3018
        %4276 = vmatpush.msra.mxu0 %v3016
        %4277 = vmatpush.msra.mxu0 %v3014
        %4278 = vmatmul.f32.gmra.mxu0 %v3536
        %v4279 = vpop.f32.mrf.mxu0
        %v4280 = vadd.f32 %v4260, %v4279
        %4281 = vdwg.mxu0
        %4282 = vmatpush.msra.mxu0 %v3076
        %4283 = vmatpush.msra.mxu0 %v3074
        %4284 = vmatpush.msra.mxu0 %v3072
        %4285 = vmatpush.msra.mxu0 %v3070
        %4286 = vmatpush.msra.mxu0 %v3068
        %4287 = vmatpush.msra.mxu0 %v3066
        %4288 = vmatpush.msra.mxu0 %v3064
        %4289 = vmatpush.msra.mxu0 %v3062
        %4290 = vmatpush.msra.mxu0 %v3060
        %4291 = vmatpush.msra.mxu0 %v3058
        %4292 = vmatpush.msra.mxu0 %v3056
        %4293 = vmatpush.msra.mxu0 %v3054
        %4294 = vmatpush.msra.mxu0 %v3052
        %4295 = vmatpush.msra.mxu0 %v3050
        %4296 = vmatpush.msra.mxu0 %v3048
        %4297 = vmatpush.msra.mxu0 %v3046
        %4298 = vmatmul.f32.gmra.mxu0 %v3537
        %v4299 = vpop.f32.mrf.mxu0
        %v4300 = vadd.f32 %v4280, %v4299
        %4301 = vdwg.mxu0
        %4302 = vmatpush.msra.mxu0 %v3108
        %4303 = vmatpush.msra.mxu0 %v3106
        %4304 = vmatpush.msra.mxu0 %v3104
        %4305 = vmatpush.msra.mxu0 %v3102
        %4306 = vmatpush.msra.mxu0 %v3100
        %4307 = vmatpush.msra.mxu0 %v3098
        %4308 = vmatpush.msra.mxu0 %v3096
        %4309 = vmatpush.msra.mxu0 %v3094
        %4310 = vmatpush.msra.mxu0 %v3092
        %4311 = vmatpush.msra.mxu0 %v3090
        %4312 = vmatpush.msra.mxu0 %v3088
        %4313 = vmatpush.msra.mxu0 %v3086
        %4314 = vmatpush.msra.mxu0 %v3084
        %4315 = vmatpush.msra.mxu0 %v3082
        %4316 = vmatpush.msra.mxu0 %v3080
        %4317 = vmatpush.msra.mxu0 %v3078
        %4318 = vmatmul.f32.gmra.mxu0 %v3538
        %v4319 = vpop.f32.mrf.mxu0
        %v4320 = vadd.f32 %v4300, %v4319
        %4321 = vdwg.mxu0
        %4322 = vmatpush.msra.mxu0 %v3140
        %4323 = vmatpush.msra.mxu0 %v3138
        %4324 = vmatpush.msra.mxu0 %v3136
        %4325 = vmatpush.msra.mxu0 %v3134
        %4326 = vmatpush.msra.mxu0 %v3132
        %4327 = vmatpush.msra.mxu0 %v3130
        %4328 = vmatpush.msra.mxu0 %v3128
        %4329 = vmatpush.msra.mxu0 %v3126
        %4330 = vmatpush.msra.mxu0 %v3124
        %4331 = vmatpush.msra.mxu0 %v3122
        %4332 = vmatpush.msra.mxu0 %v3120
        %4333 = vmatpush.msra.mxu0 %v3118
        %4334 = vmatpush.msra.mxu0 %v3116
        %4335 = vmatpush.msra.mxu0 %v3114
        %4336 = vmatpush.msra.mxu0 %v3112
        %4337 = vmatpush.msra.mxu0 %v3110
        %4338 = vmatmul.f32.gmra.mxu0 %v3539
        %v4339 = vpop.f32.mrf.mxu0
        %v4340 = vadd.f32 %v4320, %v4339
        %4341 = vdwg.mxu0
        %4342 = vmatpush.msra.mxu0 %v3172
        %4343 = vmatpush.msra.mxu0 %v3170
        %4344 = vmatpush.msra.mxu0 %v3168
        %4345 = vmatpush.msra.mxu0 %v3166
        %4346 = vmatpush.msra.mxu0 %v3164
        %4347 = vmatpush.msra.mxu0 %v3162
        %4348 = vmatpush.msra.mxu0 %v3160
        %4349 = vmatpush.msra.mxu0 %v3158
        %4350 = vmatpush.msra.mxu0 %v3156
        %4351 = vmatpush.msra.mxu0 %v3154
        %4352 = vmatpush.msra.mxu0 %v3152
        %4353 = vmatpush.msra.mxu0 %v3150
        %4354 = vmatpush.msra.mxu0 %v3148
        %4355 = vmatpush.msra.mxu0 %v3146
        %4356 = vmatpush.msra.mxu0 %v3144
        %4357 = vmatpush.msra.mxu0 %v3142
        %4358 = vmatmul.f32.gmra.mxu0 %v3540
        %v4359 = vpop.f32.mrf.mxu0
        %v4360 = vadd.f32 %v4340, %v4359
        %4361 = vdwg.mxu0
        %4362 = vmatpush.msra.mxu0 %v3204
        %4363 = vmatpush.msra.mxu0 %v3202
        %4364 = vmatpush.msra.mxu0 %v3200
        %4365 = vmatpush.msra.mxu0 %v3198
        %4366 = vmatpush.msra.mxu0 %v3196
        %4367 = vmatpush.msra.mxu0 %v3194
        %4368 = vmatpush.msra.mxu0 %v3192
        %4369 = vmatpush.msra.mxu0 %v3190
        %4370 = vmatpush.msra.mxu0 %v3188
        %4371 = vmatpush.msra.mxu0 %v3186
        %4372 = vmatpush.msra.mxu0 %v3184
        %4373 = vmatpush.msra.mxu0 %v3182
        %4374 = vmatpush.msra.mxu0 %v3180
        %4375 = vmatpush.msra.mxu0 %v3178
        %4376 = vmatpush.msra.mxu0 %v3176
        %4377 = vmatpush.msra.mxu0 %v3174
        %4378 = vmatmul.f32.gmra.mxu0 %v3541
        %v4379 = vpop.f32.mrf.mxu0
        %v4380 = vadd.f32 %v4360, %v4379
        %4381 = vdwg.mxu0
        %4382 = vmatpush.msra.mxu0 %v3236
        %4383 = vmatpush.msra.mxu0 %v3234
        %4384 = vmatpush.msra.mxu0 %v3232
        %4385 = vmatpush.msra.mxu0 %v3230
        %4386 = vmatpush.msra.mxu0 %v3228
        %4387 = vmatpush.msra.mxu0 %v3226
        %4388 = vmatpush.msra.mxu0 %v3224
        %4389 = vmatpush.msra.mxu0 %v3222
        %4390 = vmatpush.msra.mxu0 %v3220
        %4391 = vmatpush.msra.mxu0 %v3218
        %4392 = vmatpush.msra.mxu0 %v3216
        %4393 = vmatpush.msra.mxu0 %v3214
        %4394 = vmatpush.msra.mxu0 %v3212
        %4395 = vmatpush.msra.mxu0 %v3210
        %4396 = vmatpush.msra.mxu0 %v3208
        %4397 = vmatpush.msra.mxu0 %v3206
        %4398 = vmatmul.f32.gmra.mxu0 %v3542
        %v4399 = vpop.f32.mrf.mxu0
        %v4400 = vadd.f32 %v4380, %v4399
        %4401 = vdwg.mxu0
        %4402 = vmatpush.msra.mxu0 %v3268
        %4403 = vmatpush.msra.mxu0 %v3266
        %4404 = vmatpush.msra.mxu0 %v3264
        %4405 = vmatpush.msra.mxu0 %v3262
        %4406 = vmatpush.msra.mxu0 %v3260
        %4407 = vmatpush.msra.mxu0 %v3258
        %4408 = vmatpush.msra.mxu0 %v3256
        %4409 = vmatpush.msra.mxu0 %v3254
        %4410 = vmatpush.msra.mxu0 %v3252
        %4411 = vmatpush.msra.mxu0 %v3250
        %4412 = vmatpush.msra.mxu0 %v3248
        %4413 = vmatpush.msra.mxu0 %v3246
        %4414 = vmatpush.msra.mxu0 %v3244
        %4415 = vmatpush.msra.mxu0 %v3242
        %4416 = vmatpush.msra.mxu0 %v3240
        %4417 = vmatpush.msra.mxu0 %v3238
        %4418 = vmatmul.f32.gmra.mxu0 %v3545
        %v4419 = vpop.f32.mrf.mxu0
        %v4420 = vadd.f32 %v4400, %v4419
        %4421 = vdwg.mxu0
        %4422 = vmatpush.msra.mxu0 %v3300
        %4423 = vmatpush.msra.mxu0 %v3298
        %4424 = vmatpush.msra.mxu0 %v3296
        %4425 = vmatpush.msra.mxu0 %v3294
        %4426 = vmatpush.msra.mxu0 %v3292
        %4427 = vmatpush.msra.mxu0 %v3290
        %4428 = vmatpush.msra.mxu0 %v3288
        %4429 = vmatpush.msra.mxu0 %v3286
        %4430 = vmatpush.msra.mxu0 %v3284
        %4431 = vmatpush.msra.mxu0 %v3282
        %4432 = vmatpush.msra.mxu0 %v3280
        %4433 = vmatpush.msra.mxu0 %v3278
        %4434 = vmatpush.msra.mxu0 %v3276
        %4435 = vmatpush.msra.mxu0 %v3274
        %4436 = vmatpush.msra.mxu0 %v3272
        %4437 = vmatpush.msra.mxu0 %v3270
        %4438 = vmatmul.f32.gmra.mxu0 %v3546
        %v4439 = vpop.f32.mrf.mxu0
        %v4440 = vadd.f32 %v4420, %v4439
        %4441 = vdwg.mxu0
        %4442 = vmatpush.msra.mxu0 %v3332
        %4443 = vmatpush.msra.mxu0 %v3330
        %4444 = vmatpush.msra.mxu0 %v3328
        %4445 = vmatpush.msra.mxu0 %v3326
        %4446 = vmatpush.msra.mxu0 %v3324
        %4447 = vmatpush.msra.mxu0 %v3322
        %4448 = vmatpush.msra.mxu0 %v3320
        %4449 = vmatpush.msra.mxu0 %v3318
        %4450 = vmatpush.msra.mxu0 %v3316
        %4451 = vmatpush.msra.mxu0 %v3314
        %4452 = vmatpush.msra.mxu0 %v3312
        %4453 = vmatpush.msra.mxu0 %v3310
        %4454 = vmatpush.msra.mxu0 %v3308
        %4455 = vmatpush.msra.mxu0 %v3306
        %4456 = vmatpush.msra.mxu0 %v3304
        %4457 = vmatpush.msra.mxu0 %v3302
        %4458 = vmatmul.f32.gmra.mxu0 %v3547
        %v4459 = vpop.f32.mrf.mxu0
        %v4460 = vadd.f32 %v4440, %v4459
        %4461 = vdwg.mxu0
        %4462 = vmatpush.msra.mxu0 %v3364
        %4463 = vmatpush.msra.mxu0 %v3362
        %4464 = vmatpush.msra.mxu0 %v3360
        %4465 = vmatpush.msra.mxu0 %v3358
        %4466 = vmatpush.msra.mxu0 %v3356
        %4467 = vmatpush.msra.mxu0 %v3354
        %4468 = vmatpush.msra.mxu0 %v3352
        %4469 = vmatpush.msra.mxu0 %v3350
        %4470 = vmatpush.msra.mxu0 %v3348
        %4471 = vmatpush.msra.mxu0 %v3346
        %4472 = vmatpush.msra.mxu0 %v3344
        %4473 = vmatpush.msra.mxu0 %v3342
        %4474 = vmatpush.msra.mxu0 %v3340
        %4475 = vmatpush.msra.mxu0 %v3338
        %4476 = vmatpush.msra.mxu0 %v3336
        %4477 = vmatpush.msra.mxu0 %v3334
        %4478 = vmatmul.f32.gmra.mxu0 %v3548
        %v4479 = vpop.f32.mrf.mxu0
        %v4480 = vadd.f32 %v4460, %v4479
        %4481 = vdwg.mxu0
        %4482 = vmatpush.msra.mxu0 %v3396
        %4483 = vmatpush.msra.mxu0 %v3394
        %4484 = vmatpush.msra.mxu0 %v3392
        %4485 = vmatpush.msra.mxu0 %v3390
        %4486 = vmatpush.msra.mxu0 %v3388
        %4487 = vmatpush.msra.mxu0 %v3386
        %4488 = vmatpush.msra.mxu0 %v3384
        %4489 = vmatpush.msra.mxu0 %v3382
        %4490 = vmatpush.msra.mxu0 %v3380
        %4491 = vmatpush.msra.mxu0 %v3378
        %4492 = vmatpush.msra.mxu0 %v3376
        %4493 = vmatpush.msra.mxu0 %v3374
        %4494 = vmatpush.msra.mxu0 %v3372
        %4495 = vmatpush.msra.mxu0 %v3370
        %4496 = vmatpush.msra.mxu0 %v3368
        %4497 = vmatpush.msra.mxu0 %v3366
        %4498 = vmatmul.f32.gmra.mxu0 %v3549
        %v4499 = vpop.f32.mrf.mxu0
        %v4500 = vadd.f32 %v4480, %v4499
        %4501 = vdwg.mxu0
        %4502 = vmatpush.msra.mxu0 %v3428
        %4503 = vmatpush.msra.mxu0 %v3426
        %4504 = vmatpush.msra.mxu0 %v3424
        %4505 = vmatpush.msra.mxu0 %v3422
        %4506 = vmatpush.msra.mxu0 %v3420
        %4507 = vmatpush.msra.mxu0 %v3418
        %4508 = vmatpush.msra.mxu0 %v3416
        %4509 = vmatpush.msra.mxu0 %v3414
        %4510 = vmatpush.msra.mxu0 %v3412
        %4511 = vmatpush.msra.mxu0 %v3410
        %4512 = vmatpush.msra.mxu0 %v3408
        %4513 = vmatpush.msra.mxu0 %v3406
        %4514 = vmatpush.msra.mxu0 %v3404
        %4515 = vmatpush.msra.mxu0 %v3402
        %4516 = vmatpush.msra.mxu0 %v3400
        %4517 = vmatpush.msra.mxu0 %v3398
        %4518 = vmatmul.f32.gmra.mxu0 %v3550
        %v4519 = vpop.f32.mrf.mxu0
        %v4520 = vadd.f32 %v4500, %v4519
        %4521 = vdwg.mxu0
        %4522 = vmatpush.msra.mxu0 %v3460
        %4523 = vmatpush.msra.mxu0 %v3458
        %4524 = vmatpush.msra.mxu0 %v3456
        %4525 = vmatpush.msra.mxu0 %v3454
        %4526 = vmatpush.msra.mxu0 %v3452
        %4527 = vmatpush.msra.mxu0 %v3450
        %4528 = vmatpush.msra.mxu0 %v3448
        %4529 = vmatpush.msra.mxu0 %v3446
        %4530 = vmatpush.msra.mxu0 %v3444
        %4531 = vmatpush.msra.mxu0 %v3442
        %4532 = vmatpush.msra.mxu0 %v3440
        %4533 = vmatpush.msra.mxu0 %v3438
        %4534 = vmatpush.msra.mxu0 %v3436
        %4535 = vmatpush.msra.mxu0 %v3434
        %4536 = vmatpush.msra.mxu0 %v3432
        %4537 = vmatpush.msra.mxu0 %v3430
        %4538 = vmatmul.f32.gmra.mxu0 %v3551
        %v4539 = vpop.f32.mrf.mxu0
        %v4540 = vadd.f32 %v4520, %v4539
        %4541 = vdwg.mxu0
        %4542 = vmatpush.msra.mxu0 %v3492
        %4543 = vmatpush.msra.mxu0 %v3490
        %4544 = vmatpush.msra.mxu0 %v3488
        %4545 = vmatpush.msra.mxu0 %v3486
        %4546 = vmatpush.msra.mxu0 %v3484
        %4547 = vmatpush.msra.mxu0 %v3482
        %4548 = vmatpush.msra.mxu0 %v3480
        %4549 = vmatpush.msra.mxu0 %v3478
        %4550 = vmatpush.msra.mxu0 %v3476
        %4551 = vmatpush.msra.mxu0 %v3474
        %4552 = vmatpush.msra.mxu0 %v3472
        %4553 = vmatpush.msra.mxu0 %v3470
        %4554 = vmatpush.msra.mxu0 %v3468
        %4555 = vmatpush.msra.mxu0 %v3466
        %4556 = vmatpush.msra.mxu0 %v3464
        %4557 = vmatpush.msra.mxu0 %v3462
        %4558 = vmatmul.f32.gmra.mxu0 %v3552
        %v4559 = vpop.f32.mrf.mxu0
        %v4560 = vadd.f32 %v4540, %v4559
        %4561 = vdwg.mxu0
        %4562 = vmatpush.msra.mxu0 0.0
        %4563 = vmatpush.msra.mxu0 0.0
        %4564 = vmatpush.msra.mxu0 0.0
        %4565 = vmatpush.msra.mxu0 0.0
        %4566 = vmatpush.msra.mxu0 0.0
        %4567 = vmatpush.msra.mxu0 0.0
        %4568 = vmatpush.msra.mxu0 0.0
        %4569 = vmatpush.msra.mxu0 0.0
        %4570 = vmatpush.msra.mxu0 %v3508
        %4571 = vmatpush.msra.mxu0 %v3506
        %4572 = vmatpush.msra.mxu0 %v3504
        %4573 = vmatpush.msra.mxu0 %v3502
        %4574 = vmatpush.msra.mxu0 %v3500
        %4575 = vmatpush.msra.mxu0 %v3498
        %4576 = vmatpush.msra.mxu0 %v3496
        %4577 = vmatpush.msra.mxu0 %v3494
        %4578 = vmatmul.f32.gmra.mxu0 %v3580
        %v4579 = vpop.f32.mrf.mxu0
        %v4580 = vadd.f32 %v4560, %v4579
        %4581 = vdwg.mxu0
        %v4582 = vmax.f32 %v4080, 0.0
        %v4583 = vmax.f32 %v4580, 0.0
        %v4584 = vld [vmem:[#allocation2] sm:$0x3]
        %v4585 = vld [vmem:[%s2710] sm:$0xff]
        %v4586 = vld [vmem:[%s2710 + $0x8] sm:$0xff]
        %v4587 = vld [vmem:[%s2710 + $0x10] sm:$0xff]
        %v4588 = vld [vmem:[%s2710 + $0x18] sm:$0xff]
        %v4589 = vld [vmem:[%s2710 + $0x20] sm:$0xff]
        %v4590 = vld [vmem:[%s2710 + $0x28] sm:$0xff]
        %v4591 = vld [vmem:[%s2710 + $0x30] sm:$0xff]
        %v4592 = vld [vmem:[%s2710 + $0x38] sm:$0xff]
        %v4593 = vld [vmem:[%s2710 + $0x40] sm:$0xff]
        %v4594 = vld [vmem:[%s2710 + $0x48] sm:$0xff]
        %v4595 = vld [vmem:[%s2710 + $0x50] sm:$0xff]
        %v4596 = vld [vmem:[%s2710 + $0x58] sm:$0xff]
        %v4597 = vld [vmem:[%s2710 + $0x60] sm:$0xff]
        %v4598 = vld [vmem:[%s2710 + $0x68] sm:$0xff]
        %v4599 = vld [vmem:[%s2710 + $0x70] sm:$0xff]
        %v4600 = vld [vmem:[%s2710 + $0x78] sm:$0xff]
        %v4601 = vld [vmem:[%s2710 + $0x80] sm:$0xff]
        %v4602 = vld [vmem:[%s2710 + $0x88] sm:$0xff]
        %v4603 = vld [vmem:[%s2710 + $0x90] sm:$0xff]
        %v4604 = vld [vmem:[%s2710 + $0x98] sm:$0xff]
        %v4605 = vld [vmem:[%s2710 + $0xa0] sm:$0xff]
        %v4606 = vld [vmem:[%s2710 + $0xa8] sm:$0xff]
        %v4607 = vld [vmem:[%s2710 + $0xb0] sm:$0xff]
        %v4608 = vld [vmem:[%s2710 + $0xb8] sm:$0xff]
        %v4609 = vld [vmem:[%s2710 + $0xc0] sm:$0xff]
        %v4610 = vld [vmem:[%s2710 + $0xc8] sm:$0xff]
        %v4611 = vld [vmem:[%s2710 + $0xd0] sm:$0xff]
        %v4612 = vld [vmem:[%s2710 + $0xd8] sm:$0xff]
        %v4613 = vld [vmem:[%s2710 + $0xe0] sm:$0xff]
        %v4614 = vld [vmem:[%s2710 + $0xe8] sm:$0xff]
        %v4615 = vld [vmem:[%s2710 + $0xf0] sm:$0xff]
        %v4616 = vld [vmem:[%s2710 + $0xf8] sm:$0xff]
        %4617 = vmatpush.msra.mxu0 %v4600
        %4618 = vmatpush.msra.mxu0 %v4599
        %4619 = vmatpush.msra.mxu0 %v4598
        %4620 = vmatpush.msra.mxu0 %v4597
        %4621 = vmatpush.msra.mxu0 %v4596
        %4622 = vmatpush.msra.mxu0 %v4595
        %4623 = vmatpush.msra.mxu0 %v4594
        %4624 = vmatpush.msra.mxu0 %v4593
        %4625 = vmatpush.msra.mxu0 %v4592
        %4626 = vmatpush.msra.mxu0 %v4591
        %4627 = vmatpush.msra.mxu0 %v4590
        %4628 = vmatpush.msra.mxu0 %v4589
        %4629 = vmatpush.msra.mxu0 %v4588
        %4630 = vmatpush.msra.mxu0 %v4587
        %4631 = vmatpush.msra.mxu0 %v4586
        %4632 = vmatpush.msra.mxu0 %v4585
        %4633 = vmatmul.f32.gmra.mxu0 %v4582
        %v4634 = vpop.f32.mrf.mxu0
        %v4635 = vadd.f32 0.0, %v4634
        %4636 = vdwg.mxu0
        %4637 = vmatpush.msra.mxu0 %v4616
        %4638 = vmatpush.msra.mxu0 %v4615
        %4639 = vmatpush.msra.mxu0 %v4614
        %4640 = vmatpush.msra.mxu0 %v4613
        %4641 = vmatpush.msra.mxu0 %v4612
        %4642 = vmatpush.msra.mxu0 %v4611
        %4643 = vmatpush.msra.mxu0 %v4610
        %4644 = vmatpush.msra.mxu0 %v4609
        %4645 = vmatpush.msra.mxu0 %v4608
        %4646 = vmatpush.msra.mxu0 %v4607
        %4647 = vmatpush.msra.mxu0 %v4606
        %4648 = vmatpush.msra.mxu0 %v4605
        %4649 = vmatpush.msra.mxu0 %v4604
        %4650 = vmatpush.msra.mxu0 %v4603
        %4651 = vmatpush.msra.mxu0 %v4602
        %4652 = vmatpush.msra.mxu0 %v4601
        %4653 = vmatmul.f32.gmra.mxu0 %v4583
        %v4654 = vpop.f32.mrf.mxu0
        %v4655 = vadd.f32 %v4635, %v4654
        %4656 = vdwg.mxu0
        %v4657 = vadd.f32 %v4584, %v4655
        %vm4658 = vcmask 254976
        %4659 = vst.msk [vmem:[#allocation2] sm:$0x3] %vm4658, %v4657
        %p4660 = scmp.eq.s32.totalorder %s18, 3
        // Predicated region
        $region90: #{encoder_forward.5} parent=80 // pred_check
          %p4661 = pneg %p4660
        $region91: #{encoder_forward.5} parent=80 // pred_check_branch
          %4663 = sbr.rel (%p4661) target = $region93
        $region92: #{encoder_forward.5} parent=80 // pred_region
          %v4664 = vld [vmem:[#allocation2] sm:$0x3]
          %v4665 = vld [vmem:[%s4] sm:$0x1]
          %v4667 = vperm.slane %v4665, 0
          %v4669 = vadd.f32 %v4664, %v4667
          %v4670 = vmax.f32 %v4669, 0.0
          %v4671 = vld [vmem:[%s5] sm:$0xff]
          %v4672 = vld [vmem:[%s5 + $0x8] sm:$0xff]
          %v4673 = vld [vmem:[%s5 + $0x10] sm:$0xff]
          %v4674 = vld [vmem:[%s5 + $0x18] sm:$0xff]
          %v4675 = vld [vmem:[%s6] sm:$0x1]
          %v4677 = vperm.slane %v4675, 0
          %vm4679 = vcmask 261120
          %v4681 = vsel %vm4679, %v4670, 0
          %4683 = vmatpush.msra.mxu0 0.0
          %4684 = vmatpush.msra.mxu0 0.0
          %4685 = vmatpush.msra.mxu0 0.0
          %4686 = vmatpush.msra.mxu0 0.0
          %4687 = vmatpush.msra.mxu0 0.0
          %4688 = vmatpush.msra.mxu0 0.0
          %4689 = vmatpush.msra.mxu0 0.0
          %4690 = vmatpush.msra.mxu0 0.0
          %4691 = vmatpush.msra.mxu0 0.0
          %4692 = vmatpush.msra.mxu0 0.0
          %4693 = vmatpush.msra.mxu0 0.0
          %4694 = vmatpush.msra.mxu0 0.0
          %4695 = vmatpush.msra.mxu0 %v4674
          %4696 = vmatpush.msra.mxu0 %v4673
          %4697 = vmatpush.msra.mxu0 %v4672
          %4698 = vmatpush.msra.mxu0 %v4671
          %4699 = vmatmul.f32.gmra.mxu0 %v4681
          %v4700 = vpop.f32.mrf.mxu0
          %v4701 = vadd.f32 %v4677, %v4700
          %4702 = vdwg.mxu0
          %4703 = vst.msk [vmem:[%s7] sm:$0x3] %vm4658, %v4701
        $region93: #{encoder_forward.5} parent=80 // pred_fallthru
          _
        // Predicated region
        $region94: #{encoder_forward.5} parent=80 // pred_check
          %p4704 = pneg %p193
        $region95: #{encoder_forward.5} parent=80 // pred_check_branch
          %4706 = sbr.rel (%p4704) target = $region97
        $region96: #{encoder_forward.5} parent=80 // pred_region
          _
        $region97: #{encoder_forward.5} parent=80 // pred_fallthru
          _
        // Predicated region
        $region98: #{encoder_forward.5} parent=80 // pred_check
          %p4707 = pneg %p193
        $region99: #{encoder_forward.5} parent=80 // pred_check_branch
          %4709 = sbr.rel (%p4707) target = $region101
        $region100: #{encoder_forward.5} parent=80 // pred_region
          _
        $region101: #{encoder_forward.5} parent=80 // pred_fallthru
          _
      $region81: #{encoder_forward.5} parent=5 // pred_fallthru
        _
      %p4710 = scmp.le.s32.totalorder 2, %s13
      // Predicated region
      $region102: #{encoder_forward.5} parent=5 // pred_check
        %p4711 = pneg %p4710
      $region103: #{encoder_forward.5} parent=5 // pred_check_branch
        %4713 = sbr.rel (%p4711) target = $region105
      $region104: #{encoder_forward.5} parent=5 // pred_region
        %s4714 = ssub.s32 %s13, 2
      $region105: #{encoder_forward.5} parent=5 // pred_fallthru
        _
    $region6: #{encoder_forward.5} parent=1 // loop_footer
      %s17 = sadd.s32 1, %s13
    $region7: #{encoder_forward.5} parent=1 // loop_footer_branch
      %12 = sbr.rel target = $region3
    $region8: #{encoder_forward.5} parent=1 // loop_exit
      _

</llo_original>
